<compile_context>
chip_gen: v6e
topology: v6e:2x2x1
jax: 0.10.0
libtpu: 0.0.40
codegen_flags: <defaults>
</compile_context>

<pallas_src>
import functools

import jax
import jax.numpy as jnp
from jax.experimental import pallas as pl
from jax.experimental.pallas import tpu as pltpu

# ----------------------- scaled-down L1 configuration -----------------------
INPUT_SIZE = 64
EMBED_DIMS = (16, 32, 64, 128)
DEPTHS = (1, 1, 1, 2)
NUM_VIT = 1                       # last block of last stage is a ViT (attention) block
MLP_RATIO = 4
KEY_DIM = 16
NUM_HEADS = 4
ATTN_RATIO = 4
VAL_DIM = ATTN_RATIO * KEY_DIM
NUM_CLASSES = 10
LS_INIT = 1e-5                    # LayerScale init value (as in timm)
BN_EPS = 1e-5
LN_EPS = 1e-5
STAGE4_RES = INPUT_SIZE // 32     # spatial resolution seen by attention

_PAR1 = pltpu.CompilerParams(dimension_semantics=("parallel",))


# ------------------------------ in-kernel math ------------------------------
def _gelu(x):
    # tanh-approx GELU; tanh lives in the otherwise-idle EUP slot.
    c = 0.7978845608028654  # sqrt(2/pi)
    return 0.5 * x * (1.0 + jnp.tanh(c * (x + 0.044715 * x * x * x)))


def _ln(x, g, b):
    mu = jnp.mean(x, axis=-1, keepdims=True)
    xc = x - mu
    var = jnp.mean(xc * xc, axis=-1, keepdims=True)
    return xc * jax.lax.rsqrt(var + LN_EPS) * g + b


def _mxu_dot(a, w_bf16):
    return jnp.dot(a.astype(jnp.bfloat16), w_bf16, preferred_element_type=jnp.float32)


def _const_spec(shape):
    """BlockSpec for a weight that stays resident (same block for every grid step)."""
    return pl.BlockSpec(tuple(shape), lambda b, _nd=len(shape): (0,) * _nd)


# ------------------------------ Pallas kernels ------------------------------
def _conv_mm_kernel(act, x_ref, w_ref, b_ref, o_ref):
    """(tm,K)@(K,N) + bias, fused activation (stem / downsample conv-as-matmul)."""
    acc = _mxu_dot(x_ref[...], w_ref[...]) + b_ref[...]
    if act == "relu":
        acc = jnp.maximum(acc, 0.0)
    o_ref[...] = acc


def conv_matmul(patches, w, b, act):
    M, K = patches.shape
    N = w.shape[1]
    tm = M
    for cand in (1024, 512, 256, 128):        # big tiles: per-grid-step overhead amortised
        if M % cand == 0 and M > cand:
            tm = cand
            break
    return pl.pallas_call(
        functools.partial(_conv_mm_kernel, act),
        out_shape=jax.ShapeDtypeStruct((M, N), jnp.float32),
        grid=(M // tm,),
        in_specs=[
            pl.BlockSpec((tm, K), lambda i: (i, 0)),
            pl.BlockSpec((K, N), lambda i: (0, 0)),
            pl.BlockSpec((1, N), lambda i: (0, 0)),
        ],
        out_specs=pl.BlockSpec((tm, N), lambda i: (i, 0)),
        compiler_params=_PAR1,
    )(patches, w, b)


def _mb2d_kernel(x_ref, pool_ref, ls1_ref, w1_ref, b1_ref, w2_ref, b2_ref, o_ref):
    """Fused 2-D meta block: pool token-mixer + LayerScale + conv1x1 MLP + residuals."""
    x = x_ref[0]                                            # (HW, C) f32
    # 3x3 avg-pool (count_include_pad=False) as one MXU matmul against a resident
    # row-stochastic neighbourhood matrix; exact, no rolls / masks / lane broadcasts.
    pooled = jnp.dot(pool_ref[...], x, preferred_element_type=jnp.float32)
    t = x + ls1_ref[...] * (pooled - x)                     # x + ls1*(pool(x)-x)
    hid = _gelu(_mxu_dot(t, w1_ref[...]) + b1_ref[...])     # conv1x1+BN+GELU
    y = _mxu_dot(hid, w2_ref[...]) + b2_ref[...]            # conv1x1+BN, ls2 folded
    o_ref[0] = t + y


def meta_block_2d(x, pool_mat, blk):
    B, H, W, C = x.shape
    HW = H * W
    x2 = x.reshape(B, HW, C)
    in_arrays = [x2, pool_mat, blk["ls1"], blk["fc1"][0], blk["fc1"][1],
                 blk["fc2_ls"][0], blk["fc2_ls"][1]]
    in_specs = [pl.BlockSpec((1, HW, C), lambda b: (b, 0, 0))]
    in_specs += [_const_spec(a.shape) for a in in_arrays[1:]]
    out = pl.pallas_call(
        _mb2d_kernel,
        out_shape=jax.ShapeDtypeStruct((B, HW, C), jnp.float32),
        grid=(B,),
        in_specs=in_specs,
        out_specs=pl.BlockSpec((1, HW, C), lambda b: (b, 0, 0)),
        compiler_params=_PAR1,
    )(*in_arrays)
    return out.reshape(B, H, W, C)


def _mb1d_kernel(fuse_head, *refs):
    """Fused ViT block: LN -> QKV -> MHSA(+bias) -> proj+res -> LN -> MLP+res.
    When fuse_head, also: final LN -> token mean -> averaged classifier -> logits."""
    if fuse_head:
        (x_ref, g1_ref, be1_ref, wqkv_ref, bqkv_ref, bias_ref, wproj_ref, bproj_ref,
         g2_ref, be2_ref, w1_ref, b1_ref, w2_ref, b2_ref,
         ng_ref, nb_ref, hw_ref, hb_ref, o_ref) = refs
    else:
        (x_ref, g1_ref, be1_ref, wqkv_ref, bqkv_ref, bias_ref, wproj_ref, bproj_ref,
         g2_ref, be2_ref, w1_ref, b1_ref, w2_ref, b2_ref, o_ref) = refs

    x = x_ref[0]                                            # (N, C) f32
    xn = _ln(x, g1_ref[...], be1_ref[...])
    # attention scale is folded into the q columns of wqkv/bqkv at init
    qkv = _mxu_dot(xn, wqkv_ref[...]) + bqkv_ref[...]       # (N, nh*(2*kd+vd))
    wp = wproj_ref[...]                                     # (nh*vd, C) bf16, ls1 folded
    d0 = 2 * KEY_DIM + VAL_DIM
    y = jnp.zeros_like(x)
    for h in range(NUM_HEADS):                              # heads accumulate into proj,
        base = h * d0                                       # no lane-axis concat
        q = qkv[:, base:base + KEY_DIM]
        k = qkv[:, base + KEY_DIM:base + 2 * KEY_DIM]
        v = qkv[:, base + 2 * KEY_DIM:base + d0]
        s = jax.lax.dot_general(q, k, (((1,), (1,)), ((), ())),
                                preferred_element_type=jnp.float32)
        s = s + bias_ref[h]
        s = s - jnp.max(s, axis=-1, keepdims=True)
        p = jnp.exp(s)
        p = p * pl.reciprocal(jnp.sum(p, axis=-1, keepdims=True), approx=True)
        ho = jnp.dot(p, v, preferred_element_type=jnp.float32)
        y = y + jnp.dot(ho.astype(jnp.bfloat16), wp[h * VAL_DIM:(h + 1) * VAL_DIM, :],
                        preferred_element_type=jnp.float32)
    x = x + y + bproj_ref[...]                              # ls1 folded in proj
    xn2 = _ln(x, g2_ref[...], be2_ref[...])
    hid = _gelu(_mxu_dot(xn2, w1_ref[...]) + b1_ref[...])
    x = x + _mxu_dot(hid, w2_ref[...]) + b2_ref[...]        # ls2 folded in fc2

    if fuse_head:
        xf = _ln(x, ng_ref[...], nb_ref[...])               # final LayerNorm
        pooled = jnp.mean(xf, axis=0, keepdims=True)        # token mean (1, C)
        o_ref[0] = _mxu_dot(pooled, hw_ref[...]) + hb_ref[...]
    else:
        o_ref[0] = x


def meta_block_1d(x, blk, head=None):
    B, N, C = x.shape
    fuse = head is not None
    in_arrays = [x, blk["ln1"][0], blk["ln1"][1], blk["qkv"][0], blk["qkv"][1],
                 blk["attn_bias"], blk["proj_ls"][0], blk["proj_ls"][1],
                 blk["ln2"][0], blk["ln2"][1], blk["fc1"][0], blk["fc1"][1],
                 blk["fc2_ls"][0], blk["fc2_ls"][1]]
    if fuse:
        in_arrays += list(head)                             # norm_g, norm_b, head_w, head_b
        out_shape = jax.ShapeDtypeStruct((B, 1, NUM_CLASSES), jnp.float32)
        out_spec = pl.BlockSpec((1, 1, NUM_CLASSES), lambda b: (b, 0, 0))
    else:
        out_shape = jax.ShapeDtypeStruct((B, N, C), jnp.float32)
        out_spec = pl.BlockSpec((1, N, C), lambda b: (b, 0, 0))
    in_specs = [pl.BlockSpec((1, N, C), lambda b: (b, 0, 0))]
    in_specs += [_const_spec(a.shape) for a in in_arrays[1:]]
    out = pl.pallas_call(
        functools.partial(_mb1d_kernel, fuse),
        out_shape=out_shape,
        grid=(B,),
        in_specs=in_specs,
        out_specs=out_spec,
        compiler_params=_PAR1,
    )(*in_arrays)
    return out[:, 0, :] if fuse else out


# --------------------------- host-side glue ---------------------------------
def _pool_matrix(H, W):
    """Row-stochastic (HW,HW) matrix of the 3x3 avg-pool (count_include_pad=False)."""
    r = jnp.arange(H * W)
    i, j = r // W, r % W
    nb = ((jnp.abs(i[:, None] - i[None, :]) <= 1)
          & (jnp.abs(j[:, None] - j[None, :]) <= 1)).astype(jnp.float32)
    return nb / jnp.sum(nb, axis=1, keepdims=True)


def conv3x3_s2_bn(x, w, b, act="none"):
    """3x3 conv, stride 2, pad 1, BN folded into (w, b); matmul runs in Pallas."""
    # TODO(synk): at full 224x224 scale, gather the 9 taps in-kernel (manual DMA)
    #             instead of host im2col to cut stem HBM traffic.
    B, H, W, C = x.shape
    Ho, Wo = (H - 1) // 2 + 1, (W - 1) // 2 + 1
    xp = jnp.pad(x, ((0, 0), (1, 1), (1, 1), (0, 0)))
    cols = [xp[:, di:di + 2 * Ho - 1:2, dj:dj + 2 * Wo - 1:2, :]
            for di in range(3) for dj in range(3)]
    # bf16 patches: the MXU only ever sees bf16, so don't DMA f32.
    patches = jnp.stack(cols, axis=3).reshape(B * Ho * Wo, 9 * C).astype(jnp.bfloat16)
    out = conv_matmul(patches, w, b, act)
    return out.reshape(B, Ho, Wo, -1)


def attention_bias_idx(H, W):
    yy, xx = jnp.meshgrid(jnp.arange(H), jnp.arange(W), indexing="ij")
    pos = jnp.stack([yy.reshape(-1), xx.reshape(-1)])
    rel = jnp.abs(pos[:, :, None] - pos[:, None, :])
    return rel[0] * W + rel[1]


# ------------------------------ parameter init ------------------------------
class KeyGen:
    def __init__(self, seed):
        self.key = jax.random.PRNGKey(seed)

    def __call__(self):
        self.key, sub = jax.random.split(self.key)
        return sub


def _normal(kg, shape, scale=0.05):
    return scale * jax.random.normal(kg(), shape, dtype=jnp.float32)


def _bn_params(kg, c):
    gamma = 1.0 + 0.1 * jax.random.normal(kg(), (c,), dtype=jnp.float32)
    beta = 0.05 * jax.random.normal(kg(), (c,), dtype=jnp.float32)
    mean = 0.05 * jax.random.normal(kg(), (c,), dtype=jnp.float32)
    var = jax.random.uniform(kg(), (c,), dtype=jnp.float32, minval=0.5, maxval=1.5)
    return gamma, beta, mean, var


def _fold_bn(w, bconv, bn):
    gamma, beta, mean, var = bn
    s = gamma * jax.lax.rsqrt(var + BN_EPS)
    return w * s[None, :], (bconv - mean) * s + beta


def _to_mm(wb):
    """Store matmul weight in bf16 (MXU input), bias as (1, N) f32."""
    w, b = wb
    return w.astype(jnp.bfloat16), jnp.asarray(b, jnp.float32).reshape(1, -1)


def _conv_bn_raw(kg, k, cin, cout):
    w = _normal(kg, (k * k * cin, cout), scale=(k * k * cin) ** -0.5)
    bconv = _normal(kg, (cout,), scale=0.02)
    return _fold_bn(w, bconv, _bn_params(kg, cout))


def _conv_bn(kg, k, cin, cout):
    return _to_mm(_conv_bn_raw(kg, k, cin, cout))


def _linear(kg, cin, cout):
    return _normal(kg, (cin, cout), scale=cin ** -0.5), _normal(kg, (cout,), scale=0.02)


def init_params(seed=42):
    kg = KeyGen(seed)
    p = {}
    d0 = EMBED_DIMS[0]
    p["stem1"] = _conv_bn(kg, 3, 3, d0 // 2)
    p["stem2"] = _conv_bn(kg, 3, d0 // 2, d0)
    stages, prev = [], d0
    for si, (dim, depth) in enumerate(zip(EMBED_DIMS, DEPTHS)):
        st = {}
        res = INPUT_SIZE // (4 * (2 ** si))
        st["pool"] = _pool_matrix(res, res)                 # resident pooling matrix
        if si > 0:
            st["down"] = _conv_bn(kg, 3, prev, dim)
        num_vit = NUM_VIT if si == len(EMBED_DIMS) - 1 else 0
        hidden = dim * MLP_RATIO
        blocks = []
        for bi in range(depth):
            remain = depth - bi - 1
            if num_vit and num_vit > remain:
                blk = {"kind": "1d"}
                blk["ln1"] = (jnp.ones((1, dim), jnp.float32), jnp.zeros((1, dim), jnp.float32))
                # qkv linear with the attention scale folded into q columns (w AND bias)
                d_h = 2 * KEY_DIM + VAL_DIM
                wq, bq = _linear(kg, dim, NUM_HEADS * d_h)
                qcols = (jnp.arange(NUM_HEADS * d_h) % d_h) < KEY_DIM
                col_s = jnp.where(qcols, KEY_DIM ** -0.5, 1.0).astype(jnp.float32)
                blk["qkv"] = _to_mm((wq * col_s[None, :], bq * col_s))
                pw, pb = _linear(kg, NUM_HEADS * VAL_DIM, dim)
                ls1 = jnp.full((dim,), LS_INIT, jnp.float32)
                blk["proj_ls"] = _to_mm((pw * ls1[None, :], pb * ls1))      # LayerScale folded
                # relative-position attention bias, pre-gathered to (nh, N, N) at init
                idx = attention_bias_idx(res, res)
                ab = _normal(kg, (NUM_HEADS, res * res), scale=0.02)
                blk["attn_bias"] = ab[:, idx]
                blk["ln2"] = (jnp.ones((1, dim), jnp.float32), jnp.zeros((1, dim), jnp.float32))
                blk["fc1"] = _to_mm(_linear(kg, dim, hidden))
                f2w, f2b = _linear(kg, hidden, dim)
                ls2 = jnp.full((dim,), LS_INIT, jnp.float32)
                blk["fc2_ls"] = _to_mm((f2w * ls2[None, :], f2b * ls2))
            else:
                blk = {"kind": "2d"}
                blk["ls1"] = jnp.full((1, dim), LS_INIT, jnp.float32)
                blk["fc1"] = _conv_bn(kg, 1, dim, hidden)                   # 1x1 conv + BN folded
                f2w, f2b = _conv_bn_raw(kg, 1, hidden, dim)
                ls2 = jnp.full((dim,), LS_INIT, jnp.float32)
                blk["fc2_ls"] = _to_mm((f2w * ls2[None, :], f2b * ls2))
            blocks.append(blk)
        st["blocks"] = blocks
        stages.append(st)
        prev = dim
    p["stages"] = stages
    p["norm"] = (jnp.ones((1, EMBED_DIMS[-1]), jnp.float32),
                 jnp.zeros((1, EMBED_DIMS[-1]), jnp.float32))
    hw_, hb = _linear(kg, EMBED_DIMS[-1], NUM_CLASSES)
    hdw, hdb = _linear(kg, EMBED_DIMS[-1], NUM_CLASSES)
    # eval-mode distilled head: (head(x) + head_dist(x)) / 2  ->  single averaged linear
    p["head"] = _to_mm(((hw_ + hdw) * 0.5, (hb + hdb) * 0.5))
    return p


# --------------------------------- forward ----------------------------------
def efficientformer_forward(params, x_nchw):
    x = jnp.transpose(x_nchw, (0, 2, 3, 1)).astype(jnp.float32)          # NCHW -> NHWC
    x = conv3x3_s2_bn(x, *params["stem1"], act="relu")                   # Stem4
    x = conv3x3_s2_bn(x, *params["stem2"], act="relu")
    flat = False
    n_stages = len(params["stages"])
    head = (params["norm"][0], params["norm"][1], params["head"][0], params["head"][1])
    for si, st in enumerate(params["stages"]):
        if "down" in st:
            x = conv3x3_s2_bn(x, *st["down"], act="none")                # Downsample conv+BN
        blocks = st["blocks"]
        for bi, blk in enumerate(blocks):
            is_last = (si == n_stages - 1) and (bi == len(blocks) - 1)
            if blk["kind"] == "2d":
                assert not is_last, "head fusion expects the final block to be a ViT block"
                x = meta_block_2d(x, st["pool"], blk)
            else:
                if not flat:                                             # Flat(): B,C,H,W -> B,N,C
                    B, H, W, C = x.shape
                    x = x.reshape(B, H * W, C)
                    flat = True
                # last ViT block has final LN + token mean + averaged classifier fused in
                x = meta_block_1d(x, blk, head if is_last else None)
    return x                                                             # (B, NUM_CLASSES)


# ----------------------------------- main ------------------------------------
if __name__ == "__main__":
    params = init_params(seed=42)
    x = jax.random.normal(jax.random.PRNGKey(0), (2, 3, INPUT_SIZE, INPUT_SIZE),
                          dtype=jnp.float32)
    fwd = jax.jit(lambda inp: efficientformer_forward(params, inp))
    out = fwd(x)
    jax.block_until_ready(out)
    assert out.shape == (2, NUM_CLASSES) and out.dtype == jnp.float32
    print("KERNEL_OK")
</pallas_src>

<mosaic_0001>
module attributes {stable_mosaic.version = 11 : i64} {
  func.func @_conv_mm_kernel(%arg0: i32, %arg1: memref<1024x27xbf16, #tpu.memory_space<vmem>>, %arg2: memref<27x8xbf16, #tpu.memory_space<vmem>>, %arg3: memref<1x8xf32, #tpu.memory_space<vmem>>, %arg4: memref<1024x8xf32, #tpu.memory_space<vmem>>) attributes {dimension_semantics = [#tpu.dimension_semantics<parallel>], iteration_bounds = array<i64: 2>, scalar_prefetch = 0 : i64, scratch_operands = 0 : i64, tpu.core_type = #tpu.core_type<tc>, window_params = [{transform_indices = @transform_0, window_bounds = array<i64: 1024, 27>}, {pipeline_mode = #tpu.pipeline_mode<synchronous>, transform_indices = @transform_1, window_bounds = array<i64: 27, 8>}, {pipeline_mode = #tpu.pipeline_mode<synchronous>, transform_indices = @transform_2, window_bounds = array<i64: 1, 8>}, {transform_indices = @transform_3, window_bounds = array<i64: 1024, 8>}]} {
    %c0 = arith.constant 0 : index
    %c0_0 = arith.constant 0 : index
    %0 = vector.load %arg1[%c0, %c0_0] : memref<1024x27xbf16, #tpu.memory_space<vmem>>, vector<1024x27xbf16>
    %c0_1 = arith.constant 0 : index
    %c0_2 = arith.constant 0 : index
    %1 = vector.load %arg2[%c0_1, %c0_2] : memref<27x8xbf16, #tpu.memory_space<vmem>>, vector<27x8xbf16>
    %cst = arith.constant dense<0.000000e+00> : vector<1024x8xf32>
    %2 = tpu.matmul %0, %1, %cst {dimension_numbers = #tpu.dot_dimension_numbers<[1], [0], [0], [1], [0, 0, 1, 1], [], []>} : vector<1024x27xbf16>, vector<27x8xbf16>, vector<1024x8xf32> -> vector<1024x8xf32>
    %c0_3 = arith.constant 0 : index
    %c0_4 = arith.constant 0 : index
    %3 = vector.load %arg3[%c0_3, %c0_4] : memref<1x8xf32, #tpu.memory_space<vmem>>, vector<1x8xf32>
    %4 = vector.broadcast %3 : vector<1x8xf32> to vector<1024x8xf32>
    %5 = arith.addf %2, %4 : vector<1024x8xf32>
    %cst_5 = arith.constant 0.000000e+00 : f32
    %6 = vector.broadcast %cst_5 : f32 to vector<1024x8xf32>
    %7 = arith.maximumf %5, %6 : vector<1024x8xf32>
    %c0_6 = arith.constant 0 : index
    %c0_7 = arith.constant 0 : index
    %8 = vector.load %arg4[%c0_6, %c0_7] : memref<1024x8xf32, #tpu.memory_space<vmem>>, vector<1024x8xf32>
    tpu.vector_store %arg4[%c0_6, %c0_7], %7 {strides = array<i32>} : memref<1024x8xf32, #tpu.memory_space<vmem>>, vector<1024x8xf32>,
    return
  }
  func.func @transform_0(%arg0: i32) -> (i32, i32) {
    %c0_i32 = arith.constant 0 : i32
    %c0_i32_0 = arith.constant 0 : i32
    return %arg0, %c0_i32 : i32, i32
  }
  func.func @transform_1(%arg0: i32) -> (i32, i32) {
    %c0_i32 = arith.constant 0 : i32
    %c0_i32_0 = arith.constant 0 : i32
    %c0_i32_1 = arith.constant 0 : i32
    return %c0_i32, %c0_i32_0 : i32, i32
  }
  func.func @transform_2(%arg0: i32) -> (i32, i32) {
    %c0_i32 = arith.constant 0 : i32
    %c0_i32_0 = arith.constant 0 : i32
    %c0_i32_1 = arith.constant 0 : i32
    return %c0_i32, %c0_i32_0 : i32, i32
  }
  func.func @transform_3(%arg0: i32) -> (i32, i32) {
    %c0_i32 = arith.constant 0 : i32
    %c0_i32_0 = arith.constant 0 : i32
    return %arg0, %c0_i32 : i32, i32
  }
}

module attributes {stable_mosaic.version = 11 : i64} {
  func.func @_conv_mm_kernel(%arg0: i32, %arg1: memref<256x72xbf16, #tpu.memory_space<vmem>>, %arg2: memref<72x16xbf16, #tpu.memory_space<vmem>>, %arg3: memref<1x16xf32, #tpu.memory_space<vmem>>, %arg4: memref<256x16xf32, #tpu.memory_space<vmem>>) attributes {dimension_semantics = [#tpu.dimension_semantics<parallel>], iteration_bounds = array<i64: 2>, scalar_prefetch = 0 : i64, scratch_operands = 0 : i64, tpu.core_type = #tpu.core_type<tc>, window_params = [{transform_indices = @transform_0, window_bounds = array<i64: 256, 72>}, {pipeline_mode = #tpu.pipeline_mode<synchronous>, transform_indices = @transform_1, window_bounds = array<i64: 72, 16>}, {pipeline_mode = #tpu.pipeline_mode<synchronous>, transform_indices = @transform_2, window_bounds = array<i64: 1, 16>}, {transform_indices = @transform_3, window_bounds = array<i64: 256, 16>}]} {
    %c0 = arith.constant 0 : index
    %c0_0 = arith.constant 0 : index
    %0 = vector.load %arg1[%c0, %c0_0] : memref<256x72xbf16, #tpu.memory_space<vmem>>, vector<256x72xbf16>
    %c0_1 = arith.constant 0 : index
    %c0_2 = arith.constant 0 : index
    %1 = vector.load %arg2[%c0_1, %c0_2] : memref<72x16xbf16, #tpu.memory_space<vmem>>, vector<72x16xbf16>
    %cst = arith.constant dense<0.000000e+00> : vector<256x16xf32>
    %2 = tpu.matmul %0, %1, %cst {dimension_numbers = #tpu.dot_dimension_numbers<[1], [0], [0], [1], [0, 0, 1, 1], [], []>} : vector<256x72xbf16>, vector<72x16xbf16>, vector<256x16xf32> -> vector<256x16xf32>
    %c0_3 = arith.constant 0 : index
    %c0_4 = arith.constant 0 : index
    %3 = vector.load %arg3[%c0_3, %c0_4] : memref<1x16xf32, #tpu.memory_space<vmem>>, vector<1x16xf32>
    %4 = vector.broadcast %3 : vector<1x16xf32> to vector<256x16xf32>
    %5 = arith.addf %2, %4 : vector<256x16xf32>
    %cst_5 = arith.constant 0.000000e+00 : f32
    %6 = vector.broadcast %cst_5 : f32 to vector<256x16xf32>
    %7 = arith.maximumf %5, %6 : vector<256x16xf32>
    %c0_6 = arith.constant 0 : index
    %c0_7 = arith.constant 0 : index
    %8 = vector.load %arg4[%c0_6, %c0_7] : memref<256x16xf32, #tpu.memory_space<vmem>>, vector<256x16xf32>
    tpu.vector_store %arg4[%c0_6, %c0_7], %7 {strides = array<i32>} : memref<256x16xf32, #tpu.memory_space<vmem>>, vector<256x16xf32>,
    return
  }
  func.func @transform_0(%arg0: i32) -> (i32, i32) {
    %c0_i32 = arith.constant 0 : i32
    %c0_i32_0 = arith.constant 0 : i32
    return %arg0, %c0_i32 : i32, i32
  }
  func.func @transform_1(%arg0: i32) -> (i32, i32) {
    %c0_i32 = arith.constant 0 : i32
    %c0_i32_0 = arith.constant 0 : i32
    %c0_i32_1 = arith.constant 0 : i32
    return %c0_i32, %c0_i32_0 : i32, i32
  }
  func.func @transform_2(%arg0: i32) -> (i32, i32) {
    %c0_i32 = arith.constant 0 : i32
    %c0_i32_0 = arith.constant 0 : i32
    %c0_i32_1 = arith.constant 0 : i32
    return %c0_i32, %c0_i32_0 : i32, i32
  }
  func.func @transform_3(%arg0: i32) -> (i32, i32) {
    %c0_i32 = arith.constant 0 : i32
    %c0_i32_0 = arith.constant 0 : i32
    return %arg0, %c0_i32 : i32, i32
  }
}

module attributes {stable_mosaic.version = 11 : i64} {
  func.func @_mb2d_kernel(%arg0: i32, %arg1: memref<1x256x16xf32, #tpu.memory_space<vmem>>, %arg2: memref<256x256xf32, #tpu.memory_space<vmem>>, %arg3: memref<1x16xf32, #tpu.memory_space<vmem>>, %arg4: memref<16x64xbf16, #tpu.memory_space<vmem>>, %arg5: memref<1x64xf32, #tpu.memory_space<vmem>>, %arg6: memref<64x16xbf16, #tpu.memory_space<vmem>>, %arg7: memref<1x16xf32, #tpu.memory_space<vmem>>, %arg8: memref<1x256x16xf32, #tpu.memory_space<vmem>>) attributes {dimension_semantics = [#tpu.dimension_semantics<parallel>], iteration_bounds = array<i64: 2>, scalar_prefetch = 0 : i64, scratch_operands = 0 : i64, tpu.core_type = #tpu.core_type<tc>, window_params = [{transform_indices = @transform_0, window_bounds = array<i64: 1, 256, 16>}, {pipeline_mode = #tpu.pipeline_mode<synchronous>, transform_indices = @transform_1, window_bounds = array<i64: 256, 256>}, {pipeline_mode = #tpu.pipeline_mode<synchronous>, transform_indices = @transform_2, window_bounds = array<i64: 1, 16>}, {pipeline_mode = #tpu.pipeline_mode<synchronous>, transform_indices = @transform_3, window_bounds = array<i64: 16, 64>}, {pipeline_mode = #tpu.pipeline_mode<synchronous>, transform_indices = @transform_4, window_bounds = array<i64: 1, 64>}, {pipeline_mode = #tpu.pipeline_mode<synchronous>, transform_indices = @transform_5, window_bounds = array<i64: 64, 16>}, {pipeline_mode = #tpu.pipeline_mode<synchronous>, transform_indices = @transform_6, window_bounds = array<i64: 1, 16>}, {transform_indices = @transform_7, window_bounds = array<i64: 1, 256, 16>}]} {
    %c0 = arith.constant 0 : index
    %c0_0 = arith.constant 0 : index
    %c0_1 = arith.constant 0 : index
    %0 = vector.load %arg1[%c0, %c0_0, %c0_1] : memref<1x256x16xf32, #tpu.memory_space<vmem>>, vector<1x256x16xf32>
    %1 = vector.shape_cast %0 : vector<1x256x16xf32> to vector<256x16xf32>
    %c0_2 = arith.constant 0 : index
    %c0_3 = arith.constant 0 : index
    %2 = vector.load %arg2[%c0_2, %c0_3] : memref<256x256xf32, #tpu.memory_space<vmem>>, vector<256x256xf32>
    %cst = arith.constant dense<0.000000e+00> : vector<256x16xf32>
    %3 = tpu.matmul %2, %1, %cst {dimension_numbers = #tpu.dot_dimension_numbers<[1], [0], [0], [1], [0, 0, 1, 1], [], []>} : vector<256x256xf32>, vector<256x16xf32>, vector<256x16xf32> -> vector<256x16xf32>
    %c0_4 = arith.constant 0 : index
    %c0_5 = arith.constant 0 : index
    %4 = vector.load %arg3[%c0_4, %c0_5] : memref<1x16xf32, #tpu.memory_space<vmem>>, vector<1x16xf32>
    %5 = arith.subf %3, %1 : vector<256x16xf32>
    %6 = vector.broadcast %4 : vector<1x16xf32> to vector<256x16xf32>
    %7 = arith.mulf %6, %5 : vector<256x16xf32>
    %8 = arith.addf %1, %7 : vector<256x16xf32>
    %c0_6 = arith.constant 0 : index
    %c0_7 = arith.constant 0 : index
    %9 = vector.load %arg4[%c0_6, %c0_7] : memref<16x64xbf16, #tpu.memory_space<vmem>>, vector<16x64xbf16>
    %10 = arith.truncf %8 : vector<256x16xf32> to vector<256x16xbf16>
    %cst_8 = arith.constant dense<0.000000e+00> : vector<256x64xf32>
    %11 = tpu.matmul %10, %9, %cst_8 {dimension_numbers = #tpu.dot_dimension_numbers<[1], [0], [0], [1], [0, 0, 1, 1], [], []>} : vector<256x16xbf16>, vector<16x64xbf16>, vector<256x64xf32> -> vector<256x64xf32>
    %c0_9 = arith.constant 0 : index
    %c0_10 = arith.constant 0 : index
    %12 = vector.load %arg5[%c0_9, %c0_10] : memref<1x64xf32, #tpu.memory_space<vmem>>, vector<1x64xf32>
    %13 = vector.broadcast %12 : vector<1x64xf32> to vector<256x64xf32>
    %14 = arith.addf %11, %13 : vector<256x64xf32>
    %cst_11 = arith.constant 5.000000e-01 : f32
    %15 = vector.broadcast %cst_11 : f32 to vector<256x64xf32>
    %16 = arith.mulf %15, %14 : vector<256x64xf32>
    %cst_12 = arith.constant 4.471500e-02 : f32
    %17 = vector.broadcast %cst_12 : f32 to vector<256x64xf32>
    %18 = arith.mulf %17, %14 : vector<256x64xf32>
    %19 = arith.mulf %18, %14 : vector<256x64xf32>
    %20 = arith.mulf %19, %14 : vector<256x64xf32>
    %21 = arith.addf %14, %20 : vector<256x64xf32>
    %cst_13 = arith.constant 0.797884583 : f32
    %22 = vector.broadcast %cst_13 : f32 to vector<256x64xf32>
    %23 = arith.mulf %22, %21 : vector<256x64xf32>
    %24 = math.tanh %23 : vector<256x64xf32>
    %cst_14 = arith.constant 1.000000e+00 : f32
    %25 = vector.broadcast %cst_14 : f32 to vector<256x64xf32>
    %26 = arith.addf %25, %24 : vector<256x64xf32>
    %27 = arith.mulf %16, %26 : vector<256x64xf32>
    %c0_15 = arith.constant 0 : index
    %c0_16 = arith.constant 0 : index
    %28 = vector.load %arg6[%c0_15, %c0_16] : memref<64x16xbf16, #tpu.memory_space<vmem>>, vector<64x16xbf16>
    %29 = arith.truncf %27 : vector<256x64xf32> to vector<256x64xbf16>
    %cst_17 = arith.constant dense<0.000000e+00> : vector<256x16xf32>
    %30 = tpu.matmul %29, %28, %cst_17 {dimension_numbers = #tpu.dot_dimension_numbers<[1], [0], [0], [1], [0, 0, 1, 1], [], []>} : vector<256x64xbf16>, vector<64x16xbf16>, vector<256x16xf32> -> vector<256x16xf32>
    %c0_18 = arith.constant 0 : index
    %c0_19 = arith.constant 0 : index
    %31 = vector.load %arg7[%c0_18, %c0_19] : memref<1x16xf32, #tpu.memory_space<vmem>>, vector<1x16xf32>
    %32 = vector.broadcast %31 : vector<1x16xf32> to vector<256x16xf32>
    %33 = arith.addf %30, %32 : vector<256x16xf32>
    %34 = arith.addf %8, %33 : vector<256x16xf32>
    %c0_20 = arith.constant 0 : index
    %c0_21 = arith.constant 0 : index
    %c0_22 = arith.constant 0 : index
    %35 = vector.load %arg8[%c0_20, %c0_21, %c0_22] : memref<1x256x16xf32, #tpu.memory_space<vmem>>, vector<1x256x16xf32>
    %36 = vector.shape_cast %35 : vector<1x256x16xf32> to vector<256x16xf32>
    %37 = vector.shape_cast %34 : vector<256x16xf32> to vector<1x256x16xf32>
    tpu.vector_store %arg8[%c0_20, %c0_21, %c0_22], %37 {strides = array<i32>} : memref<1x256x16xf32, #tpu.memory_space<vmem>>, vector<1x256x16xf32>,
    return
  }
  func.func @transform_0(%arg0: i32) -> (i32, i32, i32) {
    %c0_i32 = arith.constant 0 : i32
    %c0_i32_0 = arith.constant 0 : i32
    %c0_i32_1 = arith.constant 0 : i32
    return %arg0, %c0_i32, %c0_i32_0 : i32, i32, i32
  }
  func.func @transform_1(%arg0: i32) -> (i32, i32) {
    %c0_i32 = arith.constant 0 : i32
    %c0_i32_0 = arith.constant 0 : i32
    %c0_i32_1 = arith.constant 0 : i32
    return %c0_i32, %c0_i32_0 : i32, i32
  }
  func.func @transform_2(%arg0: i32) -> (i32, i32) {
    %c0_i32 = arith.constant 0 : i32
    %c0_i32_0 = arith.constant 0 : i32
    %c0_i32_1 = arith.constant 0 : i32
    return %c0_i32, %c0_i32_0 : i32, i32
  }
  func.func @transform_3(%arg0: i32) -> (i32, i32) {
    %c0_i32 = arith.constant 0 : i32
    %c0_i32_0 = arith.constant 0 : i32
    %c0_i32_1 = arith.constant 0 : i32
    return %c0_i32, %c0_i32_0 : i32, i32
  }
  func.func @transform_4(%arg0: i32) -> (i32, i32) {
    %c0_i32 = arith.constant 0 : i32
    %c0_i32_0 = arith.constant 0 : i32
    %c0_i32_1 = arith.constant 0 : i32
    return %c0_i32, %c0_i32_0 : i32, i32
  }
  func.func @transform_5(%arg0: i32) -> (i32, i32) {
    %c0_i32 = arith.constant 0 : i32
    %c0_i32_0 = arith.constant 0 : i32
    %c0_i32_1 = arith.constant 0 : i32
    return %c0_i32, %c0_i32_0 : i32, i32
  }
  func.func @transform_6(%arg0: i32) -> (i32, i32) {
    %c0_i32 = arith.constant 0 : i32
    %c0_i32_0 = arith.constant 0 : i32
    %c0_i32_1 = arith.constant 0 : i32
    return %c0_i32, %c0_i32_0 : i32, i32
  }
  func.func @transform_7(%arg0: i32) -> (i32, i32, i32) {
    %c0_i32 = arith.constant 0 : i32
    %c0_i32_0 = arith.constant 0 : i32
    %c0_i32_1 = arith.constant 0 : i32
    return %arg0, %c0_i32, %c0_i32_0 : i32, i32, i32
  }
}

module attributes {stable_mosaic.version = 11 : i64} {
  func.func @_conv_mm_kernel(%arg0: i32, %arg1: memref<128x144xbf16, #tpu.memory_space<vmem>>, %arg2: memref<144x32xbf16, #tpu.memory_space<vmem>>, %arg3: memref<1x32xf32, #tpu.memory_space<vmem>>, %arg4: memref<128x32xf32, #tpu.memory_space<vmem>>) attributes {dimension_semantics = [#tpu.dimension_semantics<parallel>], iteration_bounds = array<i64: 1>, scalar_prefetch = 0 : i64, scratch_operands = 0 : i64, tpu.core_type = #tpu.core_type<tc>, window_params = [{transform_indices = @transform_0, window_bounds = array<i64: 128, 144>}, {pipeline_mode = #tpu.pipeline_mode<synchronous>, transform_indices = @transform_1, window_bounds = array<i64: 144, 32>}, {pipeline_mode = #tpu.pipeline_mode<synchronous>, transform_indices = @transform_2, window_bounds = array<i64: 1, 32>}, {transform_indices = @transform_3, window_bounds = array<i64: 128, 32>}]} {
    %c0 = arith.constant 0 : index
    %c0_0 = arith.constant 0 : index
    %0 = vector.load %arg1[%c0, %c0_0] : memref<128x144xbf16, #tpu.memory_space<vmem>>, vector<128x144xbf16>
    %c0_1 = arith.constant 0 : index
    %c0_2 = arith.constant 0 : index
    %1 = vector.load %arg2[%c0_1, %c0_2] : memref<144x32xbf16, #tpu.memory_space<vmem>>, vector<144x32xbf16>
    %cst = arith.constant dense<0.000000e+00> : vector<128x32xf32>
    %2 = tpu.matmul %0, %1, %cst {dimension_numbers = #tpu.dot_dimension_numbers<[1], [0], [0], [1], [0, 0, 1, 1], [], []>} : vector<128x144xbf16>, vector<144x32xbf16>, vector<128x32xf32> -> vector<128x32xf32>
    %c0_3 = arith.constant 0 : index
    %c0_4 = arith.constant 0 : index
    %3 = vector.load %arg3[%c0_3, %c0_4] : memref<1x32xf32, #tpu.memory_space<vmem>>, vector<1x32xf32>
    %4 = vector.broadcast %3 : vector<1x32xf32> to vector<128x32xf32>
    %5 = arith.addf %2, %4 : vector<128x32xf32>
    %c0_5 = arith.constant 0 : index
    %c0_6 = arith.constant 0 : index
    %6 = vector.load %arg4[%c0_5, %c0_6] : memref<128x32xf32, #tpu.memory_space<vmem>>, vector<128x32xf32>
    tpu.vector_store %arg4[%c0_5, %c0_6], %5 {strides = array<i32>} : memref<128x32xf32, #tpu.memory_space<vmem>>, vector<128x32xf32>,
    return
  }
  func.func @transform_0(%arg0: i32) -> (i32, i32) {
    %c0_i32 = arith.constant 0 : i32
    %c0_i32_0 = arith.constant 0 : i32
    return %arg0, %c0_i32 : i32, i32
  }
  func.func @transform_1(%arg0: i32) -> (i32, i32) {
    %c0_i32 = arith.constant 0 : i32
    %c0_i32_0 = arith.constant 0 : i32
    %c0_i32_1 = arith.constant 0 : i32
    return %c0_i32, %c0_i32_0 : i32, i32
  }
  func.func @transform_2(%arg0: i32) -> (i32, i32) {
    %c0_i32 = arith.constant 0 : i32
    %c0_i32_0 = arith.constant 0 : i32
    %c0_i32_1 = arith.constant 0 : i32
    return %c0_i32, %c0_i32_0 : i32, i32
  }
  func.func @transform_3(%arg0: i32) -> (i32, i32) {
    %c0_i32 = arith.constant 0 : i32
    %c0_i32_0 = arith.constant 0 : i32
    return %arg0, %c0_i32 : i32, i32
  }
}

module attributes {stable_mosaic.version = 11 : i64} {
  func.func @_mb2d_kernel(%arg0: i32, %arg1: memref<1x64x32xf32, #tpu.memory_space<vmem>>, %arg2: memref<64x64xf32, #tpu.memory_space<vmem>>, %arg3: memref<1x32xf32, #tpu.memory_space<vmem>>, %arg4: memref<32x128xbf16, #tpu.memory_space<vmem>>, %arg5: memref<1x128xf32, #tpu.memory_space<vmem>>, %arg6: memref<128x32xbf16, #tpu.memory_space<vmem>>, %arg7: memref<1x32xf32, #tpu.memory_space<vmem>>, %arg8: memref<1x64x32xf32, #tpu.memory_space<vmem>>) attributes {dimension_semantics = [#tpu.dimension_semantics<parallel>], iteration_bounds = array<i64: 2>, scalar_prefetch = 0 : i64, scratch_operands = 0 : i64, tpu.core_type = #tpu.core_type<tc>, window_params = [{transform_indices = @transform_0, window_bounds = array<i64: 1, 64, 32>}, {pipeline_mode = #tpu.pipeline_mode<synchronous>, transform_indices = @transform_1, window_bounds = array<i64: 64, 64>}, {pipeline_mode = #tpu.pipeline_mode<synchronous>, transform_indices = @transform_2, window_bounds = array<i64: 1, 32>}, {pipeline_mode = #tpu.pipeline_mode<synchronous>, transform_indices = @transform_3, window_bounds = array<i64: 32, 128>}, {pipeline_mode = #tpu.pipeline_mode<synchronous>, transform_indices = @transform_4, window_bounds = array<i64: 1, 128>}, {pipeline_mode = #tpu.pipeline_mode<synchronous>, transform_indices = @transform_5, window_bounds = array<i64: 128, 32>}, {pipeline_mode = #tpu.pipeline_mode<synchronous>, transform_indices = @transform_6, window_bounds = array<i64: 1, 32>}, {transform_indices = @transform_7, window_bounds = array<i64: 1, 64, 32>}]} {
    %c0 = arith.constant 0 : index
    %c0_0 = arith.constant 0 : index
    %c0_1 = arith.constant 0 : index
    %0 = vector.load %arg1[%c0, %c0_0, %c0_1] : memref<1x64x32xf32, #tpu.memory_space<vmem>>, vector<1x64x32xf32>
    %1 = vector.shape_cast %0 : vector<1x64x32xf32> to vector<64x32xf32>
    %c0_2 = arith.constant 0 : index
    %c0_3 = arith.constant 0 : index
    %2 = vector.load %arg2[%c0_2, %c0_3] : memref<64x64xf32, #tpu.memory_space<vmem>>, vector<64x64xf32>
    %cst = arith.constant dense<0.000000e+00> : vector<64x32xf32>
    %3 = tpu.matmul %2, %1, %cst {dimension_numbers = #tpu.dot_dimension_numbers<[1], [0], [0], [1], [0, 0, 1, 1], [], []>} : vector<64x64xf32>, vector<64x32xf32>, vector<64x32xf32> -> vector<64x32xf32>
    %c0_4 = arith.constant 0 : index
    %c0_5 = arith.constant 0 : index
    %4 = vector.load %arg3[%c0_4, %c0_5] : memref<1x32xf32, #tpu.memory_space<vmem>>, vector<1x32xf32>
    %5 = arith.subf %3, %1 : vector<64x32xf32>
    %6 = vector.broadcast %4 : vector<1x32xf32> to vector<64x32xf32>
    %7 = arith.mulf %6, %5 : vector<64x32xf32>
    %8 = arith.addf %1, %7 : vector<64x32xf32>
    %c0_6 = arith.constant 0 : index
    %c0_7 = arith.constant 0 : index
    %9 = vector.load %arg4[%c0_6, %c0_7] : memref<32x128xbf16, #tpu.memory_space<vmem>>, vector<32x128xbf16>
    %10 = arith.truncf %8 : vector<64x32xf32> to vector<64x32xbf16>
    %cst_8 = arith.constant dense<0.000000e+00> : vector<64x128xf32>
    %11 = tpu.matmul %10, %9, %cst_8 {dimension_numbers = #tpu.dot_dimension_numbers<[1], [0], [0], [1], [0, 0, 1, 1], [], []>} : vector<64x32xbf16>, vector<32x128xbf16>, vector<64x128xf32> -> vector<64x128xf32>
    %c0_9 = arith.constant 0 : index
    %c0_10 = arith.constant 0 : index
    %12 = vector.load %arg5[%c0_9, %c0_10] : memref<1x128xf32, #tpu.memory_space<vmem>>, vector<1x128xf32>
    %13 = vector.broadcast %12 : vector<1x128xf32> to vector<64x128xf32>
    %14 = arith.addf %11, %13 : vector<64x128xf32>
    %cst_11 = arith.constant 5.000000e-01 : f32
    %15 = vector.broadcast %cst_11 : f32 to vector<64x128xf32>
    %16 = arith.mulf %15, %14 : vector<64x128xf32>
    %cst_12 = arith.constant 4.471500e-02 : f32
    %17 = vector.broadcast %cst_12 : f32 to vector<64x128xf32>
    %18 = arith.mulf %17, %14 : vector<64x128xf32>
    %19 = arith.mulf %18, %14 : vector<64x128xf32>
    %20 = arith.mulf %19, %14 : vector<64x128xf32>
    %21 = arith.addf %14, %20 : vector<64x128xf32>
    %cst_13 = arith.constant 0.797884583 : f32
    %22 = vector.broadcast %cst_13 : f32 to vector<64x128xf32>
    %23 = arith.mulf %22, %21 : vector<64x128xf32>
    %24 = math.tanh %23 : vector<64x128xf32>
    %cst_14 = arith.constant 1.000000e+00 : f32
    %25 = vector.broadcast %cst_14 : f32 to vector<64x128xf32>
    %26 = arith.addf %25, %24 : vector<64x128xf32>
    %27 = arith.mulf %16, %26 : vector<64x128xf32>
    %c0_15 = arith.constant 0 : index
    %c0_16 = arith.constant 0 : index
    %28 = vector.load %arg6[%c0_15, %c0_16] : memref<128x32xbf16, #tpu.memory_space<vmem>>, vector<128x32xbf16>
    %29 = arith.truncf %27 : vector<64x128xf32> to vector<64x128xbf16>
    %cst_17 = arith.constant dense<0.000000e+00> : vector<64x32xf32>
    %30 = tpu.matmul %29, %28, %cst_17 {dimension_numbers = #tpu.dot_dimension_numbers<[1], [0], [0], [1], [0, 0, 1, 1], [], []>} : vector<64x128xbf16>, vector<128x32xbf16>, vector<64x32xf32> -> vector<64x32xf32>
    %c0_18 = arith.constant 0 : index
    %c0_19 = arith.constant 0 : index
    %31 = vector.load %arg7[%c0_18, %c0_19] : memref<1x32xf32, #tpu.memory_space<vmem>>, vector<1x32xf32>
    %32 = vector.broadcast %31 : vector<1x32xf32> to vector<64x32xf32>
    %33 = arith.addf %30, %32 : vector<64x32xf32>
    %34 = arith.addf %8, %33 : vector<64x32xf32>
    %c0_20 = arith.constant 0 : index
    %c0_21 = arith.constant 0 : index
    %c0_22 = arith.constant 0 : index
    %35 = vector.load %arg8[%c0_20, %c0_21, %c0_22] : memref<1x64x32xf32, #tpu.memory_space<vmem>>, vector<1x64x32xf32>
    %36 = vector.shape_cast %35 : vector<1x64x32xf32> to vector<64x32xf32>
    %37 = vector.shape_cast %34 : vector<64x32xf32> to vector<1x64x32xf32>
    tpu.vector_store %arg8[%c0_20, %c0_21, %c0_22], %37 {strides = array<i32>} : memref<1x64x32xf32, #tpu.memory_space<vmem>>, vector<1x64x32xf32>,
    return
  }
  func.func @transform_0(%arg0: i32) -> (i32, i32, i32) {
    %c0_i32 = arith.constant 0 : i32
    %c0_i32_0 = arith.constant 0 : i32
    %c0_i32_1 = arith.constant 0 : i32
    return %arg0, %c0_i32, %c0_i32_0 : i32, i32, i32
  }
  func.func @transform_1(%arg0: i32) -> (i32, i32) {
    %c0_i32 = arith.constant 0 : i32
    %c0_i32_0 = arith.constant 0 : i32
    %c0_i32_1 = arith.constant 0 : i32
    return %c0_i32, %c0_i32_0 : i32, i32
  }
  func.func @transform_2(%arg0: i32) -> (i32, i32) {
    %c0_i32 = arith.constant 0 : i32
    %c0_i32_0 = arith.constant 0 : i32
    %c0_i32_1 = arith.constant 0 : i32
    return %c0_i32, %c0_i32_0 : i32, i32
  }
  func.func @transform_3(%arg0: i32) -> (i32, i32) {
    %c0_i32 = arith.constant 0 : i32
    %c0_i32_0 = arith.constant 0 : i32
    %c0_i32_1 = arith.constant 0 : i32
    return %c0_i32, %c0_i32_0 : i32, i32
  }
  func.func @transform_4(%arg0: i32) -> (i32, i32) {
    %c0_i32 = arith.constant 0 : i32
    %c0_i32_0 = arith.constant 0 : i32
    %c0_i32_1 = arith.constant 0 : i32
    return %c0_i32, %c0_i32_0 : i32, i32
  }
  func.func @transform_5(%arg0: i32) -> (i32, i32) {
    %c0_i32 = arith.constant 0 : i32
    %c0_i32_0 = arith.constant 0 : i32
    %c0_i32_1 = arith.constant 0 : i32
    return %c0_i32, %c0_i32_0 : i32, i32
  }
  func.func @transform_6(%arg0: i32) -> (i32, i32) {
    %c0_i32 = arith.constant 0 : i32
    %c0_i32_0 = arith.constant 0 : i32
    %c0_i32_1 = arith.constant 0 : i32
    return %c0_i32, %c0_i32_0 : i32, i32
  }
  func.func @transform_7(%arg0: i32) -> (i32, i32, i32) {
    %c0_i32 = arith.constant 0 : i32
    %c0_i32_0 = arith.constant 0 : i32
    %c0_i32_1 = arith.constant 0 : i32
    return %arg0, %c0_i32, %c0_i32_0 : i32, i32, i32
  }
}

module attributes {stable_mosaic.version = 11 : i64} {
  func.func @_conv_mm_kernel(%arg0: i32, %arg1: memref<32x288xbf16, #tpu.memory_space<vmem>>, %arg2: memref<288x64xbf16, #tpu.memory_space<vmem>>, %arg3: memref<1x64xf32, #tpu.memory_space<vmem>>, %arg4: memref<32x64xf32, #tpu.memory_space<vmem>>) attributes {dimension_semantics = [#tpu.dimension_semantics<parallel>], iteration_bounds = array<i64: 1>, scalar_prefetch = 0 : i64, scratch_operands = 0 : i64, tpu.core_type = #tpu.core_type<tc>, window_params = [{transform_indices = @transform_0, window_bounds = array<i64: 32, 288>}, {pipeline_mode = #tpu.pipeline_mode<synchronous>, transform_indices = @transform_1, window_bounds = array<i64: 288, 64>}, {pipeline_mode = #tpu.pipeline_mode<synchronous>, transform_indices = @transform_2, window_bounds = array<i64: 1, 64>}, {transform_indices = @transform_3, window_bounds = array<i64: 32, 64>}]} {
    %c0 = arith.constant 0 : index
    %c0_0 = arith.constant 0 : index
    %0 = vector.load %arg1[%c0, %c0_0] : memref<32x288xbf16, #tpu.memory_space<vmem>>, vector<32x288xbf16>
    %c0_1 = arith.constant 0 : index
    %c0_2 = arith.constant 0 : index
    %1 = vector.load %arg2[%c0_1, %c0_2] : memref<288x64xbf16, #tpu.memory_space<vmem>>, vector<288x64xbf16>
    %cst = arith.constant dense<0.000000e+00> : vector<32x64xf32>
    %2 = tpu.matmul %0, %1, %cst {dimension_numbers = #tpu.dot_dimension_numbers<[1], [0], [0], [1], [0, 0, 1, 1], [], []>} : vector<32x288xbf16>, vector<288x64xbf16>, vector<32x64xf32> -> vector<32x64xf32>
    %c0_3 = arith.constant 0 : index
    %c0_4 = arith.constant 0 : index
    %3 = vector.load %arg3[%c0_3, %c0_4] : memref<1x64xf32, #tpu.memory_space<vmem>>, vector<1x64xf32>
    %4 = vector.broadcast %3 : vector<1x64xf32> to vector<32x64xf32>
    %5 = arith.addf %2, %4 : vector<32x64xf32>
    %c0_5 = arith.constant 0 : index
    %c0_6 = arith.constant 0 : index
    %6 = vector.load %arg4[%c0_5, %c0_6] : memref<32x64xf32, #tpu.memory_space<vmem>>, vector<32x64xf32>
    tpu.vector_store %arg4[%c0_5, %c0_6], %5 {strides = array<i32>} : memref<32x64xf32, #tpu.memory_space<vmem>>, vector<32x64xf32>,
    return
  }
  func.func @transform_0(%arg0: i32) -> (i32, i32) {
    %c0_i32 = arith.constant 0 : i32
    %c0_i32_0 = arith.constant 0 : i32
    return %arg0, %c0_i32 : i32, i32
  }
  func.func @transform_1(%arg0: i32) -> (i32, i32) {
    %c0_i32 = arith.constant 0 : i32
    %c0_i32_0 = arith.constant 0 : i32
    %c0_i32_1 = arith.constant 0 : i32
    return %c0_i32, %c0_i32_0 : i32, i32
  }
  func.func @transform_2(%arg0: i32) -> (i32, i32) {
    %c0_i32 = arith.constant 0 : i32
    %c0_i32_0 = arith.constant 0 : i32
    %c0_i32_1 = arith.constant 0 : i32
    return %c0_i32, %c0_i32_0 : i32, i32
  }
  func.func @transform_3(%arg0: i32) -> (i32, i32) {
    %c0_i32 = arith.constant 0 : i32
    %c0_i32_0 = arith.constant 0 : i32
    return %arg0, %c0_i32 : i32, i32
  }
}

module attributes {stable_mosaic.version = 11 : i64} {
  func.func @_mb2d_kernel(%arg0: i32, %arg1: memref<1x16x64xf32, #tpu.memory_space<vmem>>, %arg2: memref<16x16xf32, #tpu.memory_space<vmem>>, %arg3: memref<1x64xf32, #tpu.memory_space<vmem>>, %arg4: memref<64x256xbf16, #tpu.memory_space<vmem>>, %arg5: memref<1x256xf32, #tpu.memory_space<vmem>>, %arg6: memref<256x64xbf16, #tpu.memory_space<vmem>>, %arg7: memref<1x64xf32, #tpu.memory_space<vmem>>, %arg8: memref<1x16x64xf32, #tpu.memory_space<vmem>>) attributes {dimension_semantics = [#tpu.dimension_semantics<parallel>], iteration_bounds = array<i64: 2>, scalar_prefetch = 0 : i64, scratch_operands = 0 : i64, tpu.core_type = #tpu.core_type<tc>, window_params = [{transform_indices = @transform_0, window_bounds = array<i64: 1, 16, 64>}, {pipeline_mode = #tpu.pipeline_mode<synchronous>, transform_indices = @transform_1, window_bounds = array<i64: 16, 16>}, {pipeline_mode = #tpu.pipeline_mode<synchronous>, transform_indices = @transform_2, window_bounds = array<i64: 1, 64>}, {pipeline_mode = #tpu.pipeline_mode<synchronous>, transform_indices = @transform_3, window_bounds = array<i64: 64, 256>}, {pipeline_mode = #tpu.pipeline_mode<synchronous>, transform_indices = @transform_4, window_bounds = array<i64: 1, 256>}, {pipeline_mode = #tpu.pipeline_mode<synchronous>, transform_indices = @transform_5, window_bounds = array<i64: 256, 64>}, {pipeline_mode = #tpu.pipeline_mode<synchronous>, transform_indices = @transform_6, window_bounds = array<i64: 1, 64>}, {transform_indices = @transform_7, window_bounds = array<i64: 1, 16, 64>}]} {
    %c0 = arith.constant 0 : index
    %c0_0 = arith.constant 0 : index
    %c0_1 = arith.constant 0 : index
    %0 = vector.load %arg1[%c0, %c0_0, %c0_1] : memref<1x16x64xf32, #tpu.memory_space<vmem>>, vector<1x16x64xf32>
    %1 = vector.shape_cast %0 : vector<1x16x64xf32> to vector<16x64xf32>
    %c0_2 = arith.constant 0 : index
    %c0_3 = arith.constant 0 : index
    %2 = vector.load %arg2[%c0_2, %c0_3] : memref<16x16xf32, #tpu.memory_space<vmem>>, vector<16x16xf32>
    %cst = arith.constant dense<0.000000e+00> : vector<16x64xf32>
    %3 = tpu.matmul %2, %1, %cst {dimension_numbers = #tpu.dot_dimension_numbers<[1], [0], [0], [1], [0, 0, 1, 1], [], []>} : vector<16x16xf32>, vector<16x64xf32>, vector<16x64xf32> -> vector<16x64xf32>
    %c0_4 = arith.constant 0 : index
    %c0_5 = arith.constant 0 : index
    %4 = vector.load %arg3[%c0_4, %c0_5] : memref<1x64xf32, #tpu.memory_space<vmem>>, vector<1x64xf32>
    %5 = arith.subf %3, %1 : vector<16x64xf32>
    %6 = vector.broadcast %4 : vector<1x64xf32> to vector<16x64xf32>
    %7 = arith.mulf %6, %5 : vector<16x64xf32>
    %8 = arith.addf %1, %7 : vector<16x64xf32>
    %c0_6 = arith.constant 0 : index
    %c0_7 = arith.constant 0 : index
    %9 = vector.load %arg4[%c0_6, %c0_7] : memref<64x256xbf16, #tpu.memory_space<vmem>>, vector<64x256xbf16>
    %10 = arith.truncf %8 : vector<16x64xf32> to vector<16x64xbf16>
    %cst_8 = arith.constant dense<0.000000e+00> : vector<16x256xf32>
    %11 = tpu.matmul %10, %9, %cst_8 {dimension_numbers = #tpu.dot_dimension_numbers<[1], [0], [0], [1], [0, 0, 1, 1], [], []>} : vector<16x64xbf16>, vector<64x256xbf16>, vector<16x256xf32> -> vector<16x256xf32>
    %c0_9 = arith.constant 0 : index
    %c0_10 = arith.constant 0 : index
    %12 = vector.load %arg5[%c0_9, %c0_10] : memref<1x256xf32, #tpu.memory_space<vmem>>, vector<1x256xf32>
    %13 = vector.broadcast %12 : vector<1x256xf32> to vector<16x256xf32>
    %14 = arith.addf %11, %13 : vector<16x256xf32>
    %cst_11 = arith.constant 5.000000e-01 : f32
    %15 = vector.broadcast %cst_11 : f32 to vector<16x256xf32>
    %16 = arith.mulf %15, %14 : vector<16x256xf32>
    %cst_12 = arith.constant 4.471500e-02 : f32
    %17 = vector.broadcast %cst_12 : f32 to vector<16x256xf32>
    %18 = arith.mulf %17, %14 : vector<16x256xf32>
    %19 = arith.mulf %18, %14 : vector<16x256xf32>
    %20 = arith.mulf %19, %14 : vector<16x256xf32>
    %21 = arith.addf %14, %20 : vector<16x256xf32>
    %cst_13 = arith.constant 0.797884583 : f32
    %22 = vector.broadcast %cst_13 : f32 to vector<16x256xf32>
    %23 = arith.mulf %22, %21 : vector<16x256xf32>
    %24 = math.tanh %23 : vector<16x256xf32>
    %cst_14 = arith.constant 1.000000e+00 : f32
    %25 = vector.broadcast %cst_14 : f32 to vector<16x256xf32>
    %26 = arith.addf %25, %24 : vector<16x256xf32>
    %27 = arith.mulf %16, %26 : vector<16x256xf32>
    %c0_15 = arith.constant 0 : index
    %c0_16 = arith.constant 0 : index
    %28 = vector.load %arg6[%c0_15, %c0_16] : memref<256x64xbf16, #tpu.memory_space<vmem>>, vector<256x64xbf16>
    %29 = arith.truncf %27 : vector<16x256xf32> to vector<16x256xbf16>
    %cst_17 = arith.constant dense<0.000000e+00> : vector<16x64xf32>
    %30 = tpu.matmul %29, %28, %cst_17 {dimension_numbers = #tpu.dot_dimension_numbers<[1], [0], [0], [1], [0, 0, 1, 1], [], []>} : vector<16x256xbf16>, vector<256x64xbf16>, vector<16x64xf32> -> vector<16x64xf32>
    %c0_18 = arith.constant 0 : index
    %c0_19 = arith.constant 0 : index
    %31 = vector.load %arg7[%c0_18, %c0_19] : memref<1x64xf32, #tpu.memory_space<vmem>>, vector<1x64xf32>
    %32 = vector.broadcast %31 : vector<1x64xf32> to vector<16x64xf32>
    %33 = arith.addf %30, %32 : vector<16x64xf32>
    %34 = arith.addf %8, %33 : vector<16x64xf32>
    %c0_20 = arith.constant 0 : index
    %c0_21 = arith.constant 0 : index
    %c0_22 = arith.constant 0 : index
    %35 = vector.load %arg8[%c0_20, %c0_21, %c0_22] : memref<1x16x64xf32, #tpu.memory_space<vmem>>, vector<1x16x64xf32>
    %36 = vector.shape_cast %35 : vector<1x16x64xf32> to vector<16x64xf32>
    %37 = vector.shape_cast %34 : vector<16x64xf32> to vector<1x16x64xf32>
    tpu.vector_store %arg8[%c0_20, %c0_21, %c0_22], %37 {strides = array<i32>} : memref<1x16x64xf32, #tpu.memory_space<vmem>>, vector<1x16x64xf32>,
    return
  }
  func.func @transform_0(%arg0: i32) -> (i32, i32, i32) {
    %c0_i32 = arith.constant 0 : i32
    %c0_i32_0 = arith.constant 0 : i32
    %c0_i32_1 = arith.constant 0 : i32
    return %arg0, %c0_i32, %c0_i32_0 : i32, i32, i32
  }
  func.func @transform_1(%arg0: i32) -> (i32, i32) {
    %c0_i32 = arith.constant 0 : i32
    %c0_i32_0 = arith.constant 0 : i32
    %c0_i32_1 = arith.constant 0 : i32
    return %c0_i32, %c0_i32_0 : i32, i32
  }
  func.func @transform_2(%arg0: i32) -> (i32, i32) {
    %c0_i32 = arith.constant 0 : i32
    %c0_i32_0 = arith.constant 0 : i32
    %c0_i32_1 = arith.constant 0 : i32
    return %c0_i32, %c0_i32_0 : i32, i32
  }
  func.func @transform_3(%arg0: i32) -> (i32, i32) {
    %c0_i32 = arith.constant 0 : i32
    %c0_i32_0 = arith.constant 0 : i32
    %c0_i32_1 = arith.constant 0 : i32
    return %c0_i32, %c0_i32_0 : i32, i32
  }
  func.func @transform_4(%arg0: i32) -> (i32, i32) {
    %c0_i32 = arith.constant 0 : i32
    %c0_i32_0 = arith.constant 0 : i32
    %c0_i32_1 = arith.constant 0 : i32
    return %c0_i32, %c0_i32_0 : i32, i32
  }
  func.func @transform_5(%arg0: i32) -> (i32, i32) {
    %c0_i32 = arith.constant 0 : i32
    %c0_i32_0 = arith.constant 0 : i32
    %c0_i32_1 = arith.constant 0 : i32
    return %c0_i32, %c0_i32_0 : i32, i32
  }
  func.func @transform_6(%arg0: i32) -> (i32, i32) {
    %c0_i32 = arith.constant 0 : i32
    %c0_i32_0 = arith.constant 0 : i32
    %c0_i32_1 = arith.constant 0 : i32
    return %c0_i32, %c0_i32_0 : i32, i32
  }
  func.func @transform_7(%arg0: i32) -> (i32, i32, i32) {
    %c0_i32 = arith.constant 0 : i32
    %c0_i32_0 = arith.constant 0 : i32
    %c0_i32_1 = arith.constant 0 : i32
    return %arg0, %c0_i32, %c0_i32_0 : i32, i32, i32
  }
}

module attributes {stable_mosaic.version = 11 : i64} {
  func.func @_conv_mm_kernel(%arg0: i32, %arg1: memref<8x576xbf16, #tpu.memory_space<vmem>>, %arg2: memref<576x128xbf16, #tpu.memory_space<vmem>>, %arg3: memref<1x128xf32, #tpu.memory_space<vmem>>, %arg4: memref<8x128xf32, #tpu.memory_space<vmem>>) attributes {dimension_semantics = [#tpu.dimension_semantics<parallel>], iteration_bounds = array<i64: 1>, scalar_prefetch = 0 : i64, scratch_operands = 0 : i64, tpu.core_type = #tpu.core_type<tc>, window_params = [{transform_indices = @transform_0, window_bounds = array<i64: 8, 576>}, {pipeline_mode = #tpu.pipeline_mode<synchronous>, transform_indices = @transform_1, window_bounds = array<i64: 576, 128>}, {pipeline_mode = #tpu.pipeline_mode<synchronous>, transform_indices = @transform_2, window_bounds = array<i64: 1, 128>}, {transform_indices = @transform_3, window_bounds = array<i64: 8, 128>}]} {
    %c0 = arith.constant 0 : index
    %c0_0 = arith.constant 0 : index
    %0 = vector.load %arg1[%c0, %c0_0] : memref<8x576xbf16, #tpu.memory_space<vmem>>, vector<8x576xbf16>
    %c0_1 = arith.constant 0 : index
    %c0_2 = arith.constant 0 : index
    %1 = vector.load %arg2[%c0_1, %c0_2] : memref<576x128xbf16, #tpu.memory_space<vmem>>, vector<576x128xbf16>
    %cst = arith.constant dense<0.000000e+00> : vector<8x128xf32>
    %2 = tpu.matmul %0, %1, %cst {dimension_numbers = #tpu.dot_dimension_numbers<[1], [0], [0], [1], [0, 0, 1, 1], [], []>} : vector<8x576xbf16>, vector<576x128xbf16>, vector<8x128xf32> -> vector<8x128xf32>
    %c0_3 = arith.constant 0 : index
    %c0_4 = arith.constant 0 : index
    %3 = vector.load %arg3[%c0_3, %c0_4] : memref<1x128xf32, #tpu.memory_space<vmem>>, vector<1x128xf32>
    %4 = vector.broadcast %3 : vector<1x128xf32> to vector<8x128xf32>
    %5 = arith.addf %2, %4 : vector<8x128xf32>
    %c0_5 = arith.constant 0 : index
    %c0_6 = arith.constant 0 : index
    %6 = vector.load %arg4[%c0_5, %c0_6] : memref<8x128xf32, #tpu.memory_space<vmem>>, vector<8x128xf32>
    tpu.vector_store %arg4[%c0_5, %c0_6], %5 {strides = array<i32>} : memref<8x128xf32, #tpu.memory_space<vmem>>, vector<8x128xf32>,
    return
  }
  func.func @transform_0(%arg0: i32) -> (i32, i32) {
    %c0_i32 = arith.constant 0 : i32
    %c0_i32_0 = arith.constant 0 : i32
    return %arg0, %c0_i32 : i32, i32
  }
  func.func @transform_1(%arg0: i32) -> (i32, i32) {
    %c0_i32 = arith.constant 0 : i32
    %c0_i32_0 = arith.constant 0 : i32
    %c0_i32_1 = arith.constant 0 : i32
    return %c0_i32, %c0_i32_0 : i32, i32
  }
  func.func @transform_2(%arg0: i32) -> (i32, i32) {
    %c0_i32 = arith.constant 0 : i32
    %c0_i32_0 = arith.constant 0 : i32
    %c0_i32_1 = arith.constant 0 : i32
    return %c0_i32, %c0_i32_0 : i32, i32
  }
  func.func @transform_3(%arg0: i32) -> (i32, i32) {
    %c0_i32 = arith.constant 0 : i32
    %c0_i32_0 = arith.constant 0 : i32
    return %arg0, %c0_i32 : i32, i32
  }
}

module attributes {stable_mosaic.version = 11 : i64} {
  func.func @_mb2d_kernel(%arg0: i32, %arg1: memref<1x4x128xf32, #tpu.memory_space<vmem>>, %arg2: memref<4x4xf32, #tpu.memory_space<vmem>>, %arg3: memref<1x128xf32, #tpu.memory_space<vmem>>, %arg4: memref<128x512xbf16, #tpu.memory_space<vmem>>, %arg5: memref<1x512xf32, #tpu.memory_space<vmem>>, %arg6: memref<512x128xbf16, #tpu.memory_space<vmem>>, %arg7: memref<1x128xf32, #tpu.memory_space<vmem>>, %arg8: memref<1x4x128xf32, #tpu.memory_space<vmem>>) attributes {dimension_semantics = [#tpu.dimension_semantics<parallel>], iteration_bounds = array<i64: 2>, scalar_prefetch = 0 : i64, scratch_operands = 0 : i64, tpu.core_type = #tpu.core_type<tc>, window_params = [{transform_indices = @transform_0, window_bounds = array<i64: 1, 4, 128>}, {pipeline_mode = #tpu.pipeline_mode<synchronous>, transform_indices = @transform_1, window_bounds = array<i64: 4, 4>}, {pipeline_mode = #tpu.pipeline_mode<synchronous>, transform_indices = @transform_2, window_bounds = array<i64: 1, 128>}, {pipeline_mode = #tpu.pipeline_mode<synchronous>, transform_indices = @transform_3, window_bounds = array<i64: 128, 512>}, {pipeline_mode = #tpu.pipeline_mode<synchronous>, transform_indices = @transform_4, window_bounds = array<i64: 1, 512>}, {pipeline_mode = #tpu.pipeline_mode<synchronous>, transform_indices = @transform_5, window_bounds = array<i64: 512, 128>}, {pipeline_mode = #tpu.pipeline_mode<synchronous>, transform_indices = @transform_6, window_bounds = array<i64: 1, 128>}, {transform_indices = @transform_7, window_bounds = array<i64: 1, 4, 128>}]} {
    %c0 = arith.constant 0 : index
    %c0_0 = arith.constant 0 : index
    %c0_1 = arith.constant 0 : index
    %0 = vector.load %arg1[%c0, %c0_0, %c0_1] : memref<1x4x128xf32, #tpu.memory_space<vmem>>, vector<1x4x128xf32>
    %1 = vector.shape_cast %0 : vector<1x4x128xf32> to vector<4x128xf32>
    %c0_2 = arith.constant 0 : index
    %c0_3 = arith.constant 0 : index
    %2 = vector.load %arg2[%c0_2, %c0_3] : memref<4x4xf32, #tpu.memory_space<vmem>>, vector<4x4xf32>
    %cst = arith.constant dense<0.000000e+00> : vector<4x128xf32>
    %3 = tpu.matmul %2, %1, %cst {dimension_numbers = #tpu.dot_dimension_numbers<[1], [0], [0], [1], [0, 0, 1, 1], [], []>} : vector<4x4xf32>, vector<4x128xf32>, vector<4x128xf32> -> vector<4x128xf32>
    %c0_4 = arith.constant 0 : index
    %c0_5 = arith.constant 0 : index
    %4 = vector.load %arg3[%c0_4, %c0_5] : memref<1x128xf32, #tpu.memory_space<vmem>>, vector<1x128xf32>
    %5 = arith.subf %3, %1 : vector<4x128xf32>
    %6 = vector.broadcast %4 : vector<1x128xf32> to vector<4x128xf32>
    %7 = arith.mulf %6, %5 : vector<4x128xf32>
    %8 = arith.addf %1, %7 : vector<4x128xf32>
    %c0_6 = arith.constant 0 : index
    %c0_7 = arith.constant 0 : index
    %9 = vector.load %arg4[%c0_6, %c0_7] : memref<128x512xbf16, #tpu.memory_space<vmem>>, vector<128x512xbf16>
    %10 = arith.truncf %8 : vector<4x128xf32> to vector<4x128xbf16>
    %cst_8 = arith.constant dense<0.000000e+00> : vector<4x512xf32>
    %11 = tpu.matmul %10, %9, %cst_8 {dimension_numbers = #tpu.dot_dimension_numbers<[1], [0], [0], [1], [0, 0, 1, 1], [], []>} : vector<4x128xbf16>, vector<128x512xbf16>, vector<4x512xf32> -> vector<4x512xf32>
    %c0_9 = arith.constant 0 : index
    %c0_10 = arith.constant 0 : index
    %12 = vector.load %arg5[%c0_9, %c0_10] : memref<1x512xf32, #tpu.memory_space<vmem>>, vector<1x512xf32>
    %13 = vector.broadcast %12 : vector<1x512xf32> to vector<4x512xf32>
    %14 = arith.addf %11, %13 : vector<4x512xf32>
    %cst_11 = arith.constant 5.000000e-01 : f32
    %15 = vector.broadcast %cst_11 : f32 to vector<4x512xf32>
    %16 = arith.mulf %15, %14 : vector<4x512xf32>
    %cst_12 = arith.constant 4.471500e-02 : f32
    %17 = vector.broadcast %cst_12 : f32 to vector<4x512xf32>
    %18 = arith.mulf %17, %14 : vector<4x512xf32>
    %19 = arith.mulf %18, %14 : vector<4x512xf32>
    %20 = arith.mulf %19, %14 : vector<4x512xf32>
    %21 = arith.addf %14, %20 : vector<4x512xf32>
    %cst_13 = arith.constant 0.797884583 : f32
    %22 = vector.broadcast %cst_13 : f32 to vector<4x512xf32>
    %23 = arith.mulf %22, %21 : vector<4x512xf32>
    %24 = math.tanh %23 : vector<4x512xf32>
    %cst_14 = arith.constant 1.000000e+00 : f32
    %25 = vector.broadcast %cst_14 : f32 to vector<4x512xf32>
    %26 = arith.addf %25, %24 : vector<4x512xf32>
    %27 = arith.mulf %16, %26 : vector<4x512xf32>
    %c0_15 = arith.constant 0 : index
    %c0_16 = arith.constant 0 : index
    %28 = vector.load %arg6[%c0_15, %c0_16] : memref<512x128xbf16, #tpu.memory_space<vmem>>, vector<512x128xbf16>
    %29 = arith.truncf %27 : vector<4x512xf32> to vector<4x512xbf16>
    %cst_17 = arith.constant dense<0.000000e+00> : vector<4x128xf32>
    %30 = tpu.matmul %29, %28, %cst_17 {dimension_numbers = #tpu.dot_dimension_numbers<[1], [0], [0], [1], [0, 0, 1, 1], [], []>} : vector<4x512xbf16>, vector<512x128xbf16>, vector<4x128xf32> -> vector<4x128xf32>
    %c0_18 = arith.constant 0 : index
    %c0_19 = arith.constant 0 : index
    %31 = vector.load %arg7[%c0_18, %c0_19] : memref<1x128xf32, #tpu.memory_space<vmem>>, vector<1x128xf32>
    %32 = vector.broadcast %31 : vector<1x128xf32> to vector<4x128xf32>
    %33 = arith.addf %30, %32 : vector<4x128xf32>
    %34 = arith.addf %8, %33 : vector<4x128xf32>
    %c0_20 = arith.constant 0 : index
    %c0_21 = arith.constant 0 : index
    %c0_22 = arith.constant 0 : index
    %35 = vector.load %arg8[%c0_20, %c0_21, %c0_22] : memref<1x4x128xf32, #tpu.memory_space<vmem>>, vector<1x4x128xf32>
    %36 = vector.shape_cast %35 : vector<1x4x128xf32> to vector<4x128xf32>
    %37 = vector.shape_cast %34 : vector<4x128xf32> to vector<1x4x128xf32>
    tpu.vector_store %arg8[%c0_20, %c0_21, %c0_22], %37 {strides = array<i32>} : memref<1x4x128xf32, #tpu.memory_space<vmem>>, vector<1x4x128xf32>,
    return
  }
  func.func @transform_0(%arg0: i32) -> (i32, i32, i32) {
    %c0_i32 = arith.constant 0 : i32
    %c0_i32_0 = arith.constant 0 : i32
    %c0_i32_1 = arith.constant 0 : i32
    return %arg0, %c0_i32, %c0_i32_0 : i32, i32, i32
  }
  func.func @transform_1(%arg0: i32) -> (i32, i32) {
    %c0_i32 = arith.constant 0 : i32
    %c0_i32_0 = arith.constant 0 : i32
    %c0_i32_1 = arith.constant 0 : i32
    return %c0_i32, %c0_i32_0 : i32, i32
  }
  func.func @transform_2(%arg0: i32) -> (i32, i32) {
    %c0_i32 = arith.constant 0 : i32
    %c0_i32_0 = arith.constant 0 : i32
    %c0_i32_1 = arith.constant 0 : i32
    return %c0_i32, %c0_i32_0 : i32, i32
  }
  func.func @transform_3(%arg0: i32) -> (i32, i32) {
    %c0_i32 = arith.constant 0 : i32
    %c0_i32_0 = arith.constant 0 : i32
    %c0_i32_1 = arith.constant 0 : i32
    return %c0_i32, %c0_i32_0 : i32, i32
  }
  func.func @transform_4(%arg0: i32) -> (i32, i32) {
    %c0_i32 = arith.constant 0 : i32
    %c0_i32_0 = arith.constant 0 : i32
    %c0_i32_1 = arith.constant 0 : i32
    return %c0_i32, %c0_i32_0 : i32, i32
  }
  func.func @transform_5(%arg0: i32) -> (i32, i32) {
    %c0_i32 = arith.constant 0 : i32
    %c0_i32_0 = arith.constant 0 : i32
    %c0_i32_1 = arith.constant 0 : i32
    return %c0_i32, %c0_i32_0 : i32, i32
  }
  func.func @transform_6(%arg0: i32) -> (i32, i32) {
    %c0_i32 = arith.constant 0 : i32
    %c0_i32_0 = arith.constant 0 : i32
    %c0_i32_1 = arith.constant 0 : i32
    return %c0_i32, %c0_i32_0 : i32, i32
  }
  func.func @transform_7(%arg0: i32) -> (i32, i32, i32) {
    %c0_i32 = arith.constant 0 : i32
    %c0_i32_0 = arith.constant 0 : i32
    %c0_i32_1 = arith.constant 0 : i32
    return %arg0, %c0_i32, %c0_i32_0 : i32, i32, i32
  }
}

module attributes {stable_mosaic.version = 11 : i64} {
  func.func @_mb1d_kernel(%arg0: i32, %arg1: memref<1x4x128xf32, #tpu.memory_space<vmem>>, %arg2: memref<1x128xf32, #tpu.memory_space<vmem>>, %arg3: memref<1x128xf32, #tpu.memory_space<vmem>>, %arg4: memref<128x384xbf16, #tpu.memory_space<vmem>>, %arg5: memref<1x384xf32, #tpu.memory_space<vmem>>, %arg6: memref<4x4x4xf32, #tpu.memory_space<vmem>>, %arg7: memref<256x128xbf16, #tpu.memory_space<vmem>>, %arg8: memref<1x128xf32, #tpu.memory_space<vmem>>, %arg9: memref<1x128xf32, #tpu.memory_space<vmem>>, %arg10: memref<1x128xf32, #tpu.memory_space<vmem>>, %arg11: memref<128x512xbf16, #tpu.memory_space<vmem>>, %arg12: memref<1x512xf32, #tpu.memory_space<vmem>>, %arg13: memref<512x128xbf16, #tpu.memory_space<vmem>>, %arg14: memref<1x128xf32, #tpu.memory_space<vmem>>, %arg15: memref<1x128xf32, #tpu.memory_space<vmem>>, %arg16: memref<1x128xf32, #tpu.memory_space<vmem>>, %arg17: memref<128x10xbf16, #tpu.memory_space<vmem>>, %arg18: memref<1x10xf32, #tpu.memory_space<vmem>>, %arg19: memref<1x1x10xf32, #tpu.memory_space<vmem>>) attributes {dimension_semantics = [#tpu.dimension_semantics<parallel>], iteration_bounds = array<i64: 2>, scalar_prefetch = 0 : i64, scratch_operands = 0 : i64, tpu.core_type = #tpu.core_type<tc>, window_params = [{transform_indices = @transform_0, window_bounds = array<i64: 1, 4, 128>}, {pipeline_mode = #tpu.pipeline_mode<synchronous>, transform_indices = @transform_1, window_bounds = array<i64: 1, 128>}, {pipeline_mode = #tpu.pipeline_mode<synchronous>, transform_indices = @transform_2, window_bounds = array<i64: 1, 128>}, {pipeline_mode = #tpu.pipeline_mode<synchronous>, transform_indices = @transform_3, window_bounds = array<i64: 128, 384>}, {pipeline_mode = #tpu.pipeline_mode<synchronous>, transform_indices = @transform_4, window_bounds = array<i64: 1, 384>}, {pipeline_mode = #tpu.pipeline_mode<synchronous>, transform_indices = @transform_5, window_bounds = array<i64: 4, 4, 4>}, {pipeline_mode = #tpu.pipeline_mode<synchronous>, transform_indices = @transform_6, window_bounds = array<i64: 256, 128>}, {pipeline_mode = #tpu.pipeline_mode<synchronous>, transform_indices = @transform_7, window_bounds = array<i64: 1, 128>}, {pipeline_mode = #tpu.pipeline_mode<synchronous>, transform_indices = @transform_8, window_bounds = array<i64: 1, 128>}, {pipeline_mode = #tpu.pipeline_mode<synchronous>, transform_indices = @transform_9, window_bounds = array<i64: 1, 128>}, {pipeline_mode = #tpu.pipeline_mode<synchronous>, transform_indices = @transform_10, window_bounds = array<i64: 128, 512>}, {pipeline_mode = #tpu.pipeline_mode<synchronous>, transform_indices = @transform_11, window_bounds = array<i64: 1, 512>}, {pipeline_mode = #tpu.pipeline_mode<synchronous>, transform_indices = @transform_12, window_bounds = array<i64: 512, 128>}, {pipeline_mode = #tpu.pipeline_mode<synchronous>, transform_indices = @transform_13, window_bounds = array<i64: 1, 128>}, {pipeline_mode = #tpu.pipeline_mode<synchronous>, transform_indices = @transform_14, window_bounds = array<i64: 1, 128>}, {pipeline_mode = #tpu.pipeline_mode<synchronous>, transform_indices = @transform_15, window_bounds = array<i64: 1, 128>}, {pipeline_mode = #tpu.pipeline_mode<synchronous>, transform_indices = @transform_16, window_bounds = array<i64: 128, 10>}, {pipeline_mode = #tpu.pipeline_mode<synchronous>, transform_indices = @transform_17, window_bounds = array<i64: 1, 10>}, {transform_indices = @transform_18, window_bounds = array<i64: 1, 1, 10>}]} {
    %c0 = arith.constant 0 : index
    %c0_0 = arith.constant 0 : index
    %c0_1 = arith.constant 0 : index
    %0 = vector.load %arg1[%c0, %c0_0, %c0_1] : memref<1x4x128xf32, #tpu.memory_space<vmem>>, vector<1x4x128xf32>
    %1 = vector.shape_cast %0 : vector<1x4x128xf32> to vector<4x128xf32>
    %c0_2 = arith.constant 0 : index
    %c0_3 = arith.constant 0 : index
    %2 = vector.load %arg2[%c0_2, %c0_3] : memref<1x128xf32, #tpu.memory_space<vmem>>, vector<1x128xf32>
    %c0_4 = arith.constant 0 : index
    %c0_5 = arith.constant 0 : index
    %3 = vector.load %arg3[%c0_4, %c0_5] : memref<1x128xf32, #tpu.memory_space<vmem>>, vector<1x128xf32>
    %cst = arith.constant dense<0.000000e+00> : vector<4xf32>
    %4 = vector.multi_reduction <add>, %1, %cst [1] : vector<4x128xf32> to vector<4xf32>
    %5 = vector.shape_cast %4 : vector<4xf32> to vector<4x1xf32>
    %cst_6 = arith.constant 1.280000e+02 : f32
    %6 = vector.broadcast %cst_6 : f32 to vector<4x1xf32>
    %7 = arith.divf %5, %6 : vector<4x1xf32>
    %8 = vector.broadcast %7 : vector<4x1xf32> to vector<4x128xf32>
    %9 = arith.subf %1, %8 : vector<4x128xf32>
    %10 = arith.mulf %9, %9 : vector<4x128xf32>
    %cst_7 = arith.constant dense<0.000000e+00> : vector<4xf32>
    %11 = vector.multi_reduction <add>, %10, %cst_7 [1] : vector<4x128xf32> to vector<4xf32>
    %12 = vector.shape_cast %11 : vector<4xf32> to vector<4x1xf32>
    %cst_8 = arith.constant 1.280000e+02 : f32
    %13 = vector.broadcast %cst_8 : f32 to vector<4x1xf32>
    %14 = arith.divf %12, %13 : vector<4x1xf32>
    %cst_9 = arith.constant 9.99999974E-6 : f32
    %15 = vector.broadcast %cst_9 : f32 to vector<4x1xf32>
    %16 = arith.addf %14, %15 : vector<4x1xf32>
    %17 = math.rsqrt %16 : vector<4x1xf32>
    %18 = vector.broadcast %17 : vector<4x1xf32> to vector<4x128xf32>
    %19 = arith.mulf %9, %18 : vector<4x128xf32>
    %20 = vector.broadcast %2 : vector<1x128xf32> to vector<4x128xf32>
    %21 = arith.mulf %19, %20 : vector<4x128xf32>
    %22 = vector.broadcast %3 : vector<1x128xf32> to vector<4x128xf32>
    %23 = arith.addf %21, %22 : vector<4x128xf32>
    %c0_10 = arith.constant 0 : index
    %c0_11 = arith.constant 0 : index
    %24 = vector.load %arg4[%c0_10, %c0_11] : memref<128x384xbf16, #tpu.memory_space<vmem>>, vector<128x384xbf16>
    %25 = arith.truncf %23 : vector<4x128xf32> to vector<4x128xbf16>
    %cst_12 = arith.constant dense<0.000000e+00> : vector<4x384xf32>
    %26 = tpu.matmul %25, %24, %cst_12 {dimension_numbers = #tpu.dot_dimension_numbers<[1], [0], [0], [1], [0, 0, 1, 1], [], []>} : vector<4x128xbf16>, vector<128x384xbf16>, vector<4x384xf32> -> vector<4x384xf32>
    %c0_13 = arith.constant 0 : index
    %c0_14 = arith.constant 0 : index
    %27 = vector.load %arg5[%c0_13, %c0_14] : memref<1x384xf32, #tpu.memory_space<vmem>>, vector<1x384xf32>
    %28 = vector.broadcast %27 : vector<1x384xf32> to vector<4x384xf32>
    %29 = arith.addf %26, %28 : vector<4x384xf32>
    %c0_15 = arith.constant 0 : index
    %c0_16 = arith.constant 0 : index
    %30 = vector.load %arg7[%c0_15, %c0_16] : memref<256x128xbf16, #tpu.memory_space<vmem>>, vector<256x128xbf16>
    %cst_17 = arith.constant 0.000000e+00 : f32
    %31 = vector.broadcast %cst_17 : f32 to vector<4x128xf32>
    %32 = vector.extract_strided_slice %29 {offsets = [0, 0], sizes = [4, 16], strides = [1, 1]} : vector<4x384xf32> to vector<4x16xf32>
    %33 = vector.extract_strided_slice %29 {offsets = [0, 16], sizes = [4, 16], strides = [1, 1]} : vector<4x384xf32> to vector<4x16xf32>
    %34 = vector.extract_strided_slice %29 {offsets = [0, 32], sizes = [4, 64], strides = [1, 1]} : vector<4x384xf32> to vector<4x64xf32>
    %cst_18 = arith.constant dense<0.000000e+00> : vector<4x4xf32>
    %35 = tpu.matmul %32, %33, %cst_18 {dimension_numbers = #tpu.dot_dimension_numbers<[1], [1], [0], [0], [0, 0, 1, 0], [], []>} : vector<4x16xf32>, vector<4x16xf32>, vector<4x4xf32> -> vector<4x4xf32>
    %c0_19 = arith.constant 0 : index
    %c0_20 = arith.constant 0 : index
    %c0_21 = arith.constant 0 : index
    %36 = vector.load %arg6[%c0_19, %c0_20, %c0_21] : memref<4x4x4xf32, #tpu.memory_space<vmem>>, vector<1x4x4xf32>
    %37 = vector.shape_cast %36 : vector<1x4x4xf32> to vector<4x4xf32>
    %38 = arith.addf %35, %37 : vector<4x4xf32>
    %cst_22 = arith.constant dense<0xFF800000> : vector<4xf32>
    %39 = vector.multi_reduction <maximumf>, %38, %cst_22 [1] : vector<4x4xf32> to vector<4xf32>
    %40 = vector.shape_cast %39 : vector<4xf32> to vector<4x1xf32>
    %41 = vector.broadcast %40 : vector<4x1xf32> to vector<4x4xf32>
    %42 = arith.subf %38, %41 : vector<4x4xf32>
    %43 = math.exp %42 : vector<4x4xf32>
    %cst_23 = arith.constant dense<0.000000e+00> : vector<4xf32>
    %44 = vector.multi_reduction <add>, %43, %cst_23 [1] : vector<4x4xf32> to vector<4xf32>
    %45 = vector.shape_cast %44 : vector<4xf32> to vector<4x1xf32>
    %46 = tpu.reciprocal %45 {approx = true} : vector<4x1xf32> -> vector<4x1xf32>
    %47 = vector.broadcast %46 : vector<4x1xf32> to vector<4x4xf32>
    %48 = arith.mulf %43, %47 : vector<4x4xf32>
    %cst_24 = arith.constant dense<0.000000e+00> : vector<4x64xf32>
    %49 = tpu.matmul %48, %34, %cst_24 {dimension_numbers = #tpu.dot_dimension_numbers<[1], [0], [0], [1], [0, 0, 1, 1], [], []>} : vector<4x4xf32>, vector<4x64xf32>, vector<4x64xf32> -> vector<4x64xf32>
    %50 = arith.truncf %49 : vector<4x64xf32> to vector<4x64xbf16>
    %51 = vector.extract_strided_slice %30 {offsets = [0, 0], sizes = [64, 128], strides = [1, 1]} : vector<256x128xbf16> to vector<64x128xbf16>
    %cst_25 = arith.constant dense<0.000000e+00> : vector<4x128xf32>
    %52 = tpu.matmul %50, %51, %cst_25 {dimension_numbers = #tpu.dot_dimension_numbers<[1], [0], [0], [1], [0, 0, 1, 1], [], []>} : vector<4x64xbf16>, vector<64x128xbf16>, vector<4x128xf32> -> vector<4x128xf32>
    %53 = arith.addf %31, %52 : vector<4x128xf32>
    %54 = vector.extract_strided_slice %29 {offsets = [0, 96], sizes = [4, 16], strides = [1, 1]} : vector<4x384xf32> to vector<4x16xf32>
    %55 = vector.extract_strided_slice %29 {offsets = [0, 112], sizes = [4, 16], strides = [1, 1]} : vector<4x384xf32> to vector<4x16xf32>
    %56 = vector.extract_strided_slice %29 {offsets = [0, 128], sizes = [4, 64], strides = [1, 1]} : vector<4x384xf32> to vector<4x64xf32>
    %cst_26 = arith.constant dense<0.000000e+00> : vector<4x4xf32>
    %57 = tpu.matmul %54, %55, %cst_26 {dimension_numbers = #tpu.dot_dimension_numbers<[1], [1], [0], [0], [0, 0, 1, 0], [], []>} : vector<4x16xf32>, vector<4x16xf32>, vector<4x4xf32> -> vector<4x4xf32>
    %c1 = arith.constant 1 : index
    %c0_27 = arith.constant 0 : index
    %c0_28 = arith.constant 0 : index
    %58 = vector.load %arg6[%c1, %c0_27, %c0_28] : memref<4x4x4xf32, #tpu.memory_space<vmem>>, vector<1x4x4xf32>
    %59 = vector.shape_cast %58 : vector<1x4x4xf32> to vector<4x4xf32>
    %60 = arith.addf %57, %59 : vector<4x4xf32>
    %cst_29 = arith.constant dense<0xFF800000> : vector<4xf32>
    %61 = vector.multi_reduction <maximumf>, %60, %cst_29 [1] : vector<4x4xf32> to vector<4xf32>
    %62 = vector.shape_cast %61 : vector<4xf32> to vector<4x1xf32>
    %63 = vector.broadcast %62 : vector<4x1xf32> to vector<4x4xf32>
    %64 = arith.subf %60, %63 : vector<4x4xf32>
    %65 = math.exp %64 : vector<4x4xf32>
    %cst_30 = arith.constant dense<0.000000e+00> : vector<4xf32>
    %66 = vector.multi_reduction <add>, %65, %cst_30 [1] : vector<4x4xf32> to vector<4xf32>
    %67 = vector.shape_cast %66 : vector<4xf32> to vector<4x1xf32>
    %68 = tpu.reciprocal %67 {approx = true} : vector<4x1xf32> -> vector<4x1xf32>
    %69 = vector.broadcast %68 : vector<4x1xf32> to vector<4x4xf32>
    %70 = arith.mulf %65, %69 : vector<4x4xf32>
    %cst_31 = arith.constant dense<0.000000e+00> : vector<4x64xf32>
    %71 = tpu.matmul %70, %56, %cst_31 {dimension_numbers = #tpu.dot_dimension_numbers<[1], [0], [0], [1], [0, 0, 1, 1], [], []>} : vector<4x4xf32>, vector<4x64xf32>, vector<4x64xf32> -> vector<4x64xf32>
    %72 = arith.truncf %71 : vector<4x64xf32> to vector<4x64xbf16>
    %73 = vector.extract_strided_slice %30 {offsets = [64, 0], sizes = [64, 128], strides = [1, 1]} : vector<256x128xbf16> to vector<64x128xbf16>
    %cst_32 = arith.constant dense<0.000000e+00> : vector<4x128xf32>
    %74 = tpu.matmul %72, %73, %cst_32 {dimension_numbers = #tpu.dot_dimension_numbers<[1], [0], [0], [1], [0, 0, 1, 1], [], []>} : vector<4x64xbf16>, vector<64x128xbf16>, vector<4x128xf32> -> vector<4x128xf32>
    %75 = arith.addf %53, %74 : vector<4x128xf32>
    %76 = vector.extract_strided_slice %29 {offsets = [0, 192], sizes = [4, 16], strides = [1, 1]} : vector<4x384xf32> to vector<4x16xf32>
    %77 = vector.extract_strided_slice %29 {offsets = [0, 208], sizes = [4, 16], strides = [1, 1]} : vector<4x384xf32> to vector<4x16xf32>
    %78 = vector.extract_strided_slice %29 {offsets = [0, 224], sizes = [4, 64], strides = [1, 1]} : vector<4x384xf32> to vector<4x64xf32>
    %cst_33 = arith.constant dense<0.000000e+00> : vector<4x4xf32>
    %79 = tpu.matmul %76, %77, %cst_33 {dimension_numbers = #tpu.dot_dimension_numbers<[1], [1], [0], [0], [0, 0, 1, 0], [], []>} : vector<4x16xf32>, vector<4x16xf32>, vector<4x4xf32> -> vector<4x4xf32>
    %c2 = arith.constant 2 : index
    %c0_34 = arith.constant 0 : index
    %c0_35 = arith.constant 0 : index
    %80 = vector.load %arg6[%c2, %c0_34, %c0_35] : memref<4x4x4xf32, #tpu.memory_space<vmem>>, vector<1x4x4xf32>
    %81 = vector.shape_cast %80 : vector<1x4x4xf32> to vector<4x4xf32>
    %82 = arith.addf %79, %81 : vector<4x4xf32>
    %cst_36 = arith.constant dense<0xFF800000> : vector<4xf32>
    %83 = vector.multi_reduction <maximumf>, %82, %cst_36 [1] : vector<4x4xf32> to vector<4xf32>
    %84 = vector.shape_cast %83 : vector<4xf32> to vector<4x1xf32>
    %85 = vector.broadcast %84 : vector<4x1xf32> to vector<4x4xf32>
    %86 = arith.subf %82, %85 : vector<4x4xf32>
    %87 = math.exp %86 : vector<4x4xf32>
    %cst_37 = arith.constant dense<0.000000e+00> : vector<4xf32>
    %88 = vector.multi_reduction <add>, %87, %cst_37 [1] : vector<4x4xf32> to vector<4xf32>
    %89 = vector.shape_cast %88 : vector<4xf32> to vector<4x1xf32>
    %90 = tpu.reciprocal %89 {approx = true} : vector<4x1xf32> -> vector<4x1xf32>
    %91 = vector.broadcast %90 : vector<4x1xf32> to vector<4x4xf32>
    %92 = arith.mulf %87, %91 : vector<4x4xf32>
    %cst_38 = arith.constant dense<0.000000e+00> : vector<4x64xf32>
    %93 = tpu.matmul %92, %78, %cst_38 {dimension_numbers = #tpu.dot_dimension_numbers<[1], [0], [0], [1], [0, 0, 1, 1], [], []>} : vector<4x4xf32>, vector<4x64xf32>, vector<4x64xf32> -> vector<4x64xf32>
    %94 = arith.truncf %93 : vector<4x64xf32> to vector<4x64xbf16>
    %95 = vector.extract_strided_slice %30 {offsets = [128, 0], sizes = [64, 128], strides = [1, 1]} : vector<256x128xbf16> to vector<64x128xbf16>
    %cst_39 = arith.constant dense<0.000000e+00> : vector<4x128xf32>
    %96 = tpu.matmul %94, %95, %cst_39 {dimension_numbers = #tpu.dot_dimension_numbers<[1], [0], [0], [1], [0, 0, 1, 1], [], []>} : vector<4x64xbf16>, vector<64x128xbf16>, vector<4x128xf32> -> vector<4x128xf32>
    %97 = arith.addf %75, %96 : vector<4x128xf32>
    %98 = vector.extract_strided_slice %29 {offsets = [0, 288], sizes = [4, 16], strides = [1, 1]} : vector<4x384xf32> to vector<4x16xf32>
    %99 = vector.extract_strided_slice %29 {offsets = [0, 304], sizes = [4, 16], strides = [1, 1]} : vector<4x384xf32> to vector<4x16xf32>
    %100 = vector.extract_strided_slice %29 {offsets = [0, 320], sizes = [4, 64], strides = [1, 1]} : vector<4x384xf32> to vector<4x64xf32>
    %cst_40 = arith.constant dense<0.000000e+00> : vector<4x4xf32>
    %101 = tpu.matmul %98, %99, %cst_40 {dimension_numbers = #tpu.dot_dimension_numbers<[1], [1], [0], [0], [0, 0, 1, 0], [], []>} : vector<4x16xf32>, vector<4x16xf32>, vector<4x4xf32> -> vector<4x4xf32>
    %c3 = arith.constant 3 : index
    %c0_41 = arith.constant 0 : index
    %c0_42 = arith.constant 0 : index
    %102 = vector.load %arg6[%c3, %c0_41, %c0_42] : memref<4x4x4xf32, #tpu.memory_space<vmem>>, vector<1x4x4xf32>
    %103 = vector.shape_cast %102 : vector<1x4x4xf32> to vector<4x4xf32>
    %104 = arith.addf %101, %103 : vector<4x4xf32>
    %cst_43 = arith.constant dense<0xFF800000> : vector<4xf32>
    %105 = vector.multi_reduction <maximumf>, %104, %cst_43 [1] : vector<4x4xf32> to vector<4xf32>
    %106 = vector.shape_cast %105 : vector<4xf32> to vector<4x1xf32>
    %107 = vector.broadcast %106 : vector<4x1xf32> to vector<4x4xf32>
    %108 = arith.subf %104, %107 : vector<4x4xf32>
    %109 = math.exp %108 : vector<4x4xf32>
    %cst_44 = arith.constant dense<0.000000e+00> : vector<4xf32>
    %110 = vector.multi_reduction <add>, %109, %cst_44 [1] : vector<4x4xf32> to vector<4xf32>
    %111 = vector.shape_cast %110 : vector<4xf32> to vector<4x1xf32>
    %112 = tpu.reciprocal %111 {approx = true} : vector<4x1xf32> -> vector<4x1xf32>
    %113 = vector.broadcast %112 : vector<4x1xf32> to vector<4x4xf32>
    %114 = arith.mulf %109, %113 : vector<4x4xf32>
    %cst_45 = arith.constant dense<0.000000e+00> : vector<4x64xf32>
    %115 = tpu.matmul %114, %100, %cst_45 {dimension_numbers = #tpu.dot_dimension_numbers<[1], [0], [0], [1], [0, 0, 1, 1], [], []>} : vector<4x4xf32>, vector<4x64xf32>, vector<4x64xf32> -> vector<4x64xf32>
    %116 = arith.truncf %115 : vector<4x64xf32> to vector<4x64xbf16>
    %117 = vector.extract_strided_slice %30 {offsets = [192, 0], sizes = [64, 128], strides = [1, 1]} : vector<256x128xbf16> to vector<64x128xbf16>
    %cst_46 = arith.constant dense<0.000000e+00> : vector<4x128xf32>
    %118 = tpu.matmul %116, %117, %cst_46 {dimension_numbers = #tpu.dot_dimension_numbers<[1], [0], [0], [1], [0, 0, 1, 1], [], []>} : vector<4x64xbf16>, vector<64x128xbf16>, vector<4x128xf32> -> vector<4x128xf32>
    %119 = arith.addf %97, %118 : vector<4x128xf32>
    %120 = arith.addf %1, %119 : vector<4x128xf32>
    %c0_47 = arith.constant 0 : index
    %c0_48 = arith.constant 0 : index
    %121 = vector.load %arg8[%c0_47, %c0_48] : memref<1x128xf32, #tpu.memory_space<vmem>>, vector<1x128xf32>
    %122 = vector.broadcast %121 : vector<1x128xf32> to vector<4x128xf32>
    %123 = arith.addf %120, %122 : vector<4x128xf32>
    %c0_49 = arith.constant 0 : index
    %c0_50 = arith.constant 0 : index
    %124 = vector.load %arg9[%c0_49, %c0_50] : memref<1x128xf32, #tpu.memory_space<vmem>>, vector<1x128xf32>
    %c0_51 = arith.constant 0 : index
    %c0_52 = arith.constant 0 : index
    %125 = vector.load %arg10[%c0_51, %c0_52] : memref<1x128xf32, #tpu.memory_space<vmem>>, vector<1x128xf32>
    %cst_53 = arith.constant dense<0.000000e+00> : vector<4xf32>
    %126 = vector.multi_reduction <add>, %123, %cst_53 [1] : vector<4x128xf32> to vector<4xf32>
    %127 = vector.shape_cast %126 : vector<4xf32> to vector<4x1xf32>
    %cst_54 = arith.constant 1.280000e+02 : f32
    %128 = vector.broadcast %cst_54 : f32 to vector<4x1xf32>
    %129 = arith.divf %127, %128 : vector<4x1xf32>
    %130 = vector.broadcast %129 : vector<4x1xf32> to vector<4x128xf32>
    %131 = arith.subf %123, %130 : vector<4x128xf32>
    %132 = arith.mulf %131, %131 : vector<4x128xf32>
    %cst_55 = arith.constant dense<0.000000e+00> : vector<4xf32>
    %133 = vector.multi_reduction <add>, %132, %cst_55 [1] : vector<4x128xf32> to vector<4xf32>
    %134 = vector.shape_cast %133 : vector<4xf32> to vector<4x1xf32>
    %cst_56 = arith.constant 1.280000e+02 : f32
    %135 = vector.broadcast %cst_56 : f32 to vector<4x1xf32>
    %136 = arith.divf %134, %135 : vector<4x1xf32>
    %cst_57 = arith.constant 9.99999974E-6 : f32
    %137 = vector.broadcast %cst_57 : f32 to vector<4x1xf32>
    %138 = arith.addf %136, %137 : vector<4x1xf32>
    %139 = math.rsqrt %138 : vector<4x1xf32>
    %140 = vector.broadcast %139 : vector<4x1xf32> to vector<4x128xf32>
    %141 = arith.mulf %131, %140 : vector<4x128xf32>
    %142 = vector.broadcast %124 : vector<1x128xf32> to vector<4x128xf32>
    %143 = arith.mulf %141, %142 : vector<4x128xf32>
    %144 = vector.broadcast %125 : vector<1x128xf32> to vector<4x128xf32>
    %145 = arith.addf %143, %144 : vector<4x128xf32>
    %c0_58 = arith.constant 0 : index
    %c0_59 = arith.constant 0 : index
    %146 = vector.load %arg11[%c0_58, %c0_59] : memref<128x512xbf16, #tpu.memory_space<vmem>>, vector<128x512xbf16>
    %147 = arith.truncf %145 : vector<4x128xf32> to vector<4x128xbf16>
    %cst_60 = arith.constant dense<0.000000e+00> : vector<4x512xf32>
    %148 = tpu.matmul %147, %146, %cst_60 {dimension_numbers = #tpu.dot_dimension_numbers<[1], [0], [0], [1], [0, 0, 1, 1], [], []>} : vector<4x128xbf16>, vector<128x512xbf16>, vector<4x512xf32> -> vector<4x512xf32>
    %c0_61 = arith.constant 0 : index
    %c0_62 = arith.constant 0 : index
    %149 = vector.load %arg12[%c0_61, %c0_62] : memref<1x512xf32, #tpu.memory_space<vmem>>, vector<1x512xf32>
    %150 = vector.broadcast %149 : vector<1x512xf32> to vector<4x512xf32>
    %151 = arith.addf %148, %150 : vector<4x512xf32>
    %cst_63 = arith.constant 5.000000e-01 : f32
    %152 = vector.broadcast %cst_63 : f32 to vector<4x512xf32>
    %153 = arith.mulf %152, %151 : vector<4x512xf32>
    %cst_64 = arith.constant 4.471500e-02 : f32
    %154 = vector.broadcast %cst_64 : f32 to vector<4x512xf32>
    %155 = arith.mulf %154, %151 : vector<4x512xf32>
    %156 = arith.mulf %155, %151 : vector<4x512xf32>
    %157 = arith.mulf %156, %151 : vector<4x512xf32>
    %158 = arith.addf %151, %157 : vector<4x512xf32>
    %cst_65 = arith.constant 0.797884583 : f32
    %159 = vector.broadcast %cst_65 : f32 to vector<4x512xf32>
    %160 = arith.mulf %159, %158 : vector<4x512xf32>
    %161 = math.tanh %160 : vector<4x512xf32>
    %cst_66 = arith.constant 1.000000e+00 : f32
    %162 = vector.broadcast %cst_66 : f32 to vector<4x512xf32>
    %163 = arith.addf %162, %161 : vector<4x512xf32>
    %164 = arith.mulf %153, %163 : vector<4x512xf32>
    %c0_67 = arith.constant 0 : index
    %c0_68 = arith.constant 0 : index
    %165 = vector.load %arg13[%c0_67, %c0_68] : memref<512x128xbf16, #tpu.memory_space<vmem>>, vector<512x128xbf16>
    %166 = arith.truncf %164 : vector<4x512xf32> to vector<4x512xbf16>
    %cst_69 = arith.constant dense<0.000000e+00> : vector<4x128xf32>
    %167 = tpu.matmul %166, %165, %cst_69 {dimension_numbers = #tpu.dot_dimension_numbers<[1], [0], [0], [1], [0, 0, 1, 1], [], []>} : vector<4x512xbf16>, vector<512x128xbf16>, vector<4x128xf32> -> vector<4x128xf32>
    %168 = arith.addf %123, %167 : vector<4x128xf32>
    %c0_70 = arith.constant 0 : index
    %c0_71 = arith.constant 0 : index
    %169 = vector.load %arg14[%c0_70, %c0_71] : memref<1x128xf32, #tpu.memory_space<vmem>>, vector<1x128xf32>
    %170 = vector.broadcast %169 : vector<1x128xf32> to vector<4x128xf32>
    %171 = arith.addf %168, %170 : vector<4x128xf32>
    %c0_72 = arith.constant 0 : index
    %c0_73 = arith.constant 0 : index
    %172 = vector.load %arg15[%c0_72, %c0_73] : memref<1x128xf32, #tpu.memory_space<vmem>>, vector<1x128xf32>
    %c0_74 = arith.constant 0 : index
    %c0_75 = arith.constant 0 : index
    %173 = vector.load %arg16[%c0_74, %c0_75] : memref<1x128xf32, #tpu.memory_space<vmem>>, vector<1x128xf32>
    %cst_76 = arith.constant dense<0.000000e+00> : vector<4xf32>
    %174 = vector.multi_reduction <add>, %171, %cst_76 [1] : vector<4x128xf32> to vector<4xf32>
    %175 = vector.shape_cast %174 : vector<4xf32> to vector<4x1xf32>
    %cst_77 = arith.constant 1.280000e+02 : f32
    %176 = vector.broadcast %cst_77 : f32 to vector<4x1xf32>
    %177 = arith.divf %175, %176 : vector<4x1xf32>
    %178 = vector.broadcast %177 : vector<4x1xf32> to vector<4x128xf32>
    %179 = arith.subf %171, %178 : vector<4x128xf32>
    %180 = arith.mulf %179, %179 : vector<4x128xf32>
    %cst_78 = arith.constant dense<0.000000e+00> : vector<4xf32>
    %181 = vector.multi_reduction <add>, %180, %cst_78 [1] : vector<4x128xf32> to vector<4xf32>
    %182 = vector.shape_cast %181 : vector<4xf32> to vector<4x1xf32>
    %cst_79 = arith.constant 1.280000e+02 : f32
    %183 = vector.broadcast %cst_79 : f32 to vector<4x1xf32>
    %184 = arith.divf %182, %183 : vector<4x1xf32>
    %cst_80 = arith.constant 9.99999974E-6 : f32
    %185 = vector.broadcast %cst_80 : f32 to vector<4x1xf32>
    %186 = arith.addf %184, %185 : vector<4x1xf32>
    %187 = math.rsqrt %186 : vector<4x1xf32>
    %188 = vector.broadcast %187 : vector<4x1xf32> to vector<4x128xf32>
    %189 = arith.mulf %179, %188 : vector<4x128xf32>
    %190 = vector.broadcast %172 : vector<1x128xf32> to vector<4x128xf32>
    %191 = arith.mulf %189, %190 : vector<4x128xf32>
    %192 = vector.broadcast %173 : vector<1x128xf32> to vector<4x128xf32>
    %193 = arith.addf %191, %192 : vector<4x128xf32>
    %cst_81 = arith.constant dense<0.000000e+00> : vector<128xf32>
    %194 = vector.multi_reduction <add>, %193, %cst_81 [0] : vector<4x128xf32> to vector<128xf32>
    %195 = vector.shape_cast %194 : vector<128xf32> to vector<1x128xf32>
    %cst_82 = arith.constant 4.000000e+00 : f32
    %196 = vector.broadcast %cst_82 : f32 to vector<1x128xf32>
    %197 = arith.divf %195, %196 : vector<1x128xf32>
    %c0_83 = arith.constant 0 : index
    %c0_84 = arith.constant 0 : index
    %198 = vector.load %arg17[%c0_83, %c0_84] : memref<128x10xbf16, #tpu.memory_space<vmem>>, vector<128x10xbf16>
    %199 = arith.truncf %197 : vector<1x128xf32> to vector<1x128xbf16>
    %cst_85 = arith.constant dense<0.000000e+00> : vector<1x10xf32>
    %200 = tpu.matmul %199, %198, %cst_85 {dimension_numbers = #tpu.dot_dimension_numbers<[1], [0], [0], [1], [0, 0, 1, 1], [], []>} : vector<1x128xbf16>, vector<128x10xbf16>, vector<1x10xf32> -> vector<1x10xf32>
    %c0_86 = arith.constant 0 : index
    %c0_87 = arith.constant 0 : index
    %201 = vector.load %arg18[%c0_86, %c0_87] : memref<1x10xf32, #tpu.memory_space<vmem>>, vector<1x10xf32>
    %202 = arith.addf %200, %201 : vector<1x10xf32>
    %c0_88 = arith.constant 0 : index
    %c0_89 = arith.constant 0 : index
    %c0_90 = arith.constant 0 : index
    %203 = vector.load %arg19[%c0_88, %c0_89, %c0_90] : memref<1x1x10xf32, #tpu.memory_space<vmem>>, vector<1x1x10xf32>
    %204 = vector.shape_cast %203 : vector<1x1x10xf32> to vector<1x10xf32>
    %205 = vector.shape_cast %202 : vector<1x10xf32> to vector<1x1x10xf32>
    tpu.vector_store %arg19[%c0_88, %c0_89, %c0_90], %205 {strides = array<i32>} : memref<1x1x10xf32, #tpu.memory_space<vmem>>, vector<1x1x10xf32>,
    return
  }
  func.func @transform_0(%arg0: i32) -> (i32, i32, i32) {
    %c0_i32 = arith.constant 0 : i32
    %c0_i32_0 = arith.constant 0 : i32
    %c0_i32_1 = arith.constant 0 : i32
    return %arg0, %c0_i32, %c0_i32_0 : i32, i32, i32
  }
  func.func @transform_1(%arg0: i32) -> (i32, i32) {
    %c0_i32 = arith.constant 0 : i32
    %c0_i32_0 = arith.constant 0 : i32
    %c0_i32_1 = arith.constant 0 : i32
    return %c0_i32, %c0_i32_0 : i32, i32
  }
  func.func @transform_2(%arg0: i32) -> (i32, i32) {
    %c0_i32 = arith.constant 0 : i32
    %c0_i32_0 = arith.constant 0 : i32
    %c0_i32_1 = arith.constant 0 : i32
    return %c0_i32, %c0_i32_0 : i32, i32
  }
  func.func @transform_3(%arg0: i32) -> (i32, i32) {
    %c0_i32 = arith.constant 0 : i32
    %c0_i32_0 = arith.constant 0 : i32
    %c0_i32_1 = arith.constant 0 : i32
    return %c0_i32, %c0_i32_0 : i32, i32
  }
  func.func @transform_4(%arg0: i32) -> (i32, i32) {
    %c0_i32 = arith.constant 0 : i32
    %c0_i32_0 = arith.constant 0 : i32
    %c0_i32_1 = arith.constant 0 : i32
    return %c0_i32, %c0_i32_0 : i32, i32
  }
  func.func @transform_5(%arg0: i32) -> (i32, i32, i32) {
    %c0_i32 = arith.constant 0 : i32
    %c0_i32_0 = arith.constant 0 : i32
    %c0_i32_1 = arith.constant 0 : i32
    %c0_i32_2 = arith.constant 0 : i32
    return %c0_i32, %c0_i32_0, %c0_i32_1 : i32, i32, i32
  }
  func.func @transform_6(%arg0: i32) -> (i32, i32) {
    %c0_i32 = arith.constant 0 : i32
    %c0_i32_0 = arith.constant 0 : i32
    %c0_i32_1 = arith.constant 0 : i32
    return %c0_i32, %c0_i32_0 : i32, i32
  }
  func.func @transform_7(%arg0: i32) -> (i32, i32) {
    %c0_i32 = arith.constant 0 : i32
    %c0_i32_0 = arith.constant 0 : i32
    %c0_i32_1 = arith.constant 0 : i32
    return %c0_i32, %c0_i32_0 : i32, i32
  }
  func.func @transform_8(%arg0: i32) -> (i32, i32) {
    %c0_i32 = arith.constant 0 : i32
    %c0_i32_0 = arith.constant 0 : i32
    %c0_i32_1 = arith.constant 0 : i32
    return %c0_i32, %c0_i32_0 : i32, i32
  }
  func.func @transform_9(%arg0: i32) -> (i32, i32) {
    %c0_i32 = arith.constant 0 : i32
    %c0_i32_0 = arith.constant 0 : i32
    %c0_i32_1 = arith.constant 0 : i32
    return %c0_i32, %c0_i32_0 : i32, i32
  }
  func.func @transform_10(%arg0: i32) -> (i32, i32) {
    %c0_i32 = arith.constant 0 : i32
    %c0_i32_0 = arith.constant 0 : i32
    %c0_i32_1 = arith.constant 0 : i32
    return %c0_i32, %c0_i32_0 : i32, i32
  }
  func.func @transform_11(%arg0: i32) -> (i32, i32) {
    %c0_i32 = arith.constant 0 : i32
    %c0_i32_0 = arith.constant 0 : i32
    %c0_i32_1 = arith.constant 0 : i32
    return %c0_i32, %c0_i32_0 : i32, i32
  }
  func.func @transform_12(%arg0: i32) -> (i32, i32) {
    %c0_i32 = arith.constant 0 : i32
    %c0_i32_0 = arith.constant 0 : i32
    %c0_i32_1 = arith.constant 0 : i32
    return %c0_i32, %c0_i32_0 : i32, i32
  }
  func.func @transform_13(%arg0: i32) -> (i32, i32) {
    %c0_i32 = arith.constant 0 : i32
    %c0_i32_0 = arith.constant 0 : i32
    %c0_i32_1 = arith.constant 0 : i32
    return %c0_i32, %c0_i32_0 : i32, i32
  }
  func.func @transform_14(%arg0: i32) -> (i32, i32) {
    %c0_i32 = arith.constant 0 : i32
    %c0_i32_0 = arith.constant 0 : i32
    %c0_i32_1 = arith.constant 0 : i32
    return %c0_i32, %c0_i32_0 : i32, i32
  }
  func.func @transform_15(%arg0: i32) -> (i32, i32) {
    %c0_i32 = arith.constant 0 : i32
    %c0_i32_0 = arith.constant 0 : i32
    %c0_i32_1 = arith.constant 0 : i32
    return %c0_i32, %c0_i32_0 : i32, i32
  }
  func.func @transform_16(%arg0: i32) -> (i32, i32) {
    %c0_i32 = arith.constant 0 : i32
    %c0_i32_0 = arith.constant 0 : i32
    %c0_i32_1 = arith.constant 0 : i32
    return %c0_i32, %c0_i32_0 : i32, i32
  }
  func.func @transform_17(%arg0: i32) -> (i32, i32) {
    %c0_i32 = arith.constant 0 : i32
    %c0_i32_0 = arith.constant 0 : i32
    %c0_i32_1 = arith.constant 0 : i32
    return %c0_i32, %c0_i32_0 : i32, i32
  }
  func.func @transform_18(%arg0: i32) -> (i32, i32, i32) {
    %c0_i32 = arith.constant 0 : i32
    %c0_i32_0 = arith.constant 0 : i32
    %c0_i32_1 = arith.constant 0 : i32
    return %arg0, %c0_i32, %c0_i32_0 : i32, i32, i32
  }
}

</mosaic_0001>

<llo_original>
// kernel: _lambda_.10
$region0: #{_lambda_.10}
  #allocation0 [shape = 'u32[]', space=smem, size = 0x4, offset = 0x4, fixed_abs, tag = 'smem constant byte address 0x4 - core index']
  #allocation1 [shape = 'u32[144,128]{1,0:T(1,128)}', space=vmem, size = 0x12000, scoped, tag = 'internal scratch']
  %s0 = inlined_call_operand.vmem [shape: bf16[2048,27], index: 0, kind: input, shape index: {}]
  %s1 = inlined_call_operand.vmem [shape: bf16[27,8], index: 1, kind: input, shape index: {}]
  %s2 = inlined_call_operand.vmem [shape: f32[1,8], index: 2, kind: input, shape index: {}]
  %s3 = inlined_call_operand.vmem [shape: f32[2048,8], index: 3, kind: output, shape index: {}]
  %s4 = sld [smem:[#allocation0]]
  $region45: #{_lambda_.10} parent=0
    _
  %s6 = ssub.s32 1, %s4
  %s7 = scalar_select 0, %s6, %s4
  loop: start=0, step=1, limit=4
  $region2: #{_lambda_.10} parent=0 // loop_pre_header
    _
  $region3: #{_lambda_.10} parent=0 // loop_header
    %s9 = sphi 0, %s13
    %p10 = scmp.ge.s32.totalorder %s9, 4
    %s19 = sphi 0, %s21
    %s22 = sphi 0, %s19
    %s23 = sphi 0, %s22
    %s39 = sphi 0, %s23
    %s43 = sphi 0, %s43
    %s45 = sphi 0, %s43
    %s46 = sphi 0, %s45
    %s60 = sphi 0, %s46
    %s64 = sphi 0, %s64
    %s66 = sphi 0, %s64
    %s67 = sphi 0, %s66
    %s81 = sphi 0, %s67
    %s87 = sphi 0, %s89
    %s90 = sphi 0, %s87
    %s91 = sphi 0, %s90
    %s107 = sphi 0, %s91
  $region4: #{_lambda_.10} parent=0 // loop_header_branch
    %12 = sbr.rel (%p10) target = $region8
  $region5: #{_lambda_.10} parent=0 // loop_body
    %s14 = ssub.s32 %s9, 1
    %s15 = ssub.s32 %s9, 2
    %s16 = sadd.s32 %s9, 1
    %s17 = ssub.s32 %s9, %s16
    %p18 = scmp.eq.s32.totalorder %s17, 0
    %s20 = sadd.s32 %s19, 1
    %s21 = scalar_select %p18, %s19, %s20
    %p24 = pneg %p18
    %p25 = scmp.eq.s32.totalorder %s9, 1
    %p26 = por %p24, %p25
    %p27 = scmp.ne.s32.totalorder %s19, %s22
    %p28 = scmp.eq.s32.totalorder %s9, 0
    %p29 = por %p27, %p28
    %p30 = scmp.ne.s32.totalorder %s19, %s22
    %p31 = scmp.eq.s32.totalorder %s14, 1
    %p32 = por %p30, %p31
    %p33 = scmp.ne.s32.totalorder %s22, %s23
    %p34 = scmp.eq.s32.totalorder %s14, 0
    %p35 = por %p33, %p34
    %p36 = scmp.ne.s32.totalorder %s22, %s23
    %p37 = scmp.eq.s32.totalorder %s15, 1
    %p38 = por %p36, %p37
    %p40 = scmp.ne.s32.totalorder %s23, %s39
    %p41 = scmp.eq.s32.totalorder %s15, 0
    %p42 = por %p40, %p41
    %s44 = sadd.s32 %s43, 1
    %p47 = scmp.eq.s32.totalorder %s9, 1
    %p48 = scmp.ne.s32.totalorder %s43, %s45
    %p49 = scmp.eq.s32.totalorder %s9, 0
    %p50 = por %p48, %p49
    %p51 = scmp.ne.s32.totalorder %s43, %s45
    %p52 = scmp.eq.s32.totalorder %s14, 1
    %p53 = por %p51, %p52
    %p54 = scmp.ne.s32.totalorder %s45, %s46
    %p55 = scmp.eq.s32.totalorder %s14, 0
    %p56 = por %p54, %p55
    %p57 = scmp.ne.s32.totalorder %s45, %s46
    %p58 = scmp.eq.s32.totalorder %s15, 1
    %p59 = por %p57, %p58
    %p61 = scmp.ne.s32.totalorder %s46, %s60
    %p62 = scmp.eq.s32.totalorder %s15, 0
    %p63 = por %p61, %p62
    %s65 = sadd.s32 %s64, 1
    %p68 = scmp.eq.s32.totalorder %s9, 1
    %p69 = scmp.ne.s32.totalorder %s64, %s66
    %p70 = scmp.eq.s32.totalorder %s9, 0
    %p71 = por %p69, %p70
    %p72 = scmp.ne.s32.totalorder %s64, %s66
    %p73 = scmp.eq.s32.totalorder %s14, 1
    %p74 = por %p72, %p73
    %p75 = scmp.ne.s32.totalorder %s66, %s67
    %p76 = scmp.eq.s32.totalorder %s14, 0
    %p77 = por %p75, %p76
    %p78 = scmp.ne.s32.totalorder %s66, %s67
    %p79 = scmp.eq.s32.totalorder %s15, 1
    %p80 = por %p78, %p79
    %p82 = scmp.ne.s32.totalorder %s67, %s81
    %p83 = scmp.eq.s32.totalorder %s15, 0
    %p84 = por %p82, %p83
    %s85 = ssub.s32 %s9, %s16
    %p86 = scmp.eq.s32.totalorder %s85, 0
    %s88 = sadd.s32 %s87, 1
    %s89 = scalar_select %p86, %s87, %s88
    %p92 = pneg %p86
    %p93 = scmp.eq.s32.totalorder %s9, 1
    %p94 = por %p92, %p93
    %p95 = scmp.ne.s32.totalorder %s87, %s90
    %p96 = scmp.eq.s32.totalorder %s9, 0
    %p97 = por %p95, %p96
    %p98 = scmp.ne.s32.totalorder %s87, %s90
    %p99 = scmp.eq.s32.totalorder %s14, 1
    %p100 = por %p98, %p99
    %p101 = scmp.ne.s32.totalorder %s90, %s91
    %p102 = scmp.eq.s32.totalorder %s14, 0
    %p103 = por %p101, %p102
    %p104 = scmp.ne.s32.totalorder %s90, %s91
    %p105 = scmp.eq.s32.totalorder %s15, 1
    %p106 = por %p104, %p105
    %p108 = scmp.ne.s32.totalorder %s91, %s107
    %p109 = scmp.eq.s32.totalorder %s15, 0
    %p110 = por %p108, %p109
    %p111 = scmp.le.s32.totalorder 1, %s9
    %p112 = scmp.lt.s32.totalorder %s9, 3
    %p113 = pnand %p111, %p112
    %p114 = pneg %p113
    // Predicated region
    $region9: #{_lambda_.10} parent=5 // pred_check
      _
    $region10: #{_lambda_.10} parent=5 // pred_check_branch
      %116 = sbr.rel (%p113) target = $region12
    $region11: #{_lambda_.10} parent=5 // pred_region
      %s117 = ssub.s32 %s9, 1
      // Predicated region
      $region13: #{_lambda_.10} parent=11 // pred_check
        %p118 = pneg %p56
      $region14: #{_lambda_.10} parent=11 // pred_check_branch
        %120 = sbr.rel (%p118) target = $region16
      $region15: #{_lambda_.10} parent=11 // pred_region
        _
      $region16: #{_lambda_.10} parent=11 // pred_fallthru
        _
      // Predicated region
      $region17: #{_lambda_.10} parent=11 // pred_check
        %p121 = pneg %p77
      $region18: #{_lambda_.10} parent=11 // pred_check_branch
        %123 = sbr.rel (%p121) target = $region20
      $region19: #{_lambda_.10} parent=11 // pred_region
        _
      $region20: #{_lambda_.10} parent=11 // pred_fallthru
        _
    $region12: #{_lambda_.10} parent=5 // pred_fallthru
      _
    %p124 = scmp.lt.s32.totalorder %s9, 2
    // Predicated region
    $region21: #{_lambda_.10} parent=5 // pred_check
      %p125 = pneg %p124
    $region22: #{_lambda_.10} parent=5 // pred_check_branch
      %127 = sbr.rel (%p125) target = $region24
    $region23: #{_lambda_.10} parent=5 // pred_region
      // Predicated region
      $region25: #{_lambda_.10} parent=23 // pred_check
        %p128 = pneg %p29
      $region26: #{_lambda_.10} parent=23 // pred_check_branch
        %130 = sbr.rel (%p128) target = $region28
      $region27: #{_lambda_.10} parent=23 // pred_region
        %s131 = smul.u32 128, %s9
        %p132 = scmp.lt.s32.totalorder %s131, 255
        %s133 = scalar_select %p132, %s131, 255
        %s134 = smul.addr %s133, 4
        %s135 = scalar_lea.vmem %s0, %s134
        %s136 = smul.u32 128, %s9
      $region28: #{_lambda_.10} parent=23 // pred_fallthru
        _
    $region24: #{_lambda_.10} parent=5 // pred_fallthru
      _
    %p137 = scmp.le.s32.totalorder 1, %s9
    %p138 = scmp.lt.s32.totalorder %s9, 3
    %p139 = pnand %p137, %p138
    %p140 = pneg %p139
    // Predicated region
    $region29: #{_lambda_.10} parent=5 // pred_check
      _
    $region30: #{_lambda_.10} parent=5 // pred_check_branch
      %142 = sbr.rel (%p139) target = $region32
    $region31: #{_lambda_.10} parent=5 // pred_region
      %s143 = ssub.s32 %s9, 1
      %s144 = smul.u32 128, %s14
      %p145 = scmp.lt.s32.totalorder %s144, 255
      %s146 = scalar_select %p145, %s144, 255
      %s147 = smul.addr %s146, 4
      %s148 = scalar_lea.vmem %s0, %s147
      %p149 = pneg %p35
      %p150 = pneg %p32
      %p151 = pneg %p56
      %p152 = pneg %p53
      %p153 = pneg %p77
      %p154 = pneg %p74
      %p155 = pneg %p103
      %p156 = pneg %p100
      %s157 = smul.u32 128, %s14
      %p158 = scmp.lt.s32.totalorder %s157, 255
      %s159 = scalar_select %p158, %s157, 255
      %s160 = smul.addr %s159, 8
      %s161 = scalar_lea.vmem %s3, %s160
      %s162 = smul.u32 128, %s14
      %p163 = scmp.lt.s32.totalorder %s162, 255
      %s164 = scalar_select %p163, %s162, 255
      %s165 = smul.addr %s164, 4
      %s166 = scalar_lea.vmem %s0, %s165
      %s167 = smul.u32 128, %s14
      %s168 = smul.u32 128, %s14
      %p169 = scmp.lt.s32.totalorder %s168, 255
      %s170 = scalar_select %p169, %s168, 255
      %s171 = smul.addr %s170, 8
      %s172 = scalar_lea.vmem %s3, %s171
      %s173 = smul.u32 128, %s14
      %v175 = vld [vmem:[%s166] sm:$0xf]
      %v176 = vld [vmem:[%s166 + $0x4] sm:$0xf]
      %v177 = vld [vmem:[%s166 + $0x8] sm:$0xf]
      %v178 = vld [vmem:[%s166 + $0xc] sm:$0xf]
      %v179 = vld [vmem:[%s166 + $0x10] sm:$0xf]
      %v180 = vld [vmem:[%s166 + $0x14] sm:$0xf]
      %v181 = vld [vmem:[%s166 + $0x18] sm:$0xf]
      %v182 = vld [vmem:[%s166 + $0x1c] sm:$0xf]
      %v183 = vld [vmem:[%s166 + $0x20] sm:$0xf]
      %v184 = vld [vmem:[%s166 + $0x24] sm:$0xf]
      %v185 = vld [vmem:[%s166 + $0x28] sm:$0xf]
      %v186 = vld [vmem:[%s166 + $0x2c] sm:$0xf]
      %v187 = vld [vmem:[%s166 + $0x30] sm:$0xf]
      %v188 = vld [vmem:[%s166 + $0x34] sm:$0xf]
      %v189 = vld [vmem:[%s166 + $0x38] sm:$0xf]
      %v190 = vld [vmem:[%s166 + $0x3c] sm:$0xf]
      %v191 = vld [vmem:[%s166 + $0x40] sm:$0xf]
      %v192 = vld [vmem:[%s166 + $0x44] sm:$0xf]
      %v193 = vld [vmem:[%s166 + $0x48] sm:$0xf]
      %v194 = vld [vmem:[%s166 + $0x4c] sm:$0xf]
      %v195 = vld [vmem:[%s166 + $0x50] sm:$0xf]
      %v196 = vld [vmem:[%s166 + $0x54] sm:$0xf]
      %v197 = vld [vmem:[%s166 + $0x58] sm:$0xf]
      %v198 = vld [vmem:[%s166 + $0x5c] sm:$0xf]
      %v199 = vld [vmem:[%s166 + $0x60] sm:$0xf]
      %v200 = vld [vmem:[%s166 + $0x64] sm:$0xf]
      %v201 = vld [vmem:[%s166 + $0x68] sm:$0xf]
      %v202 = vld [vmem:[%s166 + $0x6c] sm:$0xf]
      %v203 = vld [vmem:[%s166 + $0x70] sm:$0xf]
      %v204 = vld [vmem:[%s166 + $0x74] sm:$0xf]
      %v205 = vld [vmem:[%s166 + $0x78] sm:$0xf]
      %v206 = vld [vmem:[%s166 + $0x7c] sm:$0xf]
      %v207 = vld [vmem:[%s166 + $0x80] sm:$0xf]
      %v208 = vld [vmem:[%s166 + $0x84] sm:$0xf]
      %v209 = vld [vmem:[%s166 + $0x88] sm:$0xf]
      %v210 = vld [vmem:[%s166 + $0x8c] sm:$0xf]
      %v211 = vld [vmem:[%s166 + $0x90] sm:$0xf]
      %v212 = vld [vmem:[%s166 + $0x94] sm:$0xf]
      %v213 = vld [vmem:[%s166 + $0x98] sm:$0xf]
      %v214 = vld [vmem:[%s166 + $0x9c] sm:$0xf]
      %v215 = vld [vmem:[%s166 + $0xa0] sm:$0xf]
      %v216 = vld [vmem:[%s166 + $0xa4] sm:$0xf]
      %v217 = vld [vmem:[%s166 + $0xa8] sm:$0xf]
      %v218 = vld [vmem:[%s166 + $0xac] sm:$0xf]
      %v219 = vld [vmem:[%s166 + $0xb0] sm:$0xf]
      %v220 = vld [vmem:[%s166 + $0xb4] sm:$0xf]
      %v221 = vld [vmem:[%s166 + $0xb8] sm:$0xf]
      %v222 = vld [vmem:[%s166 + $0xbc] sm:$0xf]
      %v223 = vld [vmem:[%s166 + $0xc0] sm:$0xf]
      %v224 = vld [vmem:[%s166 + $0xc4] sm:$0xf]
      %v225 = vld [vmem:[%s166 + $0xc8] sm:$0xf]
      %v226 = vld [vmem:[%s166 + $0xcc] sm:$0xf]
      %v227 = vld [vmem:[%s166 + $0xd0] sm:$0xf]
      %v228 = vld [vmem:[%s166 + $0xd4] sm:$0xf]
      %v229 = vld [vmem:[%s166 + $0xd8] sm:$0xf]
      %v230 = vld [vmem:[%s166 + $0xdc] sm:$0xf]
      %v231 = vld [vmem:[%s166 + $0xe0] sm:$0xf]
      %v232 = vld [vmem:[%s166 + $0xe4] sm:$0xf]
      %v233 = vld [vmem:[%s166 + $0xe8] sm:$0xf]
      %v234 = vld [vmem:[%s166 + $0xec] sm:$0xf]
      %v235 = vld [vmem:[%s166 + $0xf0] sm:$0xf]
      %v236 = vld [vmem:[%s166 + $0xf4] sm:$0xf]
      %v237 = vld [vmem:[%s166 + $0xf8] sm:$0xf]
      %v238 = vld [vmem:[%s166 + $0xfc] sm:$0xf]
      %v239 = vld [vmem:[%s166 + $0x100] sm:$0xf]
      %v240 = vld [vmem:[%s166 + $0x104] sm:$0xf]
      %v241 = vld [vmem:[%s166 + $0x108] sm:$0xf]
      %v242 = vld [vmem:[%s166 + $0x10c] sm:$0xf]
      %v243 = vld [vmem:[%s166 + $0x110] sm:$0xf]
      %v244 = vld [vmem:[%s166 + $0x114] sm:$0xf]
      %v245 = vld [vmem:[%s166 + $0x118] sm:$0xf]
      %v246 = vld [vmem:[%s166 + $0x11c] sm:$0xf]
      %v247 = vld [vmem:[%s166 + $0x120] sm:$0xf]
      %v248 = vld [vmem:[%s166 + $0x124] sm:$0xf]
      %v249 = vld [vmem:[%s166 + $0x128] sm:$0xf]
      %v250 = vld [vmem:[%s166 + $0x12c] sm:$0xf]
      %v251 = vld [vmem:[%s166 + $0x130] sm:$0xf]
      %v252 = vld [vmem:[%s166 + $0x134] sm:$0xf]
      %v253 = vld [vmem:[%s166 + $0x138] sm:$0xf]
      %v254 = vld [vmem:[%s166 + $0x13c] sm:$0xf]
      %v255 = vld [vmem:[%s166 + $0x140] sm:$0xf]
      %v256 = vld [vmem:[%s166 + $0x144] sm:$0xf]
      %v257 = vld [vmem:[%s166 + $0x148] sm:$0xf]
      %v258 = vld [vmem:[%s166 + $0x14c] sm:$0xf]
      %v259 = vld [vmem:[%s166 + $0x150] sm:$0xf]
      %v260 = vld [vmem:[%s166 + $0x154] sm:$0xf]
      %v261 = vld [vmem:[%s166 + $0x158] sm:$0xf]
      %v262 = vld [vmem:[%s166 + $0x15c] sm:$0xf]
      %v263 = vld [vmem:[%s166 + $0x160] sm:$0xf]
      %v264 = vld [vmem:[%s166 + $0x164] sm:$0xf]
      %v265 = vld [vmem:[%s166 + $0x168] sm:$0xf]
      %v266 = vld [vmem:[%s166 + $0x16c] sm:$0xf]
      %v267 = vld [vmem:[%s166 + $0x170] sm:$0xf]
      %v268 = vld [vmem:[%s166 + $0x174] sm:$0xf]
      %v269 = vld [vmem:[%s166 + $0x178] sm:$0xf]
      %v270 = vld [vmem:[%s166 + $0x17c] sm:$0xf]
      %v271 = vld [vmem:[%s166 + $0x180] sm:$0xf]
      %v272 = vld [vmem:[%s166 + $0x184] sm:$0xf]
      %v273 = vld [vmem:[%s166 + $0x188] sm:$0xf]
      %v274 = vld [vmem:[%s166 + $0x18c] sm:$0xf]
      %v275 = vld [vmem:[%s166 + $0x190] sm:$0xf]
      %v276 = vld [vmem:[%s166 + $0x194] sm:$0xf]
      %v277 = vld [vmem:[%s166 + $0x198] sm:$0xf]
      %v278 = vld [vmem:[%s166 + $0x19c] sm:$0xf]
      %v279 = vld [vmem:[%s166 + $0x1a0] sm:$0xf]
      %v280 = vld [vmem:[%s166 + $0x1a4] sm:$0xf]
      %v281 = vld [vmem:[%s166 + $0x1a8] sm:$0xf]
      %v282 = vld [vmem:[%s166 + $0x1ac] sm:$0xf]
      %v283 = vld [vmem:[%s166 + $0x1b0] sm:$0xf]
      %v284 = vld [vmem:[%s166 + $0x1b4] sm:$0xf]
      %v285 = vld [vmem:[%s166 + $0x1b8] sm:$0xf]
      %v286 = vld [vmem:[%s166 + $0x1bc] sm:$0xf]
      %v287 = vld [vmem:[%s166 + $0x1c0] sm:$0xf]
      %v288 = vld [vmem:[%s166 + $0x1c4] sm:$0xf]
      %v289 = vld [vmem:[%s166 + $0x1c8] sm:$0xf]
      %v290 = vld [vmem:[%s166 + $0x1cc] sm:$0xf]
      %v291 = vld [vmem:[%s166 + $0x1d0] sm:$0xf]
      %v292 = vld [vmem:[%s166 + $0x1d4] sm:$0xf]
      %v293 = vld [vmem:[%s166 + $0x1d8] sm:$0xf]
      %v294 = vld [vmem:[%s166 + $0x1dc] sm:$0xf]
      %v295 = vld [vmem:[%s166 + $0x1e0] sm:$0xf]
      %v296 = vld [vmem:[%s166 + $0x1e4] sm:$0xf]
      %v297 = vld [vmem:[%s166 + $0x1e8] sm:$0xf]
      %v298 = vld [vmem:[%s166 + $0x1ec] sm:$0xf]
      %v299 = vld [vmem:[%s166 + $0x1f0] sm:$0xf]
      %v300 = vld [vmem:[%s166 + $0x1f4] sm:$0xf]
      %v301 = vld [vmem:[%s166 + $0x1f8] sm:$0xf]
      %v302 = vld [vmem:[%s166 + $0x1fc] sm:$0xf]
      %v303 = vld [vmem:[%s1] sm:$0xf]
      %v304 = vld [vmem:[%s1 + $0x4] sm:$0xf]
      %v305 = vld [vmem:[%s1 + $0x8] sm:$0xf]
      %v306 = vld [vmem:[%s1 + $0xc] sm:$0x3]
      %v307 = vld [vmem:[%s2] sm:$0x1]
      %v309 = vlaneseq
      %v310 = vshrl.u32 %v309, 7
      %v311 = vsub.s32 0, %v310
      %v312 = vrot.slane %v307, %v311
      %v442 = vunpack.c.l.b16 %v175
      %v443 = vunpack.c.l.b16 %v176
      %v444 = vunpack.c.l.b16 %v177
      %v445 = vunpack.c.l.b16 %v178
      %v446 = vunpack.c.l.b16 %v179
      %v447 = vunpack.c.l.b16 %v180
      %v448 = vunpack.c.l.b16 %v181
      %v449 = vunpack.c.l.b16 %v182
      %v450 = vunpack.c.l.b16 %v183
      %v451 = vunpack.c.l.b16 %v184
      %v452 = vunpack.c.l.b16 %v185
      %v453 = vunpack.c.l.b16 %v186
      %v454 = vunpack.c.l.b16 %v187
      %v455 = vunpack.c.l.b16 %v188
      %v456 = vunpack.c.l.b16 %v189
      %v457 = vunpack.c.l.b16 %v190
      %v458 = vunpack.c.l.b16 %v191
      %v459 = vunpack.c.l.b16 %v192
      %v460 = vunpack.c.l.b16 %v193
      %v461 = vunpack.c.l.b16 %v194
      %v462 = vunpack.c.l.b16 %v195
      %v463 = vunpack.c.l.b16 %v196
      %v464 = vunpack.c.l.b16 %v197
      %v465 = vunpack.c.l.b16 %v198
      %v466 = vunpack.c.l.b16 %v199
      %v467 = vunpack.c.l.b16 %v200
      %v468 = vunpack.c.l.b16 %v201
      %v469 = vunpack.c.l.b16 %v202
      %v470 = vunpack.c.l.b16 %v203
      %v471 = vunpack.c.l.b16 %v204
      %v472 = vunpack.c.l.b16 %v205
      %v473 = vunpack.c.l.b16 %v206
      %v474 = vunpack.c.l.b16 %v207
      %v475 = vunpack.c.l.b16 %v208
      %v476 = vunpack.c.l.b16 %v209
      %v477 = vunpack.c.l.b16 %v210
      %v478 = vunpack.c.l.b16 %v211
      %v479 = vunpack.c.l.b16 %v212
      %v480 = vunpack.c.l.b16 %v213
      %v481 = vunpack.c.l.b16 %v214
      %v482 = vunpack.c.l.b16 %v215
      %v483 = vunpack.c.l.b16 %v216
      %v484 = vunpack.c.l.b16 %v217
      %v485 = vunpack.c.l.b16 %v218
      %v486 = vunpack.c.l.b16 %v219
      %v487 = vunpack.c.l.b16 %v220
      %v488 = vunpack.c.l.b16 %v221
      %v489 = vunpack.c.l.b16 %v222
      %v490 = vunpack.c.l.b16 %v223
      %v491 = vunpack.c.l.b16 %v224
      %v492 = vunpack.c.l.b16 %v225
      %v493 = vunpack.c.l.b16 %v226
      %v494 = vunpack.c.l.b16 %v227
      %v495 = vunpack.c.l.b16 %v228
      %v496 = vunpack.c.l.b16 %v229
      %v497 = vunpack.c.l.b16 %v230
      %v498 = vunpack.c.l.b16 %v231
      %v499 = vunpack.c.l.b16 %v232
      %v500 = vunpack.c.l.b16 %v233
      %v501 = vunpack.c.l.b16 %v234
      %v502 = vunpack.c.l.b16 %v235
      %v503 = vunpack.c.l.b16 %v236
      %v504 = vunpack.c.l.b16 %v237
      %v505 = vunpack.c.l.b16 %v238
      %v506 = vunpack.c.l.b16 %v239
      %v507 = vunpack.c.l.b16 %v240
      %v508 = vunpack.c.l.b16 %v241
      %v509 = vunpack.c.l.b16 %v242
      %v510 = vunpack.c.l.b16 %v243
      %v511 = vunpack.c.l.b16 %v244
      %v512 = vunpack.c.l.b16 %v245
      %v513 = vunpack.c.l.b16 %v246
      %v514 = vunpack.c.l.b16 %v247
      %v515 = vunpack.c.l.b16 %v248
      %v516 = vunpack.c.l.b16 %v249
      %v517 = vunpack.c.l.b16 %v250
      %v518 = vunpack.c.l.b16 %v251
      %v519 = vunpack.c.l.b16 %v252
      %v520 = vunpack.c.l.b16 %v253
      %v521 = vunpack.c.l.b16 %v254
      %v522 = vunpack.c.l.b16 %v255
      %v523 = vunpack.c.l.b16 %v256
      %v524 = vunpack.c.l.b16 %v257
      %v525 = vunpack.c.l.b16 %v258
      %v526 = vunpack.c.l.b16 %v259
      %v527 = vunpack.c.l.b16 %v260
      %v528 = vunpack.c.l.b16 %v261
      %v529 = vunpack.c.l.b16 %v262
      %v530 = vunpack.c.l.b16 %v263
      %v531 = vunpack.c.l.b16 %v264
      %v532 = vunpack.c.l.b16 %v265
      %v533 = vunpack.c.l.b16 %v266
      %v534 = vunpack.c.l.b16 %v267
      %v535 = vunpack.c.l.b16 %v268
      %v536 = vunpack.c.l.b16 %v269
      %v537 = vunpack.c.l.b16 %v270
      %v538 = vunpack.c.l.b16 %v271
      %v539 = vunpack.c.l.b16 %v272
      %v540 = vunpack.c.l.b16 %v273
      %v541 = vunpack.c.l.b16 %v274
      %v542 = vunpack.c.l.b16 %v275
      %v543 = vunpack.c.l.b16 %v276
      %v544 = vunpack.c.l.b16 %v277
      %v545 = vunpack.c.l.b16 %v278
      %v546 = vunpack.c.l.b16 %v279
      %v547 = vunpack.c.l.b16 %v280
      %v548 = vunpack.c.l.b16 %v281
      %v549 = vunpack.c.l.b16 %v282
      %v550 = vunpack.c.l.b16 %v283
      %v551 = vunpack.c.l.b16 %v284
      %v552 = vunpack.c.l.b16 %v285
      %v553 = vunpack.c.l.b16 %v286
      %v554 = vunpack.c.l.b16 %v287
      %v555 = vunpack.c.l.b16 %v288
      %v556 = vunpack.c.l.b16 %v289
      %v557 = vunpack.c.l.b16 %v290
      %v558 = vunpack.c.l.b16 %v291
      %v559 = vunpack.c.l.b16 %v292
      %v560 = vunpack.c.l.b16 %v293
      %v561 = vunpack.c.l.b16 %v294
      %v562 = vunpack.c.l.b16 %v295
      %v563 = vunpack.c.l.b16 %v296
      %v564 = vunpack.c.l.b16 %v297
      %v565 = vunpack.c.l.b16 %v298
      %v566 = vunpack.c.l.b16 %v299
      %v567 = vunpack.c.l.b16 %v300
      %v568 = vunpack.c.l.b16 %v301
      %v569 = vunpack.c.l.b16 %v302
      %v570 = vpack.c.b16 %v443, %v442
      %v571 = vpack.c.b16 %v445, %v444
      %v572 = vpack.c.b16 %v447, %v446
      %v573 = vpack.c.b16 %v449, %v448
      %v574 = vpack.c.b16 %v451, %v450
      %v575 = vpack.c.b16 %v453, %v452
      %v576 = vpack.c.b16 %v455, %v454
      %v577 = vpack.c.b16 %v457, %v456
      %v578 = vpack.c.b16 %v459, %v458
      %v579 = vpack.c.b16 %v461, %v460
      %v580 = vpack.c.b16 %v463, %v462
      %v581 = vpack.c.b16 %v465, %v464
      %v582 = vpack.c.b16 %v467, %v466
      %v583 = vpack.c.b16 %v469, %v468
      %v584 = vpack.c.b16 %v471, %v470
      %v585 = vpack.c.b16 %v473, %v472
      %v586 = vpack.c.b16 %v475, %v474
      %v587 = vpack.c.b16 %v477, %v476
      %v588 = vpack.c.b16 %v479, %v478
      %v589 = vpack.c.b16 %v481, %v480
      %v590 = vpack.c.b16 %v483, %v482
      %v591 = vpack.c.b16 %v485, %v484
      %v592 = vpack.c.b16 %v487, %v486
      %v593 = vpack.c.b16 %v489, %v488
      %v594 = vpack.c.b16 %v491, %v490
      %v595 = vpack.c.b16 %v493, %v492
      %v596 = vpack.c.b16 %v495, %v494
      %v597 = vpack.c.b16 %v497, %v496
      %v598 = vpack.c.b16 %v499, %v498
      %v599 = vpack.c.b16 %v501, %v500
      %v600 = vpack.c.b16 %v503, %v502
      %v601 = vpack.c.b16 %v505, %v504
      %v602 = vpack.c.b16 %v507, %v506
      %v603 = vpack.c.b16 %v509, %v508
      %v604 = vpack.c.b16 %v511, %v510
      %v605 = vpack.c.b16 %v513, %v512
      %v606 = vpack.c.b16 %v515, %v514
      %v607 = vpack.c.b16 %v517, %v516
      %v608 = vpack.c.b16 %v519, %v518
      %v609 = vpack.c.b16 %v521, %v520
      %v610 = vpack.c.b16 %v523, %v522
      %v611 = vpack.c.b16 %v525, %v524
      %v612 = vpack.c.b16 %v527, %v526
      %v613 = vpack.c.b16 %v529, %v528
      %v614 = vpack.c.b16 %v531, %v530
      %v615 = vpack.c.b16 %v533, %v532
      %v616 = vpack.c.b16 %v535, %v534
      %v617 = vpack.c.b16 %v537, %v536
      %v618 = vpack.c.b16 %v539, %v538
      %v619 = vpack.c.b16 %v541, %v540
      %v620 = vpack.c.b16 %v543, %v542
      %v621 = vpack.c.b16 %v545, %v544
      %v622 = vpack.c.b16 %v547, %v546
      %v623 = vpack.c.b16 %v549, %v548
      %v624 = vpack.c.b16 %v551, %v550
      %v625 = vpack.c.b16 %v553, %v552
      %v626 = vpack.c.b16 %v555, %v554
      %v627 = vpack.c.b16 %v557, %v556
      %v628 = vpack.c.b16 %v559, %v558
      %v629 = vpack.c.b16 %v561, %v560
      %v630 = vpack.c.b16 %v563, %v562
      %v631 = vpack.c.b16 %v565, %v564
      %v632 = vpack.c.b16 %v567, %v566
      %v633 = vpack.c.b16 %v569, %v568
      %v638 = vunpack.c.l.b16 %v303
      %v639 = vunpack.c.l.b16 %v304
      %v640 = vunpack.c.l.b16 %v305
      %v641 = vunpack.c.l.b16 %v306
      %v642 = vpack.c.b16 %v639, %v638
      %v643 = vpack.c.b16 %v641, %v640
      %vm645 = vcmask 220160
      %v647 = vsel %vm645, %v570, 0
      %v650 = vsel %vm645, %v571, 0
      %v653 = vsel %vm645, %v572, 0
      %v656 = vsel %vm645, %v573, 0
      %v659 = vsel %vm645, %v574, 0
      %v662 = vsel %vm645, %v575, 0
      %v665 = vsel %vm645, %v576, 0
      %v668 = vsel %vm645, %v577, 0
      %v671 = vsel %vm645, %v578, 0
      %v674 = vsel %vm645, %v579, 0
      %v677 = vsel %vm645, %v580, 0
      %v680 = vsel %vm645, %v581, 0
      %v683 = vsel %vm645, %v582, 0
      %v686 = vsel %vm645, %v583, 0
      %v689 = vsel %vm645, %v584, 0
      %v692 = vsel %vm645, %v585, 0
      %v695 = vsel %vm645, %v586, 0
      %v698 = vsel %vm645, %v587, 0
      %v701 = vsel %vm645, %v588, 0
      %v704 = vsel %vm645, %v589, 0
      %v707 = vsel %vm645, %v590, 0
      %v710 = vsel %vm645, %v591, 0
      %v713 = vsel %vm645, %v592, 0
      %v716 = vsel %vm645, %v593, 0
      %v719 = vsel %vm645, %v594, 0
      %v722 = vsel %vm645, %v595, 0
      %v725 = vsel %vm645, %v596, 0
      %v728 = vsel %vm645, %v597, 0
      %v731 = vsel %vm645, %v598, 0
      %v734 = vsel %vm645, %v599, 0
      %v737 = vsel %vm645, %v600, 0
      %v740 = vsel %vm645, %v601, 0
      %v743 = vsel %vm645, %v602, 0
      %v746 = vsel %vm645, %v603, 0
      %v749 = vsel %vm645, %v604, 0
      %v752 = vsel %vm645, %v605, 0
      %v755 = vsel %vm645, %v606, 0
      %v758 = vsel %vm645, %v607, 0
      %v761 = vsel %vm645, %v608, 0
      %v764 = vsel %vm645, %v609, 0
      %v767 = vsel %vm645, %v610, 0
      %v770 = vsel %vm645, %v611, 0
      %v773 = vsel %vm645, %v612, 0
      %v776 = vsel %vm645, %v613, 0
      %v779 = vsel %vm645, %v614, 0
      %v782 = vsel %vm645, %v615, 0
      %v785 = vsel %vm645, %v616, 0
      %v788 = vsel %vm645, %v617, 0
      %v791 = vsel %vm645, %v618, 0
      %v794 = vsel %vm645, %v619, 0
      %v797 = vsel %vm645, %v620, 0
      %v800 = vsel %vm645, %v621, 0
      %v803 = vsel %vm645, %v622, 0
      %v806 = vsel %vm645, %v623, 0
      %v809 = vsel %vm645, %v624, 0
      %v812 = vsel %vm645, %v625, 0
      %v815 = vsel %vm645, %v626, 0
      %v818 = vsel %vm645, %v627, 0
      %v821 = vsel %vm645, %v628, 0
      %v824 = vsel %vm645, %v629, 0
      %v827 = vsel %vm645, %v630, 0
      %v830 = vsel %vm645, %v631, 0
      %v833 = vsel %vm645, %v632, 0
      %v836 = vsel %vm645, %v633, 0
      %vm838 = vcmask 1044480
      %vm839 = vcmask 1045504
      %v840 = vsel %vm838, 4294967295, 65535
      %v841 = vsel %vm839, %v840, 0
      %v843 = vand.u32 %v643, %v841
      %845 = vmatprep.subr.bf16.mxu0 0
      %846 = vmatpush1.bf16.msra.mxu0 0
      %847 = vmatprep.subr.bf16.mxu0 0
      %848 = vmatpush1.bf16.msra.mxu0 0
      %849 = vmatprep.subr.bf16.mxu0 0
      %850 = vmatpush1.bf16.msra.mxu0 0
      %851 = vmatprep.subr.bf16.mxu0 0
      %852 = vmatpush1.bf16.msra.mxu0 0
      %853 = vmatprep.subr.bf16.mxu0 0
      %854 = vmatpush1.bf16.msra.mxu0 0
      %855 = vmatprep.subr.bf16.mxu0 0
      %856 = vmatpush1.bf16.msra.mxu0 0
      %857 = vmatprep.subr.bf16.mxu0 0
      %858 = vmatpush1.bf16.msra.mxu0 %v843
      %859 = vmatprep.subr.bf16.mxu0 0
      %860 = vmatpush1.bf16.msra.mxu0 %v642
      %861 = vmatprep.subr.bf16.mxu0 0
      %862 = vmatpush2.bf16.msra.mxu0 0
      %863 = vmatprep.subr.bf16.mxu0 0
      %864 = vmatpush2.bf16.msra.mxu0 0
      %865 = vmatprep.subr.bf16.mxu0 0
      %866 = vmatpush2.bf16.msra.mxu0 0
      %867 = vmatprep.subr.bf16.mxu0 0
      %868 = vmatpush2.bf16.msra.mxu0 0
      %869 = vmatprep.subr.bf16.mxu0 0
      %870 = vmatpush2.bf16.msra.mxu0 0
      %871 = vmatprep.subr.bf16.mxu0 0
      %872 = vmatpush2.bf16.msra.mxu0 0
      %873 = vmatprep.subr.bf16.mxu0 0
      %874 = vmatpush2.bf16.msra.mxu0 0
      %875 = vmatprep.subr.bf16.mxu0 0
      %876 = vmatpush2.bf16.msra.mxu0 0
      %877 = vmatprep.mubr.bf16.mxu0 0
      %878 = vmatmul.mubr.bf16.gmra.mxu0 %v647
      %v879 = vpop.f32.mrf.mxu0
      %v880 = vadd.f32 %v312, %v879
      %v881 = vpop.f32.mrf.mxu0
      %v882 = vpop.f32.mrf.mxu0
      %v883 = vadd.f32 %v312, %v882
      %v884 = vpop.f32.mrf.mxu0
      %885 = vmatprep.mubr.bf16.mxu0 0
      %886 = vmatmul.mubr.bf16.gmra.mxu0 %v650
      %v887 = vpop.f32.mrf.mxu0
      %v888 = vadd.f32 %v312, %v887
      %v889 = vpop.f32.mrf.mxu0
      %v890 = vpop.f32.mrf.mxu0
      %v891 = vadd.f32 %v312, %v890
      %v892 = vpop.f32.mrf.mxu0
      %893 = vmatprep.mubr.bf16.mxu0 0
      %894 = vmatmul.mubr.bf16.gmra.mxu0 %v653
      %v895 = vpop.f32.mrf.mxu0
      %v896 = vadd.f32 %v312, %v895
      %v897 = vpop.f32.mrf.mxu0
      %v898 = vpop.f32.mrf.mxu0
      %v899 = vadd.f32 %v312, %v898
      %v900 = vpop.f32.mrf.mxu0
      %901 = vmatprep.mubr.bf16.mxu0 0
      %902 = vmatmul.mubr.bf16.gmra.mxu0 %v656
      %v903 = vpop.f32.mrf.mxu0
      %v904 = vadd.f32 %v312, %v903
      %v905 = vpop.f32.mrf.mxu0
      %v906 = vpop.f32.mrf.mxu0
      %v907 = vadd.f32 %v312, %v906
      %v908 = vpop.f32.mrf.mxu0
      %909 = vmatprep.mubr.bf16.mxu0 0
      %910 = vmatmul.mubr.bf16.gmra.mxu0 %v659
      %v911 = vpop.f32.mrf.mxu0
      %v912 = vadd.f32 %v312, %v911
      %v913 = vpop.f32.mrf.mxu0
      %v914 = vpop.f32.mrf.mxu0
      %v915 = vadd.f32 %v312, %v914
      %v916 = vpop.f32.mrf.mxu0
      %917 = vmatprep.mubr.bf16.mxu0 0
      %918 = vmatmul.mubr.bf16.gmra.mxu0 %v662
      %v919 = vpop.f32.mrf.mxu0
      %v920 = vadd.f32 %v312, %v919
      %v921 = vpop.f32.mrf.mxu0
      %v922 = vpop.f32.mrf.mxu0
      %v923 = vadd.f32 %v312, %v922
      %v924 = vpop.f32.mrf.mxu0
      %925 = vmatprep.mubr.bf16.mxu0 0
      %926 = vmatmul.mubr.bf16.gmra.mxu0 %v665
      %v927 = vpop.f32.mrf.mxu0
      %v928 = vadd.f32 %v312, %v927
      %v929 = vpop.f32.mrf.mxu0
      %v930 = vpop.f32.mrf.mxu0
      %v931 = vadd.f32 %v312, %v930
      %v932 = vpop.f32.mrf.mxu0
      %933 = vmatprep.mubr.bf16.mxu0 0
      %934 = vmatmul.mubr.bf16.gmra.mxu0 %v668
      %v935 = vpop.f32.mrf.mxu0
      %v936 = vadd.f32 %v312, %v935
      %v937 = vpop.f32.mrf.mxu0
      %v938 = vpop.f32.mrf.mxu0
      %v939 = vadd.f32 %v312, %v938
      %v940 = vpop.f32.mrf.mxu0
      %941 = vmatprep.mubr.bf16.mxu0 0
      %942 = vmatmul.mubr.bf16.gmra.mxu0 %v671
      %v943 = vpop.f32.mrf.mxu0
      %v944 = vadd.f32 %v312, %v943
      %v945 = vpop.f32.mrf.mxu0
      %v946 = vpop.f32.mrf.mxu0
      %v947 = vadd.f32 %v312, %v946
      %v948 = vpop.f32.mrf.mxu0
      %949 = vmatprep.mubr.bf16.mxu0 0
      %950 = vmatmul.mubr.bf16.gmra.mxu0 %v674
      %v951 = vpop.f32.mrf.mxu0
      %v952 = vadd.f32 %v312, %v951
      %v953 = vpop.f32.mrf.mxu0
      %v954 = vpop.f32.mrf.mxu0
      %v955 = vadd.f32 %v312, %v954
      %v956 = vpop.f32.mrf.mxu0
      %957 = vmatprep.mubr.bf16.mxu0 0
      %958 = vmatmul.mubr.bf16.gmra.mxu0 %v677
      %v959 = vpop.f32.mrf.mxu0
      %v960 = vadd.f32 %v312, %v959
      %v961 = vpop.f32.mrf.mxu0
      %v962 = vpop.f32.mrf.mxu0
      %v963 = vadd.f32 %v312, %v962
      %v964 = vpop.f32.mrf.mxu0
      %965 = vmatprep.mubr.bf16.mxu0 0
      %966 = vmatmul.mubr.bf16.gmra.mxu0 %v680
      %v967 = vpop.f32.mrf.mxu0
      %v968 = vadd.f32 %v312, %v967
      %v969 = vpop.f32.mrf.mxu0
      %v970 = vpop.f32.mrf.mxu0
      %v971 = vadd.f32 %v312, %v970
      %v972 = vpop.f32.mrf.mxu0
      %973 = vmatprep.mubr.bf16.mxu0 0
      %974 = vmatmul.mubr.bf16.gmra.mxu0 %v683
      %v975 = vpop.f32.mrf.mxu0
      %v976 = vadd.f32 %v312, %v975
      %v977 = vpop.f32.mrf.mxu0
      %v978 = vpop.f32.mrf.mxu0
      %v979 = vadd.f32 %v312, %v978
      %v980 = vpop.f32.mrf.mxu0
      %981 = vmatprep.mubr.bf16.mxu0 0
      %982 = vmatmul.mubr.bf16.gmra.mxu0 %v686
      %v983 = vpop.f32.mrf.mxu0
      %v984 = vadd.f32 %v312, %v983
      %v985 = vpop.f32.mrf.mxu0
      %v986 = vpop.f32.mrf.mxu0
      %v987 = vadd.f32 %v312, %v986
      %v988 = vpop.f32.mrf.mxu0
      %989 = vmatprep.mubr.bf16.mxu0 0
      %990 = vmatmul.mubr.bf16.gmra.mxu0 %v689
      %v991 = vpop.f32.mrf.mxu0
      %v992 = vadd.f32 %v312, %v991
      %v993 = vpop.f32.mrf.mxu0
      %v994 = vpop.f32.mrf.mxu0
      %v995 = vadd.f32 %v312, %v994
      %v996 = vpop.f32.mrf.mxu0
      %997 = vmatprep.mubr.bf16.mxu0 0
      %998 = vmatmul.mubr.bf16.gmra.mxu0 %v692
      %v999 = vpop.f32.mrf.mxu0
      %v1000 = vadd.f32 %v312, %v999
      %v1001 = vpop.f32.mrf.mxu0
      %v1002 = vpop.f32.mrf.mxu0
      %v1003 = vadd.f32 %v312, %v1002
      %v1004 = vpop.f32.mrf.mxu0
      %1005 = vmatprep.mubr.bf16.mxu0 0
      %1006 = vmatmul.mubr.bf16.gmra.mxu0 %v695
      %v1007 = vpop.f32.mrf.mxu0
      %v1008 = vadd.f32 %v312, %v1007
      %v1009 = vpop.f32.mrf.mxu0
      %v1010 = vpop.f32.mrf.mxu0
      %v1011 = vadd.f32 %v312, %v1010
      %v1012 = vpop.f32.mrf.mxu0
      %1013 = vmatprep.mubr.bf16.mxu0 0
      %1014 = vmatmul.mubr.bf16.gmra.mxu0 %v698
      %v1015 = vpop.f32.mrf.mxu0
      %v1016 = vadd.f32 %v312, %v1015
      %v1017 = vpop.f32.mrf.mxu0
      %v1018 = vpop.f32.mrf.mxu0
      %v1019 = vadd.f32 %v312, %v1018
      %v1020 = vpop.f32.mrf.mxu0
      %1021 = vmatprep.mubr.bf16.mxu0 0
      %1022 = vmatmul.mubr.bf16.gmra.mxu0 %v701
      %v1023 = vpop.f32.mrf.mxu0
      %v1024 = vadd.f32 %v312, %v1023
      %v1025 = vpop.f32.mrf.mxu0
      %v1026 = vpop.f32.mrf.mxu0
      %v1027 = vadd.f32 %v312, %v1026
      %v1028 = vpop.f32.mrf.mxu0
      %1029 = vmatprep.mubr.bf16.mxu0 0
      %1030 = vmatmul.mubr.bf16.gmra.mxu0 %v704
      %v1031 = vpop.f32.mrf.mxu0
      %v1032 = vadd.f32 %v312, %v1031
      %v1033 = vpop.f32.mrf.mxu0
      %v1034 = vpop.f32.mrf.mxu0
      %v1035 = vadd.f32 %v312, %v1034
      %v1036 = vpop.f32.mrf.mxu0
      %1037 = vmatprep.mubr.bf16.mxu0 0
      %1038 = vmatmul.mubr.bf16.gmra.mxu0 %v707
      %v1039 = vpop.f32.mrf.mxu0
      %v1040 = vadd.f32 %v312, %v1039
      %v1041 = vpop.f32.mrf.mxu0
      %v1042 = vpop.f32.mrf.mxu0
      %v1043 = vadd.f32 %v312, %v1042
      %v1044 = vpop.f32.mrf.mxu0
      %1045 = vmatprep.mubr.bf16.mxu0 0
      %1046 = vmatmul.mubr.bf16.gmra.mxu0 %v710
      %v1047 = vpop.f32.mrf.mxu0
      %v1048 = vadd.f32 %v312, %v1047
      %v1049 = vpop.f32.mrf.mxu0
      %v1050 = vpop.f32.mrf.mxu0
      %v1051 = vadd.f32 %v312, %v1050
      %v1052 = vpop.f32.mrf.mxu0
      %1053 = vmatprep.mubr.bf16.mxu0 0
      %1054 = vmatmul.mubr.bf16.gmra.mxu0 %v713
      %v1055 = vpop.f32.mrf.mxu0
      %v1056 = vadd.f32 %v312, %v1055
      %v1057 = vpop.f32.mrf.mxu0
      %v1058 = vpop.f32.mrf.mxu0
      %v1059 = vadd.f32 %v312, %v1058
      %v1060 = vpop.f32.mrf.mxu0
      %1061 = vmatprep.mubr.bf16.mxu0 0
      %1062 = vmatmul.mubr.bf16.gmra.mxu0 %v716
      %v1063 = vpop.f32.mrf.mxu0
      %v1064 = vadd.f32 %v312, %v1063
      %v1065 = vpop.f32.mrf.mxu0
      %v1066 = vpop.f32.mrf.mxu0
      %v1067 = vadd.f32 %v312, %v1066
      %v1068 = vpop.f32.mrf.mxu0
      %1069 = vmatprep.mubr.bf16.mxu0 0
      %1070 = vmatmul.mubr.bf16.gmra.mxu0 %v719
      %v1071 = vpop.f32.mrf.mxu0
      %v1072 = vadd.f32 %v312, %v1071
      %v1073 = vpop.f32.mrf.mxu0
      %v1074 = vpop.f32.mrf.mxu0
      %v1075 = vadd.f32 %v312, %v1074
      %v1076 = vpop.f32.mrf.mxu0
      %1077 = vmatprep.mubr.bf16.mxu0 0
      %1078 = vmatmul.mubr.bf16.gmra.mxu0 %v722
      %v1079 = vpop.f32.mrf.mxu0
      %v1080 = vadd.f32 %v312, %v1079
      %v1081 = vpop.f32.mrf.mxu0
      %v1082 = vpop.f32.mrf.mxu0
      %v1083 = vadd.f32 %v312, %v1082
      %v1084 = vpop.f32.mrf.mxu0
      %1085 = vmatprep.mubr.bf16.mxu0 0
      %1086 = vmatmul.mubr.bf16.gmra.mxu0 %v725
      %v1087 = vpop.f32.mrf.mxu0
      %v1088 = vadd.f32 %v312, %v1087
      %v1089 = vpop.f32.mrf.mxu0
      %v1090 = vpop.f32.mrf.mxu0
      %v1091 = vadd.f32 %v312, %v1090
      %v1092 = vpop.f32.mrf.mxu0
      %1093 = vmatprep.mubr.bf16.mxu0 0
      %1094 = vmatmul.mubr.bf16.gmra.mxu0 %v728
      %v1095 = vpop.f32.mrf.mxu0
      %v1096 = vadd.f32 %v312, %v1095
      %v1097 = vpop.f32.mrf.mxu0
      %v1098 = vpop.f32.mrf.mxu0
      %v1099 = vadd.f32 %v312, %v1098
      %v1100 = vpop.f32.mrf.mxu0
      %1101 = vmatprep.mubr.bf16.mxu0 0
      %1102 = vmatmul.mubr.bf16.gmra.mxu0 %v731
      %v1103 = vpop.f32.mrf.mxu0
      %v1104 = vadd.f32 %v312, %v1103
      %v1105 = vpop.f32.mrf.mxu0
      %v1106 = vpop.f32.mrf.mxu0
      %v1107 = vadd.f32 %v312, %v1106
      %v1108 = vpop.f32.mrf.mxu0
      %1109 = vmatprep.mubr.bf16.mxu0 0
      %1110 = vmatmul.mubr.bf16.gmra.mxu0 %v734
      %v1111 = vpop.f32.mrf.mxu0
      %v1112 = vadd.f32 %v312, %v1111
      %v1113 = vpop.f32.mrf.mxu0
      %v1114 = vpop.f32.mrf.mxu0
      %v1115 = vadd.f32 %v312, %v1114
      %v1116 = vpop.f32.mrf.mxu0
      %1117 = vmatprep.mubr.bf16.mxu0 0
      %1118 = vmatmul.mubr.bf16.gmra.mxu0 %v737
      %v1119 = vpop.f32.mrf.mxu0
      %v1120 = vadd.f32 %v312, %v1119
      %v1121 = vpop.f32.mrf.mxu0
      %v1122 = vpop.f32.mrf.mxu0
      %v1123 = vadd.f32 %v312, %v1122
      %v1124 = vpop.f32.mrf.mxu0
      %1125 = vmatprep.mubr.bf16.mxu0 0
      %1126 = vmatmul.mubr.bf16.gmra.mxu0 %v740
      %v1127 = vpop.f32.mrf.mxu0
      %v1128 = vadd.f32 %v312, %v1127
      %v1129 = vpop.f32.mrf.mxu0
      %v1130 = vpop.f32.mrf.mxu0
      %v1131 = vadd.f32 %v312, %v1130
      %v1132 = vpop.f32.mrf.mxu0
      %1133 = vmatprep.mubr.bf16.mxu0 0
      %1134 = vmatmul.mubr.bf16.gmra.mxu0 %v743
      %v1135 = vpop.f32.mrf.mxu0
      %v1136 = vadd.f32 %v312, %v1135
      %v1137 = vpop.f32.mrf.mxu0
      %v1138 = vpop.f32.mrf.mxu0
      %v1139 = vadd.f32 %v312, %v1138
      %v1140 = vpop.f32.mrf.mxu0
      %1141 = vmatprep.mubr.bf16.mxu0 0
      %1142 = vmatmul.mubr.bf16.gmra.mxu0 %v746
      %v1143 = vpop.f32.mrf.mxu0
      %v1144 = vadd.f32 %v312, %v1143
      %v1145 = vpop.f32.mrf.mxu0
      %v1146 = vpop.f32.mrf.mxu0
      %v1147 = vadd.f32 %v312, %v1146
      %v1148 = vpop.f32.mrf.mxu0
      %1149 = vmatprep.mubr.bf16.mxu0 0
      %1150 = vmatmul.mubr.bf16.gmra.mxu0 %v749
      %v1151 = vpop.f32.mrf.mxu0
      %v1152 = vadd.f32 %v312, %v1151
      %v1153 = vpop.f32.mrf.mxu0
      %v1154 = vpop.f32.mrf.mxu0
      %v1155 = vadd.f32 %v312, %v1154
      %v1156 = vpop.f32.mrf.mxu0
      %1157 = vmatprep.mubr.bf16.mxu0 0
      %1158 = vmatmul.mubr.bf16.gmra.mxu0 %v752
      %v1159 = vpop.f32.mrf.mxu0
      %v1160 = vadd.f32 %v312, %v1159
      %v1161 = vpop.f32.mrf.mxu0
      %v1162 = vpop.f32.mrf.mxu0
      %v1163 = vadd.f32 %v312, %v1162
      %v1164 = vpop.f32.mrf.mxu0
      %1165 = vmatprep.mubr.bf16.mxu0 0
      %1166 = vmatmul.mubr.bf16.gmra.mxu0 %v755
      %v1167 = vpop.f32.mrf.mxu0
      %v1168 = vadd.f32 %v312, %v1167
      %v1169 = vpop.f32.mrf.mxu0
      %v1170 = vpop.f32.mrf.mxu0
      %v1171 = vadd.f32 %v312, %v1170
      %v1172 = vpop.f32.mrf.mxu0
      %1173 = vmatprep.mubr.bf16.mxu0 0
      %1174 = vmatmul.mubr.bf16.gmra.mxu0 %v758
      %v1175 = vpop.f32.mrf.mxu0
      %v1176 = vadd.f32 %v312, %v1175
      %v1177 = vpop.f32.mrf.mxu0
      %v1178 = vpop.f32.mrf.mxu0
      %v1179 = vadd.f32 %v312, %v1178
      %v1180 = vpop.f32.mrf.mxu0
      %1181 = vmatprep.mubr.bf16.mxu0 0
      %1182 = vmatmul.mubr.bf16.gmra.mxu0 %v761
      %v1183 = vpop.f32.mrf.mxu0
      %v1184 = vadd.f32 %v312, %v1183
      %v1185 = vpop.f32.mrf.mxu0
      %v1186 = vpop.f32.mrf.mxu0
      %v1187 = vadd.f32 %v312, %v1186
      %v1188 = vpop.f32.mrf.mxu0
      %1189 = vmatprep.mubr.bf16.mxu0 0
      %1190 = vmatmul.mubr.bf16.gmra.mxu0 %v764
      %v1191 = vpop.f32.mrf.mxu0
      %v1192 = vadd.f32 %v312, %v1191
      %v1193 = vpop.f32.mrf.mxu0
      %v1194 = vpop.f32.mrf.mxu0
      %v1195 = vadd.f32 %v312, %v1194
      %v1196 = vpop.f32.mrf.mxu0
      %1197 = vmatprep.mubr.bf16.mxu0 0
      %1198 = vmatmul.mubr.bf16.gmra.mxu0 %v767
      %v1199 = vpop.f32.mrf.mxu0
      %v1200 = vadd.f32 %v312, %v1199
      %v1201 = vpop.f32.mrf.mxu0
      %v1202 = vpop.f32.mrf.mxu0
      %v1203 = vadd.f32 %v312, %v1202
      %v1204 = vpop.f32.mrf.mxu0
      %1205 = vmatprep.mubr.bf16.mxu0 0
      %1206 = vmatmul.mubr.bf16.gmra.mxu0 %v770
      %v1207 = vpop.f32.mrf.mxu0
      %v1208 = vadd.f32 %v312, %v1207
      %v1209 = vpop.f32.mrf.mxu0
      %v1210 = vpop.f32.mrf.mxu0
      %v1211 = vadd.f32 %v312, %v1210
      %v1212 = vpop.f32.mrf.mxu0
      %1213 = vmatprep.mubr.bf16.mxu0 0
      %1214 = vmatmul.mubr.bf16.gmra.mxu0 %v773
      %v1215 = vpop.f32.mrf.mxu0
      %v1216 = vadd.f32 %v312, %v1215
      %v1217 = vpop.f32.mrf.mxu0
      %v1218 = vpop.f32.mrf.mxu0
      %v1219 = vadd.f32 %v312, %v1218
      %v1220 = vpop.f32.mrf.mxu0
      %1221 = vmatprep.mubr.bf16.mxu0 0
      %1222 = vmatmul.mubr.bf16.gmra.mxu0 %v776
      %v1223 = vpop.f32.mrf.mxu0
      %v1224 = vadd.f32 %v312, %v1223
      %v1225 = vpop.f32.mrf.mxu0
      %v1226 = vpop.f32.mrf.mxu0
      %v1227 = vadd.f32 %v312, %v1226
      %v1228 = vpop.f32.mrf.mxu0
      %1229 = vmatprep.mubr.bf16.mxu0 0
      %1230 = vmatmul.mubr.bf16.gmra.mxu0 %v779
      %v1231 = vpop.f32.mrf.mxu0
      %v1232 = vadd.f32 %v312, %v1231
      %v1233 = vpop.f32.mrf.mxu0
      %v1234 = vpop.f32.mrf.mxu0
      %v1235 = vadd.f32 %v312, %v1234
      %v1236 = vpop.f32.mrf.mxu0
      %1237 = vmatprep.mubr.bf16.mxu0 0
      %1238 = vmatmul.mubr.bf16.gmra.mxu0 %v782
      %v1239 = vpop.f32.mrf.mxu0
      %v1240 = vadd.f32 %v312, %v1239
      %v1241 = vpop.f32.mrf.mxu0
      %v1242 = vpop.f32.mrf.mxu0
      %v1243 = vadd.f32 %v312, %v1242
      %v1244 = vpop.f32.mrf.mxu0
      %1245 = vmatprep.mubr.bf16.mxu0 0
      %1246 = vmatmul.mubr.bf16.gmra.mxu0 %v785
      %v1247 = vpop.f32.mrf.mxu0
      %v1248 = vadd.f32 %v312, %v1247
      %v1249 = vpop.f32.mrf.mxu0
      %v1250 = vpop.f32.mrf.mxu0
      %v1251 = vadd.f32 %v312, %v1250
      %v1252 = vpop.f32.mrf.mxu0
      %1253 = vmatprep.mubr.bf16.mxu0 0
      %1254 = vmatmul.mubr.bf16.gmra.mxu0 %v788
      %v1255 = vpop.f32.mrf.mxu0
      %v1256 = vadd.f32 %v312, %v1255
      %v1257 = vpop.f32.mrf.mxu0
      %v1258 = vpop.f32.mrf.mxu0
      %v1259 = vadd.f32 %v312, %v1258
      %v1260 = vpop.f32.mrf.mxu0
      %1261 = vmatprep.mubr.bf16.mxu0 0
      %1262 = vmatmul.mubr.bf16.gmra.mxu0 %v791
      %v1263 = vpop.f32.mrf.mxu0
      %v1264 = vadd.f32 %v312, %v1263
      %v1265 = vpop.f32.mrf.mxu0
      %v1266 = vpop.f32.mrf.mxu0
      %v1267 = vadd.f32 %v312, %v1266
      %v1268 = vpop.f32.mrf.mxu0
      %1269 = vmatprep.mubr.bf16.mxu0 0
      %1270 = vmatmul.mubr.bf16.gmra.mxu0 %v794
      %v1271 = vpop.f32.mrf.mxu0
      %v1272 = vadd.f32 %v312, %v1271
      %v1273 = vpop.f32.mrf.mxu0
      %v1274 = vpop.f32.mrf.mxu0
      %v1275 = vadd.f32 %v312, %v1274
      %v1276 = vpop.f32.mrf.mxu0
      %1277 = vmatprep.mubr.bf16.mxu0 0
      %1278 = vmatmul.mubr.bf16.gmra.mxu0 %v797
      %v1279 = vpop.f32.mrf.mxu0
      %v1280 = vadd.f32 %v312, %v1279
      %v1281 = vpop.f32.mrf.mxu0
      %v1282 = vpop.f32.mrf.mxu0
      %v1283 = vadd.f32 %v312, %v1282
      %v1284 = vpop.f32.mrf.mxu0
      %1285 = vmatprep.mubr.bf16.mxu0 0
      %1286 = vmatmul.mubr.bf16.gmra.mxu0 %v800
      %v1287 = vpop.f32.mrf.mxu0
      %v1288 = vadd.f32 %v312, %v1287
      %v1289 = vpop.f32.mrf.mxu0
      %v1290 = vpop.f32.mrf.mxu0
      %v1291 = vadd.f32 %v312, %v1290
      %v1292 = vpop.f32.mrf.mxu0
      %1293 = vmatprep.mubr.bf16.mxu0 0
      %1294 = vmatmul.mubr.bf16.gmra.mxu0 %v803
      %v1295 = vpop.f32.mrf.mxu0
      %v1296 = vadd.f32 %v312, %v1295
      %v1297 = vpop.f32.mrf.mxu0
      %v1298 = vpop.f32.mrf.mxu0
      %v1299 = vadd.f32 %v312, %v1298
      %v1300 = vpop.f32.mrf.mxu0
      %1301 = vmatprep.mubr.bf16.mxu0 0
      %1302 = vmatmul.mubr.bf16.gmra.mxu0 %v806
      %v1303 = vpop.f32.mrf.mxu0
      %v1304 = vadd.f32 %v312, %v1303
      %v1305 = vpop.f32.mrf.mxu0
      %v1306 = vpop.f32.mrf.mxu0
      %v1307 = vadd.f32 %v312, %v1306
      %v1308 = vpop.f32.mrf.mxu0
      %1309 = vmatprep.mubr.bf16.mxu0 0
      %1310 = vmatmul.mubr.bf16.gmra.mxu0 %v809
      %v1311 = vpop.f32.mrf.mxu0
      %v1312 = vadd.f32 %v312, %v1311
      %v1313 = vpop.f32.mrf.mxu0
      %v1314 = vpop.f32.mrf.mxu0
      %v1315 = vadd.f32 %v312, %v1314
      %v1316 = vpop.f32.mrf.mxu0
      %1317 = vmatprep.mubr.bf16.mxu0 0
      %1318 = vmatmul.mubr.bf16.gmra.mxu0 %v812
      %v1319 = vpop.f32.mrf.mxu0
      %v1320 = vadd.f32 %v312, %v1319
      %v1321 = vpop.f32.mrf.mxu0
      %v1322 = vpop.f32.mrf.mxu0
      %v1323 = vadd.f32 %v312, %v1322
      %v1324 = vpop.f32.mrf.mxu0
      %1325 = vmatprep.mubr.bf16.mxu0 0
      %1326 = vmatmul.mubr.bf16.gmra.mxu0 %v815
      %v1327 = vpop.f32.mrf.mxu0
      %v1328 = vadd.f32 %v312, %v1327
      %v1329 = vpop.f32.mrf.mxu0
      %v1330 = vpop.f32.mrf.mxu0
      %v1331 = vadd.f32 %v312, %v1330
      %v1332 = vpop.f32.mrf.mxu0
      %1333 = vmatprep.mubr.bf16.mxu0 0
      %1334 = vmatmul.mubr.bf16.gmra.mxu0 %v818
      %v1335 = vpop.f32.mrf.mxu0
      %v1336 = vadd.f32 %v312, %v1335
      %v1337 = vpop.f32.mrf.mxu0
      %v1338 = vpop.f32.mrf.mxu0
      %v1339 = vadd.f32 %v312, %v1338
      %v1340 = vpop.f32.mrf.mxu0
      %1341 = vmatprep.mubr.bf16.mxu0 0
      %1342 = vmatmul.mubr.bf16.gmra.mxu0 %v821
      %v1343 = vpop.f32.mrf.mxu0
      %v1344 = vadd.f32 %v312, %v1343
      %v1345 = vpop.f32.mrf.mxu0
      %v1346 = vpop.f32.mrf.mxu0
      %v1347 = vadd.f32 %v312, %v1346
      %v1348 = vpop.f32.mrf.mxu0
      %1349 = vmatprep.mubr.bf16.mxu0 0
      %1350 = vmatmul.mubr.bf16.gmra.mxu0 %v824
      %v1351 = vpop.f32.mrf.mxu0
      %v1352 = vadd.f32 %v312, %v1351
      %v1353 = vpop.f32.mrf.mxu0
      %v1354 = vpop.f32.mrf.mxu0
      %v1355 = vadd.f32 %v312, %v1354
      %v1356 = vpop.f32.mrf.mxu0
      %1357 = vmatprep.mubr.bf16.mxu0 0
      %1358 = vmatmul.mubr.bf16.gmra.mxu0 %v827
      %v1359 = vpop.f32.mrf.mxu0
      %v1360 = vadd.f32 %v312, %v1359
      %v1361 = vpop.f32.mrf.mxu0
      %v1362 = vpop.f32.mrf.mxu0
      %v1363 = vadd.f32 %v312, %v1362
      %v1364 = vpop.f32.mrf.mxu0
      %1365 = vmatprep.mubr.bf16.mxu0 0
      %1366 = vmatmul.mubr.bf16.gmra.mxu0 %v830
      %v1367 = vpop.f32.mrf.mxu0
      %v1368 = vadd.f32 %v312, %v1367
      %v1369 = vpop.f32.mrf.mxu0
      %v1370 = vpop.f32.mrf.mxu0
      %v1371 = vadd.f32 %v312, %v1370
      %v1372 = vpop.f32.mrf.mxu0
      %1373 = vmatprep.mubr.bf16.mxu0 0
      %1374 = vmatmul.mubr.bf16.gmra.mxu0 %v833
      %v1375 = vpop.f32.mrf.mxu0
      %v1376 = vadd.f32 %v312, %v1375
      %v1377 = vpop.f32.mrf.mxu0
      %v1378 = vpop.f32.mrf.mxu0
      %v1379 = vadd.f32 %v312, %v1378
      %v1380 = vpop.f32.mrf.mxu0
      %1381 = vmatprep.mubr.bf16.mxu0 0
      %1382 = vmatmul.mubr.bf16.gmra.mxu0 %v836
      %v1383 = vpop.f32.mrf.mxu0
      %v1384 = vadd.f32 %v312, %v1383
      %v1385 = vpop.f32.mrf.mxu0
      %v1386 = vpop.f32.mrf.mxu0
      %v1387 = vadd.f32 %v312, %v1386
      %v1388 = vpop.f32.mrf.mxu0
      %1389 = vdwg.mxu0
      %v1390 = vmax.f32 %v880, 0.0
      %v1391 = vmax.f32 %v883, 0.0
      %v1392 = vmax.f32 %v888, 0.0
      %v1393 = vmax.f32 %v891, 0.0
      %v1394 = vmax.f32 %v896, 0.0
      %v1395 = vmax.f32 %v899, 0.0
      %v1396 = vmax.f32 %v904, 0.0
      %v1397 = vmax.f32 %v907, 0.0
      %v1398 = vmax.f32 %v912, 0.0
      %v1399 = vmax.f32 %v915, 0.0
      %v1400 = vmax.f32 %v920, 0.0
      %v1401 = vmax.f32 %v923, 0.0
      %v1402 = vmax.f32 %v928, 0.0
      %v1403 = vmax.f32 %v931, 0.0
      %v1404 = vmax.f32 %v936, 0.0
      %v1405 = vmax.f32 %v939, 0.0
      %v1406 = vmax.f32 %v944, 0.0
      %v1407 = vmax.f32 %v947, 0.0
      %v1408 = vmax.f32 %v952, 0.0
      %v1409 = vmax.f32 %v955, 0.0
      %v1410 = vmax.f32 %v960, 0.0
      %v1411 = vmax.f32 %v963, 0.0
      %v1412 = vmax.f32 %v968, 0.0
      %v1413 = vmax.f32 %v971, 0.0
      %v1414 = vmax.f32 %v976, 0.0
      %v1415 = vmax.f32 %v979, 0.0
      %v1416 = vmax.f32 %v984, 0.0
      %v1417 = vmax.f32 %v987, 0.0
      %v1418 = vmax.f32 %v992, 0.0
      %v1419 = vmax.f32 %v995, 0.0
      %v1420 = vmax.f32 %v1000, 0.0
      %v1421 = vmax.f32 %v1003, 0.0
      %v1422 = vmax.f32 %v1008, 0.0
      %v1423 = vmax.f32 %v1011, 0.0
      %v1424 = vmax.f32 %v1016, 0.0
      %v1425 = vmax.f32 %v1019, 0.0
      %v1426 = vmax.f32 %v1024, 0.0
      %v1427 = vmax.f32 %v1027, 0.0
      %v1428 = vmax.f32 %v1032, 0.0
      %v1429 = vmax.f32 %v1035, 0.0
      %v1430 = vmax.f32 %v1040, 0.0
      %v1431 = vmax.f32 %v1043, 0.0
      %v1432 = vmax.f32 %v1048, 0.0
      %v1433 = vmax.f32 %v1051, 0.0
      %v1434 = vmax.f32 %v1056, 0.0
      %v1435 = vmax.f32 %v1059, 0.0
      %v1436 = vmax.f32 %v1064, 0.0
      %v1437 = vmax.f32 %v1067, 0.0
      %v1438 = vmax.f32 %v1072, 0.0
      %v1439 = vmax.f32 %v1075, 0.0
      %v1440 = vmax.f32 %v1080, 0.0
      %v1441 = vmax.f32 %v1083, 0.0
      %v1442 = vmax.f32 %v1088, 0.0
      %v1443 = vmax.f32 %v1091, 0.0
      %v1444 = vmax.f32 %v1096, 0.0
      %v1445 = vmax.f32 %v1099, 0.0
      %v1446 = vmax.f32 %v1104, 0.0
      %v1447 = vmax.f32 %v1107, 0.0
      %v1448 = vmax.f32 %v1112, 0.0
      %v1449 = vmax.f32 %v1115, 0.0
      %v1450 = vmax.f32 %v1120, 0.0
      %v1451 = vmax.f32 %v1123, 0.0
      %v1452 = vmax.f32 %v1128, 0.0
      %v1453 = vmax.f32 %v1131, 0.0
      %v1454 = vmax.f32 %v1136, 0.0
      %v1455 = vmax.f32 %v1139, 0.0
      %v1456 = vmax.f32 %v1144, 0.0
      %v1457 = vmax.f32 %v1147, 0.0
      %v1458 = vmax.f32 %v1152, 0.0
      %v1459 = vmax.f32 %v1155, 0.0
      %v1460 = vmax.f32 %v1160, 0.0
      %v1461 = vmax.f32 %v1163, 0.0
      %v1462 = vmax.f32 %v1168, 0.0
      %v1463 = vmax.f32 %v1171, 0.0
      %v1464 = vmax.f32 %v1176, 0.0
      %v1465 = vmax.f32 %v1179, 0.0
      %v1466 = vmax.f32 %v1184, 0.0
      %v1467 = vmax.f32 %v1187, 0.0
      %v1468 = vmax.f32 %v1192, 0.0
      %v1469 = vmax.f32 %v1195, 0.0
      %v1470 = vmax.f32 %v1200, 0.0
      %v1471 = vmax.f32 %v1203, 0.0
      %v1472 = vmax.f32 %v1208, 0.0
      %v1473 = vmax.f32 %v1211, 0.0
      %v1474 = vmax.f32 %v1216, 0.0
      %v1475 = vmax.f32 %v1219, 0.0
      %v1476 = vmax.f32 %v1224, 0.0
      %v1477 = vmax.f32 %v1227, 0.0
      %v1478 = vmax.f32 %v1232, 0.0
      %v1479 = vmax.f32 %v1235, 0.0
      %v1480 = vmax.f32 %v1240, 0.0
      %v1481 = vmax.f32 %v1243, 0.0
      %v1482 = vmax.f32 %v1248, 0.0
      %v1483 = vmax.f32 %v1251, 0.0
      %v1484 = vmax.f32 %v1256, 0.0
      %v1485 = vmax.f32 %v1259, 0.0
      %v1486 = vmax.f32 %v1264, 0.0
      %v1487 = vmax.f32 %v1267, 0.0
      %v1488 = vmax.f32 %v1272, 0.0
      %v1489 = vmax.f32 %v1275, 0.0
      %v1490 = vmax.f32 %v1280, 0.0
      %v1491 = vmax.f32 %v1283, 0.0
      %v1492 = vmax.f32 %v1288, 0.0
      %v1493 = vmax.f32 %v1291, 0.0
      %v1494 = vmax.f32 %v1296, 0.0
      %v1495 = vmax.f32 %v1299, 0.0
      %v1496 = vmax.f32 %v1304, 0.0
      %v1497 = vmax.f32 %v1307, 0.0
      %v1498 = vmax.f32 %v1312, 0.0
      %v1499 = vmax.f32 %v1315, 0.0
      %v1500 = vmax.f32 %v1320, 0.0
      %v1501 = vmax.f32 %v1323, 0.0
      %v1502 = vmax.f32 %v1328, 0.0
      %v1503 = vmax.f32 %v1331, 0.0
      %v1504 = vmax.f32 %v1336, 0.0
      %v1505 = vmax.f32 %v1339, 0.0
      %v1506 = vmax.f32 %v1344, 0.0
      %v1507 = vmax.f32 %v1347, 0.0
      %v1508 = vmax.f32 %v1352, 0.0
      %v1509 = vmax.f32 %v1355, 0.0
      %v1510 = vmax.f32 %v1360, 0.0
      %v1511 = vmax.f32 %v1363, 0.0
      %v1512 = vmax.f32 %v1368, 0.0
      %v1513 = vmax.f32 %v1371, 0.0
      %v1514 = vmax.f32 %v1376, 0.0
      %v1515 = vmax.f32 %v1379, 0.0
      %v1516 = vmax.f32 %v1384, 0.0
      %v1517 = vmax.f32 %v1387, 0.0
      %vm1518 = vcmask 64512
      %1519 = vst.msk [vmem:[%s172] sm:$0xff] %vm1518, %v1390
      %1520 = vst.msk [vmem:[%s172 + $0x8] sm:$0xff] %vm1518, %v1391
      %1521 = vst.msk [vmem:[%s172 + $0x10] sm:$0xff] %vm1518, %v1392
      %1522 = vst.msk [vmem:[%s172 + $0x18] sm:$0xff] %vm1518, %v1393
      %1523 = vst.msk [vmem:[%s172 + $0x20] sm:$0xff] %vm1518, %v1394
      %1524 = vst.msk [vmem:[%s172 + $0x28] sm:$0xff] %vm1518, %v1395
      %1525 = vst.msk [vmem:[%s172 + $0x30] sm:$0xff] %vm1518, %v1396
      %1526 = vst.msk [vmem:[%s172 + $0x38] sm:$0xff] %vm1518, %v1397
      %1527 = vst.msk [vmem:[%s172 + $0x40] sm:$0xff] %vm1518, %v1398
      %1528 = vst.msk [vmem:[%s172 + $0x48] sm:$0xff] %vm1518, %v1399
      %1529 = vst.msk [vmem:[%s172 + $0x50] sm:$0xff] %vm1518, %v1400
      %1530 = vst.msk [vmem:[%s172 + $0x58] sm:$0xff] %vm1518, %v1401
      %1531 = vst.msk [vmem:[%s172 + $0x60] sm:$0xff] %vm1518, %v1402
      %1532 = vst.msk [vmem:[%s172 + $0x68] sm:$0xff] %vm1518, %v1403
      %1533 = vst.msk [vmem:[%s172 + $0x70] sm:$0xff] %vm1518, %v1404
      %1534 = vst.msk [vmem:[%s172 + $0x78] sm:$0xff] %vm1518, %v1405
      %1535 = vst.msk [vmem:[%s172 + $0x80] sm:$0xff] %vm1518, %v1406
      %1536 = vst.msk [vmem:[%s172 + $0x88] sm:$0xff] %vm1518, %v1407
      %1537 = vst.msk [vmem:[%s172 + $0x90] sm:$0xff] %vm1518, %v1408
      %1538 = vst.msk [vmem:[%s172 + $0x98] sm:$0xff] %vm1518, %v1409
      %1539 = vst.msk [vmem:[%s172 + $0xa0] sm:$0xff] %vm1518, %v1410
      %1540 = vst.msk [vmem:[%s172 + $0xa8] sm:$0xff] %vm1518, %v1411
      %1541 = vst.msk [vmem:[%s172 + $0xb0] sm:$0xff] %vm1518, %v1412
      %1542 = vst.msk [vmem:[%s172 + $0xb8] sm:$0xff] %vm1518, %v1413
      %1543 = vst.msk [vmem:[%s172 + $0xc0] sm:$0xff] %vm1518, %v1414
      %1544 = vst.msk [vmem:[%s172 + $0xc8] sm:$0xff] %vm1518, %v1415
      %1545 = vst.msk [vmem:[%s172 + $0xd0] sm:$0xff] %vm1518, %v1416
      %1546 = vst.msk [vmem:[%s172 + $0xd8] sm:$0xff] %vm1518, %v1417
      %1547 = vst.msk [vmem:[%s172 + $0xe0] sm:$0xff] %vm1518, %v1418
      %1548 = vst.msk [vmem:[%s172 + $0xe8] sm:$0xff] %vm1518, %v1419
      %1549 = vst.msk [vmem:[%s172 + $0xf0] sm:$0xff] %vm1518, %v1420
      %1550 = vst.msk [vmem:[%s172 + $0xf8] sm:$0xff] %vm1518, %v1421
      %1551 = vst.msk [vmem:[%s172 + $0x100] sm:$0xff] %vm1518, %v1422
      %1552 = vst.msk [vmem:[%s172 + $0x108] sm:$0xff] %vm1518, %v1423
      %1553 = vst.msk [vmem:[%s172 + $0x110] sm:$0xff] %vm1518, %v1424
      %1554 = vst.msk [vmem:[%s172 + $0x118] sm:$0xff] %vm1518, %v1425
      %1555 = vst.msk [vmem:[%s172 + $0x120] sm:$0xff] %vm1518, %v1426
      %1556 = vst.msk [vmem:[%s172 + $0x128] sm:$0xff] %vm1518, %v1427
      %1557 = vst.msk [vmem:[%s172 + $0x130] sm:$0xff] %vm1518, %v1428
      %1558 = vst.msk [vmem:[%s172 + $0x138] sm:$0xff] %vm1518, %v1429
      %1559 = vst.msk [vmem:[%s172 + $0x140] sm:$0xff] %vm1518, %v1430
      %1560 = vst.msk [vmem:[%s172 + $0x148] sm:$0xff] %vm1518, %v1431
      %1561 = vst.msk [vmem:[%s172 + $0x150] sm:$0xff] %vm1518, %v1432
      %1562 = vst.msk [vmem:[%s172 + $0x158] sm:$0xff] %vm1518, %v1433
      %1563 = vst.msk [vmem:[%s172 + $0x160] sm:$0xff] %vm1518, %v1434
      %1564 = vst.msk [vmem:[%s172 + $0x168] sm:$0xff] %vm1518, %v1435
      %1565 = vst.msk [vmem:[%s172 + $0x170] sm:$0xff] %vm1518, %v1436
      %1566 = vst.msk [vmem:[%s172 + $0x178] sm:$0xff] %vm1518, %v1437
      %1567 = vst.msk [vmem:[%s172 + $0x180] sm:$0xff] %vm1518, %v1438
      %1568 = vst.msk [vmem:[%s172 + $0x188] sm:$0xff] %vm1518, %v1439
      %1569 = vst.msk [vmem:[%s172 + $0x190] sm:$0xff] %vm1518, %v1440
      %1570 = vst.msk [vmem:[%s172 + $0x198] sm:$0xff] %vm1518, %v1441
      %1571 = vst.msk [vmem:[%s172 + $0x1a0] sm:$0xff] %vm1518, %v1442
      %1572 = vst.msk [vmem:[%s172 + $0x1a8] sm:$0xff] %vm1518, %v1443
      %1573 = vst.msk [vmem:[%s172 + $0x1b0] sm:$0xff] %vm1518, %v1444
      %1574 = vst.msk [vmem:[%s172 + $0x1b8] sm:$0xff] %vm1518, %v1445
      %1575 = vst.msk [vmem:[%s172 + $0x1c0] sm:$0xff] %vm1518, %v1446
      %1576 = vst.msk [vmem:[%s172 + $0x1c8] sm:$0xff] %vm1518, %v1447
      %1577 = vst.msk [vmem:[%s172 + $0x1d0] sm:$0xff] %vm1518, %v1448
      %1578 = vst.msk [vmem:[%s172 + $0x1d8] sm:$0xff] %vm1518, %v1449
      %1579 = vst.msk [vmem:[%s172 + $0x1e0] sm:$0xff] %vm1518, %v1450
      %1580 = vst.msk [vmem:[%s172 + $0x1e8] sm:$0xff] %vm1518, %v1451
      %1581 = vst.msk [vmem:[%s172 + $0x1f0] sm:$0xff] %vm1518, %v1452
      %1582 = vst.msk [vmem:[%s172 + $0x1f8] sm:$0xff] %vm1518, %v1453
      %1583 = vst.msk [vmem:[%s172 + $0x200] sm:$0xff] %vm1518, %v1454
      %1584 = vst.msk [vmem:[%s172 + $0x208] sm:$0xff] %vm1518, %v1455
      %1585 = vst.msk [vmem:[%s172 + $0x210] sm:$0xff] %vm1518, %v1456
      %1586 = vst.msk [vmem:[%s172 + $0x218] sm:$0xff] %vm1518, %v1457
      %1587 = vst.msk [vmem:[%s172 + $0x220] sm:$0xff] %vm1518, %v1458
      %1588 = vst.msk [vmem:[%s172 + $0x228] sm:$0xff] %vm1518, %v1459
      %1589 = vst.msk [vmem:[%s172 + $0x230] sm:$0xff] %vm1518, %v1460
      %1590 = vst.msk [vmem:[%s172 + $0x238] sm:$0xff] %vm1518, %v1461
      %1591 = vst.msk [vmem:[%s172 + $0x240] sm:$0xff] %vm1518, %v1462
      %1592 = vst.msk [vmem:[%s172 + $0x248] sm:$0xff] %vm1518, %v1463
      %1593 = vst.msk [vmem:[%s172 + $0x250] sm:$0xff] %vm1518, %v1464
      %1594 = vst.msk [vmem:[%s172 + $0x258] sm:$0xff] %vm1518, %v1465
      %1595 = vst.msk [vmem:[%s172 + $0x260] sm:$0xff] %vm1518, %v1466
      %1596 = vst.msk [vmem:[%s172 + $0x268] sm:$0xff] %vm1518, %v1467
      %1597 = vst.msk [vmem:[%s172 + $0x270] sm:$0xff] %vm1518, %v1468
      %1598 = vst.msk [vmem:[%s172 + $0x278] sm:$0xff] %vm1518, %v1469
      %1599 = vst.msk [vmem:[%s172 + $0x280] sm:$0xff] %vm1518, %v1470
      %1600 = vst.msk [vmem:[%s172 + $0x288] sm:$0xff] %vm1518, %v1471
      %1601 = vst.msk [vmem:[%s172 + $0x290] sm:$0xff] %vm1518, %v1472
      %1602 = vst.msk [vmem:[%s172 + $0x298] sm:$0xff] %vm1518, %v1473
      %1603 = vst.msk [vmem:[%s172 + $0x2a0] sm:$0xff] %vm1518, %v1474
      %1604 = vst.msk [vmem:[%s172 + $0x2a8] sm:$0xff] %vm1518, %v1475
      %1605 = vst.msk [vmem:[%s172 + $0x2b0] sm:$0xff] %vm1518, %v1476
      %1606 = vst.msk [vmem:[%s172 + $0x2b8] sm:$0xff] %vm1518, %v1477
      %1607 = vst.msk [vmem:[%s172 + $0x2c0] sm:$0xff] %vm1518, %v1478
      %1608 = vst.msk [vmem:[%s172 + $0x2c8] sm:$0xff] %vm1518, %v1479
      %1609 = vst.msk [vmem:[%s172 + $0x2d0] sm:$0xff] %vm1518, %v1480
      %1610 = vst.msk [vmem:[%s172 + $0x2d8] sm:$0xff] %vm1518, %v1481
      %1611 = vst.msk [vmem:[%s172 + $0x2e0] sm:$0xff] %vm1518, %v1482
      %1612 = vst.msk [vmem:[%s172 + $0x2e8] sm:$0xff] %vm1518, %v1483
      %1613 = vst.msk [vmem:[%s172 + $0x2f0] sm:$0xff] %vm1518, %v1484
      %1614 = vst.msk [vmem:[%s172 + $0x2f8] sm:$0xff] %vm1518, %v1485
      %1615 = vst.msk [vmem:[%s172 + $0x300] sm:$0xff] %vm1518, %v1486
      %1616 = vst.msk [vmem:[%s172 + $0x308] sm:$0xff] %vm1518, %v1487
      %1617 = vst.msk [vmem:[%s172 + $0x310] sm:$0xff] %vm1518, %v1488
      %1618 = vst.msk [vmem:[%s172 + $0x318] sm:$0xff] %vm1518, %v1489
      %1619 = vst.msk [vmem:[%s172 + $0x320] sm:$0xff] %vm1518, %v1490
      %1620 = vst.msk [vmem:[%s172 + $0x328] sm:$0xff] %vm1518, %v1491
      %1621 = vst.msk [vmem:[%s172 + $0x330] sm:$0xff] %vm1518, %v1492
      %1622 = vst.msk [vmem:[%s172 + $0x338] sm:$0xff] %vm1518, %v1493
      %1623 = vst.msk [vmem:[%s172 + $0x340] sm:$0xff] %vm1518, %v1494
      %1624 = vst.msk [vmem:[%s172 + $0x348] sm:$0xff] %vm1518, %v1495
      %1625 = vst.msk [vmem:[%s172 + $0x350] sm:$0xff] %vm1518, %v1496
      %1626 = vst.msk [vmem:[%s172 + $0x358] sm:$0xff] %vm1518, %v1497
      %1627 = vst.msk [vmem:[%s172 + $0x360] sm:$0xff] %vm1518, %v1498
      %1628 = vst.msk [vmem:[%s172 + $0x368] sm:$0xff] %vm1518, %v1499
      %1629 = vst.msk [vmem:[%s172 + $0x370] sm:$0xff] %vm1518, %v1500
      %1630 = vst.msk [vmem:[%s172 + $0x378] sm:$0xff] %vm1518, %v1501
      %1631 = vst.msk [vmem:[%s172 + $0x380] sm:$0xff] %vm1518, %v1502
      %1632 = vst.msk [vmem:[%s172 + $0x388] sm:$0xff] %vm1518, %v1503
      %1633 = vst.msk [vmem:[%s172 + $0x390] sm:$0xff] %vm1518, %v1504
      %1634 = vst.msk [vmem:[%s172 + $0x398] sm:$0xff] %vm1518, %v1505
      %1635 = vst.msk [vmem:[%s172 + $0x3a0] sm:$0xff] %vm1518, %v1506
      %1636 = vst.msk [vmem:[%s172 + $0x3a8] sm:$0xff] %vm1518, %v1507
      %1637 = vst.msk [vmem:[%s172 + $0x3b0] sm:$0xff] %vm1518, %v1508
      %1638 = vst.msk [vmem:[%s172 + $0x3b8] sm:$0xff] %vm1518, %v1509
      %1639 = vst.msk [vmem:[%s172 + $0x3c0] sm:$0xff] %vm1518, %v1510
      %1640 = vst.msk [vmem:[%s172 + $0x3c8] sm:$0xff] %vm1518, %v1511
      %1641 = vst.msk [vmem:[%s172 + $0x3d0] sm:$0xff] %vm1518, %v1512
      %1642 = vst.msk [vmem:[%s172 + $0x3d8] sm:$0xff] %vm1518, %v1513
      %1643 = vst.msk [vmem:[%s172 + $0x3e0] sm:$0xff] %vm1518, %v1514
      %1644 = vst.msk [vmem:[%s172 + $0x3e8] sm:$0xff] %vm1518, %v1515
      %1645 = vst.msk [vmem:[%s172 + $0x3f0] sm:$0xff] %vm1518, %v1516
      %1646 = vst.msk [vmem:[%s172 + $0x3f8] sm:$0xff] %vm1518, %v1517
      %s1647 = smul.u32 128, %s14
      %p1648 = scmp.lt.s32.totalorder %s1647, 255
      %s1649 = scalar_select %p1648, %s1647, 255
      %s1650 = smul.addr %s1649, 8
      %s1651 = scalar_lea.vmem %s3, %s1650
      // Predicated region
      $region33: #{_lambda_.10} parent=31 // pred_check
        %p1652 = pneg %p100
      $region34: #{_lambda_.10} parent=31 // pred_check_branch
        %1654 = sbr.rel (%p1652) target = $region36
      $region35: #{_lambda_.10} parent=31 // pred_region
        %s1655 = smul.u32 128, %s14
      $region36: #{_lambda_.10} parent=31 // pred_fallthru
        _
    $region32: #{_lambda_.10} parent=5 // pred_fallthru
      _
    %p1656 = scmp.le.s32.totalorder 2, %s9
    // Predicated region
    $region37: #{_lambda_.10} parent=5 // pred_check
      %p1657 = pneg %p1656
    $region38: #{_lambda_.10} parent=5 // pred_check_branch
      %1659 = sbr.rel (%p1657) target = $region40
    $region39: #{_lambda_.10} parent=5 // pred_region
      %s1660 = ssub.s32 %s9, 2
      // Predicated region
      $region41: #{_lambda_.10} parent=39 // pred_check
        %p1661 = pneg %p106
      $region42: #{_lambda_.10} parent=39 // pred_check_branch
        %1663 = sbr.rel (%p1661) target = $region44
      $region43: #{_lambda_.10} parent=39 // pred_region
        %s1664 = smul.u32 128, %s15
        %p1665 = scmp.lt.s32.totalorder %s1664, 255
        %s1666 = scalar_select %p1665, %s1664, 255
        %s1667 = smul.addr %s1666, 8
        %s1668 = scalar_lea.vmem %s3, %s1667
      $region44: #{_lambda_.10} parent=39 // pred_fallthru
        _
    $region40: #{_lambda_.10} parent=5 // pred_fallthru
      _
  $region6: #{_lambda_.10} parent=0 // loop_footer
    %s13 = sadd.s32 1, %s9
  $region7: #{_lambda_.10} parent=0 // loop_footer_branch
    %8 = sbr.rel target = $region3
  $region8: #{_lambda_.10} parent=0 // loop_exit
    _

// kernel: _lambda_.11
$region0: #{_lambda_.11}
  #allocation0 [shape = 'u32[]', space=smem, size = 0x4, offset = 0x4, fixed_abs, tag = 'smem constant byte address 0x4 - core index']
  #allocation1 [shape = 'u32[144,128]{1,0:T(1,128)}', space=vmem, size = 0x12000, scoped, tag = 'internal scratch']
  %s0 = inlined_call_operand.vmem [shape: bf16[512,72], index: 0, kind: input, shape index: {}]
  %s1 = inlined_call_operand.vmem [shape: bf16[72,16], index: 1, kind: input, shape index: {}]
  %s2 = inlined_call_operand.vmem [shape: f32[1,16], index: 2, kind: input, shape index: {}]
  %s3 = inlined_call_operand.vmem [shape: f32[512,16], index: 3, kind: output, shape index: {}]
  %s4 = sld [smem:[#allocation0]]
  $region45: #{_lambda_.11} parent=0
    _
  %s6 = ssub.s32 1, %s4
  %s7 = scalar_select 0, %s6, %s4
  loop: start=0, step=1, limit=4
  $region2: #{_lambda_.11} parent=0 // loop_pre_header
    _
  $region3: #{_lambda_.11} parent=0 // loop_header
    %s9 = sphi 0, %s13
    %p10 = scmp.ge.s32.totalorder %s9, 4
    %s19 = sphi 0, %s21
    %s22 = sphi 0, %s19
    %s23 = sphi 0, %s22
    %s39 = sphi 0, %s23
    %s43 = sphi 0, %s43
    %s45 = sphi 0, %s43
    %s46 = sphi 0, %s45
    %s60 = sphi 0, %s46
    %s64 = sphi 0, %s64
    %s66 = sphi 0, %s64
    %s67 = sphi 0, %s66
    %s81 = sphi 0, %s67
    %s87 = sphi 0, %s89
    %s90 = sphi 0, %s87
    %s91 = sphi 0, %s90
    %s107 = sphi 0, %s91
  $region4: #{_lambda_.11} parent=0 // loop_header_branch
    %12 = sbr.rel (%p10) target = $region8
  $region5: #{_lambda_.11} parent=0 // loop_body
    %s14 = ssub.s32 %s9, 1
    %s15 = ssub.s32 %s9, 2
    %s16 = sadd.s32 %s9, 1
    %s17 = ssub.s32 %s9, %s16
    %p18 = scmp.eq.s32.totalorder %s17, 0
    %s20 = sadd.s32 %s19, 1
    %s21 = scalar_select %p18, %s19, %s20
    %p24 = pneg %p18
    %p25 = scmp.eq.s32.totalorder %s9, 1
    %p26 = por %p24, %p25
    %p27 = scmp.ne.s32.totalorder %s19, %s22
    %p28 = scmp.eq.s32.totalorder %s9, 0
    %p29 = por %p27, %p28
    %p30 = scmp.ne.s32.totalorder %s19, %s22
    %p31 = scmp.eq.s32.totalorder %s14, 1
    %p32 = por %p30, %p31
    %p33 = scmp.ne.s32.totalorder %s22, %s23
    %p34 = scmp.eq.s32.totalorder %s14, 0
    %p35 = por %p33, %p34
    %p36 = scmp.ne.s32.totalorder %s22, %s23
    %p37 = scmp.eq.s32.totalorder %s15, 1
    %p38 = por %p36, %p37
    %p40 = scmp.ne.s32.totalorder %s23, %s39
    %p41 = scmp.eq.s32.totalorder %s15, 0
    %p42 = por %p40, %p41
    %s44 = sadd.s32 %s43, 1
    %p47 = scmp.eq.s32.totalorder %s9, 1
    %p48 = scmp.ne.s32.totalorder %s43, %s45
    %p49 = scmp.eq.s32.totalorder %s9, 0
    %p50 = por %p48, %p49
    %p51 = scmp.ne.s32.totalorder %s43, %s45
    %p52 = scmp.eq.s32.totalorder %s14, 1
    %p53 = por %p51, %p52
    %p54 = scmp.ne.s32.totalorder %s45, %s46
    %p55 = scmp.eq.s32.totalorder %s14, 0
    %p56 = por %p54, %p55
    %p57 = scmp.ne.s32.totalorder %s45, %s46
    %p58 = scmp.eq.s32.totalorder %s15, 1
    %p59 = por %p57, %p58
    %p61 = scmp.ne.s32.totalorder %s46, %s60
    %p62 = scmp.eq.s32.totalorder %s15, 0
    %p63 = por %p61, %p62
    %s65 = sadd.s32 %s64, 1
    %p68 = scmp.eq.s32.totalorder %s9, 1
    %p69 = scmp.ne.s32.totalorder %s64, %s66
    %p70 = scmp.eq.s32.totalorder %s9, 0
    %p71 = por %p69, %p70
    %p72 = scmp.ne.s32.totalorder %s64, %s66
    %p73 = scmp.eq.s32.totalorder %s14, 1
    %p74 = por %p72, %p73
    %p75 = scmp.ne.s32.totalorder %s66, %s67
    %p76 = scmp.eq.s32.totalorder %s14, 0
    %p77 = por %p75, %p76
    %p78 = scmp.ne.s32.totalorder %s66, %s67
    %p79 = scmp.eq.s32.totalorder %s15, 1
    %p80 = por %p78, %p79
    %p82 = scmp.ne.s32.totalorder %s67, %s81
    %p83 = scmp.eq.s32.totalorder %s15, 0
    %p84 = por %p82, %p83
    %s85 = ssub.s32 %s9, %s16
    %p86 = scmp.eq.s32.totalorder %s85, 0
    %s88 = sadd.s32 %s87, 1
    %s89 = scalar_select %p86, %s87, %s88
    %p92 = pneg %p86
    %p93 = scmp.eq.s32.totalorder %s9, 1
    %p94 = por %p92, %p93
    %p95 = scmp.ne.s32.totalorder %s87, %s90
    %p96 = scmp.eq.s32.totalorder %s9, 0
    %p97 = por %p95, %p96
    %p98 = scmp.ne.s32.totalorder %s87, %s90
    %p99 = scmp.eq.s32.totalorder %s14, 1
    %p100 = por %p98, %p99
    %p101 = scmp.ne.s32.totalorder %s90, %s91
    %p102 = scmp.eq.s32.totalorder %s14, 0
    %p103 = por %p101, %p102
    %p104 = scmp.ne.s32.totalorder %s90, %s91
    %p105 = scmp.eq.s32.totalorder %s15, 1
    %p106 = por %p104, %p105
    %p108 = scmp.ne.s32.totalorder %s91, %s107
    %p109 = scmp.eq.s32.totalorder %s15, 0
    %p110 = por %p108, %p109
    %p111 = scmp.le.s32.totalorder 1, %s9
    %p112 = scmp.lt.s32.totalorder %s9, 3
    %p113 = pnand %p111, %p112
    %p114 = pneg %p113
    // Predicated region
    $region9: #{_lambda_.11} parent=5 // pred_check
      _
    $region10: #{_lambda_.11} parent=5 // pred_check_branch
      %116 = sbr.rel (%p113) target = $region12
    $region11: #{_lambda_.11} parent=5 // pred_region
      %s117 = ssub.s32 %s9, 1
      // Predicated region
      $region13: #{_lambda_.11} parent=11 // pred_check
        %p118 = pneg %p56
      $region14: #{_lambda_.11} parent=11 // pred_check_branch
        %120 = sbr.rel (%p118) target = $region16
      $region15: #{_lambda_.11} parent=11 // pred_region
        _
      $region16: #{_lambda_.11} parent=11 // pred_fallthru
        _
      // Predicated region
      $region17: #{_lambda_.11} parent=11 // pred_check
        %p121 = pneg %p77
      $region18: #{_lambda_.11} parent=11 // pred_check_branch
        %123 = sbr.rel (%p121) target = $region20
      $region19: #{_lambda_.11} parent=11 // pred_region
        _
      $region20: #{_lambda_.11} parent=11 // pred_fallthru
        _
    $region12: #{_lambda_.11} parent=5 // pred_fallthru
      _
    %p124 = scmp.lt.s32.totalorder %s9, 2
    // Predicated region
    $region21: #{_lambda_.11} parent=5 // pred_check
      %p125 = pneg %p124
    $region22: #{_lambda_.11} parent=5 // pred_check_branch
      %127 = sbr.rel (%p125) target = $region24
    $region23: #{_lambda_.11} parent=5 // pred_region
      // Predicated region
      $region25: #{_lambda_.11} parent=23 // pred_check
        %p128 = pneg %p29
      $region26: #{_lambda_.11} parent=23 // pred_check_branch
        %130 = sbr.rel (%p128) target = $region28
      $region27: #{_lambda_.11} parent=23 // pred_region
        %s131 = smul.u32 32, %s9
        %p132 = scmp.lt.s32.totalorder %s131, 63
        %s133 = scalar_select %p132, %s131, 63
        %s134 = smul.addr %s133, 4
        %s135 = scalar_lea.vmem %s0, %s134
        %s136 = smul.u32 32, %s9
      $region28: #{_lambda_.11} parent=23 // pred_fallthru
        _
    $region24: #{_lambda_.11} parent=5 // pred_fallthru
      _
    %p137 = scmp.le.s32.totalorder 1, %s9
    %p138 = scmp.lt.s32.totalorder %s9, 3
    %p139 = pnand %p137, %p138
    %p140 = pneg %p139
    // Predicated region
    $region29: #{_lambda_.11} parent=5 // pred_check
      _
    $region30: #{_lambda_.11} parent=5 // pred_check_branch
      %142 = sbr.rel (%p139) target = $region32
    $region31: #{_lambda_.11} parent=5 // pred_region
      %s143 = ssub.s32 %s9, 1
      %s144 = smul.u32 32, %s14
      %p145 = scmp.lt.s32.totalorder %s144, 63
      %s146 = scalar_select %p145, %s144, 63
      %s147 = smul.addr %s146, 4
      %s148 = scalar_lea.vmem %s0, %s147
      %p149 = pneg %p35
      %p150 = pneg %p32
      %p151 = pneg %p56
      %p152 = pneg %p53
      %p153 = pneg %p77
      %p154 = pneg %p74
      %p155 = pneg %p103
      %p156 = pneg %p100
      %s157 = smul.u32 32, %s14
      %p158 = scmp.lt.s32.totalorder %s157, 63
      %s159 = scalar_select %p158, %s157, 63
      %s160 = smul.addr %s159, 8
      %s161 = scalar_lea.vmem %s3, %s160
      %s162 = smul.u32 32, %s14
      %p163 = scmp.lt.s32.totalorder %s162, 63
      %s164 = scalar_select %p163, %s162, 63
      %s165 = smul.addr %s164, 4
      %s166 = scalar_lea.vmem %s0, %s165
      %s167 = smul.u32 32, %s14
      %s168 = smul.u32 32, %s14
      %p169 = scmp.lt.s32.totalorder %s168, 63
      %s170 = scalar_select %p169, %s168, 63
      %s171 = smul.addr %s170, 8
      %s172 = scalar_lea.vmem %s3, %s171
      %s173 = smul.u32 32, %s14
      %v175 = vld [vmem:[%s166] sm:$0xf]
      %v176 = vld [vmem:[%s166 + $0x4] sm:$0xf]
      %v177 = vld [vmem:[%s166 + $0x8] sm:$0xf]
      %v178 = vld [vmem:[%s166 + $0xc] sm:$0xf]
      %v179 = vld [vmem:[%s166 + $0x10] sm:$0xf]
      %v180 = vld [vmem:[%s166 + $0x14] sm:$0xf]
      %v181 = vld [vmem:[%s166 + $0x18] sm:$0xf]
      %v182 = vld [vmem:[%s166 + $0x1c] sm:$0xf]
      %v183 = vld [vmem:[%s166 + $0x20] sm:$0xf]
      %v184 = vld [vmem:[%s166 + $0x24] sm:$0xf]
      %v185 = vld [vmem:[%s166 + $0x28] sm:$0xf]
      %v186 = vld [vmem:[%s166 + $0x2c] sm:$0xf]
      %v187 = vld [vmem:[%s166 + $0x30] sm:$0xf]
      %v188 = vld [vmem:[%s166 + $0x34] sm:$0xf]
      %v189 = vld [vmem:[%s166 + $0x38] sm:$0xf]
      %v190 = vld [vmem:[%s166 + $0x3c] sm:$0xf]
      %v191 = vld [vmem:[%s166 + $0x40] sm:$0xf]
      %v192 = vld [vmem:[%s166 + $0x44] sm:$0xf]
      %v193 = vld [vmem:[%s166 + $0x48] sm:$0xf]
      %v194 = vld [vmem:[%s166 + $0x4c] sm:$0xf]
      %v195 = vld [vmem:[%s166 + $0x50] sm:$0xf]
      %v196 = vld [vmem:[%s166 + $0x54] sm:$0xf]
      %v197 = vld [vmem:[%s166 + $0x58] sm:$0xf]
      %v198 = vld [vmem:[%s166 + $0x5c] sm:$0xf]
      %v199 = vld [vmem:[%s166 + $0x60] sm:$0xf]
      %v200 = vld [vmem:[%s166 + $0x64] sm:$0xf]
      %v201 = vld [vmem:[%s166 + $0x68] sm:$0xf]
      %v202 = vld [vmem:[%s166 + $0x6c] sm:$0xf]
      %v203 = vld [vmem:[%s166 + $0x70] sm:$0xf]
      %v204 = vld [vmem:[%s166 + $0x74] sm:$0xf]
      %v205 = vld [vmem:[%s166 + $0x78] sm:$0xf]
      %v206 = vld [vmem:[%s166 + $0x7c] sm:$0xf]
      %v207 = vld [vmem:[%s1] sm:$0xf]
      %v208 = vld [vmem:[%s1 + $0x4] sm:$0xf]
      %v209 = vld [vmem:[%s1 + $0x8] sm:$0xf]
      %v210 = vld [vmem:[%s1 + $0xc] sm:$0xf]
      %v211 = vld [vmem:[%s1 + $0x10] sm:$0xf]
      %v212 = vld [vmem:[%s1 + $0x14] sm:$0xf]
      %v213 = vld [vmem:[%s1 + $0x18] sm:$0xf]
      %v214 = vld [vmem:[%s1 + $0x1c] sm:$0xf]
      %v215 = vld [vmem:[%s1 + $0x20] sm:$0xf]
      %v216 = vld [vmem:[%s2] sm:$0x1]
      %v218 = vlaneseq
      %v219 = vshrl.u32 %v218, 7
      %v220 = vsub.s32 0, %v219
      %v221 = vrot.slane %v216, %v220
      %v255 = vunpack.c.l.b16 %v175
      %v256 = vunpack.c.l.b16 %v176
      %v257 = vunpack.c.l.b16 %v177
      %v258 = vunpack.c.l.b16 %v178
      %v259 = vunpack.c.l.b16 %v179
      %v260 = vunpack.c.l.b16 %v180
      %v261 = vunpack.c.l.b16 %v181
      %v262 = vunpack.c.l.b16 %v182
      %v263 = vunpack.c.l.b16 %v183
      %v264 = vunpack.c.l.b16 %v184
      %v265 = vunpack.c.l.b16 %v185
      %v266 = vunpack.c.l.b16 %v186
      %v267 = vunpack.c.l.b16 %v187
      %v268 = vunpack.c.l.b16 %v188
      %v269 = vunpack.c.l.b16 %v189
      %v270 = vunpack.c.l.b16 %v190
      %v271 = vunpack.c.l.b16 %v191
      %v272 = vunpack.c.l.b16 %v192
      %v273 = vunpack.c.l.b16 %v193
      %v274 = vunpack.c.l.b16 %v194
      %v275 = vunpack.c.l.b16 %v195
      %v276 = vunpack.c.l.b16 %v196
      %v277 = vunpack.c.l.b16 %v197
      %v278 = vunpack.c.l.b16 %v198
      %v279 = vunpack.c.l.b16 %v199
      %v280 = vunpack.c.l.b16 %v200
      %v281 = vunpack.c.l.b16 %v201
      %v282 = vunpack.c.l.b16 %v202
      %v283 = vunpack.c.l.b16 %v203
      %v284 = vunpack.c.l.b16 %v204
      %v285 = vunpack.c.l.b16 %v205
      %v286 = vunpack.c.l.b16 %v206
      %v287 = vpack.c.b16 %v256, %v255
      %v288 = vpack.c.b16 %v258, %v257
      %v289 = vpack.c.b16 %v260, %v259
      %v290 = vpack.c.b16 %v262, %v261
      %v291 = vpack.c.b16 %v264, %v263
      %v292 = vpack.c.b16 %v266, %v265
      %v293 = vpack.c.b16 %v268, %v267
      %v294 = vpack.c.b16 %v270, %v269
      %v295 = vpack.c.b16 %v272, %v271
      %v296 = vpack.c.b16 %v274, %v273
      %v297 = vpack.c.b16 %v276, %v275
      %v298 = vpack.c.b16 %v278, %v277
      %v299 = vpack.c.b16 %v280, %v279
      %v300 = vpack.c.b16 %v282, %v281
      %v301 = vpack.c.b16 %v284, %v283
      %v302 = vpack.c.b16 %v286, %v285
      %v312 = vunpack.c.l.b16 %v207
      %v313 = vunpack.c.l.b16 %v208
      %v314 = vunpack.c.l.b16 %v209
      %v315 = vunpack.c.l.b16 %v210
      %v316 = vunpack.c.l.b16 %v211
      %v317 = vunpack.c.l.b16 %v212
      %v318 = vunpack.c.l.b16 %v213
      %v319 = vunpack.c.l.b16 %v214
      %v320 = vunpack.c.l.b16 %v215
      %v321 = vpack.c.b16 %v313, %v312
      %v322 = vpack.c.b16 %v315, %v314
      %v323 = vpack.c.b16 %v317, %v316
      %v324 = vpack.c.b16 %v319, %v318
      %v325 = vpack.c.b16 %v320, %v320
      %vm330 = vcmask 588800
      %v332 = vsel %vm330, %v287, 0
      %v335 = vsel %vm330, %v288, 0
      %v338 = vsel %vm330, %v289, 0
      %v341 = vsel %vm330, %v290, 0
      %v344 = vsel %vm330, %v291, 0
      %v347 = vsel %vm330, %v292, 0
      %v350 = vsel %vm330, %v293, 0
      %v353 = vsel %vm330, %v294, 0
      %v356 = vsel %vm330, %v295, 0
      %v359 = vsel %vm330, %v296, 0
      %v362 = vsel %vm330, %v297, 0
      %v365 = vsel %vm330, %v298, 0
      %v368 = vsel %vm330, %v299, 0
      %v371 = vsel %vm330, %v300, 0
      %v374 = vsel %vm330, %v301, 0
      %v377 = vsel %vm330, %v302, 0
      %vm379 = vcmask 1043456
      %v381 = vsel %vm379, %v325, 0
      %383 = vmatprep.subr.bf16.mxu0 0
      %384 = vmatpush1.bf16.msra.mxu0 0
      %385 = vmatprep.subr.bf16.mxu0 0
      %386 = vmatpush1.bf16.msra.mxu0 0
      %387 = vmatprep.subr.bf16.mxu0 0
      %388 = vmatpush1.bf16.msra.mxu0 0
      %389 = vmatprep.subr.bf16.mxu0 0
      %390 = vmatpush1.bf16.msra.mxu0 %v381
      %391 = vmatprep.subr.bf16.mxu0 0
      %392 = vmatpush1.bf16.msra.mxu0 %v324
      %393 = vmatprep.subr.bf16.mxu0 0
      %394 = vmatpush1.bf16.msra.mxu0 %v323
      %395 = vmatprep.subr.bf16.mxu0 0
      %396 = vmatpush1.bf16.msra.mxu0 %v322
      %397 = vmatprep.subr.bf16.mxu0 0
      %398 = vmatpush1.bf16.msra.mxu0 %v321
      %399 = vmatprep.subr.bf16.mxu0 0
      %400 = vmatpush2.bf16.msra.mxu0 0
      %401 = vmatprep.subr.bf16.mxu0 0
      %402 = vmatpush2.bf16.msra.mxu0 0
      %403 = vmatprep.subr.bf16.mxu0 0
      %404 = vmatpush2.bf16.msra.mxu0 0
      %405 = vmatprep.subr.bf16.mxu0 0
      %406 = vmatpush2.bf16.msra.mxu0 0
      %407 = vmatprep.subr.bf16.mxu0 0
      %408 = vmatpush2.bf16.msra.mxu0 0
      %409 = vmatprep.subr.bf16.mxu0 0
      %410 = vmatpush2.bf16.msra.mxu0 0
      %411 = vmatprep.subr.bf16.mxu0 0
      %412 = vmatpush2.bf16.msra.mxu0 0
      %413 = vmatprep.subr.bf16.mxu0 0
      %414 = vmatpush2.bf16.msra.mxu0 0
      %415 = vmatprep.mubr.bf16.mxu0 0
      %416 = vmatmul.mubr.bf16.gmra.mxu0 %v332
      %v417 = vpop.f32.mrf.mxu0
      %v418 = vadd.f32 %v221, %v417
      %v419 = vpop.f32.mrf.mxu0
      %v420 = vpop.f32.mrf.mxu0
      %v421 = vadd.f32 %v221, %v420
      %v422 = vpop.f32.mrf.mxu0
      %423 = vmatprep.mubr.bf16.mxu0 0
      %424 = vmatmul.mubr.bf16.gmra.mxu0 %v335
      %v425 = vpop.f32.mrf.mxu0
      %v426 = vadd.f32 %v221, %v425
      %v427 = vpop.f32.mrf.mxu0
      %v428 = vpop.f32.mrf.mxu0
      %v429 = vadd.f32 %v221, %v428
      %v430 = vpop.f32.mrf.mxu0
      %431 = vmatprep.mubr.bf16.mxu0 0
      %432 = vmatmul.mubr.bf16.gmra.mxu0 %v338
      %v433 = vpop.f32.mrf.mxu0
      %v434 = vadd.f32 %v221, %v433
      %v435 = vpop.f32.mrf.mxu0
      %v436 = vpop.f32.mrf.mxu0
      %v437 = vadd.f32 %v221, %v436
      %v438 = vpop.f32.mrf.mxu0
      %439 = vmatprep.mubr.bf16.mxu0 0
      %440 = vmatmul.mubr.bf16.gmra.mxu0 %v341
      %v441 = vpop.f32.mrf.mxu0
      %v442 = vadd.f32 %v221, %v441
      %v443 = vpop.f32.mrf.mxu0
      %v444 = vpop.f32.mrf.mxu0
      %v445 = vadd.f32 %v221, %v444
      %v446 = vpop.f32.mrf.mxu0
      %447 = vmatprep.mubr.bf16.mxu0 0
      %448 = vmatmul.mubr.bf16.gmra.mxu0 %v344
      %v449 = vpop.f32.mrf.mxu0
      %v450 = vadd.f32 %v221, %v449
      %v451 = vpop.f32.mrf.mxu0
      %v452 = vpop.f32.mrf.mxu0
      %v453 = vadd.f32 %v221, %v452
      %v454 = vpop.f32.mrf.mxu0
      %455 = vmatprep.mubr.bf16.mxu0 0
      %456 = vmatmul.mubr.bf16.gmra.mxu0 %v347
      %v457 = vpop.f32.mrf.mxu0
      %v458 = vadd.f32 %v221, %v457
      %v459 = vpop.f32.mrf.mxu0
      %v460 = vpop.f32.mrf.mxu0
      %v461 = vadd.f32 %v221, %v460
      %v462 = vpop.f32.mrf.mxu0
      %463 = vmatprep.mubr.bf16.mxu0 0
      %464 = vmatmul.mubr.bf16.gmra.mxu0 %v350
      %v465 = vpop.f32.mrf.mxu0
      %v466 = vadd.f32 %v221, %v465
      %v467 = vpop.f32.mrf.mxu0
      %v468 = vpop.f32.mrf.mxu0
      %v469 = vadd.f32 %v221, %v468
      %v470 = vpop.f32.mrf.mxu0
      %471 = vmatprep.mubr.bf16.mxu0 0
      %472 = vmatmul.mubr.bf16.gmra.mxu0 %v353
      %v473 = vpop.f32.mrf.mxu0
      %v474 = vadd.f32 %v221, %v473
      %v475 = vpop.f32.mrf.mxu0
      %v476 = vpop.f32.mrf.mxu0
      %v477 = vadd.f32 %v221, %v476
      %v478 = vpop.f32.mrf.mxu0
      %479 = vmatprep.mubr.bf16.mxu0 0
      %480 = vmatmul.mubr.bf16.gmra.mxu0 %v356
      %v481 = vpop.f32.mrf.mxu0
      %v482 = vadd.f32 %v221, %v481
      %v483 = vpop.f32.mrf.mxu0
      %v484 = vpop.f32.mrf.mxu0
      %v485 = vadd.f32 %v221, %v484
      %v486 = vpop.f32.mrf.mxu0
      %487 = vmatprep.mubr.bf16.mxu0 0
      %488 = vmatmul.mubr.bf16.gmra.mxu0 %v359
      %v489 = vpop.f32.mrf.mxu0
      %v490 = vadd.f32 %v221, %v489
      %v491 = vpop.f32.mrf.mxu0
      %v492 = vpop.f32.mrf.mxu0
      %v493 = vadd.f32 %v221, %v492
      %v494 = vpop.f32.mrf.mxu0
      %495 = vmatprep.mubr.bf16.mxu0 0
      %496 = vmatmul.mubr.bf16.gmra.mxu0 %v362
      %v497 = vpop.f32.mrf.mxu0
      %v498 = vadd.f32 %v221, %v497
      %v499 = vpop.f32.mrf.mxu0
      %v500 = vpop.f32.mrf.mxu0
      %v501 = vadd.f32 %v221, %v500
      %v502 = vpop.f32.mrf.mxu0
      %503 = vmatprep.mubr.bf16.mxu0 0
      %504 = vmatmul.mubr.bf16.gmra.mxu0 %v365
      %v505 = vpop.f32.mrf.mxu0
      %v506 = vadd.f32 %v221, %v505
      %v507 = vpop.f32.mrf.mxu0
      %v508 = vpop.f32.mrf.mxu0
      %v509 = vadd.f32 %v221, %v508
      %v510 = vpop.f32.mrf.mxu0
      %511 = vmatprep.mubr.bf16.mxu0 0
      %512 = vmatmul.mubr.bf16.gmra.mxu0 %v368
      %v513 = vpop.f32.mrf.mxu0
      %v514 = vadd.f32 %v221, %v513
      %v515 = vpop.f32.mrf.mxu0
      %v516 = vpop.f32.mrf.mxu0
      %v517 = vadd.f32 %v221, %v516
      %v518 = vpop.f32.mrf.mxu0
      %519 = vmatprep.mubr.bf16.mxu0 0
      %520 = vmatmul.mubr.bf16.gmra.mxu0 %v371
      %v521 = vpop.f32.mrf.mxu0
      %v522 = vadd.f32 %v221, %v521
      %v523 = vpop.f32.mrf.mxu0
      %v524 = vpop.f32.mrf.mxu0
      %v525 = vadd.f32 %v221, %v524
      %v526 = vpop.f32.mrf.mxu0
      %527 = vmatprep.mubr.bf16.mxu0 0
      %528 = vmatmul.mubr.bf16.gmra.mxu0 %v374
      %v529 = vpop.f32.mrf.mxu0
      %v530 = vadd.f32 %v221, %v529
      %v531 = vpop.f32.mrf.mxu0
      %v532 = vpop.f32.mrf.mxu0
      %v533 = vadd.f32 %v221, %v532
      %v534 = vpop.f32.mrf.mxu0
      %535 = vmatprep.mubr.bf16.mxu0 0
      %536 = vmatmul.mubr.bf16.gmra.mxu0 %v377
      %v537 = vpop.f32.mrf.mxu0
      %v538 = vadd.f32 %v221, %v537
      %v539 = vpop.f32.mrf.mxu0
      %v540 = vpop.f32.mrf.mxu0
      %v541 = vadd.f32 %v221, %v540
      %v542 = vpop.f32.mrf.mxu0
      %543 = vdwg.mxu0
      %v544 = vmax.f32 %v418, 0.0
      %v545 = vmax.f32 %v421, 0.0
      %v546 = vmax.f32 %v426, 0.0
      %v547 = vmax.f32 %v429, 0.0
      %v548 = vmax.f32 %v434, 0.0
      %v549 = vmax.f32 %v437, 0.0
      %v550 = vmax.f32 %v442, 0.0
      %v551 = vmax.f32 %v445, 0.0
      %v552 = vmax.f32 %v450, 0.0
      %v553 = vmax.f32 %v453, 0.0
      %v554 = vmax.f32 %v458, 0.0
      %v555 = vmax.f32 %v461, 0.0
      %v556 = vmax.f32 %v466, 0.0
      %v557 = vmax.f32 %v469, 0.0
      %v558 = vmax.f32 %v474, 0.0
      %v559 = vmax.f32 %v477, 0.0
      %v560 = vmax.f32 %v482, 0.0
      %v561 = vmax.f32 %v485, 0.0
      %v562 = vmax.f32 %v490, 0.0
      %v563 = vmax.f32 %v493, 0.0
      %v564 = vmax.f32 %v498, 0.0
      %v565 = vmax.f32 %v501, 0.0
      %v566 = vmax.f32 %v506, 0.0
      %v567 = vmax.f32 %v509, 0.0
      %v568 = vmax.f32 %v514, 0.0
      %v569 = vmax.f32 %v517, 0.0
      %v570 = vmax.f32 %v522, 0.0
      %v571 = vmax.f32 %v525, 0.0
      %v572 = vmax.f32 %v530, 0.0
      %v573 = vmax.f32 %v533, 0.0
      %v574 = vmax.f32 %v538, 0.0
      %v575 = vmax.f32 %v541, 0.0
      %vm576 = vcmask 130048
      %577 = vst.msk [vmem:[%s172] sm:$0xff] %vm576, %v544
      %578 = vst.msk [vmem:[%s172 + $0x8] sm:$0xff] %vm576, %v545
      %579 = vst.msk [vmem:[%s172 + $0x10] sm:$0xff] %vm576, %v546
      %580 = vst.msk [vmem:[%s172 + $0x18] sm:$0xff] %vm576, %v547
      %581 = vst.msk [vmem:[%s172 + $0x20] sm:$0xff] %vm576, %v548
      %582 = vst.msk [vmem:[%s172 + $0x28] sm:$0xff] %vm576, %v549
      %583 = vst.msk [vmem:[%s172 + $0x30] sm:$0xff] %vm576, %v550
      %584 = vst.msk [vmem:[%s172 + $0x38] sm:$0xff] %vm576, %v551
      %585 = vst.msk [vmem:[%s172 + $0x40] sm:$0xff] %vm576, %v552
      %586 = vst.msk [vmem:[%s172 + $0x48] sm:$0xff] %vm576, %v553
      %587 = vst.msk [vmem:[%s172 + $0x50] sm:$0xff] %vm576, %v554
      %588 = vst.msk [vmem:[%s172 + $0x58] sm:$0xff] %vm576, %v555
      %589 = vst.msk [vmem:[%s172 + $0x60] sm:$0xff] %vm576, %v556
      %590 = vst.msk [vmem:[%s172 + $0x68] sm:$0xff] %vm576, %v557
      %591 = vst.msk [vmem:[%s172 + $0x70] sm:$0xff] %vm576, %v558
      %592 = vst.msk [vmem:[%s172 + $0x78] sm:$0xff] %vm576, %v559
      %593 = vst.msk [vmem:[%s172 + $0x80] sm:$0xff] %vm576, %v560
      %594 = vst.msk [vmem:[%s172 + $0x88] sm:$0xff] %vm576, %v561
      %595 = vst.msk [vmem:[%s172 + $0x90] sm:$0xff] %vm576, %v562
      %596 = vst.msk [vmem:[%s172 + $0x98] sm:$0xff] %vm576, %v563
      %597 = vst.msk [vmem:[%s172 + $0xa0] sm:$0xff] %vm576, %v564
      %598 = vst.msk [vmem:[%s172 + $0xa8] sm:$0xff] %vm576, %v565
      %599 = vst.msk [vmem:[%s172 + $0xb0] sm:$0xff] %vm576, %v566
      %600 = vst.msk [vmem:[%s172 + $0xb8] sm:$0xff] %vm576, %v567
      %601 = vst.msk [vmem:[%s172 + $0xc0] sm:$0xff] %vm576, %v568
      %602 = vst.msk [vmem:[%s172 + $0xc8] sm:$0xff] %vm576, %v569
      %603 = vst.msk [vmem:[%s172 + $0xd0] sm:$0xff] %vm576, %v570
      %604 = vst.msk [vmem:[%s172 + $0xd8] sm:$0xff] %vm576, %v571
      %605 = vst.msk [vmem:[%s172 + $0xe0] sm:$0xff] %vm576, %v572
      %606 = vst.msk [vmem:[%s172 + $0xe8] sm:$0xff] %vm576, %v573
      %607 = vst.msk [vmem:[%s172 + $0xf0] sm:$0xff] %vm576, %v574
      %608 = vst.msk [vmem:[%s172 + $0xf8] sm:$0xff] %vm576, %v575
      %s609 = smul.u32 32, %s14
      %p610 = scmp.lt.s32.totalorder %s609, 63
      %s611 = scalar_select %p610, %s609, 63
      %s612 = smul.addr %s611, 8
      %s613 = scalar_lea.vmem %s3, %s612
      // Predicated region
      $region33: #{_lambda_.11} parent=31 // pred_check
        %p614 = pneg %p100
      $region34: #{_lambda_.11} parent=31 // pred_check_branch
        %616 = sbr.rel (%p614) target = $region36
      $region35: #{_lambda_.11} parent=31 // pred_region
        %s617 = smul.u32 32, %s14
      $region36: #{_lambda_.11} parent=31 // pred_fallthru
        _
    $region32: #{_lambda_.11} parent=5 // pred_fallthru
      _
    %p618 = scmp.le.s32.totalorder 2, %s9
    // Predicated region
    $region37: #{_lambda_.11} parent=5 // pred_check
      %p619 = pneg %p618
    $region38: #{_lambda_.11} parent=5 // pred_check_branch
      %621 = sbr.rel (%p619) target = $region40
    $region39: #{_lambda_.11} parent=5 // pred_region
      %s622 = ssub.s32 %s9, 2
      // Predicated region
      $region41: #{_lambda_.11} parent=39 // pred_check
        %p623 = pneg %p106
      $region42: #{_lambda_.11} parent=39 // pred_check_branch
        %625 = sbr.rel (%p623) target = $region44
      $region43: #{_lambda_.11} parent=39 // pred_region
        %s626 = smul.u32 32, %s15
        %p627 = scmp.lt.s32.totalorder %s626, 63
        %s628 = scalar_select %p627, %s626, 63
        %s629 = smul.addr %s628, 8
        %s630 = scalar_lea.vmem %s3, %s629
      $region44: #{_lambda_.11} parent=39 // pred_fallthru
        _
    $region40: #{_lambda_.11} parent=5 // pred_fallthru
      _
  $region6: #{_lambda_.11} parent=0 // loop_footer
    %s13 = sadd.s32 1, %s9
  $region7: #{_lambda_.11} parent=0 // loop_footer_branch
    %8 = sbr.rel target = $region3
  $region8: #{_lambda_.11} parent=0 // loop_exit
    _

// kernel: _lambda_.12
$region0: #{_lambda_.12}
  #allocation0 [shape = 'u32[]', space=smem, size = 0x4, offset = 0x4, fixed_abs, tag = 'smem constant byte address 0x4 - core index']
  #allocation1 [shape = 'u32[144,128]{1,0:T(1,128)}', space=vmem, size = 0x12000, scoped, tag = 'internal scratch']
  %s0 = inlined_call_operand.vmem [shape: f32[2,256,16], index: 0, kind: input, shape index: {}]
  %s1 = inlined_call_operand.vmem [shape: f32[256,256], index: 1, kind: input, shape index: {}]
  %s2 = inlined_call_operand.vmem [shape: f32[1,16], index: 2, kind: input, shape index: {}]
  %s3 = inlined_call_operand.vmem [shape: bf16[16,64], index: 3, kind: input, shape index: {}]
  %s4 = inlined_call_operand.vmem [shape: f32[1,64], index: 4, kind: input, shape index: {}]
  %s5 = inlined_call_operand.vmem [shape: bf16[64,16], index: 5, kind: input, shape index: {}]
  %s6 = inlined_call_operand.vmem [shape: f32[1,16], index: 6, kind: input, shape index: {}]
  %s7 = inlined_call_operand.vmem [shape: f32[2,256,16], index: 7, kind: output, shape index: {}]
  %s8 = sld [smem:[#allocation0]]
  $region61: #{_lambda_.12} parent=0
    _
  %s10 = ssub.s32 1, %s8
  %s11 = scalar_select 0, %s10, %s8
  loop: start=0, step=1, limit=4
  $region2: #{_lambda_.12} parent=0 // loop_pre_header
    _
  $region3: #{_lambda_.12} parent=0 // loop_header
    %s13 = sphi 0, %s17
    %p14 = scmp.ge.s32.totalorder %s13, 4
    %s23 = sphi 0, %s25
    %s26 = sphi 0, %s23
    %s27 = sphi 0, %s26
    %s43 = sphi 0, %s27
    %s47 = sphi 0, %s47
    %s49 = sphi 0, %s47
    %s50 = sphi 0, %s49
    %s64 = sphi 0, %s50
    %s68 = sphi 0, %s68
    %s70 = sphi 0, %s68
    %s71 = sphi 0, %s70
    %s85 = sphi 0, %s71
    %s89 = sphi 0, %s89
    %s91 = sphi 0, %s89
    %s92 = sphi 0, %s91
    %s106 = sphi 0, %s92
    %s110 = sphi 0, %s110
    %s112 = sphi 0, %s110
    %s113 = sphi 0, %s112
    %s127 = sphi 0, %s113
    %s131 = sphi 0, %s131
    %s133 = sphi 0, %s131
    %s134 = sphi 0, %s133
    %s148 = sphi 0, %s134
    %s152 = sphi 0, %s152
    %s154 = sphi 0, %s152
    %s155 = sphi 0, %s154
    %s169 = sphi 0, %s155
    %s175 = sphi 0, %s177
    %s178 = sphi 0, %s175
    %s179 = sphi 0, %s178
    %s195 = sphi 0, %s179
  $region4: #{_lambda_.12} parent=0 // loop_header_branch
    %16 = sbr.rel (%p14) target = $region8
  $region5: #{_lambda_.12} parent=0 // loop_body
    %s18 = ssub.s32 %s13, 1
    %s19 = ssub.s32 %s13, 2
    %s20 = sadd.s32 %s13, 1
    %s21 = ssub.s32 %s13, %s20
    %p22 = scmp.eq.s32.totalorder %s21, 0
    %s24 = sadd.s32 %s23, 1
    %s25 = scalar_select %p22, %s23, %s24
    %p28 = pneg %p22
    %p29 = scmp.eq.s32.totalorder %s13, 1
    %p30 = por %p28, %p29
    %p31 = scmp.ne.s32.totalorder %s23, %s26
    %p32 = scmp.eq.s32.totalorder %s13, 0
    %p33 = por %p31, %p32
    %p34 = scmp.ne.s32.totalorder %s23, %s26
    %p35 = scmp.eq.s32.totalorder %s18, 1
    %p36 = por %p34, %p35
    %p37 = scmp.ne.s32.totalorder %s26, %s27
    %p38 = scmp.eq.s32.totalorder %s18, 0
    %p39 = por %p37, %p38
    %p40 = scmp.ne.s32.totalorder %s26, %s27
    %p41 = scmp.eq.s32.totalorder %s19, 1
    %p42 = por %p40, %p41
    %p44 = scmp.ne.s32.totalorder %s27, %s43
    %p45 = scmp.eq.s32.totalorder %s19, 0
    %p46 = por %p44, %p45
    %s48 = sadd.s32 %s47, 1
    %p51 = scmp.eq.s32.totalorder %s13, 1
    %p52 = scmp.ne.s32.totalorder %s47, %s49
    %p53 = scmp.eq.s32.totalorder %s13, 0
    %p54 = por %p52, %p53
    %p55 = scmp.ne.s32.totalorder %s47, %s49
    %p56 = scmp.eq.s32.totalorder %s18, 1
    %p57 = por %p55, %p56
    %p58 = scmp.ne.s32.totalorder %s49, %s50
    %p59 = scmp.eq.s32.totalorder %s18, 0
    %p60 = por %p58, %p59
    %p61 = scmp.ne.s32.totalorder %s49, %s50
    %p62 = scmp.eq.s32.totalorder %s19, 1
    %p63 = por %p61, %p62
    %p65 = scmp.ne.s32.totalorder %s50, %s64
    %p66 = scmp.eq.s32.totalorder %s19, 0
    %p67 = por %p65, %p66
    %s69 = sadd.s32 %s68, 1
    %p72 = scmp.eq.s32.totalorder %s13, 1
    %p73 = scmp.ne.s32.totalorder %s68, %s70
    %p74 = scmp.eq.s32.totalorder %s13, 0
    %p75 = por %p73, %p74
    %p76 = scmp.ne.s32.totalorder %s68, %s70
    %p77 = scmp.eq.s32.totalorder %s18, 1
    %p78 = por %p76, %p77
    %p79 = scmp.ne.s32.totalorder %s70, %s71
    %p80 = scmp.eq.s32.totalorder %s18, 0
    %p81 = por %p79, %p80
    %p82 = scmp.ne.s32.totalorder %s70, %s71
    %p83 = scmp.eq.s32.totalorder %s19, 1
    %p84 = por %p82, %p83
    %p86 = scmp.ne.s32.totalorder %s71, %s85
    %p87 = scmp.eq.s32.totalorder %s19, 0
    %p88 = por %p86, %p87
    %s90 = sadd.s32 %s89, 1
    %p93 = scmp.eq.s32.totalorder %s13, 1
    %p94 = scmp.ne.s32.totalorder %s89, %s91
    %p95 = scmp.eq.s32.totalorder %s13, 0
    %p96 = por %p94, %p95
    %p97 = scmp.ne.s32.totalorder %s89, %s91
    %p98 = scmp.eq.s32.totalorder %s18, 1
    %p99 = por %p97, %p98
    %p100 = scmp.ne.s32.totalorder %s91, %s92
    %p101 = scmp.eq.s32.totalorder %s18, 0
    %p102 = por %p100, %p101
    %p103 = scmp.ne.s32.totalorder %s91, %s92
    %p104 = scmp.eq.s32.totalorder %s19, 1
    %p105 = por %p103, %p104
    %p107 = scmp.ne.s32.totalorder %s92, %s106
    %p108 = scmp.eq.s32.totalorder %s19, 0
    %p109 = por %p107, %p108
    %s111 = sadd.s32 %s110, 1
    %p114 = scmp.eq.s32.totalorder %s13, 1
    %p115 = scmp.ne.s32.totalorder %s110, %s112
    %p116 = scmp.eq.s32.totalorder %s13, 0
    %p117 = por %p115, %p116
    %p118 = scmp.ne.s32.totalorder %s110, %s112
    %p119 = scmp.eq.s32.totalorder %s18, 1
    %p120 = por %p118, %p119
    %p121 = scmp.ne.s32.totalorder %s112, %s113
    %p122 = scmp.eq.s32.totalorder %s18, 0
    %p123 = por %p121, %p122
    %p124 = scmp.ne.s32.totalorder %s112, %s113
    %p125 = scmp.eq.s32.totalorder %s19, 1
    %p126 = por %p124, %p125
    %p128 = scmp.ne.s32.totalorder %s113, %s127
    %p129 = scmp.eq.s32.totalorder %s19, 0
    %p130 = por %p128, %p129
    %s132 = sadd.s32 %s131, 1
    %p135 = scmp.eq.s32.totalorder %s13, 1
    %p136 = scmp.ne.s32.totalorder %s131, %s133
    %p137 = scmp.eq.s32.totalorder %s13, 0
    %p138 = por %p136, %p137
    %p139 = scmp.ne.s32.totalorder %s131, %s133
    %p140 = scmp.eq.s32.totalorder %s18, 1
    %p141 = por %p139, %p140
    %p142 = scmp.ne.s32.totalorder %s133, %s134
    %p143 = scmp.eq.s32.totalorder %s18, 0
    %p144 = por %p142, %p143
    %p145 = scmp.ne.s32.totalorder %s133, %s134
    %p146 = scmp.eq.s32.totalorder %s19, 1
    %p147 = por %p145, %p146
    %p149 = scmp.ne.s32.totalorder %s134, %s148
    %p150 = scmp.eq.s32.totalorder %s19, 0
    %p151 = por %p149, %p150
    %s153 = sadd.s32 %s152, 1
    %p156 = scmp.eq.s32.totalorder %s13, 1
    %p157 = scmp.ne.s32.totalorder %s152, %s154
    %p158 = scmp.eq.s32.totalorder %s13, 0
    %p159 = por %p157, %p158
    %p160 = scmp.ne.s32.totalorder %s152, %s154
    %p161 = scmp.eq.s32.totalorder %s18, 1
    %p162 = por %p160, %p161
    %p163 = scmp.ne.s32.totalorder %s154, %s155
    %p164 = scmp.eq.s32.totalorder %s18, 0
    %p165 = por %p163, %p164
    %p166 = scmp.ne.s32.totalorder %s154, %s155
    %p167 = scmp.eq.s32.totalorder %s19, 1
    %p168 = por %p166, %p167
    %p170 = scmp.ne.s32.totalorder %s155, %s169
    %p171 = scmp.eq.s32.totalorder %s19, 0
    %p172 = por %p170, %p171
    %s173 = ssub.s32 %s13, %s20
    %p174 = scmp.eq.s32.totalorder %s173, 0
    %s176 = sadd.s32 %s175, 1
    %s177 = scalar_select %p174, %s175, %s176
    %p180 = pneg %p174
    %p181 = scmp.eq.s32.totalorder %s13, 1
    %p182 = por %p180, %p181
    %p183 = scmp.ne.s32.totalorder %s175, %s178
    %p184 = scmp.eq.s32.totalorder %s13, 0
    %p185 = por %p183, %p184
    %p186 = scmp.ne.s32.totalorder %s175, %s178
    %p187 = scmp.eq.s32.totalorder %s18, 1
    %p188 = por %p186, %p187
    %p189 = scmp.ne.s32.totalorder %s178, %s179
    %p190 = scmp.eq.s32.totalorder %s18, 0
    %p191 = por %p189, %p190
    %p192 = scmp.ne.s32.totalorder %s178, %s179
    %p193 = scmp.eq.s32.totalorder %s19, 1
    %p194 = por %p192, %p193
    %p196 = scmp.ne.s32.totalorder %s179, %s195
    %p197 = scmp.eq.s32.totalorder %s19, 0
    %p198 = por %p196, %p197
    %p199 = scmp.le.s32.totalorder 1, %s13
    %p200 = scmp.lt.s32.totalorder %s13, 3
    %p201 = pnand %p199, %p200
    %p202 = pneg %p201
    // Predicated region
    $region9: #{_lambda_.12} parent=5 // pred_check
      _
    $region10: #{_lambda_.12} parent=5 // pred_check_branch
      %204 = sbr.rel (%p201) target = $region12
    $region11: #{_lambda_.12} parent=5 // pred_region
      %s205 = ssub.s32 %s13, 1
      // Predicated region
      $region13: #{_lambda_.12} parent=11 // pred_check
        %p206 = pneg %p60
      $region14: #{_lambda_.12} parent=11 // pred_check_branch
        %208 = sbr.rel (%p206) target = $region16
      $region15: #{_lambda_.12} parent=11 // pred_region
        _
      $region16: #{_lambda_.12} parent=11 // pred_fallthru
        _
      // Predicated region
      $region17: #{_lambda_.12} parent=11 // pred_check
        %p209 = pneg %p81
      $region18: #{_lambda_.12} parent=11 // pred_check_branch
        %211 = sbr.rel (%p209) target = $region20
      $region19: #{_lambda_.12} parent=11 // pred_region
        _
      $region20: #{_lambda_.12} parent=11 // pred_fallthru
        _
      // Predicated region
      $region21: #{_lambda_.12} parent=11 // pred_check
        %p212 = pneg %p102
      $region22: #{_lambda_.12} parent=11 // pred_check_branch
        %214 = sbr.rel (%p212) target = $region24
      $region23: #{_lambda_.12} parent=11 // pred_region
        _
      $region24: #{_lambda_.12} parent=11 // pred_fallthru
        _
      // Predicated region
      $region25: #{_lambda_.12} parent=11 // pred_check
        %p215 = pneg %p123
      $region26: #{_lambda_.12} parent=11 // pred_check_branch
        %217 = sbr.rel (%p215) target = $region28
      $region27: #{_lambda_.12} parent=11 // pred_region
        _
      $region28: #{_lambda_.12} parent=11 // pred_fallthru
        _
      // Predicated region
      $region29: #{_lambda_.12} parent=11 // pred_check
        %p218 = pneg %p144
      $region30: #{_lambda_.12} parent=11 // pred_check_branch
        %220 = sbr.rel (%p218) target = $region32
      $region31: #{_lambda_.12} parent=11 // pred_region
        _
      $region32: #{_lambda_.12} parent=11 // pred_fallthru
        _
      // Predicated region
      $region33: #{_lambda_.12} parent=11 // pred_check
        %p221 = pneg %p165
      $region34: #{_lambda_.12} parent=11 // pred_check_branch
        %223 = sbr.rel (%p221) target = $region36
      $region35: #{_lambda_.12} parent=11 // pred_region
        _
      $region36: #{_lambda_.12} parent=11 // pred_fallthru
        _
    $region12: #{_lambda_.12} parent=5 // pred_fallthru
      _
    %p224 = scmp.lt.s32.totalorder %s13, 2
    // Predicated region
    $region37: #{_lambda_.12} parent=5 // pred_check
      %p225 = pneg %p224
    $region38: #{_lambda_.12} parent=5 // pred_check_branch
      %227 = sbr.rel (%p225) target = $region40
    $region39: #{_lambda_.12} parent=5 // pred_region
      // Predicated region
      $region41: #{_lambda_.12} parent=39 // pred_check
        %p228 = pneg %p33
      $region42: #{_lambda_.12} parent=39 // pred_check_branch
        %230 = sbr.rel (%p228) target = $region44
      $region43: #{_lambda_.12} parent=39 // pred_region
        %p231 = scmp.lt.s32.totalorder %s13, 1
        %s232 = scalar_select %p231, %s13, 1
        %s233 = smul.addr %s232, 32
        %s234 = smul.addr %s233, 8
        %s235 = scalar_lea.vmem %s0, %s234
      $region44: #{_lambda_.12} parent=39 // pred_fallthru
        _
    $region40: #{_lambda_.12} parent=5 // pred_fallthru
      _
    %p236 = scmp.le.s32.totalorder 1, %s13
    %p237 = scmp.lt.s32.totalorder %s13, 3
    %p238 = pnand %p236, %p237
    %p239 = pneg %p238
    // Predicated region
    $region45: #{_lambda_.12} parent=5 // pred_check
      _
    $region46: #{_lambda_.12} parent=5 // pred_check_branch
      %241 = sbr.rel (%p238) target = $region48
    $region47: #{_lambda_.12} parent=5 // pred_region
      %s242 = ssub.s32 %s13, 1
      %p243 = scmp.lt.s32.totalorder %s18, 1
      %s244 = scalar_select %p243, %s18, 1
      %s245 = smul.addr %s244, 32
      %s246 = smul.addr %s245, 8
      %s247 = scalar_lea.vmem %s0, %s246
      %p248 = pneg %p39
      %p249 = pneg %p36
      %p250 = pneg %p60
      %p251 = pneg %p57
      %p252 = pneg %p81
      %p253 = pneg %p78
      %p254 = pneg %p102
      %p255 = pneg %p99
      %p256 = pneg %p123
      %p257 = pneg %p120
      %p258 = pneg %p144
      %p259 = pneg %p141
      %p260 = pneg %p165
      %p261 = pneg %p162
      %p262 = pneg %p191
      %p263 = pneg %p188
      %p264 = scmp.lt.s32.totalorder %s18, 1
      %s265 = scalar_select %p264, %s18, 1
      %s266 = smul.addr %s265, 32
      %s267 = smul.addr %s266, 8
      %s268 = scalar_lea.vmem %s7, %s267
      %p269 = scmp.lt.s32.totalorder %s18, 1
      %s270 = scalar_select %p269, %s18, 1
      %s271 = smul.addr %s270, 32
      %s272 = smul.addr %s271, 8
      %s273 = scalar_lea.vmem %s0, %s272
      %p274 = scmp.lt.s32.totalorder %s18, 1
      %s275 = scalar_select %p274, %s18, 1
      %s276 = smul.addr %s275, 32
      %s277 = smul.addr %s276, 8
      %s278 = scalar_lea.vmem %s7, %s277
      %v280 = vld [vmem:[%s273] sm:$0xff]
      %v281 = vld [vmem:[%s273 + $0x8] sm:$0xff]
      %v282 = vld [vmem:[%s273 + $0x10] sm:$0xff]
      %v283 = vld [vmem:[%s273 + $0x18] sm:$0xff]
      %v284 = vld [vmem:[%s273 + $0x20] sm:$0xff]
      %v285 = vld [vmem:[%s273 + $0x28] sm:$0xff]
      %v286 = vld [vmem:[%s273 + $0x30] sm:$0xff]
      %v287 = vld [vmem:[%s273 + $0x38] sm:$0xff]
      %v288 = vld [vmem:[%s273 + $0x40] sm:$0xff]
      %v289 = vld [vmem:[%s273 + $0x48] sm:$0xff]
      %v290 = vld [vmem:[%s273 + $0x50] sm:$0xff]
      %v291 = vld [vmem:[%s273 + $0x58] sm:$0xff]
      %v292 = vld [vmem:[%s273 + $0x60] sm:$0xff]
      %v293 = vld [vmem:[%s273 + $0x68] sm:$0xff]
      %v294 = vld [vmem:[%s273 + $0x70] sm:$0xff]
      %v295 = vld [vmem:[%s273 + $0x78] sm:$0xff]
      %v296 = vld [vmem:[%s273 + $0x80] sm:$0xff]
      %v297 = vld [vmem:[%s273 + $0x88] sm:$0xff]
      %v298 = vld [vmem:[%s273 + $0x90] sm:$0xff]
      %v299 = vld [vmem:[%s273 + $0x98] sm:$0xff]
      %v300 = vld [vmem:[%s273 + $0xa0] sm:$0xff]
      %v301 = vld [vmem:[%s273 + $0xa8] sm:$0xff]
      %v302 = vld [vmem:[%s273 + $0xb0] sm:$0xff]
      %v303 = vld [vmem:[%s273 + $0xb8] sm:$0xff]
      %v304 = vld [vmem:[%s273 + $0xc0] sm:$0xff]
      %v305 = vld [vmem:[%s273 + $0xc8] sm:$0xff]
      %v306 = vld [vmem:[%s273 + $0xd0] sm:$0xff]
      %v307 = vld [vmem:[%s273 + $0xd8] sm:$0xff]
      %v308 = vld [vmem:[%s273 + $0xe0] sm:$0xff]
      %v309 = vld [vmem:[%s273 + $0xe8] sm:$0xff]
      %v310 = vld [vmem:[%s273 + $0xf0] sm:$0xff]
      %v311 = vld [vmem:[%s273 + $0xf8] sm:$0xff]
      %v312 = vld [vmem:[%s1] sm:$0xff]
      %v313 = vld [vmem:[%s1 + $0x8] sm:$0xff]
      %v314 = vld [vmem:[%s1 + $0x10] sm:$0xff]
      %v315 = vld [vmem:[%s1 + $0x18] sm:$0xff]
      %v316 = vld [vmem:[%s1 + $0x20] sm:$0xff]
      %v317 = vld [vmem:[%s1 + $0x28] sm:$0xff]
      %v318 = vld [vmem:[%s1 + $0x30] sm:$0xff]
      %v319 = vld [vmem:[%s1 + $0x38] sm:$0xff]
      %v320 = vld [vmem:[%s1 + $0x40] sm:$0xff]
      %v321 = vld [vmem:[%s1 + $0x48] sm:$0xff]
      %v322 = vld [vmem:[%s1 + $0x50] sm:$0xff]
      %v323 = vld [vmem:[%s1 + $0x58] sm:$0xff]
      %v324 = vld [vmem:[%s1 + $0x60] sm:$0xff]
      %v325 = vld [vmem:[%s1 + $0x68] sm:$0xff]
      %v326 = vld [vmem:[%s1 + $0x70] sm:$0xff]
      %v327 = vld [vmem:[%s1 + $0x78] sm:$0xff]
      %v328 = vld [vmem:[%s1 + $0x80] sm:$0xff]
      %v329 = vld [vmem:[%s1 + $0x88] sm:$0xff]
      %v330 = vld [vmem:[%s1 + $0x90] sm:$0xff]
      %v331 = vld [vmem:[%s1 + $0x98] sm:$0xff]
      %v332 = vld [vmem:[%s1 + $0xa0] sm:$0xff]
      %v333 = vld [vmem:[%s1 + $0xa8] sm:$0xff]
      %v334 = vld [vmem:[%s1 + $0xb0] sm:$0xff]
      %v335 = vld [vmem:[%s1 + $0xb8] sm:$0xff]
      %v336 = vld [vmem:[%s1 + $0xc0] sm:$0xff]
      %v337 = vld [vmem:[%s1 + $0xc8] sm:$0xff]
      %v338 = vld [vmem:[%s1 + $0xd0] sm:$0xff]
      %v339 = vld [vmem:[%s1 + $0xd8] sm:$0xff]
      %v340 = vld [vmem:[%s1 + $0xe0] sm:$0xff]
      %v341 = vld [vmem:[%s1 + $0xe8] sm:$0xff]
      %v342 = vld [vmem:[%s1 + $0xf0] sm:$0xff]
      %v343 = vld [vmem:[%s1 + $0xf8] sm:$0xff]
      %v344 = vld [vmem:[%s1 + $0x100] sm:$0xff]
      %v345 = vld [vmem:[%s1 + $0x108] sm:$0xff]
      %v346 = vld [vmem:[%s1 + $0x110] sm:$0xff]
      %v347 = vld [vmem:[%s1 + $0x118] sm:$0xff]
      %v348 = vld [vmem:[%s1 + $0x120] sm:$0xff]
      %v349 = vld [vmem:[%s1 + $0x128] sm:$0xff]
      %v350 = vld [vmem:[%s1 + $0x130] sm:$0xff]
      %v351 = vld [vmem:[%s1 + $0x138] sm:$0xff]
      %v352 = vld [vmem:[%s1 + $0x140] sm:$0xff]
      %v353 = vld [vmem:[%s1 + $0x148] sm:$0xff]
      %v354 = vld [vmem:[%s1 + $0x150] sm:$0xff]
      %v355 = vld [vmem:[%s1 + $0x158] sm:$0xff]
      %v356 = vld [vmem:[%s1 + $0x160] sm:$0xff]
      %v357 = vld [vmem:[%s1 + $0x168] sm:$0xff]
      %v358 = vld [vmem:[%s1 + $0x170] sm:$0xff]
      %v359 = vld [vmem:[%s1 + $0x178] sm:$0xff]
      %v360 = vld [vmem:[%s1 + $0x180] sm:$0xff]
      %v361 = vld [vmem:[%s1 + $0x188] sm:$0xff]
      %v362 = vld [vmem:[%s1 + $0x190] sm:$0xff]
      %v363 = vld [vmem:[%s1 + $0x198] sm:$0xff]
      %v364 = vld [vmem:[%s1 + $0x1a0] sm:$0xff]
      %v365 = vld [vmem:[%s1 + $0x1a8] sm:$0xff]
      %v366 = vld [vmem:[%s1 + $0x1b0] sm:$0xff]
      %v367 = vld [vmem:[%s1 + $0x1b8] sm:$0xff]
      %v368 = vld [vmem:[%s1 + $0x1c0] sm:$0xff]
      %v369 = vld [vmem:[%s1 + $0x1c8] sm:$0xff]
      %v370 = vld [vmem:[%s1 + $0x1d0] sm:$0xff]
      %v371 = vld [vmem:[%s1 + $0x1d8] sm:$0xff]
      %v372 = vld [vmem:[%s1 + $0x1e0] sm:$0xff]
      %v373 = vld [vmem:[%s1 + $0x1e8] sm:$0xff]
      %v374 = vld [vmem:[%s1 + $0x1f0] sm:$0xff]
      %v375 = vld [vmem:[%s1 + $0x1f8] sm:$0xff]
      %376 = vmatprep.subr.mxu0 0.0
      %377 = vmatpush1.msra.mxu0 %v295
      %378 = vmatprep.subr.mxu0 0.0
      %379 = vmatpush1.msra.mxu0 %v294
      %380 = vmatprep.subr.mxu0 0.0
      %381 = vmatpush1.msra.mxu0 %v293
      %382 = vmatprep.subr.mxu0 0.0
      %383 = vmatpush1.msra.mxu0 %v292
      %384 = vmatprep.subr.mxu0 0.0
      %385 = vmatpush1.msra.mxu0 %v291
      %386 = vmatprep.subr.mxu0 0.0
      %387 = vmatpush1.msra.mxu0 %v290
      %388 = vmatprep.subr.mxu0 0.0
      %389 = vmatpush1.msra.mxu0 %v289
      %390 = vmatprep.subr.mxu0 0.0
      %391 = vmatpush1.msra.mxu0 %v288
      %392 = vmatprep.subr.mxu0 0.0
      %393 = vmatpush1.msra.mxu0 %v287
      %394 = vmatprep.subr.mxu0 0.0
      %395 = vmatpush1.msra.mxu0 %v286
      %396 = vmatprep.subr.mxu0 0.0
      %397 = vmatpush1.msra.mxu0 %v285
      %398 = vmatprep.subr.mxu0 0.0
      %399 = vmatpush1.msra.mxu0 %v284
      %400 = vmatprep.subr.mxu0 0.0
      %401 = vmatpush1.msra.mxu0 %v283
      %402 = vmatprep.subr.mxu0 0.0
      %403 = vmatpush1.msra.mxu0 %v282
      %404 = vmatprep.subr.mxu0 0.0
      %405 = vmatpush1.msra.mxu0 %v281
      %406 = vmatprep.subr.mxu0 0.0
      %407 = vmatpush1.msra.mxu0 %v280
      %408 = vmatprep.subr.mxu0 0.0
      %409 = vmatpush2.msra.mxu0 %v311
      %410 = vmatprep.subr.mxu0 0.0
      %411 = vmatpush2.msra.mxu0 %v310
      %412 = vmatprep.subr.mxu0 0.0
      %413 = vmatpush2.msra.mxu0 %v309
      %414 = vmatprep.subr.mxu0 0.0
      %415 = vmatpush2.msra.mxu0 %v308
      %416 = vmatprep.subr.mxu0 0.0
      %417 = vmatpush2.msra.mxu0 %v307
      %418 = vmatprep.subr.mxu0 0.0
      %419 = vmatpush2.msra.mxu0 %v306
      %420 = vmatprep.subr.mxu0 0.0
      %421 = vmatpush2.msra.mxu0 %v305
      %422 = vmatprep.subr.mxu0 0.0
      %423 = vmatpush2.msra.mxu0 %v304
      %424 = vmatprep.subr.mxu0 0.0
      %425 = vmatpush2.msra.mxu0 %v303
      %426 = vmatprep.subr.mxu0 0.0
      %427 = vmatpush2.msra.mxu0 %v302
      %428 = vmatprep.subr.mxu0 0.0
      %429 = vmatpush2.msra.mxu0 %v301
      %430 = vmatprep.subr.mxu0 0.0
      %431 = vmatpush2.msra.mxu0 %v300
      %432 = vmatprep.subr.mxu0 0.0
      %433 = vmatpush2.msra.mxu0 %v299
      %434 = vmatprep.subr.mxu0 0.0
      %435 = vmatpush2.msra.mxu0 %v298
      %436 = vmatprep.subr.mxu0 0.0
      %437 = vmatpush2.msra.mxu0 %v297
      %438 = vmatprep.subr.mxu0 0.0
      %439 = vmatpush2.msra.mxu0 %v296
      %440 = vmatprep.mubr.f32.mxu0 %v313
      %441 = vmatmul.mubr.f32.gmra.mxu0 %v312
      %v442 = vpop.f32.mrf.mxu0
      %v443 = vadd.f32 0.0, %v442
      %v444 = vpop.f32.mrf.mxu0
      %445 = vmatprep.mubr.f32.mxu0 %v315
      %446 = vmatmul.mubr.f32.gmra.mxu0 %v314
      %v447 = vpop.f32.mrf.mxu0
      %v448 = vadd.f32 0.0, %v447
      %v449 = vpop.f32.mrf.mxu0
      %450 = vmatprep.mubr.f32.mxu0 %v317
      %451 = vmatmul.mubr.f32.gmra.mxu0 %v316
      %v452 = vpop.f32.mrf.mxu0
      %v453 = vadd.f32 0.0, %v452
      %v454 = vpop.f32.mrf.mxu0
      %455 = vmatprep.mubr.f32.mxu0 %v319
      %456 = vmatmul.mubr.f32.gmra.mxu0 %v318
      %v457 = vpop.f32.mrf.mxu0
      %v458 = vadd.f32 0.0, %v457
      %v459 = vpop.f32.mrf.mxu0
      %460 = vmatprep.mubr.f32.mxu0 %v321
      %461 = vmatmul.mubr.f32.gmra.mxu0 %v320
      %v462 = vpop.f32.mrf.mxu0
      %v463 = vadd.f32 0.0, %v462
      %v464 = vpop.f32.mrf.mxu0
      %465 = vmatprep.mubr.f32.mxu0 %v323
      %466 = vmatmul.mubr.f32.gmra.mxu0 %v322
      %v467 = vpop.f32.mrf.mxu0
      %v468 = vadd.f32 0.0, %v467
      %v469 = vpop.f32.mrf.mxu0
      %470 = vmatprep.mubr.f32.mxu0 %v325
      %471 = vmatmul.mubr.f32.gmra.mxu0 %v324
      %v472 = vpop.f32.mrf.mxu0
      %v473 = vadd.f32 0.0, %v472
      %v474 = vpop.f32.mrf.mxu0
      %475 = vmatprep.mubr.f32.mxu0 %v327
      %476 = vmatmul.mubr.f32.gmra.mxu0 %v326
      %v477 = vpop.f32.mrf.mxu0
      %v478 = vadd.f32 0.0, %v477
      %v479 = vpop.f32.mrf.mxu0
      %480 = vmatprep.mubr.f32.mxu0 %v329
      %481 = vmatmul.mubr.f32.gmra.mxu0 %v328
      %v482 = vpop.f32.mrf.mxu0
      %v483 = vadd.f32 0.0, %v482
      %v484 = vpop.f32.mrf.mxu0
      %485 = vmatprep.mubr.f32.mxu0 %v331
      %486 = vmatmul.mubr.f32.gmra.mxu0 %v330
      %v487 = vpop.f32.mrf.mxu0
      %v488 = vadd.f32 0.0, %v487
      %v489 = vpop.f32.mrf.mxu0
      %490 = vmatprep.mubr.f32.mxu0 %v333
      %491 = vmatmul.mubr.f32.gmra.mxu0 %v332
      %v492 = vpop.f32.mrf.mxu0
      %v493 = vadd.f32 0.0, %v492
      %v494 = vpop.f32.mrf.mxu0
      %495 = vmatprep.mubr.f32.mxu0 %v335
      %496 = vmatmul.mubr.f32.gmra.mxu0 %v334
      %v497 = vpop.f32.mrf.mxu0
      %v498 = vadd.f32 0.0, %v497
      %v499 = vpop.f32.mrf.mxu0
      %500 = vmatprep.mubr.f32.mxu0 %v337
      %501 = vmatmul.mubr.f32.gmra.mxu0 %v336
      %v502 = vpop.f32.mrf.mxu0
      %v503 = vadd.f32 0.0, %v502
      %v504 = vpop.f32.mrf.mxu0
      %505 = vmatprep.mubr.f32.mxu0 %v339
      %506 = vmatmul.mubr.f32.gmra.mxu0 %v338
      %v507 = vpop.f32.mrf.mxu0
      %v508 = vadd.f32 0.0, %v507
      %v509 = vpop.f32.mrf.mxu0
      %510 = vmatprep.mubr.f32.mxu0 %v341
      %511 = vmatmul.mubr.f32.gmra.mxu0 %v340
      %v512 = vpop.f32.mrf.mxu0
      %v513 = vadd.f32 0.0, %v512
      %v514 = vpop.f32.mrf.mxu0
      %515 = vmatprep.mubr.f32.mxu0 %v343
      %516 = vmatmul.mubr.f32.gmra.mxu0 %v342
      %v517 = vpop.f32.mrf.mxu0
      %v518 = vadd.f32 0.0, %v517
      %v519 = vpop.f32.mrf.mxu0
      %520 = vmatprep.mubr.f32.mxu0 %v345
      %521 = vmatmul.mubr.f32.gmra.mxu0 %v344
      %v522 = vpop.f32.mrf.mxu0
      %v523 = vadd.f32 0.0, %v522
      %v524 = vpop.f32.mrf.mxu0
      %525 = vmatprep.mubr.f32.mxu0 %v347
      %526 = vmatmul.mubr.f32.gmra.mxu0 %v346
      %v527 = vpop.f32.mrf.mxu0
      %v528 = vadd.f32 0.0, %v527
      %v529 = vpop.f32.mrf.mxu0
      %530 = vmatprep.mubr.f32.mxu0 %v349
      %531 = vmatmul.mubr.f32.gmra.mxu0 %v348
      %v532 = vpop.f32.mrf.mxu0
      %v533 = vadd.f32 0.0, %v532
      %v534 = vpop.f32.mrf.mxu0
      %535 = vmatprep.mubr.f32.mxu0 %v351
      %536 = vmatmul.mubr.f32.gmra.mxu0 %v350
      %v537 = vpop.f32.mrf.mxu0
      %v538 = vadd.f32 0.0, %v537
      %v539 = vpop.f32.mrf.mxu0
      %540 = vmatprep.mubr.f32.mxu0 %v353
      %541 = vmatmul.mubr.f32.gmra.mxu0 %v352
      %v542 = vpop.f32.mrf.mxu0
      %v543 = vadd.f32 0.0, %v542
      %v544 = vpop.f32.mrf.mxu0
      %545 = vmatprep.mubr.f32.mxu0 %v355
      %546 = vmatmul.mubr.f32.gmra.mxu0 %v354
      %v547 = vpop.f32.mrf.mxu0
      %v548 = vadd.f32 0.0, %v547
      %v549 = vpop.f32.mrf.mxu0
      %550 = vmatprep.mubr.f32.mxu0 %v357
      %551 = vmatmul.mubr.f32.gmra.mxu0 %v356
      %v552 = vpop.f32.mrf.mxu0
      %v553 = vadd.f32 0.0, %v552
      %v554 = vpop.f32.mrf.mxu0
      %555 = vmatprep.mubr.f32.mxu0 %v359
      %556 = vmatmul.mubr.f32.gmra.mxu0 %v358
      %v557 = vpop.f32.mrf.mxu0
      %v558 = vadd.f32 0.0, %v557
      %v559 = vpop.f32.mrf.mxu0
      %560 = vmatprep.mubr.f32.mxu0 %v361
      %561 = vmatmul.mubr.f32.gmra.mxu0 %v360
      %v562 = vpop.f32.mrf.mxu0
      %v563 = vadd.f32 0.0, %v562
      %v564 = vpop.f32.mrf.mxu0
      %565 = vmatprep.mubr.f32.mxu0 %v363
      %566 = vmatmul.mubr.f32.gmra.mxu0 %v362
      %v567 = vpop.f32.mrf.mxu0
      %v568 = vadd.f32 0.0, %v567
      %v569 = vpop.f32.mrf.mxu0
      %570 = vmatprep.mubr.f32.mxu0 %v365
      %571 = vmatmul.mubr.f32.gmra.mxu0 %v364
      %v572 = vpop.f32.mrf.mxu0
      %v573 = vadd.f32 0.0, %v572
      %v574 = vpop.f32.mrf.mxu0
      %575 = vmatprep.mubr.f32.mxu0 %v367
      %576 = vmatmul.mubr.f32.gmra.mxu0 %v366
      %v577 = vpop.f32.mrf.mxu0
      %v578 = vadd.f32 0.0, %v577
      %v579 = vpop.f32.mrf.mxu0
      %580 = vmatprep.mubr.f32.mxu0 %v369
      %581 = vmatmul.mubr.f32.gmra.mxu0 %v368
      %v582 = vpop.f32.mrf.mxu0
      %v583 = vadd.f32 0.0, %v582
      %v584 = vpop.f32.mrf.mxu0
      %585 = vmatprep.mubr.f32.mxu0 %v371
      %586 = vmatmul.mubr.f32.gmra.mxu0 %v370
      %v587 = vpop.f32.mrf.mxu0
      %v588 = vadd.f32 0.0, %v587
      %v589 = vpop.f32.mrf.mxu0
      %590 = vmatprep.mubr.f32.mxu0 %v373
      %591 = vmatmul.mubr.f32.gmra.mxu0 %v372
      %v592 = vpop.f32.mrf.mxu0
      %v593 = vadd.f32 0.0, %v592
      %v594 = vpop.f32.mrf.mxu0
      %595 = vmatprep.mubr.f32.mxu0 %v375
      %596 = vmatmul.mubr.f32.gmra.mxu0 %v374
      %v597 = vpop.f32.mrf.mxu0
      %v598 = vadd.f32 0.0, %v597
      %v599 = vpop.f32.mrf.mxu0
      %600 = vdwg.mxu0
      %v601 = vld [vmem:[%s2] sm:$0x1]
      %v602 = vsub.f32 %v443, %v280
      %v603 = vsub.f32 %v448, %v281
      %v604 = vsub.f32 %v453, %v282
      %v605 = vsub.f32 %v458, %v283
      %v606 = vsub.f32 %v463, %v284
      %v607 = vsub.f32 %v468, %v285
      %v608 = vsub.f32 %v473, %v286
      %v609 = vsub.f32 %v478, %v287
      %v610 = vsub.f32 %v483, %v288
      %v611 = vsub.f32 %v488, %v289
      %v612 = vsub.f32 %v493, %v290
      %v613 = vsub.f32 %v498, %v291
      %v614 = vsub.f32 %v503, %v292
      %v615 = vsub.f32 %v508, %v293
      %v616 = vsub.f32 %v513, %v294
      %v617 = vsub.f32 %v518, %v295
      %v618 = vsub.f32 %v523, %v296
      %v619 = vsub.f32 %v528, %v297
      %v620 = vsub.f32 %v533, %v298
      %v621 = vsub.f32 %v538, %v299
      %v622 = vsub.f32 %v543, %v300
      %v623 = vsub.f32 %v548, %v301
      %v624 = vsub.f32 %v553, %v302
      %v625 = vsub.f32 %v558, %v303
      %v626 = vsub.f32 %v563, %v304
      %v627 = vsub.f32 %v568, %v305
      %v628 = vsub.f32 %v573, %v306
      %v629 = vsub.f32 %v578, %v307
      %v630 = vsub.f32 %v583, %v308
      %v631 = vsub.f32 %v588, %v309
      %v632 = vsub.f32 %v593, %v310
      %v633 = vsub.f32 %v598, %v311
      %v635 = vlaneseq
      %v636 = vshrl.u32 %v635, 7
      %v637 = vsub.s32 0, %v636
      %v638 = vrot.slane %v601, %v637
      %v640 = vmul.f32 %v638, %v602
      %v641 = vmul.f32 %v638, %v603
      %v642 = vmul.f32 %v638, %v604
      %v643 = vmul.f32 %v638, %v605
      %v644 = vmul.f32 %v638, %v606
      %v645 = vmul.f32 %v638, %v607
      %v646 = vmul.f32 %v638, %v608
      %v647 = vmul.f32 %v638, %v609
      %v648 = vmul.f32 %v638, %v610
      %v649 = vmul.f32 %v638, %v611
      %v650 = vmul.f32 %v638, %v612
      %v651 = vmul.f32 %v638, %v613
      %v652 = vmul.f32 %v638, %v614
      %v653 = vmul.f32 %v638, %v615
      %v654 = vmul.f32 %v638, %v616
      %v655 = vmul.f32 %v638, %v617
      %v656 = vmul.f32 %v638, %v618
      %v657 = vmul.f32 %v638, %v619
      %v658 = vmul.f32 %v638, %v620
      %v659 = vmul.f32 %v638, %v621
      %v660 = vmul.f32 %v638, %v622
      %v661 = vmul.f32 %v638, %v623
      %v662 = vmul.f32 %v638, %v624
      %v663 = vmul.f32 %v638, %v625
      %v664 = vmul.f32 %v638, %v626
      %v665 = vmul.f32 %v638, %v627
      %v666 = vmul.f32 %v638, %v628
      %v667 = vmul.f32 %v638, %v629
      %v668 = vmul.f32 %v638, %v630
      %v669 = vmul.f32 %v638, %v631
      %v670 = vmul.f32 %v638, %v632
      %v671 = vmul.f32 %v638, %v633
      %v672 = vadd.f32 %v280, %v640
      %v673 = vadd.f32 %v281, %v641
      %v674 = vadd.f32 %v282, %v642
      %v675 = vadd.f32 %v283, %v643
      %v676 = vadd.f32 %v284, %v644
      %v677 = vadd.f32 %v285, %v645
      %v678 = vadd.f32 %v286, %v646
      %v679 = vadd.f32 %v287, %v647
      %v680 = vadd.f32 %v288, %v648
      %v681 = vadd.f32 %v289, %v649
      %v682 = vadd.f32 %v290, %v650
      %v683 = vadd.f32 %v291, %v651
      %v684 = vadd.f32 %v292, %v652
      %v685 = vadd.f32 %v293, %v653
      %v686 = vadd.f32 %v294, %v654
      %v687 = vadd.f32 %v295, %v655
      %v688 = vadd.f32 %v296, %v656
      %v689 = vadd.f32 %v297, %v657
      %v690 = vadd.f32 %v298, %v658
      %v691 = vadd.f32 %v299, %v659
      %v692 = vadd.f32 %v300, %v660
      %v693 = vadd.f32 %v301, %v661
      %v694 = vadd.f32 %v302, %v662
      %v695 = vadd.f32 %v303, %v663
      %v696 = vadd.f32 %v304, %v664
      %v697 = vadd.f32 %v305, %v665
      %v698 = vadd.f32 %v306, %v666
      %v699 = vadd.f32 %v307, %v667
      %v700 = vadd.f32 %v308, %v668
      %v701 = vadd.f32 %v309, %v669
      %v702 = vadd.f32 %v310, %v670
      %v703 = vadd.f32 %v311, %v671
      %v704 = vld [vmem:[%s3] sm:$0xf]
      %v705 = vld [vmem:[%s3 + $0x4] sm:$0xf]
      %v706 = vpack.c.bf16 %v673, %v672
      %v707 = vpack.c.bf16 %v675, %v674
      %v708 = vpack.c.bf16 %v677, %v676
      %v709 = vpack.c.bf16 %v679, %v678
      %v710 = vpack.c.bf16 %v681, %v680
      %v711 = vpack.c.bf16 %v683, %v682
      %v712 = vpack.c.bf16 %v685, %v684
      %v713 = vpack.c.bf16 %v687, %v686
      %v714 = vpack.c.bf16 %v689, %v688
      %v715 = vpack.c.bf16 %v691, %v690
      %v716 = vpack.c.bf16 %v693, %v692
      %v717 = vpack.c.bf16 %v695, %v694
      %v718 = vpack.c.bf16 %v697, %v696
      %v719 = vpack.c.bf16 %v699, %v698
      %v720 = vpack.c.bf16 %v701, %v700
      %v721 = vpack.c.bf16 %v703, %v702
      %v722 = vld [vmem:[%s4] sm:$0x1]
      %v724 = vlaneseq
      %v725 = vshrl.u32 %v724, 7
      %v726 = vsub.s32 0, %v725
      %v727 = vrot.slane %v722, %v726
      %v731 = vunpack.c.l.b16 %v704
      %v732 = vunpack.c.l.b16 %v705
      %v733 = vpack.c.b16 %v732, %v731
      %vm735 = vcmask 130048
      %v737 = vsel %vm735, %v706, 0
      %v740 = vsel %vm735, %v707, 0
      %v743 = vsel %vm735, %v708, 0
      %v746 = vsel %vm735, %v709, 0
      %v749 = vsel %vm735, %v710, 0
      %v752 = vsel %vm735, %v711, 0
      %v755 = vsel %vm735, %v712, 0
      %v758 = vsel %vm735, %v713, 0
      %v761 = vsel %vm735, %v714, 0
      %v764 = vsel %vm735, %v715, 0
      %v767 = vsel %vm735, %v716, 0
      %v770 = vsel %vm735, %v717, 0
      %v773 = vsel %vm735, %v718, 0
      %v776 = vsel %vm735, %v719, 0
      %v779 = vsel %vm735, %v720, 0
      %v782 = vsel %vm735, %v721, 0
      %784 = vmatprep.subr.bf16.mxu0 0
      %785 = vmatpush1.bf16.msra.mxu0 0
      %786 = vmatprep.subr.bf16.mxu0 0
      %787 = vmatpush1.bf16.msra.mxu0 0
      %788 = vmatprep.subr.bf16.mxu0 0
      %789 = vmatpush1.bf16.msra.mxu0 0
      %790 = vmatprep.subr.bf16.mxu0 0
      %791 = vmatpush1.bf16.msra.mxu0 0
      %792 = vmatprep.subr.bf16.mxu0 0
      %793 = vmatpush1.bf16.msra.mxu0 0
      %794 = vmatprep.subr.bf16.mxu0 0
      %795 = vmatpush1.bf16.msra.mxu0 0
      %796 = vmatprep.subr.bf16.mxu0 0
      %797 = vmatpush1.bf16.msra.mxu0 0
      %798 = vmatprep.subr.bf16.mxu0 0
      %799 = vmatpush1.bf16.msra.mxu0 %v733
      %800 = vmatprep.subr.bf16.mxu0 0
      %801 = vmatpush2.bf16.msra.mxu0 0
      %802 = vmatprep.subr.bf16.mxu0 0
      %803 = vmatpush2.bf16.msra.mxu0 0
      %804 = vmatprep.subr.bf16.mxu0 0
      %805 = vmatpush2.bf16.msra.mxu0 0
      %806 = vmatprep.subr.bf16.mxu0 0
      %807 = vmatpush2.bf16.msra.mxu0 0
      %808 = vmatprep.subr.bf16.mxu0 0
      %809 = vmatpush2.bf16.msra.mxu0 0
      %810 = vmatprep.subr.bf16.mxu0 0
      %811 = vmatpush2.bf16.msra.mxu0 0
      %812 = vmatprep.subr.bf16.mxu0 0
      %813 = vmatpush2.bf16.msra.mxu0 0
      %814 = vmatprep.subr.bf16.mxu0 0
      %815 = vmatpush2.bf16.msra.mxu0 0
      %816 = vmatprep.mubr.bf16.mxu0 0
      %817 = vmatmul.mubr.bf16.gmra.mxu0 %v737
      %v818 = vpop.f32.mrf.mxu0
      %v819 = vadd.f32 %v727, %v818
      %v820 = vpop.f32.mrf.mxu0
      %v821 = vpop.f32.mrf.mxu0
      %v822 = vadd.f32 %v727, %v821
      %v823 = vpop.f32.mrf.mxu0
      %824 = vmatprep.mubr.bf16.mxu0 0
      %825 = vmatmul.mubr.bf16.gmra.mxu0 %v740
      %v826 = vpop.f32.mrf.mxu0
      %v827 = vadd.f32 %v727, %v826
      %v828 = vpop.f32.mrf.mxu0
      %v829 = vpop.f32.mrf.mxu0
      %v830 = vadd.f32 %v727, %v829
      %v831 = vpop.f32.mrf.mxu0
      %832 = vmatprep.mubr.bf16.mxu0 0
      %833 = vmatmul.mubr.bf16.gmra.mxu0 %v743
      %v834 = vpop.f32.mrf.mxu0
      %v835 = vadd.f32 %v727, %v834
      %v836 = vpop.f32.mrf.mxu0
      %v837 = vpop.f32.mrf.mxu0
      %v838 = vadd.f32 %v727, %v837
      %v839 = vpop.f32.mrf.mxu0
      %840 = vmatprep.mubr.bf16.mxu0 0
      %841 = vmatmul.mubr.bf16.gmra.mxu0 %v746
      %v842 = vpop.f32.mrf.mxu0
      %v843 = vadd.f32 %v727, %v842
      %v844 = vpop.f32.mrf.mxu0
      %v845 = vpop.f32.mrf.mxu0
      %v846 = vadd.f32 %v727, %v845
      %v847 = vpop.f32.mrf.mxu0
      %848 = vmatprep.mubr.bf16.mxu0 0
      %849 = vmatmul.mubr.bf16.gmra.mxu0 %v749
      %v850 = vpop.f32.mrf.mxu0
      %v851 = vadd.f32 %v727, %v850
      %v852 = vpop.f32.mrf.mxu0
      %v853 = vpop.f32.mrf.mxu0
      %v854 = vadd.f32 %v727, %v853
      %v855 = vpop.f32.mrf.mxu0
      %856 = vmatprep.mubr.bf16.mxu0 0
      %857 = vmatmul.mubr.bf16.gmra.mxu0 %v752
      %v858 = vpop.f32.mrf.mxu0
      %v859 = vadd.f32 %v727, %v858
      %v860 = vpop.f32.mrf.mxu0
      %v861 = vpop.f32.mrf.mxu0
      %v862 = vadd.f32 %v727, %v861
      %v863 = vpop.f32.mrf.mxu0
      %864 = vmatprep.mubr.bf16.mxu0 0
      %865 = vmatmul.mubr.bf16.gmra.mxu0 %v755
      %v866 = vpop.f32.mrf.mxu0
      %v867 = vadd.f32 %v727, %v866
      %v868 = vpop.f32.mrf.mxu0
      %v869 = vpop.f32.mrf.mxu0
      %v870 = vadd.f32 %v727, %v869
      %v871 = vpop.f32.mrf.mxu0
      %872 = vmatprep.mubr.bf16.mxu0 0
      %873 = vmatmul.mubr.bf16.gmra.mxu0 %v758
      %v874 = vpop.f32.mrf.mxu0
      %v875 = vadd.f32 %v727, %v874
      %v876 = vpop.f32.mrf.mxu0
      %v877 = vpop.f32.mrf.mxu0
      %v878 = vadd.f32 %v727, %v877
      %v879 = vpop.f32.mrf.mxu0
      %880 = vmatprep.mubr.bf16.mxu0 0
      %881 = vmatmul.mubr.bf16.gmra.mxu0 %v761
      %v882 = vpop.f32.mrf.mxu0
      %v883 = vadd.f32 %v727, %v882
      %v884 = vpop.f32.mrf.mxu0
      %v885 = vpop.f32.mrf.mxu0
      %v886 = vadd.f32 %v727, %v885
      %v887 = vpop.f32.mrf.mxu0
      %888 = vmatprep.mubr.bf16.mxu0 0
      %889 = vmatmul.mubr.bf16.gmra.mxu0 %v764
      %v890 = vpop.f32.mrf.mxu0
      %v891 = vadd.f32 %v727, %v890
      %v892 = vpop.f32.mrf.mxu0
      %v893 = vpop.f32.mrf.mxu0
      %v894 = vadd.f32 %v727, %v893
      %v895 = vpop.f32.mrf.mxu0
      %896 = vmatprep.mubr.bf16.mxu0 0
      %897 = vmatmul.mubr.bf16.gmra.mxu0 %v767
      %v898 = vpop.f32.mrf.mxu0
      %v899 = vadd.f32 %v727, %v898
      %v900 = vpop.f32.mrf.mxu0
      %v901 = vpop.f32.mrf.mxu0
      %v902 = vadd.f32 %v727, %v901
      %v903 = vpop.f32.mrf.mxu0
      %904 = vmatprep.mubr.bf16.mxu0 0
      %905 = vmatmul.mubr.bf16.gmra.mxu0 %v770
      %v906 = vpop.f32.mrf.mxu0
      %v907 = vadd.f32 %v727, %v906
      %v908 = vpop.f32.mrf.mxu0
      %v909 = vpop.f32.mrf.mxu0
      %v910 = vadd.f32 %v727, %v909
      %v911 = vpop.f32.mrf.mxu0
      %912 = vmatprep.mubr.bf16.mxu0 0
      %913 = vmatmul.mubr.bf16.gmra.mxu0 %v773
      %v914 = vpop.f32.mrf.mxu0
      %v915 = vadd.f32 %v727, %v914
      %v916 = vpop.f32.mrf.mxu0
      %v917 = vpop.f32.mrf.mxu0
      %v918 = vadd.f32 %v727, %v917
      %v919 = vpop.f32.mrf.mxu0
      %920 = vmatprep.mubr.bf16.mxu0 0
      %921 = vmatmul.mubr.bf16.gmra.mxu0 %v776
      %v922 = vpop.f32.mrf.mxu0
      %v923 = vadd.f32 %v727, %v922
      %v924 = vpop.f32.mrf.mxu0
      %v925 = vpop.f32.mrf.mxu0
      %v926 = vadd.f32 %v727, %v925
      %v927 = vpop.f32.mrf.mxu0
      %928 = vmatprep.mubr.bf16.mxu0 0
      %929 = vmatmul.mubr.bf16.gmra.mxu0 %v779
      %v930 = vpop.f32.mrf.mxu0
      %v931 = vadd.f32 %v727, %v930
      %v932 = vpop.f32.mrf.mxu0
      %v933 = vpop.f32.mrf.mxu0
      %v934 = vadd.f32 %v727, %v933
      %v935 = vpop.f32.mrf.mxu0
      %936 = vmatprep.mubr.bf16.mxu0 0
      %937 = vmatmul.mubr.bf16.gmra.mxu0 %v782
      %v938 = vpop.f32.mrf.mxu0
      %v939 = vadd.f32 %v727, %v938
      %v940 = vpop.f32.mrf.mxu0
      %v941 = vpop.f32.mrf.mxu0
      %v942 = vadd.f32 %v727, %v941
      %v943 = vpop.f32.mrf.mxu0
      %944 = vdwg.mxu0
      %v945 = vmul.f32 %v819, 0.5
      %v946 = vmul.f32 %v822, 0.5
      %v947 = vmul.f32 %v827, 0.5
      %v948 = vmul.f32 %v830, 0.5
      %v949 = vmul.f32 %v835, 0.5
      %v950 = vmul.f32 %v838, 0.5
      %v951 = vmul.f32 %v843, 0.5
      %v952 = vmul.f32 %v846, 0.5
      %v953 = vmul.f32 %v851, 0.5
      %v954 = vmul.f32 %v854, 0.5
      %v955 = vmul.f32 %v859, 0.5
      %v956 = vmul.f32 %v862, 0.5
      %v957 = vmul.f32 %v867, 0.5
      %v958 = vmul.f32 %v870, 0.5
      %v959 = vmul.f32 %v875, 0.5
      %v960 = vmul.f32 %v878, 0.5
      %v961 = vmul.f32 %v883, 0.5
      %v962 = vmul.f32 %v886, 0.5
      %v963 = vmul.f32 %v891, 0.5
      %v964 = vmul.f32 %v894, 0.5
      %v965 = vmul.f32 %v899, 0.5
      %v966 = vmul.f32 %v902, 0.5
      %v967 = vmul.f32 %v907, 0.5
      %v968 = vmul.f32 %v910, 0.5
      %v969 = vmul.f32 %v915, 0.5
      %v970 = vmul.f32 %v918, 0.5
      %v971 = vmul.f32 %v923, 0.5
      %v972 = vmul.f32 %v926, 0.5
      %v973 = vmul.f32 %v931, 0.5
      %v974 = vmul.f32 %v934, 0.5
      %v975 = vmul.f32 %v939, 0.5
      %v976 = vmul.f32 %v942, 0.5
      %v977 = vmul.f32 %v819, 0.044715
      %v978 = vmul.f32 %v822, 0.044715
      %v979 = vmul.f32 %v827, 0.044715
      %v980 = vmul.f32 %v830, 0.044715
      %v981 = vmul.f32 %v835, 0.044715
      %v982 = vmul.f32 %v838, 0.044715
      %v983 = vmul.f32 %v843, 0.044715
      %v984 = vmul.f32 %v846, 0.044715
      %v985 = vmul.f32 %v851, 0.044715
      %v986 = vmul.f32 %v854, 0.044715
      %v987 = vmul.f32 %v859, 0.044715
      %v988 = vmul.f32 %v862, 0.044715
      %v989 = vmul.f32 %v867, 0.044715
      %v990 = vmul.f32 %v870, 0.044715
      %v991 = vmul.f32 %v875, 0.044715
      %v992 = vmul.f32 %v878, 0.044715
      %v993 = vmul.f32 %v883, 0.044715
      %v994 = vmul.f32 %v886, 0.044715
      %v995 = vmul.f32 %v891, 0.044715
      %v996 = vmul.f32 %v894, 0.044715
      %v997 = vmul.f32 %v899, 0.044715
      %v998 = vmul.f32 %v902, 0.044715
      %v999 = vmul.f32 %v907, 0.044715
      %v1000 = vmul.f32 %v910, 0.044715
      %v1001 = vmul.f32 %v915, 0.044715
      %v1002 = vmul.f32 %v918, 0.044715
      %v1003 = vmul.f32 %v923, 0.044715
      %v1004 = vmul.f32 %v926, 0.044715
      %v1005 = vmul.f32 %v931, 0.044715
      %v1006 = vmul.f32 %v934, 0.044715
      %v1007 = vmul.f32 %v939, 0.044715
      %v1008 = vmul.f32 %v942, 0.044715
      %v1009 = vmul.f32 %v977, %v819
      %v1010 = vmul.f32 %v978, %v822
      %v1011 = vmul.f32 %v979, %v827
      %v1012 = vmul.f32 %v980, %v830
      %v1013 = vmul.f32 %v981, %v835
      %v1014 = vmul.f32 %v982, %v838
      %v1015 = vmul.f32 %v983, %v843
      %v1016 = vmul.f32 %v984, %v846
      %v1017 = vmul.f32 %v985, %v851
      %v1018 = vmul.f32 %v986, %v854
      %v1019 = vmul.f32 %v987, %v859
      %v1020 = vmul.f32 %v988, %v862
      %v1021 = vmul.f32 %v989, %v867
      %v1022 = vmul.f32 %v990, %v870
      %v1023 = vmul.f32 %v991, %v875
      %v1024 = vmul.f32 %v992, %v878
      %v1025 = vmul.f32 %v993, %v883
      %v1026 = vmul.f32 %v994, %v886
      %v1027 = vmul.f32 %v995, %v891
      %v1028 = vmul.f32 %v996, %v894
      %v1029 = vmul.f32 %v997, %v899
      %v1030 = vmul.f32 %v998, %v902
      %v1031 = vmul.f32 %v999, %v907
      %v1032 = vmul.f32 %v1000, %v910
      %v1033 = vmul.f32 %v1001, %v915
      %v1034 = vmul.f32 %v1002, %v918
      %v1035 = vmul.f32 %v1003, %v923
      %v1036 = vmul.f32 %v1004, %v926
      %v1037 = vmul.f32 %v1005, %v931
      %v1038 = vmul.f32 %v1006, %v934
      %v1039 = vmul.f32 %v1007, %v939
      %v1040 = vmul.f32 %v1008, %v942
      %v1041 = vmul.f32 %v1009, %v819
      %v1042 = vmul.f32 %v1010, %v822
      %v1043 = vmul.f32 %v1011, %v827
      %v1044 = vmul.f32 %v1012, %v830
      %v1045 = vmul.f32 %v1013, %v835
      %v1046 = vmul.f32 %v1014, %v838
      %v1047 = vmul.f32 %v1015, %v843
      %v1048 = vmul.f32 %v1016, %v846
      %v1049 = vmul.f32 %v1017, %v851
      %v1050 = vmul.f32 %v1018, %v854
      %v1051 = vmul.f32 %v1019, %v859
      %v1052 = vmul.f32 %v1020, %v862
      %v1053 = vmul.f32 %v1021, %v867
      %v1054 = vmul.f32 %v1022, %v870
      %v1055 = vmul.f32 %v1023, %v875
      %v1056 = vmul.f32 %v1024, %v878
      %v1057 = vmul.f32 %v1025, %v883
      %v1058 = vmul.f32 %v1026, %v886
      %v1059 = vmul.f32 %v1027, %v891
      %v1060 = vmul.f32 %v1028, %v894
      %v1061 = vmul.f32 %v1029, %v899
      %v1062 = vmul.f32 %v1030, %v902
      %v1063 = vmul.f32 %v1031, %v907
      %v1064 = vmul.f32 %v1032, %v910
      %v1065 = vmul.f32 %v1033, %v915
      %v1066 = vmul.f32 %v1034, %v918
      %v1067 = vmul.f32 %v1035, %v923
      %v1068 = vmul.f32 %v1036, %v926
      %v1069 = vmul.f32 %v1037, %v931
      %v1070 = vmul.f32 %v1038, %v934
      %v1071 = vmul.f32 %v1039, %v939
      %v1072 = vmul.f32 %v1040, %v942
      %v1073 = vadd.f32 %v819, %v1041
      %v1074 = vadd.f32 %v822, %v1042
      %v1075 = vadd.f32 %v827, %v1043
      %v1076 = vadd.f32 %v830, %v1044
      %v1077 = vadd.f32 %v835, %v1045
      %v1078 = vadd.f32 %v838, %v1046
      %v1079 = vadd.f32 %v843, %v1047
      %v1080 = vadd.f32 %v846, %v1048
      %v1081 = vadd.f32 %v851, %v1049
      %v1082 = vadd.f32 %v854, %v1050
      %v1083 = vadd.f32 %v859, %v1051
      %v1084 = vadd.f32 %v862, %v1052
      %v1085 = vadd.f32 %v867, %v1053
      %v1086 = vadd.f32 %v870, %v1054
      %v1087 = vadd.f32 %v875, %v1055
      %v1088 = vadd.f32 %v878, %v1056
      %v1089 = vadd.f32 %v883, %v1057
      %v1090 = vadd.f32 %v886, %v1058
      %v1091 = vadd.f32 %v891, %v1059
      %v1092 = vadd.f32 %v894, %v1060
      %v1093 = vadd.f32 %v899, %v1061
      %v1094 = vadd.f32 %v902, %v1062
      %v1095 = vadd.f32 %v907, %v1063
      %v1096 = vadd.f32 %v910, %v1064
      %v1097 = vadd.f32 %v915, %v1065
      %v1098 = vadd.f32 %v918, %v1066
      %v1099 = vadd.f32 %v923, %v1067
      %v1100 = vadd.f32 %v926, %v1068
      %v1101 = vadd.f32 %v931, %v1069
      %v1102 = vadd.f32 %v934, %v1070
      %v1103 = vadd.f32 %v939, %v1071
      %v1104 = vadd.f32 %v942, %v1072
      %v1105 = vmul.f32 %v1073, 0.7978846
      %v1106 = vmul.f32 %v1074, 0.7978846
      %v1107 = vmul.f32 %v1075, 0.7978846
      %v1108 = vmul.f32 %v1076, 0.7978846
      %v1109 = vmul.f32 %v1077, 0.7978846
      %v1110 = vmul.f32 %v1078, 0.7978846
      %v1111 = vmul.f32 %v1079, 0.7978846
      %v1112 = vmul.f32 %v1080, 0.7978846
      %v1113 = vmul.f32 %v1081, 0.7978846
      %v1114 = vmul.f32 %v1082, 0.7978846
      %v1115 = vmul.f32 %v1083, 0.7978846
      %v1116 = vmul.f32 %v1084, 0.7978846
      %v1117 = vmul.f32 %v1085, 0.7978846
      %v1118 = vmul.f32 %v1086, 0.7978846
      %v1119 = vmul.f32 %v1087, 0.7978846
      %v1120 = vmul.f32 %v1088, 0.7978846
      %v1121 = vmul.f32 %v1089, 0.7978846
      %v1122 = vmul.f32 %v1090, 0.7978846
      %v1123 = vmul.f32 %v1091, 0.7978846
      %v1124 = vmul.f32 %v1092, 0.7978846
      %v1125 = vmul.f32 %v1093, 0.7978846
      %v1126 = vmul.f32 %v1094, 0.7978846
      %v1127 = vmul.f32 %v1095, 0.7978846
      %v1128 = vmul.f32 %v1096, 0.7978846
      %v1129 = vmul.f32 %v1097, 0.7978846
      %v1130 = vmul.f32 %v1098, 0.7978846
      %v1131 = vmul.f32 %v1099, 0.7978846
      %v1132 = vmul.f32 %v1100, 0.7978846
      %v1133 = vmul.f32 %v1101, 0.7978846
      %v1134 = vmul.f32 %v1102, 0.7978846
      %v1135 = vmul.f32 %v1103, 0.7978846
      %v1136 = vmul.f32 %v1104, 0.7978846
      %v1137 = vtanh.pop %v1105
      %v1138 = vtanh.pop %v1106
      %v1139 = vtanh.pop %v1107
      %v1140 = vtanh.pop %v1108
      %v1141 = vtanh.pop %v1109
      %v1142 = vtanh.pop %v1110
      %v1143 = vtanh.pop %v1111
      %v1144 = vtanh.pop %v1112
      %v1145 = vtanh.pop %v1113
      %v1146 = vtanh.pop %v1114
      %v1147 = vtanh.pop %v1115
      %v1148 = vtanh.pop %v1116
      %v1149 = vtanh.pop %v1117
      %v1150 = vtanh.pop %v1118
      %v1151 = vtanh.pop %v1119
      %v1152 = vtanh.pop %v1120
      %v1153 = vtanh.pop %v1121
      %v1154 = vtanh.pop %v1122
      %v1155 = vtanh.pop %v1123
      %v1156 = vtanh.pop %v1124
      %v1157 = vtanh.pop %v1125
      %v1158 = vtanh.pop %v1126
      %v1159 = vtanh.pop %v1127
      %v1160 = vtanh.pop %v1128
      %v1161 = vtanh.pop %v1129
      %v1162 = vtanh.pop %v1130
      %v1163 = vtanh.pop %v1131
      %v1164 = vtanh.pop %v1132
      %v1165 = vtanh.pop %v1133
      %v1166 = vtanh.pop %v1134
      %v1167 = vtanh.pop %v1135
      %v1168 = vtanh.pop %v1136
      %v1169 = vadd.f32 %v1137, 1.0
      %v1170 = vadd.f32 %v1138, 1.0
      %v1171 = vadd.f32 %v1139, 1.0
      %v1172 = vadd.f32 %v1140, 1.0
      %v1173 = vadd.f32 %v1141, 1.0
      %v1174 = vadd.f32 %v1142, 1.0
      %v1175 = vadd.f32 %v1143, 1.0
      %v1176 = vadd.f32 %v1144, 1.0
      %v1177 = vadd.f32 %v1145, 1.0
      %v1178 = vadd.f32 %v1146, 1.0
      %v1179 = vadd.f32 %v1147, 1.0
      %v1180 = vadd.f32 %v1148, 1.0
      %v1181 = vadd.f32 %v1149, 1.0
      %v1182 = vadd.f32 %v1150, 1.0
      %v1183 = vadd.f32 %v1151, 1.0
      %v1184 = vadd.f32 %v1152, 1.0
      %v1185 = vadd.f32 %v1153, 1.0
      %v1186 = vadd.f32 %v1154, 1.0
      %v1187 = vadd.f32 %v1155, 1.0
      %v1188 = vadd.f32 %v1156, 1.0
      %v1189 = vadd.f32 %v1157, 1.0
      %v1190 = vadd.f32 %v1158, 1.0
      %v1191 = vadd.f32 %v1159, 1.0
      %v1192 = vadd.f32 %v1160, 1.0
      %v1193 = vadd.f32 %v1161, 1.0
      %v1194 = vadd.f32 %v1162, 1.0
      %v1195 = vadd.f32 %v1163, 1.0
      %v1196 = vadd.f32 %v1164, 1.0
      %v1197 = vadd.f32 %v1165, 1.0
      %v1198 = vadd.f32 %v1166, 1.0
      %v1199 = vadd.f32 %v1167, 1.0
      %v1200 = vadd.f32 %v1168, 1.0
      %v1201 = vmul.f32 %v945, %v1169
      %v1202 = vmul.f32 %v946, %v1170
      %v1203 = vmul.f32 %v947, %v1171
      %v1204 = vmul.f32 %v948, %v1172
      %v1205 = vmul.f32 %v949, %v1173
      %v1206 = vmul.f32 %v950, %v1174
      %v1207 = vmul.f32 %v951, %v1175
      %v1208 = vmul.f32 %v952, %v1176
      %v1209 = vmul.f32 %v953, %v1177
      %v1210 = vmul.f32 %v954, %v1178
      %v1211 = vmul.f32 %v955, %v1179
      %v1212 = vmul.f32 %v956, %v1180
      %v1213 = vmul.f32 %v957, %v1181
      %v1214 = vmul.f32 %v958, %v1182
      %v1215 = vmul.f32 %v959, %v1183
      %v1216 = vmul.f32 %v960, %v1184
      %v1217 = vmul.f32 %v961, %v1185
      %v1218 = vmul.f32 %v962, %v1186
      %v1219 = vmul.f32 %v963, %v1187
      %v1220 = vmul.f32 %v964, %v1188
      %v1221 = vmul.f32 %v965, %v1189
      %v1222 = vmul.f32 %v966, %v1190
      %v1223 = vmul.f32 %v967, %v1191
      %v1224 = vmul.f32 %v968, %v1192
      %v1225 = vmul.f32 %v969, %v1193
      %v1226 = vmul.f32 %v970, %v1194
      %v1227 = vmul.f32 %v971, %v1195
      %v1228 = vmul.f32 %v972, %v1196
      %v1229 = vmul.f32 %v973, %v1197
      %v1230 = vmul.f32 %v974, %v1198
      %v1231 = vmul.f32 %v975, %v1199
      %v1232 = vmul.f32 %v976, %v1200
      %v1233 = vld [vmem:[%s5] sm:$0xf]
      %v1234 = vld [vmem:[%s5 + $0x4] sm:$0xf]
      %v1235 = vld [vmem:[%s5 + $0x8] sm:$0xf]
      %v1236 = vld [vmem:[%s5 + $0xc] sm:$0xf]
      %v1237 = vld [vmem:[%s5 + $0x10] sm:$0xf]
      %v1238 = vld [vmem:[%s5 + $0x14] sm:$0xf]
      %v1239 = vld [vmem:[%s5 + $0x18] sm:$0xf]
      %v1240 = vld [vmem:[%s5 + $0x1c] sm:$0xf]
      %v1241 = vpack.c.bf16 %v1202, %v1201
      %v1242 = vpack.c.bf16 %v1204, %v1203
      %v1243 = vpack.c.bf16 %v1206, %v1205
      %v1244 = vpack.c.bf16 %v1208, %v1207
      %v1245 = vpack.c.bf16 %v1210, %v1209
      %v1246 = vpack.c.bf16 %v1212, %v1211
      %v1247 = vpack.c.bf16 %v1214, %v1213
      %v1248 = vpack.c.bf16 %v1216, %v1215
      %v1249 = vpack.c.bf16 %v1218, %v1217
      %v1250 = vpack.c.bf16 %v1220, %v1219
      %v1251 = vpack.c.bf16 %v1222, %v1221
      %v1252 = vpack.c.bf16 %v1224, %v1223
      %v1253 = vpack.c.bf16 %v1226, %v1225
      %v1254 = vpack.c.bf16 %v1228, %v1227
      %v1255 = vpack.c.bf16 %v1230, %v1229
      %v1256 = vpack.c.bf16 %v1232, %v1231
      %v1257 = vld [vmem:[%s6] sm:$0x1]
      %v1259 = vlaneseq
      %v1260 = vshrl.u32 %v1259, 7
      %v1261 = vsub.s32 0, %v1260
      %v1262 = vrot.slane %v1257, %v1261
      %v1272 = vunpack.c.l.b16 %v1233
      %v1273 = vunpack.c.l.b16 %v1234
      %v1274 = vunpack.c.l.b16 %v1235
      %v1275 = vunpack.c.l.b16 %v1236
      %v1276 = vunpack.c.l.b16 %v1237
      %v1277 = vunpack.c.l.b16 %v1238
      %v1278 = vunpack.c.l.b16 %v1239
      %v1279 = vunpack.c.l.b16 %v1240
      %v1280 = vpack.c.b16 %v1273, %v1272
      %v1281 = vpack.c.b16 %v1275, %v1274
      %v1282 = vpack.c.b16 %v1277, %v1276
      %v1283 = vpack.c.b16 %v1279, %v1278
      %vm1288 = vcmask 523264
      %v1290 = vsel %vm1288, %v1241, 0
      %v1293 = vsel %vm1288, %v1242, 0
      %v1296 = vsel %vm1288, %v1243, 0
      %v1299 = vsel %vm1288, %v1244, 0
      %v1302 = vsel %vm1288, %v1245, 0
      %v1305 = vsel %vm1288, %v1246, 0
      %v1308 = vsel %vm1288, %v1247, 0
      %v1311 = vsel %vm1288, %v1248, 0
      %v1314 = vsel %vm1288, %v1249, 0
      %v1317 = vsel %vm1288, %v1250, 0
      %v1320 = vsel %vm1288, %v1251, 0
      %v1323 = vsel %vm1288, %v1252, 0
      %v1326 = vsel %vm1288, %v1253, 0
      %v1329 = vsel %vm1288, %v1254, 0
      %v1332 = vsel %vm1288, %v1255, 0
      %v1335 = vsel %vm1288, %v1256, 0
      %1337 = vmatprep.subr.bf16.mxu0 0
      %1338 = vmatpush1.bf16.msra.mxu0 0
      %1339 = vmatprep.subr.bf16.mxu0 0
      %1340 = vmatpush1.bf16.msra.mxu0 0
      %1341 = vmatprep.subr.bf16.mxu0 0
      %1342 = vmatpush1.bf16.msra.mxu0 0
      %1343 = vmatprep.subr.bf16.mxu0 0
      %1344 = vmatpush1.bf16.msra.mxu0 0
      %1345 = vmatprep.subr.bf16.mxu0 0
      %1346 = vmatpush1.bf16.msra.mxu0 %v1283
      %1347 = vmatprep.subr.bf16.mxu0 0
      %1348 = vmatpush1.bf16.msra.mxu0 %v1282
      %1349 = vmatprep.subr.bf16.mxu0 0
      %1350 = vmatpush1.bf16.msra.mxu0 %v1281
      %1351 = vmatprep.subr.bf16.mxu0 0
      %1352 = vmatpush1.bf16.msra.mxu0 %v1280
      %1353 = vmatprep.subr.bf16.mxu0 0
      %1354 = vmatpush2.bf16.msra.mxu0 0
      %1355 = vmatprep.subr.bf16.mxu0 0
      %1356 = vmatpush2.bf16.msra.mxu0 0
      %1357 = vmatprep.subr.bf16.mxu0 0
      %1358 = vmatpush2.bf16.msra.mxu0 0
      %1359 = vmatprep.subr.bf16.mxu0 0
      %1360 = vmatpush2.bf16.msra.mxu0 0
      %1361 = vmatprep.subr.bf16.mxu0 0
      %1362 = vmatpush2.bf16.msra.mxu0 0
      %1363 = vmatprep.subr.bf16.mxu0 0
      %1364 = vmatpush2.bf16.msra.mxu0 0
      %1365 = vmatprep.subr.bf16.mxu0 0
      %1366 = vmatpush2.bf16.msra.mxu0 0
      %1367 = vmatprep.subr.bf16.mxu0 0
      %1368 = vmatpush2.bf16.msra.mxu0 0
      %1369 = vmatprep.mubr.bf16.mxu0 0
      %1370 = vmatmul.mubr.bf16.gmra.mxu0 %v1290
      %v1371 = vpop.f32.mrf.mxu0
      %v1372 = vadd.f32 %v1262, %v1371
      %v1373 = vpop.f32.mrf.mxu0
      %v1374 = vpop.f32.mrf.mxu0
      %v1375 = vadd.f32 %v1262, %v1374
      %v1376 = vpop.f32.mrf.mxu0
      %1377 = vmatprep.mubr.bf16.mxu0 0
      %1378 = vmatmul.mubr.bf16.gmra.mxu0 %v1293
      %v1379 = vpop.f32.mrf.mxu0
      %v1380 = vadd.f32 %v1262, %v1379
      %v1381 = vpop.f32.mrf.mxu0
      %v1382 = vpop.f32.mrf.mxu0
      %v1383 = vadd.f32 %v1262, %v1382
      %v1384 = vpop.f32.mrf.mxu0
      %1385 = vmatprep.mubr.bf16.mxu0 0
      %1386 = vmatmul.mubr.bf16.gmra.mxu0 %v1296
      %v1387 = vpop.f32.mrf.mxu0
      %v1388 = vadd.f32 %v1262, %v1387
      %v1389 = vpop.f32.mrf.mxu0
      %v1390 = vpop.f32.mrf.mxu0
      %v1391 = vadd.f32 %v1262, %v1390
      %v1392 = vpop.f32.mrf.mxu0
      %1393 = vmatprep.mubr.bf16.mxu0 0
      %1394 = vmatmul.mubr.bf16.gmra.mxu0 %v1299
      %v1395 = vpop.f32.mrf.mxu0
      %v1396 = vadd.f32 %v1262, %v1395
      %v1397 = vpop.f32.mrf.mxu0
      %v1398 = vpop.f32.mrf.mxu0
      %v1399 = vadd.f32 %v1262, %v1398
      %v1400 = vpop.f32.mrf.mxu0
      %1401 = vmatprep.mubr.bf16.mxu0 0
      %1402 = vmatmul.mubr.bf16.gmra.mxu0 %v1302
      %v1403 = vpop.f32.mrf.mxu0
      %v1404 = vadd.f32 %v1262, %v1403
      %v1405 = vpop.f32.mrf.mxu0
      %v1406 = vpop.f32.mrf.mxu0
      %v1407 = vadd.f32 %v1262, %v1406
      %v1408 = vpop.f32.mrf.mxu0
      %1409 = vmatprep.mubr.bf16.mxu0 0
      %1410 = vmatmul.mubr.bf16.gmra.mxu0 %v1305
      %v1411 = vpop.f32.mrf.mxu0
      %v1412 = vadd.f32 %v1262, %v1411
      %v1413 = vpop.f32.mrf.mxu0
      %v1414 = vpop.f32.mrf.mxu0
      %v1415 = vadd.f32 %v1262, %v1414
      %v1416 = vpop.f32.mrf.mxu0
      %1417 = vmatprep.mubr.bf16.mxu0 0
      %1418 = vmatmul.mubr.bf16.gmra.mxu0 %v1308
      %v1419 = vpop.f32.mrf.mxu0
      %v1420 = vadd.f32 %v1262, %v1419
      %v1421 = vpop.f32.mrf.mxu0
      %v1422 = vpop.f32.mrf.mxu0
      %v1423 = vadd.f32 %v1262, %v1422
      %v1424 = vpop.f32.mrf.mxu0
      %1425 = vmatprep.mubr.bf16.mxu0 0
      %1426 = vmatmul.mubr.bf16.gmra.mxu0 %v1311
      %v1427 = vpop.f32.mrf.mxu0
      %v1428 = vadd.f32 %v1262, %v1427
      %v1429 = vpop.f32.mrf.mxu0
      %v1430 = vpop.f32.mrf.mxu0
      %v1431 = vadd.f32 %v1262, %v1430
      %v1432 = vpop.f32.mrf.mxu0
      %1433 = vmatprep.mubr.bf16.mxu0 0
      %1434 = vmatmul.mubr.bf16.gmra.mxu0 %v1314
      %v1435 = vpop.f32.mrf.mxu0
      %v1436 = vadd.f32 %v1262, %v1435
      %v1437 = vpop.f32.mrf.mxu0
      %v1438 = vpop.f32.mrf.mxu0
      %v1439 = vadd.f32 %v1262, %v1438
      %v1440 = vpop.f32.mrf.mxu0
      %1441 = vmatprep.mubr.bf16.mxu0 0
      %1442 = vmatmul.mubr.bf16.gmra.mxu0 %v1317
      %v1443 = vpop.f32.mrf.mxu0
      %v1444 = vadd.f32 %v1262, %v1443
      %v1445 = vpop.f32.mrf.mxu0
      %v1446 = vpop.f32.mrf.mxu0
      %v1447 = vadd.f32 %v1262, %v1446
      %v1448 = vpop.f32.mrf.mxu0
      %1449 = vmatprep.mubr.bf16.mxu0 0
      %1450 = vmatmul.mubr.bf16.gmra.mxu0 %v1320
      %v1451 = vpop.f32.mrf.mxu0
      %v1452 = vadd.f32 %v1262, %v1451
      %v1453 = vpop.f32.mrf.mxu0
      %v1454 = vpop.f32.mrf.mxu0
      %v1455 = vadd.f32 %v1262, %v1454
      %v1456 = vpop.f32.mrf.mxu0
      %1457 = vmatprep.mubr.bf16.mxu0 0
      %1458 = vmatmul.mubr.bf16.gmra.mxu0 %v1323
      %v1459 = vpop.f32.mrf.mxu0
      %v1460 = vadd.f32 %v1262, %v1459
      %v1461 = vpop.f32.mrf.mxu0
      %v1462 = vpop.f32.mrf.mxu0
      %v1463 = vadd.f32 %v1262, %v1462
      %v1464 = vpop.f32.mrf.mxu0
      %1465 = vmatprep.mubr.bf16.mxu0 0
      %1466 = vmatmul.mubr.bf16.gmra.mxu0 %v1326
      %v1467 = vpop.f32.mrf.mxu0
      %v1468 = vadd.f32 %v1262, %v1467
      %v1469 = vpop.f32.mrf.mxu0
      %v1470 = vpop.f32.mrf.mxu0
      %v1471 = vadd.f32 %v1262, %v1470
      %v1472 = vpop.f32.mrf.mxu0
      %1473 = vmatprep.mubr.bf16.mxu0 0
      %1474 = vmatmul.mubr.bf16.gmra.mxu0 %v1329
      %v1475 = vpop.f32.mrf.mxu0
      %v1476 = vadd.f32 %v1262, %v1475
      %v1477 = vpop.f32.mrf.mxu0
      %v1478 = vpop.f32.mrf.mxu0
      %v1479 = vadd.f32 %v1262, %v1478
      %v1480 = vpop.f32.mrf.mxu0
      %1481 = vmatprep.mubr.bf16.mxu0 0
      %1482 = vmatmul.mubr.bf16.gmra.mxu0 %v1332
      %v1483 = vpop.f32.mrf.mxu0
      %v1484 = vadd.f32 %v1262, %v1483
      %v1485 = vpop.f32.mrf.mxu0
      %v1486 = vpop.f32.mrf.mxu0
      %v1487 = vadd.f32 %v1262, %v1486
      %v1488 = vpop.f32.mrf.mxu0
      %1489 = vmatprep.mubr.bf16.mxu0 0
      %1490 = vmatmul.mubr.bf16.gmra.mxu0 %v1335
      %v1491 = vpop.f32.mrf.mxu0
      %v1492 = vadd.f32 %v1262, %v1491
      %v1493 = vpop.f32.mrf.mxu0
      %v1494 = vpop.f32.mrf.mxu0
      %v1495 = vadd.f32 %v1262, %v1494
      %v1496 = vpop.f32.mrf.mxu0
      %1497 = vdwg.mxu0
      %v1498 = vadd.f32 %v672, %v1372
      %v1499 = vadd.f32 %v673, %v1375
      %v1500 = vadd.f32 %v674, %v1380
      %v1501 = vadd.f32 %v675, %v1383
      %v1502 = vadd.f32 %v676, %v1388
      %v1503 = vadd.f32 %v677, %v1391
      %v1504 = vadd.f32 %v678, %v1396
      %v1505 = vadd.f32 %v679, %v1399
      %v1506 = vadd.f32 %v680, %v1404
      %v1507 = vadd.f32 %v681, %v1407
      %v1508 = vadd.f32 %v682, %v1412
      %v1509 = vadd.f32 %v683, %v1415
      %v1510 = vadd.f32 %v684, %v1420
      %v1511 = vadd.f32 %v685, %v1423
      %v1512 = vadd.f32 %v686, %v1428
      %v1513 = vadd.f32 %v687, %v1431
      %v1514 = vadd.f32 %v688, %v1436
      %v1515 = vadd.f32 %v689, %v1439
      %v1516 = vadd.f32 %v690, %v1444
      %v1517 = vadd.f32 %v691, %v1447
      %v1518 = vadd.f32 %v692, %v1452
      %v1519 = vadd.f32 %v693, %v1455
      %v1520 = vadd.f32 %v694, %v1460
      %v1521 = vadd.f32 %v695, %v1463
      %v1522 = vadd.f32 %v696, %v1468
      %v1523 = vadd.f32 %v697, %v1471
      %v1524 = vadd.f32 %v698, %v1476
      %v1525 = vadd.f32 %v699, %v1479
      %v1526 = vadd.f32 %v700, %v1484
      %v1527 = vadd.f32 %v701, %v1487
      %v1528 = vadd.f32 %v702, %v1492
      %v1529 = vadd.f32 %v703, %v1495
      %1530 = vst.msk [vmem:[%s278] sm:$0xff] %vm735, %v1498
      %1531 = vst.msk [vmem:[%s278 + $0x8] sm:$0xff] %vm735, %v1499
      %1532 = vst.msk [vmem:[%s278 + $0x10] sm:$0xff] %vm735, %v1500
      %1533 = vst.msk [vmem:[%s278 + $0x18] sm:$0xff] %vm735, %v1501
      %1534 = vst.msk [vmem:[%s278 + $0x20] sm:$0xff] %vm735, %v1502
      %1535 = vst.msk [vmem:[%s278 + $0x28] sm:$0xff] %vm735, %v1503
      %1536 = vst.msk [vmem:[%s278 + $0x30] sm:$0xff] %vm735, %v1504
      %1537 = vst.msk [vmem:[%s278 + $0x38] sm:$0xff] %vm735, %v1505
      %1538 = vst.msk [vmem:[%s278 + $0x40] sm:$0xff] %vm735, %v1506
      %1539 = vst.msk [vmem:[%s278 + $0x48] sm:$0xff] %vm735, %v1507
      %1540 = vst.msk [vmem:[%s278 + $0x50] sm:$0xff] %vm735, %v1508
      %1541 = vst.msk [vmem:[%s278 + $0x58] sm:$0xff] %vm735, %v1509
      %1542 = vst.msk [vmem:[%s278 + $0x60] sm:$0xff] %vm735, %v1510
      %1543 = vst.msk [vmem:[%s278 + $0x68] sm:$0xff] %vm735, %v1511
      %1544 = vst.msk [vmem:[%s278 + $0x70] sm:$0xff] %vm735, %v1512
      %1545 = vst.msk [vmem:[%s278 + $0x78] sm:$0xff] %vm735, %v1513
      %1546 = vst.msk [vmem:[%s278 + $0x80] sm:$0xff] %vm735, %v1514
      %1547 = vst.msk [vmem:[%s278 + $0x88] sm:$0xff] %vm735, %v1515
      %1548 = vst.msk [vmem:[%s278 + $0x90] sm:$0xff] %vm735, %v1516
      %1549 = vst.msk [vmem:[%s278 + $0x98] sm:$0xff] %vm735, %v1517
      %1550 = vst.msk [vmem:[%s278 + $0xa0] sm:$0xff] %vm735, %v1518
      %1551 = vst.msk [vmem:[%s278 + $0xa8] sm:$0xff] %vm735, %v1519
      %1552 = vst.msk [vmem:[%s278 + $0xb0] sm:$0xff] %vm735, %v1520
      %1553 = vst.msk [vmem:[%s278 + $0xb8] sm:$0xff] %vm735, %v1521
      %1554 = vst.msk [vmem:[%s278 + $0xc0] sm:$0xff] %vm735, %v1522
      %1555 = vst.msk [vmem:[%s278 + $0xc8] sm:$0xff] %vm735, %v1523
      %1556 = vst.msk [vmem:[%s278 + $0xd0] sm:$0xff] %vm735, %v1524
      %1557 = vst.msk [vmem:[%s278 + $0xd8] sm:$0xff] %vm735, %v1525
      %1558 = vst.msk [vmem:[%s278 + $0xe0] sm:$0xff] %vm735, %v1526
      %1559 = vst.msk [vmem:[%s278 + $0xe8] sm:$0xff] %vm735, %v1527
      %1560 = vst.msk [vmem:[%s278 + $0xf0] sm:$0xff] %vm735, %v1528
      %1561 = vst.msk [vmem:[%s278 + $0xf8] sm:$0xff] %vm735, %v1529
      %p1562 = scmp.lt.s32.totalorder %s18, 1
      %s1563 = scalar_select %p1562, %s18, 1
      %s1564 = smul.addr %s1563, 32
      %s1565 = smul.addr %s1564, 8
      %s1566 = scalar_lea.vmem %s7, %s1565
      // Predicated region
      $region49: #{_lambda_.12} parent=47 // pred_check
        %p1567 = pneg %p188
      $region50: #{_lambda_.12} parent=47 // pred_check_branch
        %1569 = sbr.rel (%p1567) target = $region52
      $region51: #{_lambda_.12} parent=47 // pred_region
        _
      $region52: #{_lambda_.12} parent=47 // pred_fallthru
        _
    $region48: #{_lambda_.12} parent=5 // pred_fallthru
      _
    %p1570 = scmp.le.s32.totalorder 2, %s13
    // Predicated region
    $region53: #{_lambda_.12} parent=5 // pred_check
      %p1571 = pneg %p1570
    $region54: #{_lambda_.12} parent=5 // pred_check_branch
      %1573 = sbr.rel (%p1571) target = $region56
    $region55: #{_lambda_.12} parent=5 // pred_region
      %s1574 = ssub.s32 %s13, 2
      // Predicated region
      $region57: #{_lambda_.12} parent=55 // pred_check
        %p1575 = pneg %p194
      $region58: #{_lambda_.12} parent=55 // pred_check_branch
        %1577 = sbr.rel (%p1575) target = $region60
      $region59: #{_lambda_.12} parent=55 // pred_region
        %p1578 = scmp.lt.s32.totalorder %s19, 1
        %s1579 = scalar_select %p1578, %s19, 1
        %s1580 = smul.addr %s1579, 32
        %s1581 = smul.addr %s1580, 8
        %s1582 = scalar_lea.vmem %s7, %s1581
      $region60: #{_lambda_.12} parent=55 // pred_fallthru
        _
    $region56: #{_lambda_.12} parent=5 // pred_fallthru
      _
  $region6: #{_lambda_.12} parent=0 // loop_footer
    %s17 = sadd.s32 1, %s13
  $region7: #{_lambda_.12} parent=0 // loop_footer_branch
    %12 = sbr.rel target = $region3
  $region8: #{_lambda_.12} parent=0 // loop_exit
    _

// kernel: _lambda_.13
$region0: #{_lambda_.13}
  #allocation0 [shape = 'u32[]', space=smem, size = 0x4, offset = 0x4, fixed_abs, tag = 'smem constant byte address 0x4 - core index']
  #allocation1 [shape = 'u32[144,128]{1,0:T(1,128)}', space=vmem, size = 0x12000, scoped, tag = 'internal scratch']
  %s0 = inlined_call_operand.vmem [shape: bf16[128,144], index: 0, kind: input, shape index: {}]
  %s1 = inlined_call_operand.vmem [shape: bf16[144,32], index: 1, kind: input, shape index: {}]
  %s2 = inlined_call_operand.vmem [shape: f32[1,32], index: 2, kind: input, shape index: {}]
  %s3 = inlined_call_operand.vmem [shape: f32[128,32], index: 3, kind: output, shape index: {}]
  %s4 = sld [smem:[#allocation0]]
  $region22: #{_lambda_.13} parent=0
    _
  %s6 = ssub.s32 1, %s4
  %s7 = scalar_select 0, %s6, %s4
  // Predicated region
  $region2: #{_lambda_.13} parent=0 // pred_check
    _
  $region3: #{_lambda_.13} parent=0 // pred_check_branch
    %9 = sbr.rel (0) target = $region5
  $region4: #{_lambda_.13} parent=0 // pred_region
    _
  $region5: #{_lambda_.13} parent=0 // pred_fallthru
    _
  // Predicated region
  $region6: #{_lambda_.13} parent=0 // pred_check
    _
  $region7: #{_lambda_.13} parent=0 // pred_check_branch
    %11 = sbr.rel (0) target = $region9
  $region8: #{_lambda_.13} parent=0 // pred_region
    _
  $region9: #{_lambda_.13} parent=0 // pred_fallthru
    _
  // Predicated region
  $region10: #{_lambda_.13} parent=0 // pred_check
    _
  $region11: #{_lambda_.13} parent=0 // pred_check_branch
    %13 = sbr.rel (0) target = $region13
  $region12: #{_lambda_.13} parent=0 // pred_region
    _
  $region13: #{_lambda_.13} parent=0 // pred_fallthru
    _
  %v15 = vld [vmem:[%s0] sm:$0xff]
  %v16 = vld [vmem:[%s0 + $0x8] sm:$0xff]
  %v17 = vld [vmem:[%s0 + $0x10] sm:$0xff]
  %v18 = vld [vmem:[%s0 + $0x18] sm:$0xff]
  %v19 = vld [vmem:[%s0 + $0x20] sm:$0xff]
  %v20 = vld [vmem:[%s0 + $0x28] sm:$0xff]
  %v21 = vld [vmem:[%s0 + $0x30] sm:$0xff]
  %v22 = vld [vmem:[%s0 + $0x38] sm:$0xff]
  %v23 = vld [vmem:[%s0 + $0x40] sm:$0xff]
  %v24 = vld [vmem:[%s0 + $0x48] sm:$0xff]
  %v25 = vld [vmem:[%s0 + $0x50] sm:$0xff]
  %v26 = vld [vmem:[%s0 + $0x58] sm:$0xff]
  %v27 = vld [vmem:[%s0 + $0x60] sm:$0xff]
  %v28 = vld [vmem:[%s0 + $0x68] sm:$0xff]
  %v29 = vld [vmem:[%s0 + $0x70] sm:$0xff]
  %v30 = vld [vmem:[%s0 + $0x78] sm:$0xff]
  %v31 = vld [vmem:[%s1] sm:$0xf]
  %v32 = vld [vmem:[%s1 + $0x4] sm:$0xf]
  %v33 = vld [vmem:[%s1 + $0x8] sm:$0xf]
  %v34 = vld [vmem:[%s1 + $0xc] sm:$0xf]
  %v35 = vld [vmem:[%s1 + $0x10] sm:$0xf]
  %v36 = vld [vmem:[%s1 + $0x14] sm:$0xf]
  %v37 = vld [vmem:[%s1 + $0x18] sm:$0xf]
  %v38 = vld [vmem:[%s1 + $0x1c] sm:$0xf]
  %v39 = vld [vmem:[%s1 + $0x20] sm:$0xf]
  %v40 = vld [vmem:[%s1 + $0x24] sm:$0xf]
  %v41 = vld [vmem:[%s1 + $0x28] sm:$0xf]
  %v42 = vld [vmem:[%s1 + $0x2c] sm:$0xf]
  %v43 = vld [vmem:[%s1 + $0x30] sm:$0xf]
  %v44 = vld [vmem:[%s1 + $0x34] sm:$0xf]
  %v45 = vld [vmem:[%s1 + $0x38] sm:$0xf]
  %v46 = vld [vmem:[%s1 + $0x3c] sm:$0xf]
  %v47 = vld [vmem:[%s1 + $0x40] sm:$0xf]
  %v48 = vld [vmem:[%s1 + $0x44] sm:$0xf]
  %v49 = vld [vmem:[%s2] sm:$0x1]
  %v51 = vlaneseq
  %v52 = vshrl.u32 %v51, 7
  %v53 = vsub.s32 0, %v52
  %v54 = vrot.slane %v49, %v53
  %v72 = vunpack.c.l.b16 %v15
  %v73 = vunpack.c.h.b16 %v15
  %v74 = vunpack.c.l.b16 %v16
  %v75 = vunpack.c.h.b16 %v16
  %v76 = vunpack.c.l.b16 %v17
  %v77 = vunpack.c.h.b16 %v17
  %v78 = vunpack.c.l.b16 %v18
  %v79 = vunpack.c.h.b16 %v18
  %v80 = vunpack.c.l.b16 %v19
  %v81 = vunpack.c.h.b16 %v19
  %v82 = vunpack.c.l.b16 %v20
  %v83 = vunpack.c.h.b16 %v20
  %v84 = vunpack.c.l.b16 %v21
  %v85 = vunpack.c.h.b16 %v21
  %v86 = vunpack.c.l.b16 %v22
  %v87 = vunpack.c.h.b16 %v22
  %v88 = vunpack.c.l.b16 %v23
  %v89 = vunpack.c.h.b16 %v23
  %v90 = vunpack.c.l.b16 %v24
  %v91 = vunpack.c.h.b16 %v24
  %v92 = vunpack.c.l.b16 %v25
  %v93 = vunpack.c.h.b16 %v25
  %v94 = vunpack.c.l.b16 %v26
  %v95 = vunpack.c.h.b16 %v26
  %v96 = vunpack.c.l.b16 %v27
  %v97 = vunpack.c.h.b16 %v27
  %v98 = vunpack.c.l.b16 %v28
  %v99 = vunpack.c.h.b16 %v28
  %v100 = vunpack.c.l.b16 %v29
  %v101 = vunpack.c.h.b16 %v29
  %v102 = vunpack.c.l.b16 %v30
  %v103 = vunpack.c.h.b16 %v30
  %v104 = vpack.c.b16 %v74, %v72
  %v105 = vpack.c.b16 %v75, %v73
  %v106 = vpack.c.b16 %v78, %v76
  %v107 = vpack.c.b16 %v79, %v77
  %v108 = vpack.c.b16 %v82, %v80
  %v109 = vpack.c.b16 %v83, %v81
  %v110 = vpack.c.b16 %v86, %v84
  %v111 = vpack.c.b16 %v87, %v85
  %v112 = vpack.c.b16 %v90, %v88
  %v113 = vpack.c.b16 %v91, %v89
  %v114 = vpack.c.b16 %v94, %v92
  %v115 = vpack.c.b16 %v95, %v93
  %v116 = vpack.c.b16 %v98, %v96
  %v117 = vpack.c.b16 %v99, %v97
  %v118 = vpack.c.b16 %v102, %v100
  %v119 = vpack.c.b16 %v103, %v101
  %v146 = vunpack.c.l.b16 %v31
  %v147 = vunpack.c.l.b16 %v32
  %v148 = vunpack.c.l.b16 %v33
  %v149 = vunpack.c.l.b16 %v34
  %v150 = vunpack.c.l.b16 %v35
  %v151 = vunpack.c.l.b16 %v36
  %v152 = vunpack.c.l.b16 %v37
  %v153 = vunpack.c.l.b16 %v38
  %v154 = vunpack.c.l.b16 %v39
  %v155 = vunpack.c.l.b16 %v40
  %v156 = vunpack.c.l.b16 %v41
  %v157 = vunpack.c.l.b16 %v42
  %v158 = vunpack.c.l.b16 %v43
  %v159 = vunpack.c.l.b16 %v44
  %v160 = vunpack.c.l.b16 %v45
  %v161 = vunpack.c.l.b16 %v46
  %v162 = vunpack.c.l.b16 %v47
  %v163 = vunpack.c.l.b16 %v48
  %v164 = vpack.c.b16 %v147, %v146
  %v165 = vpack.c.b16 %v149, %v148
  %v166 = vpack.c.b16 %v151, %v150
  %v167 = vpack.c.b16 %v153, %v152
  %v168 = vpack.c.b16 %v155, %v154
  %v169 = vpack.c.b16 %v157, %v156
  %v170 = vpack.c.b16 %v159, %v158
  %v171 = vpack.c.b16 %v161, %v160
  %v172 = vpack.c.b16 %v163, %v162
  %vm182 = vcmask 130048
  %v184 = vsel %vm182, %v105, 0
  %v187 = vsel %vm182, %v107, 0
  %v190 = vsel %vm182, %v109, 0
  %v193 = vsel %vm182, %v111, 0
  %v196 = vsel %vm182, %v113, 0
  %v199 = vsel %vm182, %v115, 0
  %v202 = vsel %vm182, %v117, 0
  %v205 = vsel %vm182, %v119, 0
  %207 = vmatprep.subr.bf16.mxu0 0
  %208 = vmatpush1.bf16.msra.mxu0 %v171
  %209 = vmatprep.subr.bf16.mxu0 0
  %210 = vmatpush1.bf16.msra.mxu0 %v170
  %211 = vmatprep.subr.bf16.mxu0 0
  %212 = vmatpush1.bf16.msra.mxu0 %v169
  %213 = vmatprep.subr.bf16.mxu0 0
  %214 = vmatpush1.bf16.msra.mxu0 %v168
  %215 = vmatprep.subr.bf16.mxu0 0
  %216 = vmatpush1.bf16.msra.mxu0 %v167
  %217 = vmatprep.subr.bf16.mxu0 0
  %218 = vmatpush1.bf16.msra.mxu0 %v166
  %219 = vmatprep.subr.bf16.mxu0 0
  %220 = vmatpush1.bf16.msra.mxu0 %v165
  %221 = vmatprep.subr.bf16.mxu0 0
  %222 = vmatpush1.bf16.msra.mxu0 %v164
  %223 = vmatprep.subr.bf16.mxu0 0
  %224 = vmatpush2.bf16.msra.mxu0 0
  %225 = vmatprep.subr.bf16.mxu0 0
  %226 = vmatpush2.bf16.msra.mxu0 0
  %227 = vmatprep.subr.bf16.mxu0 0
  %228 = vmatpush2.bf16.msra.mxu0 0
  %229 = vmatprep.subr.bf16.mxu0 0
  %230 = vmatpush2.bf16.msra.mxu0 0
  %231 = vmatprep.subr.bf16.mxu0 0
  %232 = vmatpush2.bf16.msra.mxu0 0
  %233 = vmatprep.subr.bf16.mxu0 0
  %234 = vmatpush2.bf16.msra.mxu0 0
  %235 = vmatprep.subr.bf16.mxu0 0
  %236 = vmatpush2.bf16.msra.mxu0 0
  %237 = vmatprep.subr.bf16.mxu0 0
  %238 = vmatpush2.bf16.msra.mxu0 %v172
  %239 = vmatprep.mubr.bf16.mxu0 %v184
  %240 = vmatmul.mubr.bf16.gmra.mxu0 %v104
  %v241 = vpop.f32.mrf.mxu0
  %v242 = vadd.f32 %v54, %v241
  %v243 = vpop.f32.mrf.mxu0
  %v244 = vpop.f32.mrf.mxu0
  %v245 = vadd.f32 %v54, %v244
  %v246 = vpop.f32.mrf.mxu0
  %247 = vmatprep.mubr.bf16.mxu0 %v187
  %248 = vmatmul.mubr.bf16.gmra.mxu0 %v106
  %v249 = vpop.f32.mrf.mxu0
  %v250 = vadd.f32 %v54, %v249
  %v251 = vpop.f32.mrf.mxu0
  %v252 = vpop.f32.mrf.mxu0
  %v253 = vadd.f32 %v54, %v252
  %v254 = vpop.f32.mrf.mxu0
  %255 = vmatprep.mubr.bf16.mxu0 %v190
  %256 = vmatmul.mubr.bf16.gmra.mxu0 %v108
  %v257 = vpop.f32.mrf.mxu0
  %v258 = vadd.f32 %v54, %v257
  %v259 = vpop.f32.mrf.mxu0
  %v260 = vpop.f32.mrf.mxu0
  %v261 = vadd.f32 %v54, %v260
  %v262 = vpop.f32.mrf.mxu0
  %263 = vmatprep.mubr.bf16.mxu0 %v193
  %264 = vmatmul.mubr.bf16.gmra.mxu0 %v110
  %v265 = vpop.f32.mrf.mxu0
  %v266 = vadd.f32 %v54, %v265
  %v267 = vpop.f32.mrf.mxu0
  %v268 = vpop.f32.mrf.mxu0
  %v269 = vadd.f32 %v54, %v268
  %v270 = vpop.f32.mrf.mxu0
  %271 = vmatprep.mubr.bf16.mxu0 %v196
  %272 = vmatmul.mubr.bf16.gmra.mxu0 %v112
  %v273 = vpop.f32.mrf.mxu0
  %v274 = vadd.f32 %v54, %v273
  %v275 = vpop.f32.mrf.mxu0
  %v276 = vpop.f32.mrf.mxu0
  %v277 = vadd.f32 %v54, %v276
  %v278 = vpop.f32.mrf.mxu0
  %279 = vmatprep.mubr.bf16.mxu0 %v199
  %280 = vmatmul.mubr.bf16.gmra.mxu0 %v114
  %v281 = vpop.f32.mrf.mxu0
  %v282 = vadd.f32 %v54, %v281
  %v283 = vpop.f32.mrf.mxu0
  %v284 = vpop.f32.mrf.mxu0
  %v285 = vadd.f32 %v54, %v284
  %v286 = vpop.f32.mrf.mxu0
  %287 = vmatprep.mubr.bf16.mxu0 %v202
  %288 = vmatmul.mubr.bf16.gmra.mxu0 %v116
  %v289 = vpop.f32.mrf.mxu0
  %v290 = vadd.f32 %v54, %v289
  %v291 = vpop.f32.mrf.mxu0
  %v292 = vpop.f32.mrf.mxu0
  %v293 = vadd.f32 %v54, %v292
  %v294 = vpop.f32.mrf.mxu0
  %295 = vmatprep.mubr.bf16.mxu0 %v205
  %296 = vmatmul.mubr.bf16.gmra.mxu0 %v118
  %v297 = vpop.f32.mrf.mxu0
  %v298 = vadd.f32 %v54, %v297
  %v299 = vpop.f32.mrf.mxu0
  %v300 = vpop.f32.mrf.mxu0
  %v301 = vadd.f32 %v54, %v300
  %v302 = vpop.f32.mrf.mxu0
  %303 = vdwg.mxu0
  %vm304 = vcmask 261120
  %305 = vst.msk [vmem:[%s3] sm:$0xff] %vm304, %v242
  %306 = vst.msk [vmem:[%s3 + $0x8] sm:$0xff] %vm304, %v245
  %307 = vst.msk [vmem:[%s3 + $0x10] sm:$0xff] %vm304, %v250
  %308 = vst.msk [vmem:[%s3 + $0x18] sm:$0xff] %vm304, %v253
  %309 = vst.msk [vmem:[%s3 + $0x20] sm:$0xff] %vm304, %v258
  %310 = vst.msk [vmem:[%s3 + $0x28] sm:$0xff] %vm304, %v261
  %311 = vst.msk [vmem:[%s3 + $0x30] sm:$0xff] %vm304, %v266
  %312 = vst.msk [vmem:[%s3 + $0x38] sm:$0xff] %vm304, %v269
  %313 = vst.msk [vmem:[%s3 + $0x40] sm:$0xff] %vm304, %v274
  %314 = vst.msk [vmem:[%s3 + $0x48] sm:$0xff] %vm304, %v277
  %315 = vst.msk [vmem:[%s3 + $0x50] sm:$0xff] %vm304, %v282
  %316 = vst.msk [vmem:[%s3 + $0x58] sm:$0xff] %vm304, %v285
  %317 = vst.msk [vmem:[%s3 + $0x60] sm:$0xff] %vm304, %v290
  %318 = vst.msk [vmem:[%s3 + $0x68] sm:$0xff] %vm304, %v293
  %319 = vst.msk [vmem:[%s3 + $0x70] sm:$0xff] %vm304, %v298
  %320 = vst.msk [vmem:[%s3 + $0x78] sm:$0xff] %vm304, %v301
  // Predicated region
  $region14: #{_lambda_.13} parent=0 // pred_check
    _
  $region15: #{_lambda_.13} parent=0 // pred_check_branch
    %322 = sbr.rel (0) target = $region17
  $region16: #{_lambda_.13} parent=0 // pred_region
    _
  $region17: #{_lambda_.13} parent=0 // pred_fallthru
    _
  // Predicated region
  $region18: #{_lambda_.13} parent=0 // pred_check
    _
  $region19: #{_lambda_.13} parent=0 // pred_check_branch
    %324 = sbr.rel (0) target = $region21
  $region20: #{_lambda_.13} parent=0 // pred_region
    _
  $region21: #{_lambda_.13} parent=0 // pred_fallthru
    _

// kernel: _lambda_.14
$region0: #{_lambda_.14}
  #allocation0 [shape = 'u32[]', space=smem, size = 0x4, offset = 0x4, fixed_abs, tag = 'smem constant byte address 0x4 - core index']
  #allocation1 [shape = 'u32[144,128]{1,0:T(1,128)}', space=vmem, size = 0x12000, scoped, tag = 'internal scratch']
  %s0 = inlined_call_operand.vmem [shape: f32[2,64,32], index: 0, kind: input, shape index: {}]
  %s1 = inlined_call_operand.vmem [shape: f32[64,64], index: 1, kind: input, shape index: {}]
  %s2 = inlined_call_operand.vmem [shape: f32[1,32], index: 2, kind: input, shape index: {}]
  %s3 = inlined_call_operand.vmem [shape: bf16[32,128], index: 3, kind: input, shape index: {}]
  %s4 = inlined_call_operand.vmem [shape: f32[1,128], index: 4, kind: input, shape index: {}]
  %s5 = inlined_call_operand.vmem [shape: bf16[128,32], index: 5, kind: input, shape index: {}]
  %s6 = inlined_call_operand.vmem [shape: f32[1,32], index: 6, kind: input, shape index: {}]
  %s7 = inlined_call_operand.vmem [shape: f32[2,64,32], index: 7, kind: output, shape index: {}]
  %s8 = sld [smem:[#allocation0]]
  $region61: #{_lambda_.14} parent=0
    _
  %s10 = ssub.s32 1, %s8
  %s11 = scalar_select 0, %s10, %s8
  loop: start=0, step=1, limit=4
  $region2: #{_lambda_.14} parent=0 // loop_pre_header
    _
  $region3: #{_lambda_.14} parent=0 // loop_header
    %s13 = sphi 0, %s17
    %p14 = scmp.ge.s32.totalorder %s13, 4
    %s23 = sphi 0, %s25
    %s26 = sphi 0, %s23
    %s27 = sphi 0, %s26
    %s43 = sphi 0, %s27
    %s47 = sphi 0, %s47
    %s49 = sphi 0, %s47
    %s50 = sphi 0, %s49
    %s64 = sphi 0, %s50
    %s68 = sphi 0, %s68
    %s70 = sphi 0, %s68
    %s71 = sphi 0, %s70
    %s85 = sphi 0, %s71
    %s89 = sphi 0, %s89
    %s91 = sphi 0, %s89
    %s92 = sphi 0, %s91
    %s106 = sphi 0, %s92
    %s110 = sphi 0, %s110
    %s112 = sphi 0, %s110
    %s113 = sphi 0, %s112
    %s127 = sphi 0, %s113
    %s131 = sphi 0, %s131
    %s133 = sphi 0, %s131
    %s134 = sphi 0, %s133
    %s148 = sphi 0, %s134
    %s152 = sphi 0, %s152
    %s154 = sphi 0, %s152
    %s155 = sphi 0, %s154
    %s169 = sphi 0, %s155
    %s175 = sphi 0, %s177
    %s178 = sphi 0, %s175
    %s179 = sphi 0, %s178
    %s195 = sphi 0, %s179
  $region4: #{_lambda_.14} parent=0 // loop_header_branch
    %16 = sbr.rel (%p14) target = $region8
  $region5: #{_lambda_.14} parent=0 // loop_body
    %s18 = ssub.s32 %s13, 1
    %s19 = ssub.s32 %s13, 2
    %s20 = sadd.s32 %s13, 1
    %s21 = ssub.s32 %s13, %s20
    %p22 = scmp.eq.s32.totalorder %s21, 0
    %s24 = sadd.s32 %s23, 1
    %s25 = scalar_select %p22, %s23, %s24
    %p28 = pneg %p22
    %p29 = scmp.eq.s32.totalorder %s13, 1
    %p30 = por %p28, %p29
    %p31 = scmp.ne.s32.totalorder %s23, %s26
    %p32 = scmp.eq.s32.totalorder %s13, 0
    %p33 = por %p31, %p32
    %p34 = scmp.ne.s32.totalorder %s23, %s26
    %p35 = scmp.eq.s32.totalorder %s18, 1
    %p36 = por %p34, %p35
    %p37 = scmp.ne.s32.totalorder %s26, %s27
    %p38 = scmp.eq.s32.totalorder %s18, 0
    %p39 = por %p37, %p38
    %p40 = scmp.ne.s32.totalorder %s26, %s27
    %p41 = scmp.eq.s32.totalorder %s19, 1
    %p42 = por %p40, %p41
    %p44 = scmp.ne.s32.totalorder %s27, %s43
    %p45 = scmp.eq.s32.totalorder %s19, 0
    %p46 = por %p44, %p45
    %s48 = sadd.s32 %s47, 1
    %p51 = scmp.eq.s32.totalorder %s13, 1
    %p52 = scmp.ne.s32.totalorder %s47, %s49
    %p53 = scmp.eq.s32.totalorder %s13, 0
    %p54 = por %p52, %p53
    %p55 = scmp.ne.s32.totalorder %s47, %s49
    %p56 = scmp.eq.s32.totalorder %s18, 1
    %p57 = por %p55, %p56
    %p58 = scmp.ne.s32.totalorder %s49, %s50
    %p59 = scmp.eq.s32.totalorder %s18, 0
    %p60 = por %p58, %p59
    %p61 = scmp.ne.s32.totalorder %s49, %s50
    %p62 = scmp.eq.s32.totalorder %s19, 1
    %p63 = por %p61, %p62
    %p65 = scmp.ne.s32.totalorder %s50, %s64
    %p66 = scmp.eq.s32.totalorder %s19, 0
    %p67 = por %p65, %p66
    %s69 = sadd.s32 %s68, 1
    %p72 = scmp.eq.s32.totalorder %s13, 1
    %p73 = scmp.ne.s32.totalorder %s68, %s70
    %p74 = scmp.eq.s32.totalorder %s13, 0
    %p75 = por %p73, %p74
    %p76 = scmp.ne.s32.totalorder %s68, %s70
    %p77 = scmp.eq.s32.totalorder %s18, 1
    %p78 = por %p76, %p77
    %p79 = scmp.ne.s32.totalorder %s70, %s71
    %p80 = scmp.eq.s32.totalorder %s18, 0
    %p81 = por %p79, %p80
    %p82 = scmp.ne.s32.totalorder %s70, %s71
    %p83 = scmp.eq.s32.totalorder %s19, 1
    %p84 = por %p82, %p83
    %p86 = scmp.ne.s32.totalorder %s71, %s85
    %p87 = scmp.eq.s32.totalorder %s19, 0
    %p88 = por %p86, %p87
    %s90 = sadd.s32 %s89, 1
    %p93 = scmp.eq.s32.totalorder %s13, 1
    %p94 = scmp.ne.s32.totalorder %s89, %s91
    %p95 = scmp.eq.s32.totalorder %s13, 0
    %p96 = por %p94, %p95
    %p97 = scmp.ne.s32.totalorder %s89, %s91
    %p98 = scmp.eq.s32.totalorder %s18, 1
    %p99 = por %p97, %p98
    %p100 = scmp.ne.s32.totalorder %s91, %s92
    %p101 = scmp.eq.s32.totalorder %s18, 0
    %p102 = por %p100, %p101
    %p103 = scmp.ne.s32.totalorder %s91, %s92
    %p104 = scmp.eq.s32.totalorder %s19, 1
    %p105 = por %p103, %p104
    %p107 = scmp.ne.s32.totalorder %s92, %s106
    %p108 = scmp.eq.s32.totalorder %s19, 0
    %p109 = por %p107, %p108
    %s111 = sadd.s32 %s110, 1
    %p114 = scmp.eq.s32.totalorder %s13, 1
    %p115 = scmp.ne.s32.totalorder %s110, %s112
    %p116 = scmp.eq.s32.totalorder %s13, 0
    %p117 = por %p115, %p116
    %p118 = scmp.ne.s32.totalorder %s110, %s112
    %p119 = scmp.eq.s32.totalorder %s18, 1
    %p120 = por %p118, %p119
    %p121 = scmp.ne.s32.totalorder %s112, %s113
    %p122 = scmp.eq.s32.totalorder %s18, 0
    %p123 = por %p121, %p122
    %p124 = scmp.ne.s32.totalorder %s112, %s113
    %p125 = scmp.eq.s32.totalorder %s19, 1
    %p126 = por %p124, %p125
    %p128 = scmp.ne.s32.totalorder %s113, %s127
    %p129 = scmp.eq.s32.totalorder %s19, 0
    %p130 = por %p128, %p129
    %s132 = sadd.s32 %s131, 1
    %p135 = scmp.eq.s32.totalorder %s13, 1
    %p136 = scmp.ne.s32.totalorder %s131, %s133
    %p137 = scmp.eq.s32.totalorder %s13, 0
    %p138 = por %p136, %p137
    %p139 = scmp.ne.s32.totalorder %s131, %s133
    %p140 = scmp.eq.s32.totalorder %s18, 1
    %p141 = por %p139, %p140
    %p142 = scmp.ne.s32.totalorder %s133, %s134
    %p143 = scmp.eq.s32.totalorder %s18, 0
    %p144 = por %p142, %p143
    %p145 = scmp.ne.s32.totalorder %s133, %s134
    %p146 = scmp.eq.s32.totalorder %s19, 1
    %p147 = por %p145, %p146
    %p149 = scmp.ne.s32.totalorder %s134, %s148
    %p150 = scmp.eq.s32.totalorder %s19, 0
    %p151 = por %p149, %p150
    %s153 = sadd.s32 %s152, 1
    %p156 = scmp.eq.s32.totalorder %s13, 1
    %p157 = scmp.ne.s32.totalorder %s152, %s154
    %p158 = scmp.eq.s32.totalorder %s13, 0
    %p159 = por %p157, %p158
    %p160 = scmp.ne.s32.totalorder %s152, %s154
    %p161 = scmp.eq.s32.totalorder %s18, 1
    %p162 = por %p160, %p161
    %p163 = scmp.ne.s32.totalorder %s154, %s155
    %p164 = scmp.eq.s32.totalorder %s18, 0
    %p165 = por %p163, %p164
    %p166 = scmp.ne.s32.totalorder %s154, %s155
    %p167 = scmp.eq.s32.totalorder %s19, 1
    %p168 = por %p166, %p167
    %p170 = scmp.ne.s32.totalorder %s155, %s169
    %p171 = scmp.eq.s32.totalorder %s19, 0
    %p172 = por %p170, %p171
    %s173 = ssub.s32 %s13, %s20
    %p174 = scmp.eq.s32.totalorder %s173, 0
    %s176 = sadd.s32 %s175, 1
    %s177 = scalar_select %p174, %s175, %s176
    %p180 = pneg %p174
    %p181 = scmp.eq.s32.totalorder %s13, 1
    %p182 = por %p180, %p181
    %p183 = scmp.ne.s32.totalorder %s175, %s178
    %p184 = scmp.eq.s32.totalorder %s13, 0
    %p185 = por %p183, %p184
    %p186 = scmp.ne.s32.totalorder %s175, %s178
    %p187 = scmp.eq.s32.totalorder %s18, 1
    %p188 = por %p186, %p187
    %p189 = scmp.ne.s32.totalorder %s178, %s179
    %p190 = scmp.eq.s32.totalorder %s18, 0
    %p191 = por %p189, %p190
    %p192 = scmp.ne.s32.totalorder %s178, %s179
    %p193 = scmp.eq.s32.totalorder %s19, 1
    %p194 = por %p192, %p193
    %p196 = scmp.ne.s32.totalorder %s179, %s195
    %p197 = scmp.eq.s32.totalorder %s19, 0
    %p198 = por %p196, %p197
    %p199 = scmp.le.s32.totalorder 1, %s13
    %p200 = scmp.lt.s32.totalorder %s13, 3
    %p201 = pnand %p199, %p200
    %p202 = pneg %p201
    // Predicated region
    $region9: #{_lambda_.14} parent=5 // pred_check
      _
    $region10: #{_lambda_.14} parent=5 // pred_check_branch
      %204 = sbr.rel (%p201) target = $region12
    $region11: #{_lambda_.14} parent=5 // pred_region
      %s205 = ssub.s32 %s13, 1
      // Predicated region
      $region13: #{_lambda_.14} parent=11 // pred_check
        %p206 = pneg %p60
      $region14: #{_lambda_.14} parent=11 // pred_check_branch
        %208 = sbr.rel (%p206) target = $region16
      $region15: #{_lambda_.14} parent=11 // pred_region
        _
      $region16: #{_lambda_.14} parent=11 // pred_fallthru
        _
      // Predicated region
      $region17: #{_lambda_.14} parent=11 // pred_check
        %p209 = pneg %p81
      $region18: #{_lambda_.14} parent=11 // pred_check_branch
        %211 = sbr.rel (%p209) target = $region20
      $region19: #{_lambda_.14} parent=11 // pred_region
        _
      $region20: #{_lambda_.14} parent=11 // pred_fallthru
        _
      // Predicated region
      $region21: #{_lambda_.14} parent=11 // pred_check
        %p212 = pneg %p102
      $region22: #{_lambda_.14} parent=11 // pred_check_branch
        %214 = sbr.rel (%p212) target = $region24
      $region23: #{_lambda_.14} parent=11 // pred_region
        _
      $region24: #{_lambda_.14} parent=11 // pred_fallthru
        _
      // Predicated region
      $region25: #{_lambda_.14} parent=11 // pred_check
        %p215 = pneg %p123
      $region26: #{_lambda_.14} parent=11 // pred_check_branch
        %217 = sbr.rel (%p215) target = $region28
      $region27: #{_lambda_.14} parent=11 // pred_region
        _
      $region28: #{_lambda_.14} parent=11 // pred_fallthru
        _
      // Predicated region
      $region29: #{_lambda_.14} parent=11 // pred_check
        %p218 = pneg %p144
      $region30: #{_lambda_.14} parent=11 // pred_check_branch
        %220 = sbr.rel (%p218) target = $region32
      $region31: #{_lambda_.14} parent=11 // pred_region
        _
      $region32: #{_lambda_.14} parent=11 // pred_fallthru
        _
      // Predicated region
      $region33: #{_lambda_.14} parent=11 // pred_check
        %p221 = pneg %p165
      $region34: #{_lambda_.14} parent=11 // pred_check_branch
        %223 = sbr.rel (%p221) target = $region36
      $region35: #{_lambda_.14} parent=11 // pred_region
        _
      $region36: #{_lambda_.14} parent=11 // pred_fallthru
        _
    $region12: #{_lambda_.14} parent=5 // pred_fallthru
      _
    %p224 = scmp.lt.s32.totalorder %s13, 2
    // Predicated region
    $region37: #{_lambda_.14} parent=5 // pred_check
      %p225 = pneg %p224
    $region38: #{_lambda_.14} parent=5 // pred_check_branch
      %227 = sbr.rel (%p225) target = $region40
    $region39: #{_lambda_.14} parent=5 // pred_region
      // Predicated region
      $region41: #{_lambda_.14} parent=39 // pred_check
        %p228 = pneg %p33
      $region42: #{_lambda_.14} parent=39 // pred_check_branch
        %230 = sbr.rel (%p228) target = $region44
      $region43: #{_lambda_.14} parent=39 // pred_region
        %p231 = scmp.lt.s32.totalorder %s13, 1
        %s232 = scalar_select %p231, %s13, 1
        %s233 = smul.addr %s232, 8
        %s234 = smul.addr %s233, 8
        %s235 = scalar_lea.vmem %s0, %s234
      $region44: #{_lambda_.14} parent=39 // pred_fallthru
        _
    $region40: #{_lambda_.14} parent=5 // pred_fallthru
      _
    %p236 = scmp.le.s32.totalorder 1, %s13
    %p237 = scmp.lt.s32.totalorder %s13, 3
    %p238 = pnand %p236, %p237
    %p239 = pneg %p238
    // Predicated region
    $region45: #{_lambda_.14} parent=5 // pred_check
      _
    $region46: #{_lambda_.14} parent=5 // pred_check_branch
      %241 = sbr.rel (%p238) target = $region48
    $region47: #{_lambda_.14} parent=5 // pred_region
      %s242 = ssub.s32 %s13, 1
      %p243 = scmp.lt.s32.totalorder %s18, 1
      %s244 = scalar_select %p243, %s18, 1
      %s245 = smul.addr %s244, 8
      %s246 = smul.addr %s245, 8
      %s247 = scalar_lea.vmem %s0, %s246
      %p248 = pneg %p39
      %p249 = pneg %p36
      %p250 = pneg %p60
      %p251 = pneg %p57
      %p252 = pneg %p81
      %p253 = pneg %p78
      %p254 = pneg %p102
      %p255 = pneg %p99
      %p256 = pneg %p123
      %p257 = pneg %p120
      %p258 = pneg %p144
      %p259 = pneg %p141
      %p260 = pneg %p165
      %p261 = pneg %p162
      %p262 = pneg %p191
      %p263 = pneg %p188
      %p264 = scmp.lt.s32.totalorder %s18, 1
      %s265 = scalar_select %p264, %s18, 1
      %s266 = smul.addr %s265, 8
      %s267 = smul.addr %s266, 8
      %s268 = scalar_lea.vmem %s7, %s267
      %p269 = scmp.lt.s32.totalorder %s18, 1
      %s270 = scalar_select %p269, %s18, 1
      %s271 = smul.addr %s270, 8
      %s272 = smul.addr %s271, 8
      %s273 = scalar_lea.vmem %s0, %s272
      %p274 = scmp.lt.s32.totalorder %s18, 1
      %s275 = scalar_select %p274, %s18, 1
      %s276 = smul.addr %s275, 8
      %s277 = smul.addr %s276, 8
      %s278 = scalar_lea.vmem %s7, %s277
      %v280 = vld [vmem:[%s273] sm:$0xff]
      %v281 = vld [vmem:[%s273 + $0x8] sm:$0xff]
      %v282 = vld [vmem:[%s273 + $0x10] sm:$0xff]
      %v283 = vld [vmem:[%s273 + $0x18] sm:$0xff]
      %v284 = vld [vmem:[%s273 + $0x20] sm:$0xff]
      %v285 = vld [vmem:[%s273 + $0x28] sm:$0xff]
      %v286 = vld [vmem:[%s273 + $0x30] sm:$0xff]
      %v287 = vld [vmem:[%s273 + $0x38] sm:$0xff]
      %v288 = vld [vmem:[%s1] sm:$0xff]
      %v289 = vld [vmem:[%s1 + $0x8] sm:$0xff]
      %v290 = vld [vmem:[%s1 + $0x10] sm:$0xff]
      %v291 = vld [vmem:[%s1 + $0x18] sm:$0xff]
      %v292 = vld [vmem:[%s1 + $0x20] sm:$0xff]
      %v293 = vld [vmem:[%s1 + $0x28] sm:$0xff]
      %v294 = vld [vmem:[%s1 + $0x30] sm:$0xff]
      %v295 = vld [vmem:[%s1 + $0x38] sm:$0xff]
      %vm296 = vcmask 523264
      %v298 = vsel %vm296, %v288, 0
      %v301 = vsel %vm296, %v289, 0
      %v304 = vsel %vm296, %v290, 0
      %v307 = vsel %vm296, %v291, 0
      %v310 = vsel %vm296, %v292, 0
      %v313 = vsel %vm296, %v293, 0
      %v316 = vsel %vm296, %v294, 0
      %v319 = vsel %vm296, %v295, 0
      %321 = vmatprep.subr.mxu0 0.0
      %322 = vmatpush1.msra.mxu0 0.0
      %323 = vmatprep.subr.mxu0 0.0
      %324 = vmatpush1.msra.mxu0 0.0
      %325 = vmatprep.subr.mxu0 0.0
      %326 = vmatpush1.msra.mxu0 0.0
      %327 = vmatprep.subr.mxu0 0.0
      %328 = vmatpush1.msra.mxu0 0.0
      %329 = vmatprep.subr.mxu0 0.0
      %330 = vmatpush1.msra.mxu0 0.0
      %331 = vmatprep.subr.mxu0 0.0
      %332 = vmatpush1.msra.mxu0 0.0
      %333 = vmatprep.subr.mxu0 0.0
      %334 = vmatpush1.msra.mxu0 0.0
      %335 = vmatprep.subr.mxu0 0.0
      %336 = vmatpush1.msra.mxu0 0.0
      %337 = vmatprep.subr.mxu0 0.0
      %338 = vmatpush1.msra.mxu0 %v287
      %339 = vmatprep.subr.mxu0 0.0
      %340 = vmatpush1.msra.mxu0 %v286
      %341 = vmatprep.subr.mxu0 0.0
      %342 = vmatpush1.msra.mxu0 %v285
      %343 = vmatprep.subr.mxu0 0.0
      %344 = vmatpush1.msra.mxu0 %v284
      %345 = vmatprep.subr.mxu0 0.0
      %346 = vmatpush1.msra.mxu0 %v283
      %347 = vmatprep.subr.mxu0 0.0
      %348 = vmatpush1.msra.mxu0 %v282
      %349 = vmatprep.subr.mxu0 0.0
      %350 = vmatpush1.msra.mxu0 %v281
      %351 = vmatprep.subr.mxu0 0.0
      %352 = vmatpush1.msra.mxu0 %v280
      %353 = vmatprep.subr.mxu0 0.0
      %354 = vmatpush2.msra.mxu0 0.0
      %355 = vmatprep.subr.mxu0 0.0
      %356 = vmatpush2.msra.mxu0 0.0
      %357 = vmatprep.subr.mxu0 0.0
      %358 = vmatpush2.msra.mxu0 0.0
      %359 = vmatprep.subr.mxu0 0.0
      %360 = vmatpush2.msra.mxu0 0.0
      %361 = vmatprep.subr.mxu0 0.0
      %362 = vmatpush2.msra.mxu0 0.0
      %363 = vmatprep.subr.mxu0 0.0
      %364 = vmatpush2.msra.mxu0 0.0
      %365 = vmatprep.subr.mxu0 0.0
      %366 = vmatpush2.msra.mxu0 0.0
      %367 = vmatprep.subr.mxu0 0.0
      %368 = vmatpush2.msra.mxu0 0.0
      %369 = vmatprep.subr.mxu0 0.0
      %370 = vmatpush2.msra.mxu0 0.0
      %371 = vmatprep.subr.mxu0 0.0
      %372 = vmatpush2.msra.mxu0 0.0
      %373 = vmatprep.subr.mxu0 0.0
      %374 = vmatpush2.msra.mxu0 0.0
      %375 = vmatprep.subr.mxu0 0.0
      %376 = vmatpush2.msra.mxu0 0.0
      %377 = vmatprep.subr.mxu0 0.0
      %378 = vmatpush2.msra.mxu0 0.0
      %379 = vmatprep.subr.mxu0 0.0
      %380 = vmatpush2.msra.mxu0 0.0
      %381 = vmatprep.subr.mxu0 0.0
      %382 = vmatpush2.msra.mxu0 0.0
      %383 = vmatprep.subr.mxu0 0.0
      %384 = vmatpush2.msra.mxu0 0.0
      %385 = vmatprep.mubr.f32.mxu0 0.0
      %386 = vmatmul.mubr.f32.gmra.mxu0 %v298
      %v387 = vpop.f32.mrf.mxu0
      %v388 = vadd.f32 0.0, %v387
      %v389 = vpop.f32.mrf.mxu0
      %390 = vmatprep.mubr.f32.mxu0 0.0
      %391 = vmatmul.mubr.f32.gmra.mxu0 %v301
      %v392 = vpop.f32.mrf.mxu0
      %v393 = vadd.f32 0.0, %v392
      %v394 = vpop.f32.mrf.mxu0
      %395 = vmatprep.mubr.f32.mxu0 0.0
      %396 = vmatmul.mubr.f32.gmra.mxu0 %v304
      %v397 = vpop.f32.mrf.mxu0
      %v398 = vadd.f32 0.0, %v397
      %v399 = vpop.f32.mrf.mxu0
      %400 = vmatprep.mubr.f32.mxu0 0.0
      %401 = vmatmul.mubr.f32.gmra.mxu0 %v307
      %v402 = vpop.f32.mrf.mxu0
      %v403 = vadd.f32 0.0, %v402
      %v404 = vpop.f32.mrf.mxu0
      %405 = vmatprep.mubr.f32.mxu0 0.0
      %406 = vmatmul.mubr.f32.gmra.mxu0 %v310
      %v407 = vpop.f32.mrf.mxu0
      %v408 = vadd.f32 0.0, %v407
      %v409 = vpop.f32.mrf.mxu0
      %410 = vmatprep.mubr.f32.mxu0 0.0
      %411 = vmatmul.mubr.f32.gmra.mxu0 %v313
      %v412 = vpop.f32.mrf.mxu0
      %v413 = vadd.f32 0.0, %v412
      %v414 = vpop.f32.mrf.mxu0
      %415 = vmatprep.mubr.f32.mxu0 0.0
      %416 = vmatmul.mubr.f32.gmra.mxu0 %v316
      %v417 = vpop.f32.mrf.mxu0
      %v418 = vadd.f32 0.0, %v417
      %v419 = vpop.f32.mrf.mxu0
      %420 = vmatprep.mubr.f32.mxu0 0.0
      %421 = vmatmul.mubr.f32.gmra.mxu0 %v319
      %v422 = vpop.f32.mrf.mxu0
      %v423 = vadd.f32 0.0, %v422
      %v424 = vpop.f32.mrf.mxu0
      %425 = vdwg.mxu0
      %v426 = vld [vmem:[%s2] sm:$0x1]
      %v427 = vsub.f32 %v388, %v280
      %v428 = vsub.f32 %v393, %v281
      %v429 = vsub.f32 %v398, %v282
      %v430 = vsub.f32 %v403, %v283
      %v431 = vsub.f32 %v408, %v284
      %v432 = vsub.f32 %v413, %v285
      %v433 = vsub.f32 %v418, %v286
      %v434 = vsub.f32 %v423, %v287
      %v436 = vlaneseq
      %v437 = vshrl.u32 %v436, 7
      %v438 = vsub.s32 0, %v437
      %v439 = vrot.slane %v426, %v438
      %v441 = vmul.f32 %v439, %v427
      %v442 = vmul.f32 %v439, %v428
      %v443 = vmul.f32 %v439, %v429
      %v444 = vmul.f32 %v439, %v430
      %v445 = vmul.f32 %v439, %v431
      %v446 = vmul.f32 %v439, %v432
      %v447 = vmul.f32 %v439, %v433
      %v448 = vmul.f32 %v439, %v434
      %v449 = vadd.f32 %v280, %v441
      %v450 = vadd.f32 %v281, %v442
      %v451 = vadd.f32 %v282, %v443
      %v452 = vadd.f32 %v283, %v444
      %v453 = vadd.f32 %v284, %v445
      %v454 = vadd.f32 %v285, %v446
      %v455 = vadd.f32 %v286, %v447
      %v456 = vadd.f32 %v287, %v448
      %v457 = vld [vmem:[%s3] sm:$0xf]
      %v458 = vld [vmem:[%s3 + $0x4] sm:$0xf]
      %v459 = vld [vmem:[%s3 + $0x8] sm:$0xf]
      %v460 = vld [vmem:[%s3 + $0xc] sm:$0xf]
      %v461 = vpack.c.bf16 %v450, %v449
      %v462 = vpack.c.bf16 %v452, %v451
      %v463 = vpack.c.bf16 %v454, %v453
      %v464 = vpack.c.bf16 %v456, %v455
      %v465 = vld [vmem:[%s4] sm:$0x1]
      %v467 = vlaneseq
      %v468 = vshrl.u32 %v467, 7
      %v469 = vsub.s32 0, %v468
      %v470 = vrot.slane %v465, %v469
      %v476 = vunpack.c.l.b16 %v457
      %v477 = vunpack.c.l.b16 %v458
      %v478 = vunpack.c.l.b16 %v459
      %v479 = vunpack.c.l.b16 %v460
      %v480 = vpack.c.b16 %v477, %v476
      %v481 = vpack.c.b16 %v479, %v478
      %vm484 = vcmask 261120
      %v486 = vsel %vm484, %v461, 0
      %v489 = vsel %vm484, %v462, 0
      %v492 = vsel %vm484, %v463, 0
      %v495 = vsel %vm484, %v464, 0
      %497 = vmatprep.subr.bf16.mxu0 0
      %498 = vmatpush1.bf16.msra.mxu0 0
      %499 = vmatprep.subr.bf16.mxu0 0
      %500 = vmatpush1.bf16.msra.mxu0 0
      %501 = vmatprep.subr.bf16.mxu0 0
      %502 = vmatpush1.bf16.msra.mxu0 0
      %503 = vmatprep.subr.bf16.mxu0 0
      %504 = vmatpush1.bf16.msra.mxu0 0
      %505 = vmatprep.subr.bf16.mxu0 0
      %506 = vmatpush1.bf16.msra.mxu0 0
      %507 = vmatprep.subr.bf16.mxu0 0
      %508 = vmatpush1.bf16.msra.mxu0 0
      %509 = vmatprep.subr.bf16.mxu0 0
      %510 = vmatpush1.bf16.msra.mxu0 %v481
      %511 = vmatprep.subr.bf16.mxu0 0
      %512 = vmatpush1.bf16.msra.mxu0 %v480
      %513 = vmatprep.subr.bf16.mxu0 0
      %514 = vmatpush2.bf16.msra.mxu0 0
      %515 = vmatprep.subr.bf16.mxu0 0
      %516 = vmatpush2.bf16.msra.mxu0 0
      %517 = vmatprep.subr.bf16.mxu0 0
      %518 = vmatpush2.bf16.msra.mxu0 0
      %519 = vmatprep.subr.bf16.mxu0 0
      %520 = vmatpush2.bf16.msra.mxu0 0
      %521 = vmatprep.subr.bf16.mxu0 0
      %522 = vmatpush2.bf16.msra.mxu0 0
      %523 = vmatprep.subr.bf16.mxu0 0
      %524 = vmatpush2.bf16.msra.mxu0 0
      %525 = vmatprep.subr.bf16.mxu0 0
      %526 = vmatpush2.bf16.msra.mxu0 0
      %527 = vmatprep.subr.bf16.mxu0 0
      %528 = vmatpush2.bf16.msra.mxu0 0
      %529 = vmatprep.mubr.bf16.mxu0 0
      %530 = vmatmul.mubr.bf16.gmra.mxu0 %v486
      %v531 = vpop.f32.mrf.mxu0
      %v532 = vadd.f32 %v470, %v531
      %v533 = vpop.f32.mrf.mxu0
      %v534 = vpop.f32.mrf.mxu0
      %v535 = vadd.f32 %v470, %v534
      %v536 = vpop.f32.mrf.mxu0
      %537 = vmatprep.mubr.bf16.mxu0 0
      %538 = vmatmul.mubr.bf16.gmra.mxu0 %v489
      %v539 = vpop.f32.mrf.mxu0
      %v540 = vadd.f32 %v470, %v539
      %v541 = vpop.f32.mrf.mxu0
      %v542 = vpop.f32.mrf.mxu0
      %v543 = vadd.f32 %v470, %v542
      %v544 = vpop.f32.mrf.mxu0
      %545 = vmatprep.mubr.bf16.mxu0 0
      %546 = vmatmul.mubr.bf16.gmra.mxu0 %v492
      %v547 = vpop.f32.mrf.mxu0
      %v548 = vadd.f32 %v470, %v547
      %v549 = vpop.f32.mrf.mxu0
      %v550 = vpop.f32.mrf.mxu0
      %v551 = vadd.f32 %v470, %v550
      %v552 = vpop.f32.mrf.mxu0
      %553 = vmatprep.mubr.bf16.mxu0 0
      %554 = vmatmul.mubr.bf16.gmra.mxu0 %v495
      %v555 = vpop.f32.mrf.mxu0
      %v556 = vadd.f32 %v470, %v555
      %v557 = vpop.f32.mrf.mxu0
      %v558 = vpop.f32.mrf.mxu0
      %v559 = vadd.f32 %v470, %v558
      %v560 = vpop.f32.mrf.mxu0
      %561 = vdwg.mxu0
      %v562 = vmul.f32 %v532, 0.5
      %v563 = vmul.f32 %v535, 0.5
      %v564 = vmul.f32 %v540, 0.5
      %v565 = vmul.f32 %v543, 0.5
      %v566 = vmul.f32 %v548, 0.5
      %v567 = vmul.f32 %v551, 0.5
      %v568 = vmul.f32 %v556, 0.5
      %v569 = vmul.f32 %v559, 0.5
      %v570 = vmul.f32 %v532, 0.044715
      %v571 = vmul.f32 %v535, 0.044715
      %v572 = vmul.f32 %v540, 0.044715
      %v573 = vmul.f32 %v543, 0.044715
      %v574 = vmul.f32 %v548, 0.044715
      %v575 = vmul.f32 %v551, 0.044715
      %v576 = vmul.f32 %v556, 0.044715
      %v577 = vmul.f32 %v559, 0.044715
      %v578 = vmul.f32 %v570, %v532
      %v579 = vmul.f32 %v571, %v535
      %v580 = vmul.f32 %v572, %v540
      %v581 = vmul.f32 %v573, %v543
      %v582 = vmul.f32 %v574, %v548
      %v583 = vmul.f32 %v575, %v551
      %v584 = vmul.f32 %v576, %v556
      %v585 = vmul.f32 %v577, %v559
      %v586 = vmul.f32 %v578, %v532
      %v587 = vmul.f32 %v579, %v535
      %v588 = vmul.f32 %v580, %v540
      %v589 = vmul.f32 %v581, %v543
      %v590 = vmul.f32 %v582, %v548
      %v591 = vmul.f32 %v583, %v551
      %v592 = vmul.f32 %v584, %v556
      %v593 = vmul.f32 %v585, %v559
      %v594 = vadd.f32 %v532, %v586
      %v595 = vadd.f32 %v535, %v587
      %v596 = vadd.f32 %v540, %v588
      %v597 = vadd.f32 %v543, %v589
      %v598 = vadd.f32 %v548, %v590
      %v599 = vadd.f32 %v551, %v591
      %v600 = vadd.f32 %v556, %v592
      %v601 = vadd.f32 %v559, %v593
      %v602 = vmul.f32 %v594, 0.7978846
      %v603 = vmul.f32 %v595, 0.7978846
      %v604 = vmul.f32 %v596, 0.7978846
      %v605 = vmul.f32 %v597, 0.7978846
      %v606 = vmul.f32 %v598, 0.7978846
      %v607 = vmul.f32 %v599, 0.7978846
      %v608 = vmul.f32 %v600, 0.7978846
      %v609 = vmul.f32 %v601, 0.7978846
      %v610 = vtanh.pop %v602
      %v611 = vtanh.pop %v603
      %v612 = vtanh.pop %v604
      %v613 = vtanh.pop %v605
      %v614 = vtanh.pop %v606
      %v615 = vtanh.pop %v607
      %v616 = vtanh.pop %v608
      %v617 = vtanh.pop %v609
      %v618 = vadd.f32 %v610, 1.0
      %v619 = vadd.f32 %v611, 1.0
      %v620 = vadd.f32 %v612, 1.0
      %v621 = vadd.f32 %v613, 1.0
      %v622 = vadd.f32 %v614, 1.0
      %v623 = vadd.f32 %v615, 1.0
      %v624 = vadd.f32 %v616, 1.0
      %v625 = vadd.f32 %v617, 1.0
      %v626 = vmul.f32 %v562, %v618
      %v627 = vmul.f32 %v563, %v619
      %v628 = vmul.f32 %v564, %v620
      %v629 = vmul.f32 %v565, %v621
      %v630 = vmul.f32 %v566, %v622
      %v631 = vmul.f32 %v567, %v623
      %v632 = vmul.f32 %v568, %v624
      %v633 = vmul.f32 %v569, %v625
      %v634 = vld [vmem:[%s5] sm:$0xf]
      %v635 = vld [vmem:[%s5 + $0x4] sm:$0xf]
      %v636 = vld [vmem:[%s5 + $0x8] sm:$0xf]
      %v637 = vld [vmem:[%s5 + $0xc] sm:$0xf]
      %v638 = vld [vmem:[%s5 + $0x10] sm:$0xf]
      %v639 = vld [vmem:[%s5 + $0x14] sm:$0xf]
      %v640 = vld [vmem:[%s5 + $0x18] sm:$0xf]
      %v641 = vld [vmem:[%s5 + $0x1c] sm:$0xf]
      %v642 = vld [vmem:[%s5 + $0x20] sm:$0xf]
      %v643 = vld [vmem:[%s5 + $0x24] sm:$0xf]
      %v644 = vld [vmem:[%s5 + $0x28] sm:$0xf]
      %v645 = vld [vmem:[%s5 + $0x2c] sm:$0xf]
      %v646 = vld [vmem:[%s5 + $0x30] sm:$0xf]
      %v647 = vld [vmem:[%s5 + $0x34] sm:$0xf]
      %v648 = vld [vmem:[%s5 + $0x38] sm:$0xf]
      %v649 = vld [vmem:[%s5 + $0x3c] sm:$0xf]
      %v650 = vpack.c.bf16 %v627, %v626
      %v651 = vpack.c.bf16 %v629, %v628
      %v652 = vpack.c.bf16 %v631, %v630
      %v653 = vpack.c.bf16 %v633, %v632
      %v654 = vld [vmem:[%s6] sm:$0x1]
      %v656 = vlaneseq
      %v657 = vshrl.u32 %v656, 7
      %v658 = vsub.s32 0, %v657
      %v659 = vrot.slane %v654, %v658
      %v677 = vunpack.c.l.b16 %v634
      %v678 = vunpack.c.l.b16 %v635
      %v679 = vunpack.c.l.b16 %v636
      %v680 = vunpack.c.l.b16 %v637
      %v681 = vunpack.c.l.b16 %v638
      %v682 = vunpack.c.l.b16 %v639
      %v683 = vunpack.c.l.b16 %v640
      %v684 = vunpack.c.l.b16 %v641
      %v685 = vunpack.c.l.b16 %v642
      %v686 = vunpack.c.l.b16 %v643
      %v687 = vunpack.c.l.b16 %v644
      %v688 = vunpack.c.l.b16 %v645
      %v689 = vunpack.c.l.b16 %v646
      %v690 = vunpack.c.l.b16 %v647
      %v691 = vunpack.c.l.b16 %v648
      %v692 = vunpack.c.l.b16 %v649
      %v693 = vpack.c.b16 %v678, %v677
      %v694 = vpack.c.b16 %v680, %v679
      %v695 = vpack.c.b16 %v682, %v681
      %v696 = vpack.c.b16 %v684, %v683
      %v697 = vpack.c.b16 %v686, %v685
      %v698 = vpack.c.b16 %v688, %v687
      %v699 = vpack.c.b16 %v690, %v689
      %v700 = vpack.c.b16 %v692, %v691
      %709 = vmatprep.subr.bf16.mxu0 0
      %710 = vmatpush1.bf16.msra.mxu0 %v700
      %711 = vmatprep.subr.bf16.mxu0 0
      %712 = vmatpush1.bf16.msra.mxu0 %v699
      %713 = vmatprep.subr.bf16.mxu0 0
      %714 = vmatpush1.bf16.msra.mxu0 %v698
      %715 = vmatprep.subr.bf16.mxu0 0
      %716 = vmatpush1.bf16.msra.mxu0 %v697
      %717 = vmatprep.subr.bf16.mxu0 0
      %718 = vmatpush1.bf16.msra.mxu0 %v696
      %719 = vmatprep.subr.bf16.mxu0 0
      %720 = vmatpush1.bf16.msra.mxu0 %v695
      %721 = vmatprep.subr.bf16.mxu0 0
      %722 = vmatpush1.bf16.msra.mxu0 %v694
      %723 = vmatprep.subr.bf16.mxu0 0
      %724 = vmatpush1.bf16.msra.mxu0 %v693
      %725 = vmatprep.subr.bf16.mxu0 0
      %726 = vmatpush2.bf16.msra.mxu0 0
      %727 = vmatprep.subr.bf16.mxu0 0
      %728 = vmatpush2.bf16.msra.mxu0 0
      %729 = vmatprep.subr.bf16.mxu0 0
      %730 = vmatpush2.bf16.msra.mxu0 0
      %731 = vmatprep.subr.bf16.mxu0 0
      %732 = vmatpush2.bf16.msra.mxu0 0
      %733 = vmatprep.subr.bf16.mxu0 0
      %734 = vmatpush2.bf16.msra.mxu0 0
      %735 = vmatprep.subr.bf16.mxu0 0
      %736 = vmatpush2.bf16.msra.mxu0 0
      %737 = vmatprep.subr.bf16.mxu0 0
      %738 = vmatpush2.bf16.msra.mxu0 0
      %739 = vmatprep.subr.bf16.mxu0 0
      %740 = vmatpush2.bf16.msra.mxu0 0
      %741 = vmatprep.mubr.bf16.mxu0 0
      %742 = vmatmul.mubr.bf16.gmra.mxu0 %v650
      %v743 = vpop.f32.mrf.mxu0
      %v744 = vadd.f32 %v659, %v743
      %v745 = vpop.f32.mrf.mxu0
      %v746 = vpop.f32.mrf.mxu0
      %v747 = vadd.f32 %v659, %v746
      %v748 = vpop.f32.mrf.mxu0
      %749 = vmatprep.mubr.bf16.mxu0 0
      %750 = vmatmul.mubr.bf16.gmra.mxu0 %v651
      %v751 = vpop.f32.mrf.mxu0
      %v752 = vadd.f32 %v659, %v751
      %v753 = vpop.f32.mrf.mxu0
      %v754 = vpop.f32.mrf.mxu0
      %v755 = vadd.f32 %v659, %v754
      %v756 = vpop.f32.mrf.mxu0
      %757 = vmatprep.mubr.bf16.mxu0 0
      %758 = vmatmul.mubr.bf16.gmra.mxu0 %v652
      %v759 = vpop.f32.mrf.mxu0
      %v760 = vadd.f32 %v659, %v759
      %v761 = vpop.f32.mrf.mxu0
      %v762 = vpop.f32.mrf.mxu0
      %v763 = vadd.f32 %v659, %v762
      %v764 = vpop.f32.mrf.mxu0
      %765 = vmatprep.mubr.bf16.mxu0 0
      %766 = vmatmul.mubr.bf16.gmra.mxu0 %v653
      %v767 = vpop.f32.mrf.mxu0
      %v768 = vadd.f32 %v659, %v767
      %v769 = vpop.f32.mrf.mxu0
      %v770 = vpop.f32.mrf.mxu0
      %v771 = vadd.f32 %v659, %v770
      %v772 = vpop.f32.mrf.mxu0
      %773 = vdwg.mxu0
      %v774 = vadd.f32 %v449, %v744
      %v775 = vadd.f32 %v450, %v747
      %v776 = vadd.f32 %v451, %v752
      %v777 = vadd.f32 %v452, %v755
      %v778 = vadd.f32 %v453, %v760
      %v779 = vadd.f32 %v454, %v763
      %v780 = vadd.f32 %v455, %v768
      %v781 = vadd.f32 %v456, %v771
      %782 = vst.msk [vmem:[%s278] sm:$0xff] %vm484, %v774
      %783 = vst.msk [vmem:[%s278 + $0x8] sm:$0xff] %vm484, %v775
      %784 = vst.msk [vmem:[%s278 + $0x10] sm:$0xff] %vm484, %v776
      %785 = vst.msk [vmem:[%s278 + $0x18] sm:$0xff] %vm484, %v777
      %786 = vst.msk [vmem:[%s278 + $0x20] sm:$0xff] %vm484, %v778
      %787 = vst.msk [vmem:[%s278 + $0x28] sm:$0xff] %vm484, %v779
      %788 = vst.msk [vmem:[%s278 + $0x30] sm:$0xff] %vm484, %v780
      %789 = vst.msk [vmem:[%s278 + $0x38] sm:$0xff] %vm484, %v781
      %p790 = scmp.lt.s32.totalorder %s18, 1
      %s791 = scalar_select %p790, %s18, 1
      %s792 = smul.addr %s791, 8
      %s793 = smul.addr %s792, 8
      %s794 = scalar_lea.vmem %s7, %s793
      // Predicated region
      $region49: #{_lambda_.14} parent=47 // pred_check
        %p795 = pneg %p188
      $region50: #{_lambda_.14} parent=47 // pred_check_branch
        %797 = sbr.rel (%p795) target = $region52
      $region51: #{_lambda_.14} parent=47 // pred_region
        _
      $region52: #{_lambda_.14} parent=47 // pred_fallthru
        _
    $region48: #{_lambda_.14} parent=5 // pred_fallthru
      _
    %p798 = scmp.le.s32.totalorder 2, %s13
    // Predicated region
    $region53: #{_lambda_.14} parent=5 // pred_check
      %p799 = pneg %p798
    $region54: #{_lambda_.14} parent=5 // pred_check_branch
      %801 = sbr.rel (%p799) target = $region56
    $region55: #{_lambda_.14} parent=5 // pred_region
      %s802 = ssub.s32 %s13, 2
      // Predicated region
      $region57: #{_lambda_.14} parent=55 // pred_check
        %p803 = pneg %p194
      $region58: #{_lambda_.14} parent=55 // pred_check_branch
        %805 = sbr.rel (%p803) target = $region60
      $region59: #{_lambda_.14} parent=55 // pred_region
        %p806 = scmp.lt.s32.totalorder %s19, 1
        %s807 = scalar_select %p806, %s19, 1
        %s808 = smul.addr %s807, 8
        %s809 = smul.addr %s808, 8
        %s810 = scalar_lea.vmem %s7, %s809
      $region60: #{_lambda_.14} parent=55 // pred_fallthru
        _
    $region56: #{_lambda_.14} parent=5 // pred_fallthru
      _
  $region6: #{_lambda_.14} parent=0 // loop_footer
    %s17 = sadd.s32 1, %s13
  $region7: #{_lambda_.14} parent=0 // loop_footer_branch
    %12 = sbr.rel target = $region3
  $region8: #{_lambda_.14} parent=0 // loop_exit
    _

// kernel: _lambda_.15
$region0: #{_lambda_.15}
  #allocation0 [shape = 'u32[]', space=smem, size = 0x4, offset = 0x4, fixed_abs, tag = 'smem constant byte address 0x4 - core index']
  #allocation1 [shape = 'u32[144,128]{1,0:T(1,128)}', space=vmem, size = 0x12000, scoped, tag = 'internal scratch']
  %s0 = inlined_call_operand.vmem [shape: bf16[32,288], index: 0, kind: input, shape index: {}]
  %s1 = inlined_call_operand.vmem [shape: bf16[288,64], index: 1, kind: input, shape index: {}]
  %s2 = inlined_call_operand.vmem [shape: f32[1,64], index: 2, kind: input, shape index: {}]
  %s3 = inlined_call_operand.vmem [shape: f32[32,64], index: 3, kind: output, shape index: {}]
  %s4 = sld [smem:[#allocation0]]
  $region22: #{_lambda_.15} parent=0
    _
  %s6 = ssub.s32 1, %s4
  %s7 = scalar_select 0, %s6, %s4
  // Predicated region
  $region2: #{_lambda_.15} parent=0 // pred_check
    _
  $region3: #{_lambda_.15} parent=0 // pred_check_branch
    %9 = sbr.rel (0) target = $region5
  $region4: #{_lambda_.15} parent=0 // pred_region
    _
  $region5: #{_lambda_.15} parent=0 // pred_fallthru
    _
  // Predicated region
  $region6: #{_lambda_.15} parent=0 // pred_check
    _
  $region7: #{_lambda_.15} parent=0 // pred_check_branch
    %11 = sbr.rel (0) target = $region9
  $region8: #{_lambda_.15} parent=0 // pred_region
    _
  $region9: #{_lambda_.15} parent=0 // pred_fallthru
    _
  // Predicated region
  $region10: #{_lambda_.15} parent=0 // pred_check
    _
  $region11: #{_lambda_.15} parent=0 // pred_check_branch
    %13 = sbr.rel (0) target = $region13
  $region12: #{_lambda_.15} parent=0 // pred_region
    _
  $region13: #{_lambda_.15} parent=0 // pred_fallthru
    _
  %v15 = vld [vmem:[%s0] sm:$0xff]
  %v16 = vld [vmem:[%s0 + $0x8] sm:$0xf]
  %v17 = vld [vmem:[%s0 + $0xc] sm:$0xff]
  %v18 = vld [vmem:[%s0 + $0x14] sm:$0xf]
  %v19 = vld [vmem:[%s0 + $0x18] sm:$0xff]
  %v20 = vld [vmem:[%s0 + $0x20] sm:$0xf]
  %v21 = vld [vmem:[%s0 + $0x24] sm:$0xff]
  %v22 = vld [vmem:[%s0 + $0x2c] sm:$0xf]
  %v23 = vld [vmem:[%s1] sm:$0xf]
  %v24 = vld [vmem:[%s1 + $0x4] sm:$0xf]
  %v25 = vld [vmem:[%s1 + $0x8] sm:$0xf]
  %v26 = vld [vmem:[%s1 + $0xc] sm:$0xf]
  %v27 = vld [vmem:[%s1 + $0x10] sm:$0xf]
  %v28 = vld [vmem:[%s1 + $0x14] sm:$0xf]
  %v29 = vld [vmem:[%s1 + $0x18] sm:$0xf]
  %v30 = vld [vmem:[%s1 + $0x1c] sm:$0xf]
  %v31 = vld [vmem:[%s1 + $0x20] sm:$0xf]
  %v32 = vld [vmem:[%s1 + $0x24] sm:$0xf]
  %v33 = vld [vmem:[%s1 + $0x28] sm:$0xf]
  %v34 = vld [vmem:[%s1 + $0x2c] sm:$0xf]
  %v35 = vld [vmem:[%s1 + $0x30] sm:$0xf]
  %v36 = vld [vmem:[%s1 + $0x34] sm:$0xf]
  %v37 = vld [vmem:[%s1 + $0x38] sm:$0xf]
  %v38 = vld [vmem:[%s1 + $0x3c] sm:$0xf]
  %v39 = vld [vmem:[%s1 + $0x40] sm:$0xf]
  %v40 = vld [vmem:[%s1 + $0x44] sm:$0xf]
  %v41 = vld [vmem:[%s1 + $0x48] sm:$0xf]
  %v42 = vld [vmem:[%s1 + $0x4c] sm:$0xf]
  %v43 = vld [vmem:[%s1 + $0x50] sm:$0xf]
  %v44 = vld [vmem:[%s1 + $0x54] sm:$0xf]
  %v45 = vld [vmem:[%s1 + $0x58] sm:$0xf]
  %v46 = vld [vmem:[%s1 + $0x5c] sm:$0xf]
  %v47 = vld [vmem:[%s1 + $0x60] sm:$0xf]
  %v48 = vld [vmem:[%s1 + $0x64] sm:$0xf]
  %v49 = vld [vmem:[%s1 + $0x68] sm:$0xf]
  %v50 = vld [vmem:[%s1 + $0x6c] sm:$0xf]
  %v51 = vld [vmem:[%s1 + $0x70] sm:$0xf]
  %v52 = vld [vmem:[%s1 + $0x74] sm:$0xf]
  %v53 = vld [vmem:[%s1 + $0x78] sm:$0xf]
  %v54 = vld [vmem:[%s1 + $0x7c] sm:$0xf]
  %v55 = vld [vmem:[%s1 + $0x80] sm:$0xf]
  %v56 = vld [vmem:[%s1 + $0x84] sm:$0xf]
  %v57 = vld [vmem:[%s1 + $0x88] sm:$0xf]
  %v58 = vld [vmem:[%s1 + $0x8c] sm:$0xf]
  %v59 = vld [vmem:[%s2] sm:$0x1]
  %v61 = vlaneseq
  %v62 = vshrl.u32 %v61, 7
  %v63 = vsub.s32 0, %v62
  %v64 = vrot.slane %v59, %v63
  %v74 = vunpack.c.l.b16 %v15
  %v75 = vunpack.c.h.b16 %v15
  %v76 = vunpack.c.l.b16 %v16
  %v77 = vunpack.c.l.b16 %v17
  %v78 = vunpack.c.h.b16 %v17
  %v79 = vunpack.c.l.b16 %v18
  %v80 = vunpack.c.l.b16 %v19
  %v81 = vunpack.c.h.b16 %v19
  %v82 = vunpack.c.l.b16 %v20
  %v83 = vunpack.c.l.b16 %v21
  %v84 = vunpack.c.h.b16 %v21
  %v85 = vunpack.c.l.b16 %v22
  %v86 = vpack.c.b16 %v77, %v74
  %v87 = vpack.c.b16 %v78, %v75
  %v88 = vpack.c.b16 %v79, %v76
  %v89 = vpack.c.b16 %v83, %v80
  %v90 = vpack.c.b16 %v84, %v81
  %v91 = vpack.c.b16 %v85, %v82
  %v132 = vunpack.c.l.b16 %v23
  %v133 = vunpack.c.l.b16 %v24
  %v134 = vunpack.c.l.b16 %v25
  %v135 = vunpack.c.l.b16 %v26
  %v136 = vunpack.c.l.b16 %v27
  %v137 = vunpack.c.l.b16 %v28
  %v138 = vunpack.c.l.b16 %v29
  %v139 = vunpack.c.l.b16 %v30
  %v140 = vunpack.c.l.b16 %v31
  %v141 = vunpack.c.l.b16 %v32
  %v142 = vunpack.c.l.b16 %v33
  %v143 = vunpack.c.l.b16 %v34
  %v144 = vunpack.c.l.b16 %v35
  %v145 = vunpack.c.l.b16 %v36
  %v146 = vunpack.c.l.b16 %v37
  %v147 = vunpack.c.l.b16 %v38
  %v148 = vunpack.c.l.b16 %v39
  %v149 = vunpack.c.l.b16 %v40
  %v150 = vunpack.c.l.b16 %v41
  %v151 = vunpack.c.l.b16 %v42
  %v152 = vunpack.c.l.b16 %v43
  %v153 = vunpack.c.l.b16 %v44
  %v154 = vunpack.c.l.b16 %v45
  %v155 = vunpack.c.l.b16 %v46
  %v156 = vunpack.c.l.b16 %v47
  %v157 = vunpack.c.l.b16 %v48
  %v158 = vunpack.c.l.b16 %v49
  %v159 = vunpack.c.l.b16 %v50
  %v160 = vunpack.c.l.b16 %v51
  %v161 = vunpack.c.l.b16 %v52
  %v162 = vunpack.c.l.b16 %v53
  %v163 = vunpack.c.l.b16 %v54
  %v164 = vunpack.c.l.b16 %v55
  %v165 = vunpack.c.l.b16 %v56
  %v166 = vunpack.c.l.b16 %v57
  %v167 = vunpack.c.l.b16 %v58
  %v168 = vpack.c.b16 %v133, %v132
  %v169 = vpack.c.b16 %v135, %v134
  %v170 = vpack.c.b16 %v137, %v136
  %v171 = vpack.c.b16 %v139, %v138
  %v172 = vpack.c.b16 %v141, %v140
  %v173 = vpack.c.b16 %v143, %v142
  %v174 = vpack.c.b16 %v145, %v144
  %v175 = vpack.c.b16 %v147, %v146
  %v176 = vpack.c.b16 %v149, %v148
  %v177 = vpack.c.b16 %v151, %v150
  %v178 = vpack.c.b16 %v153, %v152
  %v179 = vpack.c.b16 %v155, %v154
  %v180 = vpack.c.b16 %v157, %v156
  %v181 = vpack.c.b16 %v159, %v158
  %v182 = vpack.c.b16 %v161, %v160
  %v183 = vpack.c.b16 %v163, %v162
  %v184 = vpack.c.b16 %v165, %v164
  %v185 = vpack.c.b16 %v167, %v166
  %vm204 = vcmask 261120
  %v206 = vsel %vm204, %v88, 0
  %v209 = vsel %vm204, %v91, 0
  %211 = vmatprep.subr.bf16.mxu0 0
  %212 = vmatpush1.bf16.msra.mxu0 %v175
  %213 = vmatprep.subr.bf16.mxu0 0
  %214 = vmatpush1.bf16.msra.mxu0 %v174
  %215 = vmatprep.subr.bf16.mxu0 0
  %216 = vmatpush1.bf16.msra.mxu0 %v173
  %217 = vmatprep.subr.bf16.mxu0 0
  %218 = vmatpush1.bf16.msra.mxu0 %v172
  %219 = vmatprep.subr.bf16.mxu0 0
  %220 = vmatpush1.bf16.msra.mxu0 %v171
  %221 = vmatprep.subr.bf16.mxu0 0
  %222 = vmatpush1.bf16.msra.mxu0 %v170
  %223 = vmatprep.subr.bf16.mxu0 0
  %224 = vmatpush1.bf16.msra.mxu0 %v169
  %225 = vmatprep.subr.bf16.mxu0 0
  %226 = vmatpush1.bf16.msra.mxu0 %v168
  %227 = vmatprep.subr.bf16.mxu0 0
  %228 = vmatpush2.bf16.msra.mxu0 %v183
  %229 = vmatprep.subr.bf16.mxu0 0
  %230 = vmatpush2.bf16.msra.mxu0 %v182
  %231 = vmatprep.subr.bf16.mxu0 0
  %232 = vmatpush2.bf16.msra.mxu0 %v181
  %233 = vmatprep.subr.bf16.mxu0 0
  %234 = vmatpush2.bf16.msra.mxu0 %v180
  %235 = vmatprep.subr.bf16.mxu0 0
  %236 = vmatpush2.bf16.msra.mxu0 %v179
  %237 = vmatprep.subr.bf16.mxu0 0
  %238 = vmatpush2.bf16.msra.mxu0 %v178
  %239 = vmatprep.subr.bf16.mxu0 0
  %240 = vmatpush2.bf16.msra.mxu0 %v177
  %241 = vmatprep.subr.bf16.mxu0 0
  %242 = vmatpush2.bf16.msra.mxu0 %v176
  %243 = vmatprep.mubr.bf16.mxu0 %v87
  %244 = vmatmul.mubr.bf16.gmra.mxu0 %v86
  %v245 = vpop.f32.mrf.mxu0
  %v246 = vadd.f32 %v64, %v245
  %v247 = vpop.f32.mrf.mxu0
  %v248 = vpop.f32.mrf.mxu0
  %v249 = vadd.f32 %v64, %v248
  %v250 = vpop.f32.mrf.mxu0
  %251 = vmatprep.mubr.bf16.mxu0 %v90
  %252 = vmatmul.mubr.bf16.gmra.mxu0 %v89
  %v253 = vpop.f32.mrf.mxu0
  %v254 = vadd.f32 %v64, %v253
  %v255 = vpop.f32.mrf.mxu0
  %v256 = vpop.f32.mrf.mxu0
  %v257 = vadd.f32 %v64, %v256
  %v258 = vpop.f32.mrf.mxu0
  %259 = vdwg.mxu0
  %260 = vmatprep.subr.bf16.mxu0 0
  %261 = vmatpush1.bf16.msra.mxu0 0
  %262 = vmatprep.subr.bf16.mxu0 0
  %263 = vmatpush1.bf16.msra.mxu0 0
  %264 = vmatprep.subr.bf16.mxu0 0
  %265 = vmatpush1.bf16.msra.mxu0 0
  %266 = vmatprep.subr.bf16.mxu0 0
  %267 = vmatpush1.bf16.msra.mxu0 0
  %268 = vmatprep.subr.bf16.mxu0 0
  %269 = vmatpush1.bf16.msra.mxu0 0
  %270 = vmatprep.subr.bf16.mxu0 0
  %271 = vmatpush1.bf16.msra.mxu0 0
  %272 = vmatprep.subr.bf16.mxu0 0
  %273 = vmatpush1.bf16.msra.mxu0 %v185
  %274 = vmatprep.subr.bf16.mxu0 0
  %275 = vmatpush1.bf16.msra.mxu0 %v184
  %276 = vmatprep.subr.bf16.mxu0 0
  %277 = vmatpush2.bf16.msra.mxu0 0
  %278 = vmatprep.subr.bf16.mxu0 0
  %279 = vmatpush2.bf16.msra.mxu0 0
  %280 = vmatprep.subr.bf16.mxu0 0
  %281 = vmatpush2.bf16.msra.mxu0 0
  %282 = vmatprep.subr.bf16.mxu0 0
  %283 = vmatpush2.bf16.msra.mxu0 0
  %284 = vmatprep.subr.bf16.mxu0 0
  %285 = vmatpush2.bf16.msra.mxu0 0
  %286 = vmatprep.subr.bf16.mxu0 0
  %287 = vmatpush2.bf16.msra.mxu0 0
  %288 = vmatprep.subr.bf16.mxu0 0
  %289 = vmatpush2.bf16.msra.mxu0 0
  %290 = vmatprep.subr.bf16.mxu0 0
  %291 = vmatpush2.bf16.msra.mxu0 0
  %292 = vmatprep.mubr.bf16.mxu0 0
  %293 = vmatmul.mubr.bf16.gmra.mxu0 %v206
  %v294 = vpop.f32.mrf.mxu0
  %v295 = vadd.f32 %v246, %v294
  %v296 = vpop.f32.mrf.mxu0
  %v297 = vpop.f32.mrf.mxu0
  %v298 = vadd.f32 %v249, %v297
  %v299 = vpop.f32.mrf.mxu0
  %300 = vmatprep.mubr.bf16.mxu0 0
  %301 = vmatmul.mubr.bf16.gmra.mxu0 %v209
  %v302 = vpop.f32.mrf.mxu0
  %v303 = vadd.f32 %v254, %v302
  %v304 = vpop.f32.mrf.mxu0
  %v305 = vpop.f32.mrf.mxu0
  %v306 = vadd.f32 %v257, %v305
  %v307 = vpop.f32.mrf.mxu0
  %308 = vdwg.mxu0
  %vm309 = vcmask 523264
  %310 = vst.msk [vmem:[%s3] sm:$0xff] %vm309, %v295
  %311 = vst.msk [vmem:[%s3 + $0x8] sm:$0xff] %vm309, %v298
  %312 = vst.msk [vmem:[%s3 + $0x10] sm:$0xff] %vm309, %v303
  %313 = vst.msk [vmem:[%s3 + $0x18] sm:$0xff] %vm309, %v306
  // Predicated region
  $region14: #{_lambda_.15} parent=0 // pred_check
    _
  $region15: #{_lambda_.15} parent=0 // pred_check_branch
    %315 = sbr.rel (0) target = $region17
  $region16: #{_lambda_.15} parent=0 // pred_region
    _
  $region17: #{_lambda_.15} parent=0 // pred_fallthru
    _
  // Predicated region
  $region18: #{_lambda_.15} parent=0 // pred_check
    _
  $region19: #{_lambda_.15} parent=0 // pred_check_branch
    %317 = sbr.rel (0) target = $region21
  $region20: #{_lambda_.15} parent=0 // pred_region
    _
  $region21: #{_lambda_.15} parent=0 // pred_fallthru
    _

// kernel: _lambda_.16
$region0: #{_lambda_.16}
  #allocation0 [shape = 'u32[]', space=smem, size = 0x4, offset = 0x4, fixed_abs, tag = 'smem constant byte address 0x4 - core index']
  #allocation1 [shape = 'u32[144,128]{1,0:T(1,128)}', space=vmem, size = 0x12000, scoped, tag = 'internal scratch']
  %s0 = inlined_call_operand.vmem [shape: f32[2,16,64], index: 0, kind: input, shape index: {}]
  %s1 = inlined_call_operand.vmem [shape: f32[16,16], index: 1, kind: input, shape index: {}]
  %s2 = inlined_call_operand.vmem [shape: f32[1,64], index: 2, kind: input, shape index: {}]
  %s3 = inlined_call_operand.vmem [shape: bf16[64,256], index: 3, kind: input, shape index: {}]
  %s4 = inlined_call_operand.vmem [shape: f32[1,256], index: 4, kind: input, shape index: {}]
  %s5 = inlined_call_operand.vmem [shape: bf16[256,64], index: 5, kind: input, shape index: {}]
  %s6 = inlined_call_operand.vmem [shape: f32[1,64], index: 6, kind: input, shape index: {}]
  %s7 = inlined_call_operand.vmem [shape: f32[2,16,64], index: 7, kind: output, shape index: {}]
  %s8 = sld [smem:[#allocation0]]
  $region61: #{_lambda_.16} parent=0
    _
  %s10 = ssub.s32 1, %s8
  %s11 = scalar_select 0, %s10, %s8
  loop: start=0, step=1, limit=4
  $region2: #{_lambda_.16} parent=0 // loop_pre_header
    _
  $region3: #{_lambda_.16} parent=0 // loop_header
    %s13 = sphi 0, %s17
    %p14 = scmp.ge.s32.totalorder %s13, 4
    %s23 = sphi 0, %s25
    %s26 = sphi 0, %s23
    %s27 = sphi 0, %s26
    %s43 = sphi 0, %s27
    %s47 = sphi 0, %s47
    %s49 = sphi 0, %s47
    %s50 = sphi 0, %s49
    %s64 = sphi 0, %s50
    %s68 = sphi 0, %s68
    %s70 = sphi 0, %s68
    %s71 = sphi 0, %s70
    %s85 = sphi 0, %s71
    %s89 = sphi 0, %s89
    %s91 = sphi 0, %s89
    %s92 = sphi 0, %s91
    %s106 = sphi 0, %s92
    %s110 = sphi 0, %s110
    %s112 = sphi 0, %s110
    %s113 = sphi 0, %s112
    %s127 = sphi 0, %s113
    %s131 = sphi 0, %s131
    %s133 = sphi 0, %s131
    %s134 = sphi 0, %s133
    %s148 = sphi 0, %s134
    %s152 = sphi 0, %s152
    %s154 = sphi 0, %s152
    %s155 = sphi 0, %s154
    %s169 = sphi 0, %s155
    %s175 = sphi 0, %s177
    %s178 = sphi 0, %s175
    %s179 = sphi 0, %s178
    %s195 = sphi 0, %s179
  $region4: #{_lambda_.16} parent=0 // loop_header_branch
    %16 = sbr.rel (%p14) target = $region8
  $region5: #{_lambda_.16} parent=0 // loop_body
    %s18 = ssub.s32 %s13, 1
    %s19 = ssub.s32 %s13, 2
    %s20 = sadd.s32 %s13, 1
    %s21 = ssub.s32 %s13, %s20
    %p22 = scmp.eq.s32.totalorder %s21, 0
    %s24 = sadd.s32 %s23, 1
    %s25 = scalar_select %p22, %s23, %s24
    %p28 = pneg %p22
    %p29 = scmp.eq.s32.totalorder %s13, 1
    %p30 = por %p28, %p29
    %p31 = scmp.ne.s32.totalorder %s23, %s26
    %p32 = scmp.eq.s32.totalorder %s13, 0
    %p33 = por %p31, %p32
    %p34 = scmp.ne.s32.totalorder %s23, %s26
    %p35 = scmp.eq.s32.totalorder %s18, 1
    %p36 = por %p34, %p35
    %p37 = scmp.ne.s32.totalorder %s26, %s27
    %p38 = scmp.eq.s32.totalorder %s18, 0
    %p39 = por %p37, %p38
    %p40 = scmp.ne.s32.totalorder %s26, %s27
    %p41 = scmp.eq.s32.totalorder %s19, 1
    %p42 = por %p40, %p41
    %p44 = scmp.ne.s32.totalorder %s27, %s43
    %p45 = scmp.eq.s32.totalorder %s19, 0
    %p46 = por %p44, %p45
    %s48 = sadd.s32 %s47, 1
    %p51 = scmp.eq.s32.totalorder %s13, 1
    %p52 = scmp.ne.s32.totalorder %s47, %s49
    %p53 = scmp.eq.s32.totalorder %s13, 0
    %p54 = por %p52, %p53
    %p55 = scmp.ne.s32.totalorder %s47, %s49
    %p56 = scmp.eq.s32.totalorder %s18, 1
    %p57 = por %p55, %p56
    %p58 = scmp.ne.s32.totalorder %s49, %s50
    %p59 = scmp.eq.s32.totalorder %s18, 0
    %p60 = por %p58, %p59
    %p61 = scmp.ne.s32.totalorder %s49, %s50
    %p62 = scmp.eq.s32.totalorder %s19, 1
    %p63 = por %p61, %p62
    %p65 = scmp.ne.s32.totalorder %s50, %s64
    %p66 = scmp.eq.s32.totalorder %s19, 0
    %p67 = por %p65, %p66
    %s69 = sadd.s32 %s68, 1
    %p72 = scmp.eq.s32.totalorder %s13, 1
    %p73 = scmp.ne.s32.totalorder %s68, %s70
    %p74 = scmp.eq.s32.totalorder %s13, 0
    %p75 = por %p73, %p74
    %p76 = scmp.ne.s32.totalorder %s68, %s70
    %p77 = scmp.eq.s32.totalorder %s18, 1
    %p78 = por %p76, %p77
    %p79 = scmp.ne.s32.totalorder %s70, %s71
    %p80 = scmp.eq.s32.totalorder %s18, 0
    %p81 = por %p79, %p80
    %p82 = scmp.ne.s32.totalorder %s70, %s71
    %p83 = scmp.eq.s32.totalorder %s19, 1
    %p84 = por %p82, %p83
    %p86 = scmp.ne.s32.totalorder %s71, %s85
    %p87 = scmp.eq.s32.totalorder %s19, 0
    %p88 = por %p86, %p87
    %s90 = sadd.s32 %s89, 1
    %p93 = scmp.eq.s32.totalorder %s13, 1
    %p94 = scmp.ne.s32.totalorder %s89, %s91
    %p95 = scmp.eq.s32.totalorder %s13, 0
    %p96 = por %p94, %p95
    %p97 = scmp.ne.s32.totalorder %s89, %s91
    %p98 = scmp.eq.s32.totalorder %s18, 1
    %p99 = por %p97, %p98
    %p100 = scmp.ne.s32.totalorder %s91, %s92
    %p101 = scmp.eq.s32.totalorder %s18, 0
    %p102 = por %p100, %p101
    %p103 = scmp.ne.s32.totalorder %s91, %s92
    %p104 = scmp.eq.s32.totalorder %s19, 1
    %p105 = por %p103, %p104
    %p107 = scmp.ne.s32.totalorder %s92, %s106
    %p108 = scmp.eq.s32.totalorder %s19, 0
    %p109 = por %p107, %p108
    %s111 = sadd.s32 %s110, 1
    %p114 = scmp.eq.s32.totalorder %s13, 1
    %p115 = scmp.ne.s32.totalorder %s110, %s112
    %p116 = scmp.eq.s32.totalorder %s13, 0
    %p117 = por %p115, %p116
    %p118 = scmp.ne.s32.totalorder %s110, %s112
    %p119 = scmp.eq.s32.totalorder %s18, 1
    %p120 = por %p118, %p119
    %p121 = scmp.ne.s32.totalorder %s112, %s113
    %p122 = scmp.eq.s32.totalorder %s18, 0
    %p123 = por %p121, %p122
    %p124 = scmp.ne.s32.totalorder %s112, %s113
    %p125 = scmp.eq.s32.totalorder %s19, 1
    %p126 = por %p124, %p125
    %p128 = scmp.ne.s32.totalorder %s113, %s127
    %p129 = scmp.eq.s32.totalorder %s19, 0
    %p130 = por %p128, %p129
    %s132 = sadd.s32 %s131, 1
    %p135 = scmp.eq.s32.totalorder %s13, 1
    %p136 = scmp.ne.s32.totalorder %s131, %s133
    %p137 = scmp.eq.s32.totalorder %s13, 0
    %p138 = por %p136, %p137
    %p139 = scmp.ne.s32.totalorder %s131, %s133
    %p140 = scmp.eq.s32.totalorder %s18, 1
    %p141 = por %p139, %p140
    %p142 = scmp.ne.s32.totalorder %s133, %s134
    %p143 = scmp.eq.s32.totalorder %s18, 0
    %p144 = por %p142, %p143
    %p145 = scmp.ne.s32.totalorder %s133, %s134
    %p146 = scmp.eq.s32.totalorder %s19, 1
    %p147 = por %p145, %p146
    %p149 = scmp.ne.s32.totalorder %s134, %s148
    %p150 = scmp.eq.s32.totalorder %s19, 0
    %p151 = por %p149, %p150
    %s153 = sadd.s32 %s152, 1
    %p156 = scmp.eq.s32.totalorder %s13, 1
    %p157 = scmp.ne.s32.totalorder %s152, %s154
    %p158 = scmp.eq.s32.totalorder %s13, 0
    %p159 = por %p157, %p158
    %p160 = scmp.ne.s32.totalorder %s152, %s154
    %p161 = scmp.eq.s32.totalorder %s18, 1
    %p162 = por %p160, %p161
    %p163 = scmp.ne.s32.totalorder %s154, %s155
    %p164 = scmp.eq.s32.totalorder %s18, 0
    %p165 = por %p163, %p164
    %p166 = scmp.ne.s32.totalorder %s154, %s155
    %p167 = scmp.eq.s32.totalorder %s19, 1
    %p168 = por %p166, %p167
    %p170 = scmp.ne.s32.totalorder %s155, %s169
    %p171 = scmp.eq.s32.totalorder %s19, 0
    %p172 = por %p170, %p171
    %s173 = ssub.s32 %s13, %s20
    %p174 = scmp.eq.s32.totalorder %s173, 0
    %s176 = sadd.s32 %s175, 1
    %s177 = scalar_select %p174, %s175, %s176
    %p180 = pneg %p174
    %p181 = scmp.eq.s32.totalorder %s13, 1
    %p182 = por %p180, %p181
    %p183 = scmp.ne.s32.totalorder %s175, %s178
    %p184 = scmp.eq.s32.totalorder %s13, 0
    %p185 = por %p183, %p184
    %p186 = scmp.ne.s32.totalorder %s175, %s178
    %p187 = scmp.eq.s32.totalorder %s18, 1
    %p188 = por %p186, %p187
    %p189 = scmp.ne.s32.totalorder %s178, %s179
    %p190 = scmp.eq.s32.totalorder %s18, 0
    %p191 = por %p189, %p190
    %p192 = scmp.ne.s32.totalorder %s178, %s179
    %p193 = scmp.eq.s32.totalorder %s19, 1
    %p194 = por %p192, %p193
    %p196 = scmp.ne.s32.totalorder %s179, %s195
    %p197 = scmp.eq.s32.totalorder %s19, 0
    %p198 = por %p196, %p197
    %p199 = scmp.le.s32.totalorder 1, %s13
    %p200 = scmp.lt.s32.totalorder %s13, 3
    %p201 = pnand %p199, %p200
    %p202 = pneg %p201
    // Predicated region
    $region9: #{_lambda_.16} parent=5 // pred_check
      _
    $region10: #{_lambda_.16} parent=5 // pred_check_branch
      %204 = sbr.rel (%p201) target = $region12
    $region11: #{_lambda_.16} parent=5 // pred_region
      %s205 = ssub.s32 %s13, 1
      // Predicated region
      $region13: #{_lambda_.16} parent=11 // pred_check
        %p206 = pneg %p60
      $region14: #{_lambda_.16} parent=11 // pred_check_branch
        %208 = sbr.rel (%p206) target = $region16
      $region15: #{_lambda_.16} parent=11 // pred_region
        _
      $region16: #{_lambda_.16} parent=11 // pred_fallthru
        _
      // Predicated region
      $region17: #{_lambda_.16} parent=11 // pred_check
        %p209 = pneg %p81
      $region18: #{_lambda_.16} parent=11 // pred_check_branch
        %211 = sbr.rel (%p209) target = $region20
      $region19: #{_lambda_.16} parent=11 // pred_region
        _
      $region20: #{_lambda_.16} parent=11 // pred_fallthru
        _
      // Predicated region
      $region21: #{_lambda_.16} parent=11 // pred_check
        %p212 = pneg %p102
      $region22: #{_lambda_.16} parent=11 // pred_check_branch
        %214 = sbr.rel (%p212) target = $region24
      $region23: #{_lambda_.16} parent=11 // pred_region
        _
      $region24: #{_lambda_.16} parent=11 // pred_fallthru
        _
      // Predicated region
      $region25: #{_lambda_.16} parent=11 // pred_check
        %p215 = pneg %p123
      $region26: #{_lambda_.16} parent=11 // pred_check_branch
        %217 = sbr.rel (%p215) target = $region28
      $region27: #{_lambda_.16} parent=11 // pred_region
        _
      $region28: #{_lambda_.16} parent=11 // pred_fallthru
        _
      // Predicated region
      $region29: #{_lambda_.16} parent=11 // pred_check
        %p218 = pneg %p144
      $region30: #{_lambda_.16} parent=11 // pred_check_branch
        %220 = sbr.rel (%p218) target = $region32
      $region31: #{_lambda_.16} parent=11 // pred_region
        _
      $region32: #{_lambda_.16} parent=11 // pred_fallthru
        _
      // Predicated region
      $region33: #{_lambda_.16} parent=11 // pred_check
        %p221 = pneg %p165
      $region34: #{_lambda_.16} parent=11 // pred_check_branch
        %223 = sbr.rel (%p221) target = $region36
      $region35: #{_lambda_.16} parent=11 // pred_region
        _
      $region36: #{_lambda_.16} parent=11 // pred_fallthru
        _
    $region12: #{_lambda_.16} parent=5 // pred_fallthru
      _
    %p224 = scmp.lt.s32.totalorder %s13, 2
    // Predicated region
    $region37: #{_lambda_.16} parent=5 // pred_check
      %p225 = pneg %p224
    $region38: #{_lambda_.16} parent=5 // pred_check_branch
      %227 = sbr.rel (%p225) target = $region40
    $region39: #{_lambda_.16} parent=5 // pred_region
      // Predicated region
      $region41: #{_lambda_.16} parent=39 // pred_check
        %p228 = pneg %p33
      $region42: #{_lambda_.16} parent=39 // pred_check_branch
        %230 = sbr.rel (%p228) target = $region44
      $region43: #{_lambda_.16} parent=39 // pred_region
        %p231 = scmp.lt.s32.totalorder %s13, 1
        %s232 = scalar_select %p231, %s13, 1
        %s233 = smul.addr %s232, 2
        %s234 = smul.addr %s233, 8
        %s235 = scalar_lea.vmem %s0, %s234
      $region44: #{_lambda_.16} parent=39 // pred_fallthru
        _
    $region40: #{_lambda_.16} parent=5 // pred_fallthru
      _
    %p236 = scmp.le.s32.totalorder 1, %s13
    %p237 = scmp.lt.s32.totalorder %s13, 3
    %p238 = pnand %p236, %p237
    %p239 = pneg %p238
    // Predicated region
    $region45: #{_lambda_.16} parent=5 // pred_check
      _
    $region46: #{_lambda_.16} parent=5 // pred_check_branch
      %241 = sbr.rel (%p238) target = $region48
    $region47: #{_lambda_.16} parent=5 // pred_region
      %s242 = ssub.s32 %s13, 1
      %p243 = scmp.lt.s32.totalorder %s18, 1
      %s244 = scalar_select %p243, %s18, 1
      %s245 = smul.addr %s244, 2
      %s246 = smul.addr %s245, 8
      %s247 = scalar_lea.vmem %s0, %s246
      %p248 = pneg %p39
      %p249 = pneg %p36
      %p250 = pneg %p60
      %p251 = pneg %p57
      %p252 = pneg %p81
      %p253 = pneg %p78
      %p254 = pneg %p102
      %p255 = pneg %p99
      %p256 = pneg %p123
      %p257 = pneg %p120
      %p258 = pneg %p144
      %p259 = pneg %p141
      %p260 = pneg %p165
      %p261 = pneg %p162
      %p262 = pneg %p191
      %p263 = pneg %p188
      %p264 = scmp.lt.s32.totalorder %s18, 1
      %s265 = scalar_select %p264, %s18, 1
      %s266 = smul.addr %s265, 2
      %s267 = smul.addr %s266, 8
      %s268 = scalar_lea.vmem %s7, %s267
      %p269 = scmp.lt.s32.totalorder %s18, 1
      %s270 = scalar_select %p269, %s18, 1
      %s271 = smul.addr %s270, 2
      %s272 = smul.addr %s271, 8
      %s273 = scalar_lea.vmem %s0, %s272
      %p274 = scmp.lt.s32.totalorder %s18, 1
      %s275 = scalar_select %p274, %s18, 1
      %s276 = smul.addr %s275, 2
      %s277 = smul.addr %s276, 8
      %s278 = scalar_lea.vmem %s7, %s277
      %v280 = vld [vmem:[%s273] sm:$0xff]
      %v281 = vld [vmem:[%s273 + $0x8] sm:$0xff]
      %v282 = vld [vmem:[%s1] sm:$0xff]
      %v283 = vld [vmem:[%s1 + $0x8] sm:$0xff]
      %vm284 = vcmask 130048
      %v286 = vsel %vm284, %v282, 0
      %v289 = vsel %vm284, %v283, 0
      %291 = vmatprep.subr.mxu0 0.0
      %292 = vmatpush1.msra.mxu0 0.0
      %293 = vmatprep.subr.mxu0 0.0
      %294 = vmatpush1.msra.mxu0 0.0
      %295 = vmatprep.subr.mxu0 0.0
      %296 = vmatpush1.msra.mxu0 0.0
      %297 = vmatprep.subr.mxu0 0.0
      %298 = vmatpush1.msra.mxu0 0.0
      %299 = vmatprep.subr.mxu0 0.0
      %300 = vmatpush1.msra.mxu0 0.0
      %301 = vmatprep.subr.mxu0 0.0
      %302 = vmatpush1.msra.mxu0 0.0
      %303 = vmatprep.subr.mxu0 0.0
      %304 = vmatpush1.msra.mxu0 0.0
      %305 = vmatprep.subr.mxu0 0.0
      %306 = vmatpush1.msra.mxu0 0.0
      %307 = vmatprep.subr.mxu0 0.0
      %308 = vmatpush1.msra.mxu0 0.0
      %309 = vmatprep.subr.mxu0 0.0
      %310 = vmatpush1.msra.mxu0 0.0
      %311 = vmatprep.subr.mxu0 0.0
      %312 = vmatpush1.msra.mxu0 0.0
      %313 = vmatprep.subr.mxu0 0.0
      %314 = vmatpush1.msra.mxu0 0.0
      %315 = vmatprep.subr.mxu0 0.0
      %316 = vmatpush1.msra.mxu0 0.0
      %317 = vmatprep.subr.mxu0 0.0
      %318 = vmatpush1.msra.mxu0 0.0
      %319 = vmatprep.subr.mxu0 0.0
      %320 = vmatpush1.msra.mxu0 %v281
      %321 = vmatprep.subr.mxu0 0.0
      %322 = vmatpush1.msra.mxu0 %v280
      %323 = vmatprep.subr.mxu0 0.0
      %324 = vmatpush2.msra.mxu0 0.0
      %325 = vmatprep.subr.mxu0 0.0
      %326 = vmatpush2.msra.mxu0 0.0
      %327 = vmatprep.subr.mxu0 0.0
      %328 = vmatpush2.msra.mxu0 0.0
      %329 = vmatprep.subr.mxu0 0.0
      %330 = vmatpush2.msra.mxu0 0.0
      %331 = vmatprep.subr.mxu0 0.0
      %332 = vmatpush2.msra.mxu0 0.0
      %333 = vmatprep.subr.mxu0 0.0
      %334 = vmatpush2.msra.mxu0 0.0
      %335 = vmatprep.subr.mxu0 0.0
      %336 = vmatpush2.msra.mxu0 0.0
      %337 = vmatprep.subr.mxu0 0.0
      %338 = vmatpush2.msra.mxu0 0.0
      %339 = vmatprep.subr.mxu0 0.0
      %340 = vmatpush2.msra.mxu0 0.0
      %341 = vmatprep.subr.mxu0 0.0
      %342 = vmatpush2.msra.mxu0 0.0
      %343 = vmatprep.subr.mxu0 0.0
      %344 = vmatpush2.msra.mxu0 0.0
      %345 = vmatprep.subr.mxu0 0.0
      %346 = vmatpush2.msra.mxu0 0.0
      %347 = vmatprep.subr.mxu0 0.0
      %348 = vmatpush2.msra.mxu0 0.0
      %349 = vmatprep.subr.mxu0 0.0
      %350 = vmatpush2.msra.mxu0 0.0
      %351 = vmatprep.subr.mxu0 0.0
      %352 = vmatpush2.msra.mxu0 0.0
      %353 = vmatprep.subr.mxu0 0.0
      %354 = vmatpush2.msra.mxu0 0.0
      %355 = vmatprep.mubr.f32.mxu0 0.0
      %356 = vmatmul.mubr.f32.gmra.mxu0 %v286
      %v357 = vpop.f32.mrf.mxu0
      %v358 = vadd.f32 0.0, %v357
      %v359 = vpop.f32.mrf.mxu0
      %360 = vmatprep.mubr.f32.mxu0 0.0
      %361 = vmatmul.mubr.f32.gmra.mxu0 %v289
      %v362 = vpop.f32.mrf.mxu0
      %v363 = vadd.f32 0.0, %v362
      %v364 = vpop.f32.mrf.mxu0
      %365 = vdwg.mxu0
      %v366 = vld [vmem:[%s2] sm:$0x1]
      %v367 = vsub.f32 %v358, %v280
      %v368 = vsub.f32 %v363, %v281
      %v370 = vlaneseq
      %v371 = vshrl.u32 %v370, 7
      %v372 = vsub.s32 0, %v371
      %v373 = vrot.slane %v366, %v372
      %v375 = vmul.f32 %v373, %v367
      %v376 = vmul.f32 %v373, %v368
      %v377 = vadd.f32 %v280, %v375
      %v378 = vadd.f32 %v281, %v376
      %v379 = vld [vmem:[%s3] sm:$0xff]
      %v380 = vld [vmem:[%s3 + $0x8] sm:$0xff]
      %v381 = vld [vmem:[%s3 + $0x10] sm:$0xff]
      %v382 = vld [vmem:[%s3 + $0x18] sm:$0xff]
      %v383 = vld [vmem:[%s3 + $0x20] sm:$0xff]
      %v384 = vld [vmem:[%s3 + $0x28] sm:$0xff]
      %v385 = vld [vmem:[%s3 + $0x30] sm:$0xff]
      %v386 = vld [vmem:[%s3 + $0x38] sm:$0xff]
      %v387 = vpack.c.bf16 %v378, %v377
      %v388 = vld [vmem:[%s4] sm:$0x3]
      %v390 = vlaneseq
      %v391 = vshrl.u32 %v390, 7
      %v392 = vsub.s32 0, %v391
      %v393 = vrot.slane %v388, %v392
      %v394 = vlaneseq
      %v395 = vshrl.u32 %v394, 7
      %v396 = vsub.s32 1, %v395
      %v397 = vrot.slane %v388, %v396
      %v408 = vunpack.c.l.b16 %v379
      %v409 = vunpack.c.h.b16 %v379
      %v410 = vunpack.c.l.b16 %v380
      %v411 = vunpack.c.h.b16 %v380
      %v412 = vunpack.c.l.b16 %v381
      %v413 = vunpack.c.h.b16 %v381
      %v414 = vunpack.c.l.b16 %v382
      %v415 = vunpack.c.h.b16 %v382
      %v416 = vunpack.c.l.b16 %v383
      %v417 = vunpack.c.h.b16 %v383
      %v418 = vunpack.c.l.b16 %v384
      %v419 = vunpack.c.h.b16 %v384
      %v420 = vunpack.c.l.b16 %v385
      %v421 = vunpack.c.h.b16 %v385
      %v422 = vunpack.c.l.b16 %v386
      %v423 = vunpack.c.h.b16 %v386
      %v424 = vpack.c.b16 %v410, %v408
      %v425 = vpack.c.b16 %v411, %v409
      %v426 = vpack.c.b16 %v414, %v412
      %v427 = vpack.c.b16 %v415, %v413
      %v428 = vpack.c.b16 %v418, %v416
      %v429 = vpack.c.b16 %v419, %v417
      %v430 = vpack.c.b16 %v422, %v420
      %v431 = vpack.c.b16 %v423, %v421
      %vm440 = vcmask 523264
      %v442 = vsel %vm440, %v387, 0
      %444 = vmatprep.subr.bf16.mxu0 0
      %445 = vmatpush1.bf16.msra.mxu0 0
      %446 = vmatprep.subr.bf16.mxu0 0
      %447 = vmatpush1.bf16.msra.mxu0 0
      %448 = vmatprep.subr.bf16.mxu0 0
      %449 = vmatpush1.bf16.msra.mxu0 0
      %450 = vmatprep.subr.bf16.mxu0 0
      %451 = vmatpush1.bf16.msra.mxu0 0
      %452 = vmatprep.subr.bf16.mxu0 %v431
      %453 = vmatpush1.bf16.msra.mxu0 %v430
      %454 = vmatprep.subr.bf16.mxu0 %v429
      %455 = vmatpush1.bf16.msra.mxu0 %v428
      %456 = vmatprep.subr.bf16.mxu0 %v427
      %457 = vmatpush1.bf16.msra.mxu0 %v426
      %458 = vmatprep.subr.bf16.mxu0 %v425
      %459 = vmatpush1.bf16.msra.mxu0 %v424
      %460 = vmatprep.subr.bf16.mxu0 0
      %461 = vmatpush2.bf16.msra.mxu0 0
      %462 = vmatprep.subr.bf16.mxu0 0
      %463 = vmatpush2.bf16.msra.mxu0 0
      %464 = vmatprep.subr.bf16.mxu0 0
      %465 = vmatpush2.bf16.msra.mxu0 0
      %466 = vmatprep.subr.bf16.mxu0 0
      %467 = vmatpush2.bf16.msra.mxu0 0
      %468 = vmatprep.subr.bf16.mxu0 0
      %469 = vmatpush2.bf16.msra.mxu0 0
      %470 = vmatprep.subr.bf16.mxu0 0
      %471 = vmatpush2.bf16.msra.mxu0 0
      %472 = vmatprep.subr.bf16.mxu0 0
      %473 = vmatpush2.bf16.msra.mxu0 0
      %474 = vmatprep.subr.bf16.mxu0 0
      %475 = vmatpush2.bf16.msra.mxu0 0
      %476 = vmatprep.mubr.bf16.mxu0 0
      %477 = vmatmul.mubr.bf16.gmra.mxu0 %v442
      %v478 = vpop.f32.mrf.mxu0
      %v479 = vadd.f32 %v393, %v478
      %v480 = vpop.f32.mrf.mxu0
      %v481 = vadd.f32 %v397, %v480
      %v482 = vpop.f32.mrf.mxu0
      %v483 = vadd.f32 %v393, %v482
      %v484 = vpop.f32.mrf.mxu0
      %v485 = vadd.f32 %v397, %v484
      %486 = vdwg.mxu0
      %v487 = vmul.f32 %v479, 0.5
      %v488 = vmul.f32 %v481, 0.5
      %v489 = vmul.f32 %v483, 0.5
      %v490 = vmul.f32 %v485, 0.5
      %v491 = vmul.f32 %v479, 0.044715
      %v492 = vmul.f32 %v481, 0.044715
      %v493 = vmul.f32 %v483, 0.044715
      %v494 = vmul.f32 %v485, 0.044715
      %v495 = vmul.f32 %v491, %v479
      %v496 = vmul.f32 %v492, %v481
      %v497 = vmul.f32 %v493, %v483
      %v498 = vmul.f32 %v494, %v485
      %v499 = vmul.f32 %v495, %v479
      %v500 = vmul.f32 %v496, %v481
      %v501 = vmul.f32 %v497, %v483
      %v502 = vmul.f32 %v498, %v485
      %v503 = vadd.f32 %v479, %v499
      %v504 = vadd.f32 %v481, %v500
      %v505 = vadd.f32 %v483, %v501
      %v506 = vadd.f32 %v485, %v502
      %v507 = vmul.f32 %v503, 0.7978846
      %v508 = vmul.f32 %v504, 0.7978846
      %v509 = vmul.f32 %v505, 0.7978846
      %v510 = vmul.f32 %v506, 0.7978846
      %v511 = vtanh.pop %v507
      %v512 = vtanh.pop %v508
      %v513 = vtanh.pop %v509
      %v514 = vtanh.pop %v510
      %v515 = vadd.f32 %v511, 1.0
      %v516 = vadd.f32 %v512, 1.0
      %v517 = vadd.f32 %v513, 1.0
      %v518 = vadd.f32 %v514, 1.0
      %v519 = vmul.f32 %v487, %v515
      %v520 = vmul.f32 %v488, %v516
      %v521 = vmul.f32 %v489, %v517
      %v522 = vmul.f32 %v490, %v518
      %v523 = vld [vmem:[%s5] sm:$0xf]
      %v524 = vld [vmem:[%s5 + $0x4] sm:$0xf]
      %v525 = vld [vmem:[%s5 + $0x8] sm:$0xf]
      %v526 = vld [vmem:[%s5 + $0xc] sm:$0xf]
      %v527 = vld [vmem:[%s5 + $0x10] sm:$0xf]
      %v528 = vld [vmem:[%s5 + $0x14] sm:$0xf]
      %v529 = vld [vmem:[%s5 + $0x18] sm:$0xf]
      %v530 = vld [vmem:[%s5 + $0x1c] sm:$0xf]
      %v531 = vld [vmem:[%s5 + $0x20] sm:$0xf]
      %v532 = vld [vmem:[%s5 + $0x24] sm:$0xf]
      %v533 = vld [vmem:[%s5 + $0x28] sm:$0xf]
      %v534 = vld [vmem:[%s5 + $0x2c] sm:$0xf]
      %v535 = vld [vmem:[%s5 + $0x30] sm:$0xf]
      %v536 = vld [vmem:[%s5 + $0x34] sm:$0xf]
      %v537 = vld [vmem:[%s5 + $0x38] sm:$0xf]
      %v538 = vld [vmem:[%s5 + $0x3c] sm:$0xf]
      %v539 = vld [vmem:[%s5 + $0x40] sm:$0xf]
      %v540 = vld [vmem:[%s5 + $0x44] sm:$0xf]
      %v541 = vld [vmem:[%s5 + $0x48] sm:$0xf]
      %v542 = vld [vmem:[%s5 + $0x4c] sm:$0xf]
      %v543 = vld [vmem:[%s5 + $0x50] sm:$0xf]
      %v544 = vld [vmem:[%s5 + $0x54] sm:$0xf]
      %v545 = vld [vmem:[%s5 + $0x58] sm:$0xf]
      %v546 = vld [vmem:[%s5 + $0x5c] sm:$0xf]
      %v547 = vld [vmem:[%s5 + $0x60] sm:$0xf]
      %v548 = vld [vmem:[%s5 + $0x64] sm:$0xf]
      %v549 = vld [vmem:[%s5 + $0x68] sm:$0xf]
      %v550 = vld [vmem:[%s5 + $0x6c] sm:$0xf]
      %v551 = vld [vmem:[%s5 + $0x70] sm:$0xf]
      %v552 = vld [vmem:[%s5 + $0x74] sm:$0xf]
      %v553 = vld [vmem:[%s5 + $0x78] sm:$0xf]
      %v554 = vld [vmem:[%s5 + $0x7c] sm:$0xf]
      %v555 = vpack.c.bf16 %v521, %v519
      %v556 = vpack.c.bf16 %v522, %v520
      %v557 = vld [vmem:[%s6] sm:$0x1]
      %v559 = vlaneseq
      %v560 = vshrl.u32 %v559, 7
      %v561 = vsub.s32 0, %v560
      %v562 = vrot.slane %v557, %v561
      %v596 = vunpack.c.l.b16 %v523
      %v597 = vunpack.c.l.b16 %v524
      %v598 = vunpack.c.l.b16 %v525
      %v599 = vunpack.c.l.b16 %v526
      %v600 = vunpack.c.l.b16 %v527
      %v601 = vunpack.c.l.b16 %v528
      %v602 = vunpack.c.l.b16 %v529
      %v603 = vunpack.c.l.b16 %v530
      %v604 = vunpack.c.l.b16 %v531
      %v605 = vunpack.c.l.b16 %v532
      %v606 = vunpack.c.l.b16 %v533
      %v607 = vunpack.c.l.b16 %v534
      %v608 = vunpack.c.l.b16 %v535
      %v609 = vunpack.c.l.b16 %v536
      %v610 = vunpack.c.l.b16 %v537
      %v611 = vunpack.c.l.b16 %v538
      %v612 = vunpack.c.l.b16 %v539
      %v613 = vunpack.c.l.b16 %v540
      %v614 = vunpack.c.l.b16 %v541
      %v615 = vunpack.c.l.b16 %v542
      %v616 = vunpack.c.l.b16 %v543
      %v617 = vunpack.c.l.b16 %v544
      %v618 = vunpack.c.l.b16 %v545
      %v619 = vunpack.c.l.b16 %v546
      %v620 = vunpack.c.l.b16 %v547
      %v621 = vunpack.c.l.b16 %v548
      %v622 = vunpack.c.l.b16 %v549
      %v623 = vunpack.c.l.b16 %v550
      %v624 = vunpack.c.l.b16 %v551
      %v625 = vunpack.c.l.b16 %v552
      %v626 = vunpack.c.l.b16 %v553
      %v627 = vunpack.c.l.b16 %v554
      %v628 = vpack.c.b16 %v597, %v596
      %v629 = vpack.c.b16 %v599, %v598
      %v630 = vpack.c.b16 %v601, %v600
      %v631 = vpack.c.b16 %v603, %v602
      %v632 = vpack.c.b16 %v605, %v604
      %v633 = vpack.c.b16 %v607, %v606
      %v634 = vpack.c.b16 %v609, %v608
      %v635 = vpack.c.b16 %v611, %v610
      %v636 = vpack.c.b16 %v613, %v612
      %v637 = vpack.c.b16 %v615, %v614
      %v638 = vpack.c.b16 %v617, %v616
      %v639 = vpack.c.b16 %v619, %v618
      %v640 = vpack.c.b16 %v621, %v620
      %v641 = vpack.c.b16 %v623, %v622
      %v642 = vpack.c.b16 %v625, %v624
      %v643 = vpack.c.b16 %v627, %v626
      %660 = vmatprep.subr.bf16.mxu0 0
      %661 = vmatpush1.bf16.msra.mxu0 %v635
      %662 = vmatprep.subr.bf16.mxu0 0
      %663 = vmatpush1.bf16.msra.mxu0 %v634
      %664 = vmatprep.subr.bf16.mxu0 0
      %665 = vmatpush1.bf16.msra.mxu0 %v633
      %666 = vmatprep.subr.bf16.mxu0 0
      %667 = vmatpush1.bf16.msra.mxu0 %v632
      %668 = vmatprep.subr.bf16.mxu0 0
      %669 = vmatpush1.bf16.msra.mxu0 %v631
      %670 = vmatprep.subr.bf16.mxu0 0
      %671 = vmatpush1.bf16.msra.mxu0 %v630
      %672 = vmatprep.subr.bf16.mxu0 0
      %673 = vmatpush1.bf16.msra.mxu0 %v629
      %674 = vmatprep.subr.bf16.mxu0 0
      %675 = vmatpush1.bf16.msra.mxu0 %v628
      %676 = vmatprep.subr.bf16.mxu0 0
      %677 = vmatpush2.bf16.msra.mxu0 %v643
      %678 = vmatprep.subr.bf16.mxu0 0
      %679 = vmatpush2.bf16.msra.mxu0 %v642
      %680 = vmatprep.subr.bf16.mxu0 0
      %681 = vmatpush2.bf16.msra.mxu0 %v641
      %682 = vmatprep.subr.bf16.mxu0 0
      %683 = vmatpush2.bf16.msra.mxu0 %v640
      %684 = vmatprep.subr.bf16.mxu0 0
      %685 = vmatpush2.bf16.msra.mxu0 %v639
      %686 = vmatprep.subr.bf16.mxu0 0
      %687 = vmatpush2.bf16.msra.mxu0 %v638
      %688 = vmatprep.subr.bf16.mxu0 0
      %689 = vmatpush2.bf16.msra.mxu0 %v637
      %690 = vmatprep.subr.bf16.mxu0 0
      %691 = vmatpush2.bf16.msra.mxu0 %v636
      %692 = vmatprep.mubr.bf16.mxu0 %v556
      %693 = vmatmul.mubr.bf16.gmra.mxu0 %v555
      %v694 = vpop.f32.mrf.mxu0
      %v695 = vadd.f32 %v562, %v694
      %v696 = vpop.f32.mrf.mxu0
      %v697 = vpop.f32.mrf.mxu0
      %v698 = vadd.f32 %v562, %v697
      %v699 = vpop.f32.mrf.mxu0
      %700 = vdwg.mxu0
      %v701 = vadd.f32 %v377, %v695
      %v702 = vadd.f32 %v378, %v698
      %703 = vst.msk [vmem:[%s278] sm:$0xff] %vm440, %v701
      %704 = vst.msk [vmem:[%s278 + $0x8] sm:$0xff] %vm440, %v702
      %p705 = scmp.lt.s32.totalorder %s18, 1
      %s706 = scalar_select %p705, %s18, 1
      %s707 = smul.addr %s706, 2
      %s708 = smul.addr %s707, 8
      %s709 = scalar_lea.vmem %s7, %s708
      // Predicated region
      $region49: #{_lambda_.16} parent=47 // pred_check
        %p710 = pneg %p188
      $region50: #{_lambda_.16} parent=47 // pred_check_branch
        %712 = sbr.rel (%p710) target = $region52
      $region51: #{_lambda_.16} parent=47 // pred_region
        _
      $region52: #{_lambda_.16} parent=47 // pred_fallthru
        _
    $region48: #{_lambda_.16} parent=5 // pred_fallthru
      _
    %p713 = scmp.le.s32.totalorder 2, %s13
    // Predicated region
    $region53: #{_lambda_.16} parent=5 // pred_check
      %p714 = pneg %p713
    $region54: #{_lambda_.16} parent=5 // pred_check_branch
      %716 = sbr.rel (%p714) target = $region56
    $region55: #{_lambda_.16} parent=5 // pred_region
      %s717 = ssub.s32 %s13, 2
      // Predicated region
      $region57: #{_lambda_.16} parent=55 // pred_check
        %p718 = pneg %p194
      $region58: #{_lambda_.16} parent=55 // pred_check_branch
        %720 = sbr.rel (%p718) target = $region60
      $region59: #{_lambda_.16} parent=55 // pred_region
        %p721 = scmp.lt.s32.totalorder %s19, 1
        %s722 = scalar_select %p721, %s19, 1
        %s723 = smul.addr %s722, 2
        %s724 = smul.addr %s723, 8
        %s725 = scalar_lea.vmem %s7, %s724
      $region60: #{_lambda_.16} parent=55 // pred_fallthru
        _
    $region56: #{_lambda_.16} parent=5 // pred_fallthru
      _
  $region6: #{_lambda_.16} parent=0 // loop_footer
    %s17 = sadd.s32 1, %s13
  $region7: #{_lambda_.16} parent=0 // loop_footer_branch
    %12 = sbr.rel target = $region3
  $region8: #{_lambda_.16} parent=0 // loop_exit
    _

// kernel: _lambda_.17
$region0: #{_lambda_.17}
  #allocation0 [shape = 'u32[]', space=smem, size = 0x4, offset = 0x4, fixed_abs, tag = 'smem constant byte address 0x4 - core index']
  #allocation1 [shape = 'u32[144,128]{1,0:T(1,128)}', space=vmem, size = 0x12000, scoped, tag = 'internal scratch']
  %s0 = inlined_call_operand.vmem [shape: bf16[8,576], index: 0, kind: input, shape index: {}]
  %s1 = inlined_call_operand.vmem [shape: bf16[576,128], index: 1, kind: input, shape index: {}]
  %s2 = inlined_call_operand.vmem [shape: f32[1,128], index: 2, kind: input, shape index: {}]
  %s3 = inlined_call_operand.vmem [shape: f32[8,128], index: 3, kind: output, shape index: {}]
  %s4 = sld [smem:[#allocation0]]
  $region22: #{_lambda_.17} parent=0
    _
  %s6 = ssub.s32 1, %s4
  %s7 = scalar_select 0, %s6, %s4
  // Predicated region
  $region2: #{_lambda_.17} parent=0 // pred_check
    _
  $region3: #{_lambda_.17} parent=0 // pred_check_branch
    %9 = sbr.rel (0) target = $region5
  $region4: #{_lambda_.17} parent=0 // pred_region
    _
  $region5: #{_lambda_.17} parent=0 // pred_fallthru
    _
  // Predicated region
  $region6: #{_lambda_.17} parent=0 // pred_check
    _
  $region7: #{_lambda_.17} parent=0 // pred_check_branch
    %11 = sbr.rel (0) target = $region9
  $region8: #{_lambda_.17} parent=0 // pred_region
    _
  $region9: #{_lambda_.17} parent=0 // pred_fallthru
    _
  // Predicated region
  $region10: #{_lambda_.17} parent=0 // pred_check
    _
  $region11: #{_lambda_.17} parent=0 // pred_check_branch
    %13 = sbr.rel (0) target = $region13
  $region12: #{_lambda_.17} parent=0 // pred_region
    _
  $region13: #{_lambda_.17} parent=0 // pred_fallthru
    _
  %v15 = vld [vmem:[%s0] sm:$0xff]
  %v16 = vld [vmem:[%s0 + $0x8] sm:$0xff]
  %v17 = vld [vmem:[%s0 + $0x10] sm:$0xf]
  %v18 = vld [vmem:[%s1] sm:$0xf]
  %v19 = vld [vmem:[%s1 + $0x4] sm:$0xf]
  %v20 = vld [vmem:[%s1 + $0x8] sm:$0xf]
  %v21 = vld [vmem:[%s1 + $0xc] sm:$0xf]
  %v22 = vld [vmem:[%s1 + $0x10] sm:$0xf]
  %v23 = vld [vmem:[%s1 + $0x14] sm:$0xf]
  %v24 = vld [vmem:[%s1 + $0x18] sm:$0xf]
  %v25 = vld [vmem:[%s1 + $0x1c] sm:$0xf]
  %v26 = vld [vmem:[%s1 + $0x20] sm:$0xf]
  %v27 = vld [vmem:[%s1 + $0x24] sm:$0xf]
  %v28 = vld [vmem:[%s1 + $0x28] sm:$0xf]
  %v29 = vld [vmem:[%s1 + $0x2c] sm:$0xf]
  %v30 = vld [vmem:[%s1 + $0x30] sm:$0xf]
  %v31 = vld [vmem:[%s1 + $0x34] sm:$0xf]
  %v32 = vld [vmem:[%s1 + $0x38] sm:$0xf]
  %v33 = vld [vmem:[%s1 + $0x3c] sm:$0xf]
  %v34 = vld [vmem:[%s1 + $0x40] sm:$0xf]
  %v35 = vld [vmem:[%s1 + $0x44] sm:$0xf]
  %v36 = vld [vmem:[%s1 + $0x48] sm:$0xf]
  %v37 = vld [vmem:[%s1 + $0x4c] sm:$0xf]
  %v38 = vld [vmem:[%s1 + $0x50] sm:$0xf]
  %v39 = vld [vmem:[%s1 + $0x54] sm:$0xf]
  %v40 = vld [vmem:[%s1 + $0x58] sm:$0xf]
  %v41 = vld [vmem:[%s1 + $0x5c] sm:$0xf]
  %v42 = vld [vmem:[%s1 + $0x60] sm:$0xf]
  %v43 = vld [vmem:[%s1 + $0x64] sm:$0xf]
  %v44 = vld [vmem:[%s1 + $0x68] sm:$0xf]
  %v45 = vld [vmem:[%s1 + $0x6c] sm:$0xf]
  %v46 = vld [vmem:[%s1 + $0x70] sm:$0xf]
  %v47 = vld [vmem:[%s1 + $0x74] sm:$0xf]
  %v48 = vld [vmem:[%s1 + $0x78] sm:$0xf]
  %v49 = vld [vmem:[%s1 + $0x7c] sm:$0xf]
  %v50 = vld [vmem:[%s1 + $0x80] sm:$0xf]
  %v51 = vld [vmem:[%s1 + $0x84] sm:$0xf]
  %v52 = vld [vmem:[%s1 + $0x88] sm:$0xf]
  %v53 = vld [vmem:[%s1 + $0x8c] sm:$0xf]
  %v54 = vld [vmem:[%s1 + $0x90] sm:$0xf]
  %v55 = vld [vmem:[%s1 + $0x94] sm:$0xf]
  %v56 = vld [vmem:[%s1 + $0x98] sm:$0xf]
  %v57 = vld [vmem:[%s1 + $0x9c] sm:$0xf]
  %v58 = vld [vmem:[%s1 + $0xa0] sm:$0xf]
  %v59 = vld [vmem:[%s1 + $0xa4] sm:$0xf]
  %v60 = vld [vmem:[%s1 + $0xa8] sm:$0xf]
  %v61 = vld [vmem:[%s1 + $0xac] sm:$0xf]
  %v62 = vld [vmem:[%s1 + $0xb0] sm:$0xf]
  %v63 = vld [vmem:[%s1 + $0xb4] sm:$0xf]
  %v64 = vld [vmem:[%s1 + $0xb8] sm:$0xf]
  %v65 = vld [vmem:[%s1 + $0xbc] sm:$0xf]
  %v66 = vld [vmem:[%s1 + $0xc0] sm:$0xf]
  %v67 = vld [vmem:[%s1 + $0xc4] sm:$0xf]
  %v68 = vld [vmem:[%s1 + $0xc8] sm:$0xf]
  %v69 = vld [vmem:[%s1 + $0xcc] sm:$0xf]
  %v70 = vld [vmem:[%s1 + $0xd0] sm:$0xf]
  %v71 = vld [vmem:[%s1 + $0xd4] sm:$0xf]
  %v72 = vld [vmem:[%s1 + $0xd8] sm:$0xf]
  %v73 = vld [vmem:[%s1 + $0xdc] sm:$0xf]
  %v74 = vld [vmem:[%s1 + $0xe0] sm:$0xf]
  %v75 = vld [vmem:[%s1 + $0xe4] sm:$0xf]
  %v76 = vld [vmem:[%s1 + $0xe8] sm:$0xf]
  %v77 = vld [vmem:[%s1 + $0xec] sm:$0xf]
  %v78 = vld [vmem:[%s1 + $0xf0] sm:$0xf]
  %v79 = vld [vmem:[%s1 + $0xf4] sm:$0xf]
  %v80 = vld [vmem:[%s1 + $0xf8] sm:$0xf]
  %v81 = vld [vmem:[%s1 + $0xfc] sm:$0xf]
  %v82 = vld [vmem:[%s1 + $0x100] sm:$0xf]
  %v83 = vld [vmem:[%s1 + $0x104] sm:$0xf]
  %v84 = vld [vmem:[%s1 + $0x108] sm:$0xf]
  %v85 = vld [vmem:[%s1 + $0x10c] sm:$0xf]
  %v86 = vld [vmem:[%s1 + $0x110] sm:$0xf]
  %v87 = vld [vmem:[%s1 + $0x114] sm:$0xf]
  %v88 = vld [vmem:[%s1 + $0x118] sm:$0xf]
  %v89 = vld [vmem:[%s1 + $0x11c] sm:$0xf]
  %v90 = vld [vmem:[%s2] sm:$0x1]
  %v92 = vlaneseq
  %v93 = vshrl.u32 %v92, 7
  %v94 = vsub.s32 0, %v93
  %v95 = vrot.slane %v90, %v94
  %v100 = vunpack.c.l.b16 %v15
  %v101 = vunpack.c.h.b16 %v15
  %v102 = vunpack.c.l.b16 %v16
  %v103 = vunpack.c.h.b16 %v16
  %v104 = vunpack.c.l.b16 %v17
  %v105 = vpack.c.b16 %v100, %v100
  %v106 = vpack.c.b16 %v101, %v101
  %v107 = vpack.c.b16 %v102, %v102
  %v108 = vpack.c.b16 %v103, %v103
  %v109 = vpack.c.b16 %v104, %v104
  %v186 = vunpack.c.l.b16 %v18
  %v187 = vunpack.c.l.b16 %v19
  %v188 = vunpack.c.l.b16 %v20
  %v189 = vunpack.c.l.b16 %v21
  %v190 = vunpack.c.l.b16 %v22
  %v191 = vunpack.c.l.b16 %v23
  %v192 = vunpack.c.l.b16 %v24
  %v193 = vunpack.c.l.b16 %v25
  %v194 = vunpack.c.l.b16 %v26
  %v195 = vunpack.c.l.b16 %v27
  %v196 = vunpack.c.l.b16 %v28
  %v197 = vunpack.c.l.b16 %v29
  %v198 = vunpack.c.l.b16 %v30
  %v199 = vunpack.c.l.b16 %v31
  %v200 = vunpack.c.l.b16 %v32
  %v201 = vunpack.c.l.b16 %v33
  %v202 = vunpack.c.l.b16 %v34
  %v203 = vunpack.c.l.b16 %v35
  %v204 = vunpack.c.l.b16 %v36
  %v205 = vunpack.c.l.b16 %v37
  %v206 = vunpack.c.l.b16 %v38
  %v207 = vunpack.c.l.b16 %v39
  %v208 = vunpack.c.l.b16 %v40
  %v209 = vunpack.c.l.b16 %v41
  %v210 = vunpack.c.l.b16 %v42
  %v211 = vunpack.c.l.b16 %v43
  %v212 = vunpack.c.l.b16 %v44
  %v213 = vunpack.c.l.b16 %v45
  %v214 = vunpack.c.l.b16 %v46
  %v215 = vunpack.c.l.b16 %v47
  %v216 = vunpack.c.l.b16 %v48
  %v217 = vunpack.c.l.b16 %v49
  %v218 = vunpack.c.l.b16 %v50
  %v219 = vunpack.c.l.b16 %v51
  %v220 = vunpack.c.l.b16 %v52
  %v221 = vunpack.c.l.b16 %v53
  %v222 = vunpack.c.l.b16 %v54
  %v223 = vunpack.c.l.b16 %v55
  %v224 = vunpack.c.l.b16 %v56
  %v225 = vunpack.c.l.b16 %v57
  %v226 = vunpack.c.l.b16 %v58
  %v227 = vunpack.c.l.b16 %v59
  %v228 = vunpack.c.l.b16 %v60
  %v229 = vunpack.c.l.b16 %v61
  %v230 = vunpack.c.l.b16 %v62
  %v231 = vunpack.c.l.b16 %v63
  %v232 = vunpack.c.l.b16 %v64
  %v233 = vunpack.c.l.b16 %v65
  %v234 = vunpack.c.l.b16 %v66
  %v235 = vunpack.c.l.b16 %v67
  %v236 = vunpack.c.l.b16 %v68
  %v237 = vunpack.c.l.b16 %v69
  %v238 = vunpack.c.l.b16 %v70
  %v239 = vunpack.c.l.b16 %v71
  %v240 = vunpack.c.l.b16 %v72
  %v241 = vunpack.c.l.b16 %v73
  %v242 = vunpack.c.l.b16 %v74
  %v243 = vunpack.c.l.b16 %v75
  %v244 = vunpack.c.l.b16 %v76
  %v245 = vunpack.c.l.b16 %v77
  %v246 = vunpack.c.l.b16 %v78
  %v247 = vunpack.c.l.b16 %v79
  %v248 = vunpack.c.l.b16 %v80
  %v249 = vunpack.c.l.b16 %v81
  %v250 = vunpack.c.l.b16 %v82
  %v251 = vunpack.c.l.b16 %v83
  %v252 = vunpack.c.l.b16 %v84
  %v253 = vunpack.c.l.b16 %v85
  %v254 = vunpack.c.l.b16 %v86
  %v255 = vunpack.c.l.b16 %v87
  %v256 = vunpack.c.l.b16 %v88
  %v257 = vunpack.c.l.b16 %v89
  %v258 = vpack.c.b16 %v187, %v186
  %v259 = vpack.c.b16 %v189, %v188
  %v260 = vpack.c.b16 %v191, %v190
  %v261 = vpack.c.b16 %v193, %v192
  %v262 = vpack.c.b16 %v195, %v194
  %v263 = vpack.c.b16 %v197, %v196
  %v264 = vpack.c.b16 %v199, %v198
  %v265 = vpack.c.b16 %v201, %v200
  %v266 = vpack.c.b16 %v203, %v202
  %v267 = vpack.c.b16 %v205, %v204
  %v268 = vpack.c.b16 %v207, %v206
  %v269 = vpack.c.b16 %v209, %v208
  %v270 = vpack.c.b16 %v211, %v210
  %v271 = vpack.c.b16 %v213, %v212
  %v272 = vpack.c.b16 %v215, %v214
  %v273 = vpack.c.b16 %v217, %v216
  %v274 = vpack.c.b16 %v219, %v218
  %v275 = vpack.c.b16 %v221, %v220
  %v276 = vpack.c.b16 %v223, %v222
  %v277 = vpack.c.b16 %v225, %v224
  %v278 = vpack.c.b16 %v227, %v226
  %v279 = vpack.c.b16 %v229, %v228
  %v280 = vpack.c.b16 %v231, %v230
  %v281 = vpack.c.b16 %v233, %v232
  %v282 = vpack.c.b16 %v235, %v234
  %v283 = vpack.c.b16 %v237, %v236
  %v284 = vpack.c.b16 %v239, %v238
  %v285 = vpack.c.b16 %v241, %v240
  %v286 = vpack.c.b16 %v243, %v242
  %v287 = vpack.c.b16 %v245, %v244
  %v288 = vpack.c.b16 %v247, %v246
  %v289 = vpack.c.b16 %v249, %v248
  %v290 = vpack.c.b16 %v251, %v250
  %v291 = vpack.c.b16 %v253, %v252
  %v292 = vpack.c.b16 %v255, %v254
  %v293 = vpack.c.b16 %v257, %v256
  %vm330 = vcmask 523264
  %v332 = vsel %vm330, %v109, 0
  %334 = vmatprep.subr.bf16.mxu0 0
  %335 = vmatpush1.bf16.msra.mxu0 %v265
  %336 = vmatprep.subr.bf16.mxu0 0
  %337 = vmatpush1.bf16.msra.mxu0 %v264
  %338 = vmatprep.subr.bf16.mxu0 0
  %339 = vmatpush1.bf16.msra.mxu0 %v263
  %340 = vmatprep.subr.bf16.mxu0 0
  %341 = vmatpush1.bf16.msra.mxu0 %v262
  %342 = vmatprep.subr.bf16.mxu0 0
  %343 = vmatpush1.bf16.msra.mxu0 %v261
  %344 = vmatprep.subr.bf16.mxu0 0
  %345 = vmatpush1.bf16.msra.mxu0 %v260
  %346 = vmatprep.subr.bf16.mxu0 0
  %347 = vmatpush1.bf16.msra.mxu0 %v259
  %348 = vmatprep.subr.bf16.mxu0 0
  %349 = vmatpush1.bf16.msra.mxu0 %v258
  %350 = vmatprep.subr.bf16.mxu0 0
  %351 = vmatpush2.bf16.msra.mxu0 %v273
  %352 = vmatprep.subr.bf16.mxu0 0
  %353 = vmatpush2.bf16.msra.mxu0 %v272
  %354 = vmatprep.subr.bf16.mxu0 0
  %355 = vmatpush2.bf16.msra.mxu0 %v271
  %356 = vmatprep.subr.bf16.mxu0 0
  %357 = vmatpush2.bf16.msra.mxu0 %v270
  %358 = vmatprep.subr.bf16.mxu0 0
  %359 = vmatpush2.bf16.msra.mxu0 %v269
  %360 = vmatprep.subr.bf16.mxu0 0
  %361 = vmatpush2.bf16.msra.mxu0 %v268
  %362 = vmatprep.subr.bf16.mxu0 0
  %363 = vmatpush2.bf16.msra.mxu0 %v267
  %364 = vmatprep.subr.bf16.mxu0 0
  %365 = vmatpush2.bf16.msra.mxu0 %v266
  %366 = vmatprep.mubr.bf16.mxu0 %v106
  %367 = vmatmul.mubr.bf16.gmra.mxu0 %v105
  %v368 = vpop.f32.mrf.mxu0
  %v369 = vadd.f32 %v95, %v368
  %v370 = vpop.f32.mrf.mxu0
  %v371 = vpop.f32.mrf.mxu0
  %v372 = vpop.f32.mrf.mxu0
  %373 = vdwg.mxu0
  %374 = vmatprep.subr.bf16.mxu0 0
  %375 = vmatpush1.bf16.msra.mxu0 %v281
  %376 = vmatprep.subr.bf16.mxu0 0
  %377 = vmatpush1.bf16.msra.mxu0 %v280
  %378 = vmatprep.subr.bf16.mxu0 0
  %379 = vmatpush1.bf16.msra.mxu0 %v279
  %380 = vmatprep.subr.bf16.mxu0 0
  %381 = vmatpush1.bf16.msra.mxu0 %v278
  %382 = vmatprep.subr.bf16.mxu0 0
  %383 = vmatpush1.bf16.msra.mxu0 %v277
  %384 = vmatprep.subr.bf16.mxu0 0
  %385 = vmatpush1.bf16.msra.mxu0 %v276
  %386 = vmatprep.subr.bf16.mxu0 0
  %387 = vmatpush1.bf16.msra.mxu0 %v275
  %388 = vmatprep.subr.bf16.mxu0 0
  %389 = vmatpush1.bf16.msra.mxu0 %v274
  %390 = vmatprep.subr.bf16.mxu0 0
  %391 = vmatpush2.bf16.msra.mxu0 %v289
  %392 = vmatprep.subr.bf16.mxu0 0
  %393 = vmatpush2.bf16.msra.mxu0 %v288
  %394 = vmatprep.subr.bf16.mxu0 0
  %395 = vmatpush2.bf16.msra.mxu0 %v287
  %396 = vmatprep.subr.bf16.mxu0 0
  %397 = vmatpush2.bf16.msra.mxu0 %v286
  %398 = vmatprep.subr.bf16.mxu0 0
  %399 = vmatpush2.bf16.msra.mxu0 %v285
  %400 = vmatprep.subr.bf16.mxu0 0
  %401 = vmatpush2.bf16.msra.mxu0 %v284
  %402 = vmatprep.subr.bf16.mxu0 0
  %403 = vmatpush2.bf16.msra.mxu0 %v283
  %404 = vmatprep.subr.bf16.mxu0 0
  %405 = vmatpush2.bf16.msra.mxu0 %v282
  %406 = vmatprep.mubr.bf16.mxu0 %v108
  %407 = vmatmul.mubr.bf16.gmra.mxu0 %v107
  %v408 = vpop.f32.mrf.mxu0
  %v409 = vadd.f32 %v369, %v408
  %v410 = vpop.f32.mrf.mxu0
  %v411 = vpop.f32.mrf.mxu0
  %v412 = vpop.f32.mrf.mxu0
  %413 = vdwg.mxu0
  %414 = vmatprep.subr.bf16.mxu0 0
  %415 = vmatpush1.bf16.msra.mxu0 0
  %416 = vmatprep.subr.bf16.mxu0 0
  %417 = vmatpush1.bf16.msra.mxu0 0
  %418 = vmatprep.subr.bf16.mxu0 0
  %419 = vmatpush1.bf16.msra.mxu0 0
  %420 = vmatprep.subr.bf16.mxu0 0
  %421 = vmatpush1.bf16.msra.mxu0 0
  %422 = vmatprep.subr.bf16.mxu0 0
  %423 = vmatpush1.bf16.msra.mxu0 %v293
  %424 = vmatprep.subr.bf16.mxu0 0
  %425 = vmatpush1.bf16.msra.mxu0 %v292
  %426 = vmatprep.subr.bf16.mxu0 0
  %427 = vmatpush1.bf16.msra.mxu0 %v291
  %428 = vmatprep.subr.bf16.mxu0 0
  %429 = vmatpush1.bf16.msra.mxu0 %v290
  %430 = vmatprep.subr.bf16.mxu0 0
  %431 = vmatpush2.bf16.msra.mxu0 0
  %432 = vmatprep.subr.bf16.mxu0 0
  %433 = vmatpush2.bf16.msra.mxu0 0
  %434 = vmatprep.subr.bf16.mxu0 0
  %435 = vmatpush2.bf16.msra.mxu0 0
  %436 = vmatprep.subr.bf16.mxu0 0
  %437 = vmatpush2.bf16.msra.mxu0 0
  %438 = vmatprep.subr.bf16.mxu0 0
  %439 = vmatpush2.bf16.msra.mxu0 0
  %440 = vmatprep.subr.bf16.mxu0 0
  %441 = vmatpush2.bf16.msra.mxu0 0
  %442 = vmatprep.subr.bf16.mxu0 0
  %443 = vmatpush2.bf16.msra.mxu0 0
  %444 = vmatprep.subr.bf16.mxu0 0
  %445 = vmatpush2.bf16.msra.mxu0 0
  %446 = vmatprep.mubr.bf16.mxu0 0
  %447 = vmatmul.mubr.bf16.gmra.mxu0 %v332
  %v448 = vpop.f32.mrf.mxu0
  %v449 = vadd.f32 %v409, %v448
  %v450 = vpop.f32.mrf.mxu0
  %v451 = vpop.f32.mrf.mxu0
  %v452 = vpop.f32.mrf.mxu0
  %453 = vdwg.mxu0
  %454 = vst [vmem:[%s3] sm:$0xff] %v449
  // Predicated region
  $region14: #{_lambda_.17} parent=0 // pred_check
    _
  $region15: #{_lambda_.17} parent=0 // pred_check_branch
    %456 = sbr.rel (0) target = $region17
  $region16: #{_lambda_.17} parent=0 // pred_region
    _
  $region17: #{_lambda_.17} parent=0 // pred_fallthru
    _
  // Predicated region
  $region18: #{_lambda_.17} parent=0 // pred_check
    _
  $region19: #{_lambda_.17} parent=0 // pred_check_branch
    %458 = sbr.rel (0) target = $region21
  $region20: #{_lambda_.17} parent=0 // pred_region
    _
  $region21: #{_lambda_.17} parent=0 // pred_fallthru
    _

// kernel: _lambda_.18
$region0: #{_lambda_.18}
  #allocation0 [shape = 'u32[]', space=smem, size = 0x4, offset = 0x4, fixed_abs, tag = 'smem constant byte address 0x4 - core index']
  #allocation1 [shape = 'u32[144,128]{1,0:T(1,128)}', space=vmem, size = 0x12000, scoped, tag = 'internal scratch']
  %s0 = inlined_call_operand.vmem [shape: f32[2,4,128], index: 0, kind: input, shape index: {}]
  %s1 = inlined_call_operand.vmem [shape: f32[4,4], index: 1, kind: input, shape index: {}]
  %s2 = inlined_call_operand.vmem [shape: f32[1,128], index: 2, kind: input, shape index: {}]
  %s3 = inlined_call_operand.vmem [shape: bf16[128,512], index: 3, kind: input, shape index: {}]
  %s4 = inlined_call_operand.vmem [shape: f32[1,512], index: 4, kind: input, shape index: {}]
  %s5 = inlined_call_operand.vmem [shape: bf16[512,128], index: 5, kind: input, shape index: {}]
  %s6 = inlined_call_operand.vmem [shape: f32[1,128], index: 6, kind: input, shape index: {}]
  %s7 = inlined_call_operand.vmem [shape: f32[2,4,128], index: 7, kind: output, shape index: {}]
  %s8 = sld [smem:[#allocation0]]
  $region61: #{_lambda_.18} parent=0
    _
  %s10 = ssub.s32 1, %s8
  %s11 = scalar_select 0, %s10, %s8
  loop: start=0, step=1, limit=4
  $region2: #{_lambda_.18} parent=0 // loop_pre_header
    _
  $region3: #{_lambda_.18} parent=0 // loop_header
    %s13 = sphi 0, %s17
    %p14 = scmp.ge.s32.totalorder %s13, 4
    %s23 = sphi 0, %s25
    %s26 = sphi 0, %s23
    %s27 = sphi 0, %s26
    %s43 = sphi 0, %s27
    %s47 = sphi 0, %s47
    %s49 = sphi 0, %s47
    %s50 = sphi 0, %s49
    %s64 = sphi 0, %s50
    %s68 = sphi 0, %s68
    %s70 = sphi 0, %s68
    %s71 = sphi 0, %s70
    %s85 = sphi 0, %s71
    %s89 = sphi 0, %s89
    %s91 = sphi 0, %s89
    %s92 = sphi 0, %s91
    %s106 = sphi 0, %s92
    %s110 = sphi 0, %s110
    %s112 = sphi 0, %s110
    %s113 = sphi 0, %s112
    %s127 = sphi 0, %s113
    %s131 = sphi 0, %s131
    %s133 = sphi 0, %s131
    %s134 = sphi 0, %s133
    %s148 = sphi 0, %s134
    %s152 = sphi 0, %s152
    %s154 = sphi 0, %s152
    %s155 = sphi 0, %s154
    %s169 = sphi 0, %s155
    %s175 = sphi 0, %s177
    %s178 = sphi 0, %s175
    %s179 = sphi 0, %s178
    %s195 = sphi 0, %s179
  $region4: #{_lambda_.18} parent=0 // loop_header_branch
    %16 = sbr.rel (%p14) target = $region8
  $region5: #{_lambda_.18} parent=0 // loop_body
    %s18 = ssub.s32 %s13, 1
    %s19 = ssub.s32 %s13, 2
    %s20 = sadd.s32 %s13, 1
    %s21 = ssub.s32 %s13, %s20
    %p22 = scmp.eq.s32.totalorder %s21, 0
    %s24 = sadd.s32 %s23, 1
    %s25 = scalar_select %p22, %s23, %s24
    %p28 = pneg %p22
    %p29 = scmp.eq.s32.totalorder %s13, 1
    %p30 = por %p28, %p29
    %p31 = scmp.ne.s32.totalorder %s23, %s26
    %p32 = scmp.eq.s32.totalorder %s13, 0
    %p33 = por %p31, %p32
    %p34 = scmp.ne.s32.totalorder %s23, %s26
    %p35 = scmp.eq.s32.totalorder %s18, 1
    %p36 = por %p34, %p35
    %p37 = scmp.ne.s32.totalorder %s26, %s27
    %p38 = scmp.eq.s32.totalorder %s18, 0
    %p39 = por %p37, %p38
    %p40 = scmp.ne.s32.totalorder %s26, %s27
    %p41 = scmp.eq.s32.totalorder %s19, 1
    %p42 = por %p40, %p41
    %p44 = scmp.ne.s32.totalorder %s27, %s43
    %p45 = scmp.eq.s32.totalorder %s19, 0
    %p46 = por %p44, %p45
    %s48 = sadd.s32 %s47, 1
    %p51 = scmp.eq.s32.totalorder %s13, 1
    %p52 = scmp.ne.s32.totalorder %s47, %s49
    %p53 = scmp.eq.s32.totalorder %s13, 0
    %p54 = por %p52, %p53
    %p55 = scmp.ne.s32.totalorder %s47, %s49
    %p56 = scmp.eq.s32.totalorder %s18, 1
    %p57 = por %p55, %p56
    %p58 = scmp.ne.s32.totalorder %s49, %s50
    %p59 = scmp.eq.s32.totalorder %s18, 0
    %p60 = por %p58, %p59
    %p61 = scmp.ne.s32.totalorder %s49, %s50
    %p62 = scmp.eq.s32.totalorder %s19, 1
    %p63 = por %p61, %p62
    %p65 = scmp.ne.s32.totalorder %s50, %s64
    %p66 = scmp.eq.s32.totalorder %s19, 0
    %p67 = por %p65, %p66
    %s69 = sadd.s32 %s68, 1
    %p72 = scmp.eq.s32.totalorder %s13, 1
    %p73 = scmp.ne.s32.totalorder %s68, %s70
    %p74 = scmp.eq.s32.totalorder %s13, 0
    %p75 = por %p73, %p74
    %p76 = scmp.ne.s32.totalorder %s68, %s70
    %p77 = scmp.eq.s32.totalorder %s18, 1
    %p78 = por %p76, %p77
    %p79 = scmp.ne.s32.totalorder %s70, %s71
    %p80 = scmp.eq.s32.totalorder %s18, 0
    %p81 = por %p79, %p80
    %p82 = scmp.ne.s32.totalorder %s70, %s71
    %p83 = scmp.eq.s32.totalorder %s19, 1
    %p84 = por %p82, %p83
    %p86 = scmp.ne.s32.totalorder %s71, %s85
    %p87 = scmp.eq.s32.totalorder %s19, 0
    %p88 = por %p86, %p87
    %s90 = sadd.s32 %s89, 1
    %p93 = scmp.eq.s32.totalorder %s13, 1
    %p94 = scmp.ne.s32.totalorder %s89, %s91
    %p95 = scmp.eq.s32.totalorder %s13, 0
    %p96 = por %p94, %p95
    %p97 = scmp.ne.s32.totalorder %s89, %s91
    %p98 = scmp.eq.s32.totalorder %s18, 1
    %p99 = por %p97, %p98
    %p100 = scmp.ne.s32.totalorder %s91, %s92
    %p101 = scmp.eq.s32.totalorder %s18, 0
    %p102 = por %p100, %p101
    %p103 = scmp.ne.s32.totalorder %s91, %s92
    %p104 = scmp.eq.s32.totalorder %s19, 1
    %p105 = por %p103, %p104
    %p107 = scmp.ne.s32.totalorder %s92, %s106
    %p108 = scmp.eq.s32.totalorder %s19, 0
    %p109 = por %p107, %p108
    %s111 = sadd.s32 %s110, 1
    %p114 = scmp.eq.s32.totalorder %s13, 1
    %p115 = scmp.ne.s32.totalorder %s110, %s112
    %p116 = scmp.eq.s32.totalorder %s13, 0
    %p117 = por %p115, %p116
    %p118 = scmp.ne.s32.totalorder %s110, %s112
    %p119 = scmp.eq.s32.totalorder %s18, 1
    %p120 = por %p118, %p119
    %p121 = scmp.ne.s32.totalorder %s112, %s113
    %p122 = scmp.eq.s32.totalorder %s18, 0
    %p123 = por %p121, %p122
    %p124 = scmp.ne.s32.totalorder %s112, %s113
    %p125 = scmp.eq.s32.totalorder %s19, 1
    %p126 = por %p124, %p125
    %p128 = scmp.ne.s32.totalorder %s113, %s127
    %p129 = scmp.eq.s32.totalorder %s19, 0
    %p130 = por %p128, %p129
    %s132 = sadd.s32 %s131, 1
    %p135 = scmp.eq.s32.totalorder %s13, 1
    %p136 = scmp.ne.s32.totalorder %s131, %s133
    %p137 = scmp.eq.s32.totalorder %s13, 0
    %p138 = por %p136, %p137
    %p139 = scmp.ne.s32.totalorder %s131, %s133
    %p140 = scmp.eq.s32.totalorder %s18, 1
    %p141 = por %p139, %p140
    %p142 = scmp.ne.s32.totalorder %s133, %s134
    %p143 = scmp.eq.s32.totalorder %s18, 0
    %p144 = por %p142, %p143
    %p145 = scmp.ne.s32.totalorder %s133, %s134
    %p146 = scmp.eq.s32.totalorder %s19, 1
    %p147 = por %p145, %p146
    %p149 = scmp.ne.s32.totalorder %s134, %s148
    %p150 = scmp.eq.s32.totalorder %s19, 0
    %p151 = por %p149, %p150
    %s153 = sadd.s32 %s152, 1
    %p156 = scmp.eq.s32.totalorder %s13, 1
    %p157 = scmp.ne.s32.totalorder %s152, %s154
    %p158 = scmp.eq.s32.totalorder %s13, 0
    %p159 = por %p157, %p158
    %p160 = scmp.ne.s32.totalorder %s152, %s154
    %p161 = scmp.eq.s32.totalorder %s18, 1
    %p162 = por %p160, %p161
    %p163 = scmp.ne.s32.totalorder %s154, %s155
    %p164 = scmp.eq.s32.totalorder %s18, 0
    %p165 = por %p163, %p164
    %p166 = scmp.ne.s32.totalorder %s154, %s155
    %p167 = scmp.eq.s32.totalorder %s19, 1
    %p168 = por %p166, %p167
    %p170 = scmp.ne.s32.totalorder %s155, %s169
    %p171 = scmp.eq.s32.totalorder %s19, 0
    %p172 = por %p170, %p171
    %s173 = ssub.s32 %s13, %s20
    %p174 = scmp.eq.s32.totalorder %s173, 0
    %s176 = sadd.s32 %s175, 1
    %s177 = scalar_select %p174, %s175, %s176
    %p180 = pneg %p174
    %p181 = scmp.eq.s32.totalorder %s13, 1
    %p182 = por %p180, %p181
    %p183 = scmp.ne.s32.totalorder %s175, %s178
    %p184 = scmp.eq.s32.totalorder %s13, 0
    %p185 = por %p183, %p184
    %p186 = scmp.ne.s32.totalorder %s175, %s178
    %p187 = scmp.eq.s32.totalorder %s18, 1
    %p188 = por %p186, %p187
    %p189 = scmp.ne.s32.totalorder %s178, %s179
    %p190 = scmp.eq.s32.totalorder %s18, 0
    %p191 = por %p189, %p190
    %p192 = scmp.ne.s32.totalorder %s178, %s179
    %p193 = scmp.eq.s32.totalorder %s19, 1
    %p194 = por %p192, %p193
    %p196 = scmp.ne.s32.totalorder %s179, %s195
    %p197 = scmp.eq.s32.totalorder %s19, 0
    %p198 = por %p196, %p197
    %p199 = scmp.le.s32.totalorder 1, %s13
    %p200 = scmp.lt.s32.totalorder %s13, 3
    %p201 = pnand %p199, %p200
    %p202 = pneg %p201
    // Predicated region
    $region9: #{_lambda_.18} parent=5 // pred_check
      _
    $region10: #{_lambda_.18} parent=5 // pred_check_branch
      %204 = sbr.rel (%p201) target = $region12
    $region11: #{_lambda_.18} parent=5 // pred_region
      %s205 = ssub.s32 %s13, 1
      // Predicated region
      $region13: #{_lambda_.18} parent=11 // pred_check
        %p206 = pneg %p60
      $region14: #{_lambda_.18} parent=11 // pred_check_branch
        %208 = sbr.rel (%p206) target = $region16
      $region15: #{_lambda_.18} parent=11 // pred_region
        _
      $region16: #{_lambda_.18} parent=11 // pred_fallthru
        _
      // Predicated region
      $region17: #{_lambda_.18} parent=11 // pred_check
        %p209 = pneg %p81
      $region18: #{_lambda_.18} parent=11 // pred_check_branch
        %211 = sbr.rel (%p209) target = $region20
      $region19: #{_lambda_.18} parent=11 // pred_region
        _
      $region20: #{_lambda_.18} parent=11 // pred_fallthru
        _
      // Predicated region
      $region21: #{_lambda_.18} parent=11 // pred_check
        %p212 = pneg %p102
      $region22: #{_lambda_.18} parent=11 // pred_check_branch
        %214 = sbr.rel (%p212) target = $region24
      $region23: #{_lambda_.18} parent=11 // pred_region
        _
      $region24: #{_lambda_.18} parent=11 // pred_fallthru
        _
      // Predicated region
      $region25: #{_lambda_.18} parent=11 // pred_check
        %p215 = pneg %p123
      $region26: #{_lambda_.18} parent=11 // pred_check_branch
        %217 = sbr.rel (%p215) target = $region28
      $region27: #{_lambda_.18} parent=11 // pred_region
        _
      $region28: #{_lambda_.18} parent=11 // pred_fallthru
        _
      // Predicated region
      $region29: #{_lambda_.18} parent=11 // pred_check
        %p218 = pneg %p144
      $region30: #{_lambda_.18} parent=11 // pred_check_branch
        %220 = sbr.rel (%p218) target = $region32
      $region31: #{_lambda_.18} parent=11 // pred_region
        _
      $region32: #{_lambda_.18} parent=11 // pred_fallthru
        _
      // Predicated region
      $region33: #{_lambda_.18} parent=11 // pred_check
        %p221 = pneg %p165
      $region34: #{_lambda_.18} parent=11 // pred_check_branch
        %223 = sbr.rel (%p221) target = $region36
      $region35: #{_lambda_.18} parent=11 // pred_region
        _
      $region36: #{_lambda_.18} parent=11 // pred_fallthru
        _
    $region12: #{_lambda_.18} parent=5 // pred_fallthru
      _
    %p224 = scmp.lt.s32.totalorder %s13, 2
    // Predicated region
    $region37: #{_lambda_.18} parent=5 // pred_check
      %p225 = pneg %p224
    $region38: #{_lambda_.18} parent=5 // pred_check_branch
      %227 = sbr.rel (%p225) target = $region40
    $region39: #{_lambda_.18} parent=5 // pred_region
      // Predicated region
      $region41: #{_lambda_.18} parent=39 // pred_check
        %p228 = pneg %p33
      $region42: #{_lambda_.18} parent=39 // pred_check_branch
        %230 = sbr.rel (%p228) target = $region44
      $region43: #{_lambda_.18} parent=39 // pred_region
        %p231 = scmp.lt.s32.totalorder %s13, 1
        %s232 = scalar_select %p231, %s13, 1
        %s233 = smul.addr %s232, 4
        %s234 = scalar_lea.vmem %s0, %s233
      $region44: #{_lambda_.18} parent=39 // pred_fallthru
        _
    $region40: #{_lambda_.18} parent=5 // pred_fallthru
      _
    %p235 = scmp.le.s32.totalorder 1, %s13
    %p236 = scmp.lt.s32.totalorder %s13, 3
    %p237 = pnand %p235, %p236
    %p238 = pneg %p237
    // Predicated region
    $region45: #{_lambda_.18} parent=5 // pred_check
      _
    $region46: #{_lambda_.18} parent=5 // pred_check_branch
      %240 = sbr.rel (%p237) target = $region48
    $region47: #{_lambda_.18} parent=5 // pred_region
      %s241 = ssub.s32 %s13, 1
      %p242 = scmp.lt.s32.totalorder %s18, 1
      %s243 = scalar_select %p242, %s18, 1
      %s244 = smul.addr %s243, 4
      %s245 = scalar_lea.vmem %s0, %s244
      %p246 = pneg %p39
      %p247 = pneg %p36
      %p248 = pneg %p60
      %p249 = pneg %p57
      %p250 = pneg %p81
      %p251 = pneg %p78
      %p252 = pneg %p102
      %p253 = pneg %p99
      %p254 = pneg %p123
      %p255 = pneg %p120
      %p256 = pneg %p144
      %p257 = pneg %p141
      %p258 = pneg %p165
      %p259 = pneg %p162
      %p260 = pneg %p191
      %p261 = pneg %p188
      %p262 = scmp.lt.s32.totalorder %s18, 1
      %s263 = scalar_select %p262, %s18, 1
      %s264 = smul.addr %s263, 4
      %s265 = scalar_lea.vmem %s7, %s264
      %p266 = scmp.lt.s32.totalorder %s18, 1
      %s267 = scalar_select %p266, %s18, 1
      %s268 = smul.addr %s267, 4
      %s269 = scalar_lea.vmem %s0, %s268
      %p270 = scmp.lt.s32.totalorder %s18, 1
      %s271 = scalar_select %p270, %s18, 1
      %s272 = smul.addr %s271, 4
      %s273 = scalar_lea.vmem %s7, %s272
      %v275 = vld [vmem:[%s269] sm:$0xf]
      %v276 = vld [vmem:[%s1] sm:$0xf]
      %vm277 = vcmask 31744
      %v279 = vsel %vm277, %v276, 0
      %vm281 = vcmask 1043456
      %v283 = vsel %vm281, %v275, 0
      %285 = vmatprep.subr.mxu0 0.0
      %286 = vmatpush1.msra.mxu0 0.0
      %287 = vmatprep.subr.mxu0 0.0
      %288 = vmatpush1.msra.mxu0 0.0
      %289 = vmatprep.subr.mxu0 0.0
      %290 = vmatpush1.msra.mxu0 0.0
      %291 = vmatprep.subr.mxu0 0.0
      %292 = vmatpush1.msra.mxu0 0.0
      %293 = vmatprep.subr.mxu0 0.0
      %294 = vmatpush1.msra.mxu0 0.0
      %295 = vmatprep.subr.mxu0 0.0
      %296 = vmatpush1.msra.mxu0 0.0
      %297 = vmatprep.subr.mxu0 0.0
      %298 = vmatpush1.msra.mxu0 0.0
      %299 = vmatprep.subr.mxu0 0.0
      %300 = vmatpush1.msra.mxu0 0.0
      %301 = vmatprep.subr.mxu0 0.0
      %302 = vmatpush1.msra.mxu0 0.0
      %303 = vmatprep.subr.mxu0 0.0
      %304 = vmatpush1.msra.mxu0 0.0
      %305 = vmatprep.subr.mxu0 0.0
      %306 = vmatpush1.msra.mxu0 0.0
      %307 = vmatprep.subr.mxu0 0.0
      %308 = vmatpush1.msra.mxu0 0.0
      %309 = vmatprep.subr.mxu0 0.0
      %310 = vmatpush1.msra.mxu0 0.0
      %311 = vmatprep.subr.mxu0 0.0
      %312 = vmatpush1.msra.mxu0 0.0
      %313 = vmatprep.subr.mxu0 0.0
      %314 = vmatpush1.msra.mxu0 0.0
      %315 = vmatprep.subr.mxu0 0.0
      %316 = vmatpush1.msra.mxu0 %v283
      %317 = vmatprep.subr.mxu0 0.0
      %318 = vmatpush2.msra.mxu0 0.0
      %319 = vmatprep.subr.mxu0 0.0
      %320 = vmatpush2.msra.mxu0 0.0
      %321 = vmatprep.subr.mxu0 0.0
      %322 = vmatpush2.msra.mxu0 0.0
      %323 = vmatprep.subr.mxu0 0.0
      %324 = vmatpush2.msra.mxu0 0.0
      %325 = vmatprep.subr.mxu0 0.0
      %326 = vmatpush2.msra.mxu0 0.0
      %327 = vmatprep.subr.mxu0 0.0
      %328 = vmatpush2.msra.mxu0 0.0
      %329 = vmatprep.subr.mxu0 0.0
      %330 = vmatpush2.msra.mxu0 0.0
      %331 = vmatprep.subr.mxu0 0.0
      %332 = vmatpush2.msra.mxu0 0.0
      %333 = vmatprep.subr.mxu0 0.0
      %334 = vmatpush2.msra.mxu0 0.0
      %335 = vmatprep.subr.mxu0 0.0
      %336 = vmatpush2.msra.mxu0 0.0
      %337 = vmatprep.subr.mxu0 0.0
      %338 = vmatpush2.msra.mxu0 0.0
      %339 = vmatprep.subr.mxu0 0.0
      %340 = vmatpush2.msra.mxu0 0.0
      %341 = vmatprep.subr.mxu0 0.0
      %342 = vmatpush2.msra.mxu0 0.0
      %343 = vmatprep.subr.mxu0 0.0
      %344 = vmatpush2.msra.mxu0 0.0
      %345 = vmatprep.subr.mxu0 0.0
      %346 = vmatpush2.msra.mxu0 0.0
      %347 = vmatprep.subr.mxu0 0.0
      %348 = vmatpush2.msra.mxu0 0.0
      %349 = vmatprep.mubr.f32.mxu0 0.0
      %350 = vmatmul.mubr.f32.gmra.mxu0 %v279
      %v351 = vpop.f32.mrf.mxu0
      %v352 = vadd.f32 0.0, %v351
      %v353 = vpop.f32.mrf.mxu0
      %354 = vdwg.mxu0
      %v355 = vld [vmem:[%s2] sm:$0x1]
      %v356 = vsub.f32 %v352, %v275
      %v358 = vlaneseq
      %v359 = vshrl.u32 %v358, 7
      %v360 = vsub.s32 0, %v359
      %v361 = vrot.slane %v355, %v360
      %v363 = vmul.f32 %v361, %v356
      %v364 = vadd.f32 %v275, %v363
      %v365 = vld [vmem:[%s3] sm:$0xff]
      %v366 = vld [vmem:[%s3 + $0x8] sm:$0xff]
      %v367 = vld [vmem:[%s3 + $0x10] sm:$0xff]
      %v368 = vld [vmem:[%s3 + $0x18] sm:$0xff]
      %v369 = vld [vmem:[%s3 + $0x20] sm:$0xff]
      %v370 = vld [vmem:[%s3 + $0x28] sm:$0xff]
      %v371 = vld [vmem:[%s3 + $0x30] sm:$0xff]
      %v372 = vld [vmem:[%s3 + $0x38] sm:$0xff]
      %v373 = vld [vmem:[%s3 + $0x40] sm:$0xff]
      %v374 = vld [vmem:[%s3 + $0x48] sm:$0xff]
      %v375 = vld [vmem:[%s3 + $0x50] sm:$0xff]
      %v376 = vld [vmem:[%s3 + $0x58] sm:$0xff]
      %v377 = vld [vmem:[%s3 + $0x60] sm:$0xff]
      %v378 = vld [vmem:[%s3 + $0x68] sm:$0xff]
      %v379 = vld [vmem:[%s3 + $0x70] sm:$0xff]
      %v380 = vld [vmem:[%s3 + $0x78] sm:$0xff]
      %v381 = vld [vmem:[%s3 + $0x80] sm:$0xff]
      %v382 = vld [vmem:[%s3 + $0x88] sm:$0xff]
      %v383 = vld [vmem:[%s3 + $0x90] sm:$0xff]
      %v384 = vld [vmem:[%s3 + $0x98] sm:$0xff]
      %v385 = vld [vmem:[%s3 + $0xa0] sm:$0xff]
      %v386 = vld [vmem:[%s3 + $0xa8] sm:$0xff]
      %v387 = vld [vmem:[%s3 + $0xb0] sm:$0xff]
      %v388 = vld [vmem:[%s3 + $0xb8] sm:$0xff]
      %v389 = vld [vmem:[%s3 + $0xc0] sm:$0xff]
      %v390 = vld [vmem:[%s3 + $0xc8] sm:$0xff]
      %v391 = vld [vmem:[%s3 + $0xd0] sm:$0xff]
      %v392 = vld [vmem:[%s3 + $0xd8] sm:$0xff]
      %v393 = vld [vmem:[%s3 + $0xe0] sm:$0xff]
      %v394 = vld [vmem:[%s3 + $0xe8] sm:$0xff]
      %v395 = vld [vmem:[%s3 + $0xf0] sm:$0xff]
      %v396 = vld [vmem:[%s3 + $0xf8] sm:$0xff]
      %v397 = vpack.c.bf16 %v364, %v364
      %v398 = vld [vmem:[%s4] sm:$0xf]
      %v400 = vlaneseq
      %v401 = vshrl.u32 %v400, 7
      %v402 = vsub.s32 0, %v401
      %v403 = vrot.slane %v398, %v402
      %v404 = vlaneseq
      %v405 = vshrl.u32 %v404, 7
      %v406 = vsub.s32 1, %v405
      %v407 = vrot.slane %v398, %v406
      %v408 = vlaneseq
      %v409 = vshrl.u32 %v408, 7
      %v410 = vsub.s32 2, %v409
      %v411 = vrot.slane %v398, %v410
      %v412 = vlaneseq
      %v413 = vshrl.u32 %v412, 7
      %v414 = vsub.s32 3, %v413
      %v415 = vrot.slane %v398, %v414
      %v452 = vunpack.c.l.b16 %v365
      %v453 = vunpack.c.h.b16 %v365
      %v454 = vunpack.c.l.b16 %v366
      %v455 = vunpack.c.h.b16 %v366
      %v456 = vunpack.c.l.b16 %v367
      %v457 = vunpack.c.h.b16 %v367
      %v458 = vunpack.c.l.b16 %v368
      %v459 = vunpack.c.h.b16 %v368
      %v460 = vunpack.c.l.b16 %v369
      %v461 = vunpack.c.h.b16 %v369
      %v462 = vunpack.c.l.b16 %v370
      %v463 = vunpack.c.h.b16 %v370
      %v464 = vunpack.c.l.b16 %v371
      %v465 = vunpack.c.h.b16 %v371
      %v466 = vunpack.c.l.b16 %v372
      %v467 = vunpack.c.h.b16 %v372
      %v468 = vunpack.c.l.b16 %v373
      %v469 = vunpack.c.h.b16 %v373
      %v470 = vunpack.c.l.b16 %v374
      %v471 = vunpack.c.h.b16 %v374
      %v472 = vunpack.c.l.b16 %v375
      %v473 = vunpack.c.h.b16 %v375
      %v474 = vunpack.c.l.b16 %v376
      %v475 = vunpack.c.h.b16 %v376
      %v476 = vunpack.c.l.b16 %v377
      %v477 = vunpack.c.h.b16 %v377
      %v478 = vunpack.c.l.b16 %v378
      %v479 = vunpack.c.h.b16 %v378
      %v480 = vunpack.c.l.b16 %v379
      %v481 = vunpack.c.h.b16 %v379
      %v482 = vunpack.c.l.b16 %v380
      %v483 = vunpack.c.h.b16 %v380
      %v484 = vunpack.c.l.b16 %v381
      %v485 = vunpack.c.h.b16 %v381
      %v486 = vunpack.c.l.b16 %v382
      %v487 = vunpack.c.h.b16 %v382
      %v488 = vunpack.c.l.b16 %v383
      %v489 = vunpack.c.h.b16 %v383
      %v490 = vunpack.c.l.b16 %v384
      %v491 = vunpack.c.h.b16 %v384
      %v492 = vunpack.c.l.b16 %v385
      %v493 = vunpack.c.h.b16 %v385
      %v494 = vunpack.c.l.b16 %v386
      %v495 = vunpack.c.h.b16 %v386
      %v496 = vunpack.c.l.b16 %v387
      %v497 = vunpack.c.h.b16 %v387
      %v498 = vunpack.c.l.b16 %v388
      %v499 = vunpack.c.h.b16 %v388
      %v500 = vunpack.c.l.b16 %v389
      %v501 = vunpack.c.h.b16 %v389
      %v502 = vunpack.c.l.b16 %v390
      %v503 = vunpack.c.h.b16 %v390
      %v504 = vunpack.c.l.b16 %v391
      %v505 = vunpack.c.h.b16 %v391
      %v506 = vunpack.c.l.b16 %v392
      %v507 = vunpack.c.h.b16 %v392
      %v508 = vunpack.c.l.b16 %v393
      %v509 = vunpack.c.h.b16 %v393
      %v510 = vunpack.c.l.b16 %v394
      %v511 = vunpack.c.h.b16 %v394
      %v512 = vunpack.c.l.b16 %v395
      %v513 = vunpack.c.h.b16 %v395
      %v514 = vunpack.c.l.b16 %v396
      %v515 = vunpack.c.h.b16 %v396
      %v516 = vpack.c.b16 %v456, %v452
      %v517 = vpack.c.b16 %v457, %v453
      %v518 = vpack.c.b16 %v458, %v454
      %v519 = vpack.c.b16 %v459, %v455
      %v520 = vpack.c.b16 %v464, %v460
      %v521 = vpack.c.b16 %v465, %v461
      %v522 = vpack.c.b16 %v466, %v462
      %v523 = vpack.c.b16 %v467, %v463
      %v524 = vpack.c.b16 %v472, %v468
      %v525 = vpack.c.b16 %v473, %v469
      %v526 = vpack.c.b16 %v474, %v470
      %v527 = vpack.c.b16 %v475, %v471
      %v528 = vpack.c.b16 %v480, %v476
      %v529 = vpack.c.b16 %v481, %v477
      %v530 = vpack.c.b16 %v482, %v478
      %v531 = vpack.c.b16 %v483, %v479
      %v532 = vpack.c.b16 %v488, %v484
      %v533 = vpack.c.b16 %v489, %v485
      %v534 = vpack.c.b16 %v490, %v486
      %v535 = vpack.c.b16 %v491, %v487
      %v536 = vpack.c.b16 %v496, %v492
      %v537 = vpack.c.b16 %v497, %v493
      %v538 = vpack.c.b16 %v498, %v494
      %v539 = vpack.c.b16 %v499, %v495
      %v540 = vpack.c.b16 %v504, %v500
      %v541 = vpack.c.b16 %v505, %v501
      %v542 = vpack.c.b16 %v506, %v502
      %v543 = vpack.c.b16 %v507, %v503
      %v544 = vpack.c.b16 %v512, %v508
      %v545 = vpack.c.b16 %v513, %v509
      %v546 = vpack.c.b16 %v514, %v510
      %v547 = vpack.c.b16 %v515, %v511
      %580 = vmatprep.subr.bf16.mxu0 %v545
      %581 = vmatpush1.bf16.msra.mxu0 %v544
      %582 = vmatprep.subr.bf16.mxu0 %v541
      %583 = vmatpush1.bf16.msra.mxu0 %v540
      %584 = vmatprep.subr.bf16.mxu0 %v537
      %585 = vmatpush1.bf16.msra.mxu0 %v536
      %586 = vmatprep.subr.bf16.mxu0 %v533
      %587 = vmatpush1.bf16.msra.mxu0 %v532
      %588 = vmatprep.subr.bf16.mxu0 %v529
      %589 = vmatpush1.bf16.msra.mxu0 %v528
      %590 = vmatprep.subr.bf16.mxu0 %v525
      %591 = vmatpush1.bf16.msra.mxu0 %v524
      %592 = vmatprep.subr.bf16.mxu0 %v521
      %593 = vmatpush1.bf16.msra.mxu0 %v520
      %594 = vmatprep.subr.bf16.mxu0 %v517
      %595 = vmatpush1.bf16.msra.mxu0 %v516
      %596 = vmatprep.subr.bf16.mxu0 0
      %597 = vmatpush2.bf16.msra.mxu0 0
      %598 = vmatprep.subr.bf16.mxu0 0
      %599 = vmatpush2.bf16.msra.mxu0 0
      %600 = vmatprep.subr.bf16.mxu0 0
      %601 = vmatpush2.bf16.msra.mxu0 0
      %602 = vmatprep.subr.bf16.mxu0 0
      %603 = vmatpush2.bf16.msra.mxu0 0
      %604 = vmatprep.subr.bf16.mxu0 0
      %605 = vmatpush2.bf16.msra.mxu0 0
      %606 = vmatprep.subr.bf16.mxu0 0
      %607 = vmatpush2.bf16.msra.mxu0 0
      %608 = vmatprep.subr.bf16.mxu0 0
      %609 = vmatpush2.bf16.msra.mxu0 0
      %610 = vmatprep.subr.bf16.mxu0 0
      %611 = vmatpush2.bf16.msra.mxu0 0
      %612 = vmatprep.mubr.bf16.mxu0 0
      %613 = vmatmul.mubr.bf16.gmra.mxu0 %v397
      %v614 = vpop.f32.mrf.mxu0
      %v615 = vadd.f32 %v403, %v614
      %v616 = vpop.f32.mrf.mxu0
      %v617 = vadd.f32 %v407, %v616
      %v618 = vpop.f32.mrf.mxu0
      %v619 = vpop.f32.mrf.mxu0
      %620 = vdwg.mxu0
      %621 = vmatprep.subr.bf16.mxu0 %v547
      %622 = vmatpush1.bf16.msra.mxu0 %v546
      %623 = vmatprep.subr.bf16.mxu0 %v543
      %624 = vmatpush1.bf16.msra.mxu0 %v542
      %625 = vmatprep.subr.bf16.mxu0 %v539
      %626 = vmatpush1.bf16.msra.mxu0 %v538
      %627 = vmatprep.subr.bf16.mxu0 %v535
      %628 = vmatpush1.bf16.msra.mxu0 %v534
      %629 = vmatprep.subr.bf16.mxu0 %v531
      %630 = vmatpush1.bf16.msra.mxu0 %v530
      %631 = vmatprep.subr.bf16.mxu0 %v527
      %632 = vmatpush1.bf16.msra.mxu0 %v526
      %633 = vmatprep.subr.bf16.mxu0 %v523
      %634 = vmatpush1.bf16.msra.mxu0 %v522
      %635 = vmatprep.subr.bf16.mxu0 %v519
      %636 = vmatpush1.bf16.msra.mxu0 %v518
      %637 = vmatprep.subr.bf16.mxu0 0
      %638 = vmatpush2.bf16.msra.mxu0 0
      %639 = vmatprep.subr.bf16.mxu0 0
      %640 = vmatpush2.bf16.msra.mxu0 0
      %641 = vmatprep.subr.bf16.mxu0 0
      %642 = vmatpush2.bf16.msra.mxu0 0
      %643 = vmatprep.subr.bf16.mxu0 0
      %644 = vmatpush2.bf16.msra.mxu0 0
      %645 = vmatprep.subr.bf16.mxu0 0
      %646 = vmatpush2.bf16.msra.mxu0 0
      %647 = vmatprep.subr.bf16.mxu0 0
      %648 = vmatpush2.bf16.msra.mxu0 0
      %649 = vmatprep.subr.bf16.mxu0 0
      %650 = vmatpush2.bf16.msra.mxu0 0
      %651 = vmatprep.subr.bf16.mxu0 0
      %652 = vmatpush2.bf16.msra.mxu0 0
      %653 = vmatprep.mubr.bf16.mxu0 0
      %654 = vmatmul.mubr.bf16.gmra.mxu0 %v397
      %v655 = vpop.f32.mrf.mxu0
      %v656 = vadd.f32 %v411, %v655
      %v657 = vpop.f32.mrf.mxu0
      %v658 = vadd.f32 %v415, %v657
      %v659 = vpop.f32.mrf.mxu0
      %v660 = vpop.f32.mrf.mxu0
      %661 = vdwg.mxu0
      %v662 = vmul.f32 %v615, 0.5
      %v663 = vmul.f32 %v617, 0.5
      %v664 = vmul.f32 %v656, 0.5
      %v665 = vmul.f32 %v658, 0.5
      %v666 = vmul.f32 %v615, 0.044715
      %v667 = vmul.f32 %v617, 0.044715
      %v668 = vmul.f32 %v656, 0.044715
      %v669 = vmul.f32 %v658, 0.044715
      %v670 = vmul.f32 %v666, %v615
      %v671 = vmul.f32 %v667, %v617
      %v672 = vmul.f32 %v668, %v656
      %v673 = vmul.f32 %v669, %v658
      %v674 = vmul.f32 %v670, %v615
      %v675 = vmul.f32 %v671, %v617
      %v676 = vmul.f32 %v672, %v656
      %v677 = vmul.f32 %v673, %v658
      %v678 = vadd.f32 %v615, %v674
      %v679 = vadd.f32 %v617, %v675
      %v680 = vadd.f32 %v656, %v676
      %v681 = vadd.f32 %v658, %v677
      %v682 = vmul.f32 %v678, 0.7978846
      %v683 = vmul.f32 %v679, 0.7978846
      %v684 = vmul.f32 %v680, 0.7978846
      %v685 = vmul.f32 %v681, 0.7978846
      %v686 = vtanh.pop %v682
      %v687 = vtanh.pop %v683
      %v688 = vtanh.pop %v684
      %v689 = vtanh.pop %v685
      %v690 = vadd.f32 %v686, 1.0
      %v691 = vadd.f32 %v687, 1.0
      %v692 = vadd.f32 %v688, 1.0
      %v693 = vadd.f32 %v689, 1.0
      %v694 = vmul.f32 %v662, %v690
      %v695 = vmul.f32 %v663, %v691
      %v696 = vmul.f32 %v664, %v692
      %v697 = vmul.f32 %v665, %v693
      %v698 = vld [vmem:[%s5] sm:$0xf]
      %v699 = vld [vmem:[%s5 + $0x4] sm:$0xf]
      %v700 = vld [vmem:[%s5 + $0x8] sm:$0xf]
      %v701 = vld [vmem:[%s5 + $0xc] sm:$0xf]
      %v702 = vld [vmem:[%s5 + $0x10] sm:$0xf]
      %v703 = vld [vmem:[%s5 + $0x14] sm:$0xf]
      %v704 = vld [vmem:[%s5 + $0x18] sm:$0xf]
      %v705 = vld [vmem:[%s5 + $0x1c] sm:$0xf]
      %v706 = vld [vmem:[%s5 + $0x20] sm:$0xf]
      %v707 = vld [vmem:[%s5 + $0x24] sm:$0xf]
      %v708 = vld [vmem:[%s5 + $0x28] sm:$0xf]
      %v709 = vld [vmem:[%s5 + $0x2c] sm:$0xf]
      %v710 = vld [vmem:[%s5 + $0x30] sm:$0xf]
      %v711 = vld [vmem:[%s5 + $0x34] sm:$0xf]
      %v712 = vld [vmem:[%s5 + $0x38] sm:$0xf]
      %v713 = vld [vmem:[%s5 + $0x3c] sm:$0xf]
      %v714 = vld [vmem:[%s5 + $0x40] sm:$0xf]
      %v715 = vld [vmem:[%s5 + $0x44] sm:$0xf]
      %v716 = vld [vmem:[%s5 + $0x48] sm:$0xf]
      %v717 = vld [vmem:[%s5 + $0x4c] sm:$0xf]
      %v718 = vld [vmem:[%s5 + $0x50] sm:$0xf]
      %v719 = vld [vmem:[%s5 + $0x54] sm:$0xf]
      %v720 = vld [vmem:[%s5 + $0x58] sm:$0xf]
      %v721 = vld [vmem:[%s5 + $0x5c] sm:$0xf]
      %v722 = vld [vmem:[%s5 + $0x60] sm:$0xf]
      %v723 = vld [vmem:[%s5 + $0x64] sm:$0xf]
      %v724 = vld [vmem:[%s5 + $0x68] sm:$0xf]
      %v725 = vld [vmem:[%s5 + $0x6c] sm:$0xf]
      %v726 = vld [vmem:[%s5 + $0x70] sm:$0xf]
      %v727 = vld [vmem:[%s5 + $0x74] sm:$0xf]
      %v728 = vld [vmem:[%s5 + $0x78] sm:$0xf]
      %v729 = vld [vmem:[%s5 + $0x7c] sm:$0xf]
      %v730 = vld [vmem:[%s5 + $0x80] sm:$0xf]
      %v731 = vld [vmem:[%s5 + $0x84] sm:$0xf]
      %v732 = vld [vmem:[%s5 + $0x88] sm:$0xf]
      %v733 = vld [vmem:[%s5 + $0x8c] sm:$0xf]
      %v734 = vld [vmem:[%s5 + $0x90] sm:$0xf]
      %v735 = vld [vmem:[%s5 + $0x94] sm:$0xf]
      %v736 = vld [vmem:[%s5 + $0x98] sm:$0xf]
      %v737 = vld [vmem:[%s5 + $0x9c] sm:$0xf]
      %v738 = vld [vmem:[%s5 + $0xa0] sm:$0xf]
      %v739 = vld [vmem:[%s5 + $0xa4] sm:$0xf]
      %v740 = vld [vmem:[%s5 + $0xa8] sm:$0xf]
      %v741 = vld [vmem:[%s5 + $0xac] sm:$0xf]
      %v742 = vld [vmem:[%s5 + $0xb0] sm:$0xf]
      %v743 = vld [vmem:[%s5 + $0xb4] sm:$0xf]
      %v744 = vld [vmem:[%s5 + $0xb8] sm:$0xf]
      %v745 = vld [vmem:[%s5 + $0xbc] sm:$0xf]
      %v746 = vld [vmem:[%s5 + $0xc0] sm:$0xf]
      %v747 = vld [vmem:[%s5 + $0xc4] sm:$0xf]
      %v748 = vld [vmem:[%s5 + $0xc8] sm:$0xf]
      %v749 = vld [vmem:[%s5 + $0xcc] sm:$0xf]
      %v750 = vld [vmem:[%s5 + $0xd0] sm:$0xf]
      %v751 = vld [vmem:[%s5 + $0xd4] sm:$0xf]
      %v752 = vld [vmem:[%s5 + $0xd8] sm:$0xf]
      %v753 = vld [vmem:[%s5 + $0xdc] sm:$0xf]
      %v754 = vld [vmem:[%s5 + $0xe0] sm:$0xf]
      %v755 = vld [vmem:[%s5 + $0xe4] sm:$0xf]
      %v756 = vld [vmem:[%s5 + $0xe8] sm:$0xf]
      %v757 = vld [vmem:[%s5 + $0xec] sm:$0xf]
      %v758 = vld [vmem:[%s5 + $0xf0] sm:$0xf]
      %v759 = vld [vmem:[%s5 + $0xf4] sm:$0xf]
      %v760 = vld [vmem:[%s5 + $0xf8] sm:$0xf]
      %v761 = vld [vmem:[%s5 + $0xfc] sm:$0xf]
      %v762 = vpack.c.bf16 %v694, %v694
      %v763 = vpack.c.bf16 %v695, %v695
      %v764 = vpack.c.bf16 %v696, %v696
      %v765 = vpack.c.bf16 %v697, %v697
      %v766 = vld [vmem:[%s6] sm:$0x1]
      %v768 = vlaneseq
      %v769 = vshrl.u32 %v768, 7
      %v770 = vsub.s32 0, %v769
      %v771 = vrot.slane %v766, %v770
      %v837 = vunpack.c.l.b16 %v698
      %v838 = vunpack.c.l.b16 %v699
      %v839 = vunpack.c.l.b16 %v700
      %v840 = vunpack.c.l.b16 %v701
      %v841 = vunpack.c.l.b16 %v702
      %v842 = vunpack.c.l.b16 %v703
      %v843 = vunpack.c.l.b16 %v704
      %v844 = vunpack.c.l.b16 %v705
      %v845 = vunpack.c.l.b16 %v706
      %v846 = vunpack.c.l.b16 %v707
      %v847 = vunpack.c.l.b16 %v708
      %v848 = vunpack.c.l.b16 %v709
      %v849 = vunpack.c.l.b16 %v710
      %v850 = vunpack.c.l.b16 %v711
      %v851 = vunpack.c.l.b16 %v712
      %v852 = vunpack.c.l.b16 %v713
      %v853 = vunpack.c.l.b16 %v714
      %v854 = vunpack.c.l.b16 %v715
      %v855 = vunpack.c.l.b16 %v716
      %v856 = vunpack.c.l.b16 %v717
      %v857 = vunpack.c.l.b16 %v718
      %v858 = vunpack.c.l.b16 %v719
      %v859 = vunpack.c.l.b16 %v720
      %v860 = vunpack.c.l.b16 %v721
      %v861 = vunpack.c.l.b16 %v722
      %v862 = vunpack.c.l.b16 %v723
      %v863 = vunpack.c.l.b16 %v724
      %v864 = vunpack.c.l.b16 %v725
      %v865 = vunpack.c.l.b16 %v726
      %v866 = vunpack.c.l.b16 %v727
      %v867 = vunpack.c.l.b16 %v728
      %v868 = vunpack.c.l.b16 %v729
      %v869 = vunpack.c.l.b16 %v730
      %v870 = vunpack.c.l.b16 %v731
      %v871 = vunpack.c.l.b16 %v732
      %v872 = vunpack.c.l.b16 %v733
      %v873 = vunpack.c.l.b16 %v734
      %v874 = vunpack.c.l.b16 %v735
      %v875 = vunpack.c.l.b16 %v736
      %v876 = vunpack.c.l.b16 %v737
      %v877 = vunpack.c.l.b16 %v738
      %v878 = vunpack.c.l.b16 %v739
      %v879 = vunpack.c.l.b16 %v740
      %v880 = vunpack.c.l.b16 %v741
      %v881 = vunpack.c.l.b16 %v742
      %v882 = vunpack.c.l.b16 %v743
      %v883 = vunpack.c.l.b16 %v744
      %v884 = vunpack.c.l.b16 %v745
      %v885 = vunpack.c.l.b16 %v746
      %v886 = vunpack.c.l.b16 %v747
      %v887 = vunpack.c.l.b16 %v748
      %v888 = vunpack.c.l.b16 %v749
      %v889 = vunpack.c.l.b16 %v750
      %v890 = vunpack.c.l.b16 %v751
      %v891 = vunpack.c.l.b16 %v752
      %v892 = vunpack.c.l.b16 %v753
      %v893 = vunpack.c.l.b16 %v754
      %v894 = vunpack.c.l.b16 %v755
      %v895 = vunpack.c.l.b16 %v756
      %v896 = vunpack.c.l.b16 %v757
      %v897 = vunpack.c.l.b16 %v758
      %v898 = vunpack.c.l.b16 %v759
      %v899 = vunpack.c.l.b16 %v760
      %v900 = vunpack.c.l.b16 %v761
      %v901 = vpack.c.b16 %v838, %v837
      %v902 = vpack.c.b16 %v840, %v839
      %v903 = vpack.c.b16 %v842, %v841
      %v904 = vpack.c.b16 %v844, %v843
      %v905 = vpack.c.b16 %v846, %v845
      %v906 = vpack.c.b16 %v848, %v847
      %v907 = vpack.c.b16 %v850, %v849
      %v908 = vpack.c.b16 %v852, %v851
      %v909 = vpack.c.b16 %v854, %v853
      %v910 = vpack.c.b16 %v856, %v855
      %v911 = vpack.c.b16 %v858, %v857
      %v912 = vpack.c.b16 %v860, %v859
      %v913 = vpack.c.b16 %v862, %v861
      %v914 = vpack.c.b16 %v864, %v863
      %v915 = vpack.c.b16 %v866, %v865
      %v916 = vpack.c.b16 %v868, %v867
      %v917 = vpack.c.b16 %v870, %v869
      %v918 = vpack.c.b16 %v872, %v871
      %v919 = vpack.c.b16 %v874, %v873
      %v920 = vpack.c.b16 %v876, %v875
      %v921 = vpack.c.b16 %v878, %v877
      %v922 = vpack.c.b16 %v880, %v879
      %v923 = vpack.c.b16 %v882, %v881
      %v924 = vpack.c.b16 %v884, %v883
      %v925 = vpack.c.b16 %v886, %v885
      %v926 = vpack.c.b16 %v888, %v887
      %v927 = vpack.c.b16 %v890, %v889
      %v928 = vpack.c.b16 %v892, %v891
      %v929 = vpack.c.b16 %v894, %v893
      %v930 = vpack.c.b16 %v896, %v895
      %v931 = vpack.c.b16 %v898, %v897
      %v932 = vpack.c.b16 %v900, %v899
      %965 = vmatprep.subr.bf16.mxu0 0
      %966 = vmatpush1.bf16.msra.mxu0 %v908
      %967 = vmatprep.subr.bf16.mxu0 0
      %968 = vmatpush1.bf16.msra.mxu0 %v907
      %969 = vmatprep.subr.bf16.mxu0 0
      %970 = vmatpush1.bf16.msra.mxu0 %v906
      %971 = vmatprep.subr.bf16.mxu0 0
      %972 = vmatpush1.bf16.msra.mxu0 %v905
      %973 = vmatprep.subr.bf16.mxu0 0
      %974 = vmatpush1.bf16.msra.mxu0 %v904
      %975 = vmatprep.subr.bf16.mxu0 0
      %976 = vmatpush1.bf16.msra.mxu0 %v903
      %977 = vmatprep.subr.bf16.mxu0 0
      %978 = vmatpush1.bf16.msra.mxu0 %v902
      %979 = vmatprep.subr.bf16.mxu0 0
      %980 = vmatpush1.bf16.msra.mxu0 %v901
      %981 = vmatprep.subr.bf16.mxu0 0
      %982 = vmatpush2.bf16.msra.mxu0 %v916
      %983 = vmatprep.subr.bf16.mxu0 0
      %984 = vmatpush2.bf16.msra.mxu0 %v915
      %985 = vmatprep.subr.bf16.mxu0 0
      %986 = vmatpush2.bf16.msra.mxu0 %v914
      %987 = vmatprep.subr.bf16.mxu0 0
      %988 = vmatpush2.bf16.msra.mxu0 %v913
      %989 = vmatprep.subr.bf16.mxu0 0
      %990 = vmatpush2.bf16.msra.mxu0 %v912
      %991 = vmatprep.subr.bf16.mxu0 0
      %992 = vmatpush2.bf16.msra.mxu0 %v911
      %993 = vmatprep.subr.bf16.mxu0 0
      %994 = vmatpush2.bf16.msra.mxu0 %v910
      %995 = vmatprep.subr.bf16.mxu0 0
      %996 = vmatpush2.bf16.msra.mxu0 %v909
      %997 = vmatprep.mubr.bf16.mxu0 %v763
      %998 = vmatmul.mubr.bf16.gmra.mxu0 %v762
      %v999 = vpop.f32.mrf.mxu0
      %v1000 = vadd.f32 %v771, %v999
      %v1001 = vpop.f32.mrf.mxu0
      %v1002 = vpop.f32.mrf.mxu0
      %v1003 = vpop.f32.mrf.mxu0
      %1004 = vdwg.mxu0
      %1005 = vmatprep.subr.bf16.mxu0 0
      %1006 = vmatpush1.bf16.msra.mxu0 %v924
      %1007 = vmatprep.subr.bf16.mxu0 0
      %1008 = vmatpush1.bf16.msra.mxu0 %v923
      %1009 = vmatprep.subr.bf16.mxu0 0
      %1010 = vmatpush1.bf16.msra.mxu0 %v922
      %1011 = vmatprep.subr.bf16.mxu0 0
      %1012 = vmatpush1.bf16.msra.mxu0 %v921
      %1013 = vmatprep.subr.bf16.mxu0 0
      %1014 = vmatpush1.bf16.msra.mxu0 %v920
      %1015 = vmatprep.subr.bf16.mxu0 0
      %1016 = vmatpush1.bf16.msra.mxu0 %v919
      %1017 = vmatprep.subr.bf16.mxu0 0
      %1018 = vmatpush1.bf16.msra.mxu0 %v918
      %1019 = vmatprep.subr.bf16.mxu0 0
      %1020 = vmatpush1.bf16.msra.mxu0 %v917
      %1021 = vmatprep.subr.bf16.mxu0 0
      %1022 = vmatpush2.bf16.msra.mxu0 %v932
      %1023 = vmatprep.subr.bf16.mxu0 0
      %1024 = vmatpush2.bf16.msra.mxu0 %v931
      %1025 = vmatprep.subr.bf16.mxu0 0
      %1026 = vmatpush2.bf16.msra.mxu0 %v930
      %1027 = vmatprep.subr.bf16.mxu0 0
      %1028 = vmatpush2.bf16.msra.mxu0 %v929
      %1029 = vmatprep.subr.bf16.mxu0 0
      %1030 = vmatpush2.bf16.msra.mxu0 %v928
      %1031 = vmatprep.subr.bf16.mxu0 0
      %1032 = vmatpush2.bf16.msra.mxu0 %v927
      %1033 = vmatprep.subr.bf16.mxu0 0
      %1034 = vmatpush2.bf16.msra.mxu0 %v926
      %1035 = vmatprep.subr.bf16.mxu0 0
      %1036 = vmatpush2.bf16.msra.mxu0 %v925
      %1037 = vmatprep.mubr.bf16.mxu0 %v765
      %1038 = vmatmul.mubr.bf16.gmra.mxu0 %v764
      %v1039 = vpop.f32.mrf.mxu0
      %v1040 = vadd.f32 %v1000, %v1039
      %v1041 = vpop.f32.mrf.mxu0
      %v1042 = vpop.f32.mrf.mxu0
      %v1043 = vpop.f32.mrf.mxu0
      %1044 = vdwg.mxu0
      %v1045 = vadd.f32 %v364, %v1040
      %1046 = vst [vmem:[%s273] sm:$0xf] %v1045
      %p1047 = scmp.lt.s32.totalorder %s18, 1
      %s1048 = scalar_select %p1047, %s18, 1
      %s1049 = smul.addr %s1048, 4
      %s1050 = scalar_lea.vmem %s7, %s1049
      // Predicated region
      $region49: #{_lambda_.18} parent=47 // pred_check
        %p1051 = pneg %p188
      $region50: #{_lambda_.18} parent=47 // pred_check_branch
        %1053 = sbr.rel (%p1051) target = $region52
      $region51: #{_lambda_.18} parent=47 // pred_region
        _
      $region52: #{_lambda_.18} parent=47 // pred_fallthru
        _
    $region48: #{_lambda_.18} parent=5 // pred_fallthru
      _
    %p1054 = scmp.le.s32.totalorder 2, %s13
    // Predicated region
    $region53: #{_lambda_.18} parent=5 // pred_check
      %p1055 = pneg %p1054
    $region54: #{_lambda_.18} parent=5 // pred_check_branch
      %1057 = sbr.rel (%p1055) target = $region56
    $region55: #{_lambda_.18} parent=5 // pred_region
      %s1058 = ssub.s32 %s13, 2
      // Predicated region
      $region57: #{_lambda_.18} parent=55 // pred_check
        %p1059 = pneg %p194
      $region58: #{_lambda_.18} parent=55 // pred_check_branch
        %1061 = sbr.rel (%p1059) target = $region60
      $region59: #{_lambda_.18} parent=55 // pred_region
        %p1062 = scmp.lt.s32.totalorder %s19, 1
        %s1063 = scalar_select %p1062, %s19, 1
        %s1064 = smul.addr %s1063, 4
        %s1065 = scalar_lea.vmem %s7, %s1064
      $region60: #{_lambda_.18} parent=55 // pred_fallthru
        _
    $region56: #{_lambda_.18} parent=5 // pred_fallthru
      _
  $region6: #{_lambda_.18} parent=0 // loop_footer
    %s17 = sadd.s32 1, %s13
  $region7: #{_lambda_.18} parent=0 // loop_footer_branch
    %12 = sbr.rel target = $region3
  $region8: #{_lambda_.18} parent=0 // loop_exit
    _

// kernel: _lambda_.19
$region0: #{_lambda_.19}
  #allocation0 [shape = 'u32[]', space=smem, size = 0x4, offset = 0x4, fixed_abs, tag = 'smem constant byte address 0x4 - core index']
  #allocation1 [shape = 'u32[144,128]{1,0:T(1,128)}', space=vmem, size = 0x12000, scoped, tag = 'internal scratch']
  %s0 = inlined_call_operand.vmem [shape: f32[2,4,128], index: 0, kind: input, shape index: {}]
  %s1 = inlined_call_operand.vmem [shape: f32[1,128], index: 1, kind: input, shape index: {}, may-alias: {1,8,14}]
  %s2 = inlined_call_operand.vmem [shape: f32[1,128], index: 2, kind: input, shape index: {}, may-alias: {2,9,15}]
  %s3 = inlined_call_operand.vmem [shape: bf16[128,384], index: 3, kind: input, shape index: {}]
  %s4 = inlined_call_operand.vmem [shape: f32[1,384], index: 4, kind: input, shape index: {}]
  %s5 = inlined_call_operand.vmem [shape: f32[4,4,4], index: 5, kind: input, shape index: {}]
  %s6 = inlined_call_operand.vmem [shape: bf16[256,128], index: 6, kind: input, shape index: {}]
  %s7 = inlined_call_operand.vmem [shape: f32[1,128], index: 7, kind: input, shape index: {}]
  %s8 = inlined_call_operand.vmem [shape: f32[1,128], index: 8, kind: input, shape index: {}, may-alias: {1,8,14}]
  %s9 = inlined_call_operand.vmem [shape: f32[1,128], index: 9, kind: input, shape index: {}, may-alias: {2,9,15}]
  %s10 = inlined_call_operand.vmem [shape: bf16[128,512], index: 10, kind: input, shape index: {}]
  %s11 = inlined_call_operand.vmem [shape: f32[1,512], index: 11, kind: input, shape index: {}]
  %s12 = inlined_call_operand.vmem [shape: bf16[512,128], index: 12, kind: input, shape index: {}]
  %s13 = inlined_call_operand.vmem [shape: f32[1,128], index: 13, kind: input, shape index: {}]
  %s14 = inlined_call_operand.vmem [shape: f32[1,128], index: 14, kind: input, shape index: {}, may-alias: {1,8,14}]
  %s15 = inlined_call_operand.vmem [shape: f32[1,128], index: 15, kind: input, shape index: {}, may-alias: {2,9,15}]
  %s16 = inlined_call_operand.vmem [shape: bf16[128,10], index: 16, kind: input, shape index: {}]
  %s17 = inlined_call_operand.vmem [shape: f32[1,10], index: 17, kind: input, shape index: {}]
  %s18 = inlined_call_operand.hbm [shape: f32[2,1,10], index: 18, kind: output, shape index: {}]
  %s19 = sld [smem:[#allocation0]]
  $region105: #{_lambda_.19} parent=0
    _
  %s21 = ssub.s32 1, %s19
  %s22 = scalar_select 0, %s21, %s19
  $region1: #{_lambda_.19} parent=0
    #allocation2 [shape = 'u8[1024]{0}', space=vmem, size = 0x400, scoped, tag = 'output window, operand 0']
    #allocation3 [shape = 's32[2]{0}', space=sflag, size = 0x8, scoped, tag = 'scoped memory for _lambda_.19']
    %23 = vsyncpa [#allocation3], 0
    %s24 = scalar_lea.sflag [#allocation3], 1
    %25 = vsyncpa %s24, 0
    loop: start=0, step=1, limit=4
    $region2: #{_lambda_.19} parent=1 // loop_pre_header
      _
    $region3: #{_lambda_.19} parent=1 // loop_header
      %s27 = sphi 0, %s31
      %p28 = scmp.ge.s32.totalorder %s27, 4
      %s37 = sphi 0, %s39
      %s40 = sphi 0, %s37
      %s41 = sphi 0, %s40
      %s57 = sphi 0, %s41
      %s61 = sphi 0, %s61
      %s63 = sphi 0, %s61
      %s64 = sphi 0, %s63
      %s78 = sphi 0, %s64
      %s82 = sphi 0, %s82
      %s84 = sphi 0, %s82
      %s85 = sphi 0, %s84
      %s99 = sphi 0, %s85
      %s103 = sphi 0, %s103
      %s105 = sphi 0, %s103
      %s106 = sphi 0, %s105
      %s120 = sphi 0, %s106
      %s124 = sphi 0, %s124
      %s126 = sphi 0, %s124
      %s127 = sphi 0, %s126
      %s141 = sphi 0, %s127
      %s145 = sphi 0, %s145
      %s147 = sphi 0, %s145
      %s148 = sphi 0, %s147
      %s162 = sphi 0, %s148
      %s166 = sphi 0, %s166
      %s168 = sphi 0, %s166
      %s169 = sphi 0, %s168
      %s183 = sphi 0, %s169
      %s187 = sphi 0, %s187
      %s189 = sphi 0, %s187
      %s190 = sphi 0, %s189
      %s204 = sphi 0, %s190
      %s208 = sphi 0, %s208
      %s210 = sphi 0, %s208
      %s211 = sphi 0, %s210
      %s225 = sphi 0, %s211
      %s229 = sphi 0, %s229
      %s231 = sphi 0, %s229
      %s232 = sphi 0, %s231
      %s246 = sphi 0, %s232
      %s250 = sphi 0, %s250
      %s252 = sphi 0, %s250
      %s253 = sphi 0, %s252
      %s267 = sphi 0, %s253
      %s271 = sphi 0, %s271
      %s273 = sphi 0, %s271
      %s274 = sphi 0, %s273
      %s288 = sphi 0, %s274
      %s292 = sphi 0, %s292
      %s294 = sphi 0, %s292
      %s295 = sphi 0, %s294
      %s309 = sphi 0, %s295
      %s313 = sphi 0, %s313
      %s315 = sphi 0, %s313
      %s316 = sphi 0, %s315
      %s330 = sphi 0, %s316
      %s334 = sphi 0, %s334
      %s336 = sphi 0, %s334
      %s337 = sphi 0, %s336
      %s351 = sphi 0, %s337
      %s355 = sphi 0, %s355
      %s357 = sphi 0, %s355
      %s358 = sphi 0, %s357
      %s372 = sphi 0, %s358
      %s376 = sphi 0, %s376
      %s378 = sphi 0, %s376
      %s379 = sphi 0, %s378
      %s393 = sphi 0, %s379
      %s397 = sphi 0, %s397
      %s399 = sphi 0, %s397
      %s400 = sphi 0, %s399
      %s414 = sphi 0, %s400
      %s420 = sphi 0, %s422
      %s423 = sphi 0, %s420
      %s424 = sphi 0, %s423
      %s440 = sphi 0, %s424
    $region4: #{_lambda_.19} parent=1 // loop_header_branch
      %30 = sbr.rel (%p28) target = $region8
    $region5: #{_lambda_.19} parent=1 // loop_body
      %s32 = ssub.s32 %s27, 1
      %s33 = ssub.s32 %s27, 2
      %s34 = sadd.s32 %s27, 1
      %s35 = ssub.s32 %s27, %s34
      %p36 = scmp.eq.s32.totalorder %s35, 0
      %s38 = sadd.s32 %s37, 1
      %s39 = scalar_select %p36, %s37, %s38
      %p42 = pneg %p36
      %p43 = scmp.eq.s32.totalorder %s27, 1
      %p44 = por %p42, %p43
      %p45 = scmp.ne.s32.totalorder %s37, %s40
      %p46 = scmp.eq.s32.totalorder %s27, 0
      %p47 = por %p45, %p46
      %p48 = scmp.ne.s32.totalorder %s37, %s40
      %p49 = scmp.eq.s32.totalorder %s32, 1
      %p50 = por %p48, %p49
      %p51 = scmp.ne.s32.totalorder %s40, %s41
      %p52 = scmp.eq.s32.totalorder %s32, 0
      %p53 = por %p51, %p52
      %p54 = scmp.ne.s32.totalorder %s40, %s41
      %p55 = scmp.eq.s32.totalorder %s33, 1
      %p56 = por %p54, %p55
      %p58 = scmp.ne.s32.totalorder %s41, %s57
      %p59 = scmp.eq.s32.totalorder %s33, 0
      %p60 = por %p58, %p59
      %s62 = sadd.s32 %s61, 1
      %p65 = scmp.eq.s32.totalorder %s27, 1
      %p66 = scmp.ne.s32.totalorder %s61, %s63
      %p67 = scmp.eq.s32.totalorder %s27, 0
      %p68 = por %p66, %p67
      %p69 = scmp.ne.s32.totalorder %s61, %s63
      %p70 = scmp.eq.s32.totalorder %s32, 1
      %p71 = por %p69, %p70
      %p72 = scmp.ne.s32.totalorder %s63, %s64
      %p73 = scmp.eq.s32.totalorder %s32, 0
      %p74 = por %p72, %p73
      %p75 = scmp.ne.s32.totalorder %s63, %s64
      %p76 = scmp.eq.s32.totalorder %s33, 1
      %p77 = por %p75, %p76
      %p79 = scmp.ne.s32.totalorder %s64, %s78
      %p80 = scmp.eq.s32.totalorder %s33, 0
      %p81 = por %p79, %p80
      %s83 = sadd.s32 %s82, 1
      %p86 = scmp.eq.s32.totalorder %s27, 1
      %p87 = scmp.ne.s32.totalorder %s82, %s84
      %p88 = scmp.eq.s32.totalorder %s27, 0
      %p89 = por %p87, %p88
      %p90 = scmp.ne.s32.totalorder %s82, %s84
      %p91 = scmp.eq.s32.totalorder %s32, 1
      %p92 = por %p90, %p91
      %p93 = scmp.ne.s32.totalorder %s84, %s85
      %p94 = scmp.eq.s32.totalorder %s32, 0
      %p95 = por %p93, %p94
      %p96 = scmp.ne.s32.totalorder %s84, %s85
      %p97 = scmp.eq.s32.totalorder %s33, 1
      %p98 = por %p96, %p97
      %p100 = scmp.ne.s32.totalorder %s85, %s99
      %p101 = scmp.eq.s32.totalorder %s33, 0
      %p102 = por %p100, %p101
      %s104 = sadd.s32 %s103, 1
      %p107 = scmp.eq.s32.totalorder %s27, 1
      %p108 = scmp.ne.s32.totalorder %s103, %s105
      %p109 = scmp.eq.s32.totalorder %s27, 0
      %p110 = por %p108, %p109
      %p111 = scmp.ne.s32.totalorder %s103, %s105
      %p112 = scmp.eq.s32.totalorder %s32, 1
      %p113 = por %p111, %p112
      %p114 = scmp.ne.s32.totalorder %s105, %s106
      %p115 = scmp.eq.s32.totalorder %s32, 0
      %p116 = por %p114, %p115
      %p117 = scmp.ne.s32.totalorder %s105, %s106
      %p118 = scmp.eq.s32.totalorder %s33, 1
      %p119 = por %p117, %p118
      %p121 = scmp.ne.s32.totalorder %s106, %s120
      %p122 = scmp.eq.s32.totalorder %s33, 0
      %p123 = por %p121, %p122
      %s125 = sadd.s32 %s124, 1
      %p128 = scmp.eq.s32.totalorder %s27, 1
      %p129 = scmp.ne.s32.totalorder %s124, %s126
      %p130 = scmp.eq.s32.totalorder %s27, 0
      %p131 = por %p129, %p130
      %p132 = scmp.ne.s32.totalorder %s124, %s126
      %p133 = scmp.eq.s32.totalorder %s32, 1
      %p134 = por %p132, %p133
      %p135 = scmp.ne.s32.totalorder %s126, %s127
      %p136 = scmp.eq.s32.totalorder %s32, 0
      %p137 = por %p135, %p136
      %p138 = scmp.ne.s32.totalorder %s126, %s127
      %p139 = scmp.eq.s32.totalorder %s33, 1
      %p140 = por %p138, %p139
      %p142 = scmp.ne.s32.totalorder %s127, %s141
      %p143 = scmp.eq.s32.totalorder %s33, 0
      %p144 = por %p142, %p143
      %s146 = sadd.s32 %s145, 1
      %p149 = scmp.eq.s32.totalorder %s27, 1
      %p150 = scmp.ne.s32.totalorder %s145, %s147
      %p151 = scmp.eq.s32.totalorder %s27, 0
      %p152 = por %p150, %p151
      %p153 = scmp.ne.s32.totalorder %s145, %s147
      %p154 = scmp.eq.s32.totalorder %s32, 1
      %p155 = por %p153, %p154
      %p156 = scmp.ne.s32.totalorder %s147, %s148
      %p157 = scmp.eq.s32.totalorder %s32, 0
      %p158 = por %p156, %p157
      %p159 = scmp.ne.s32.totalorder %s147, %s148
      %p160 = scmp.eq.s32.totalorder %s33, 1
      %p161 = por %p159, %p160
      %p163 = scmp.ne.s32.totalorder %s148, %s162
      %p164 = scmp.eq.s32.totalorder %s33, 0
      %p165 = por %p163, %p164
      %s167 = sadd.s32 %s166, 1
      %p170 = scmp.eq.s32.totalorder %s27, 1
      %p171 = scmp.ne.s32.totalorder %s166, %s168
      %p172 = scmp.eq.s32.totalorder %s27, 0
      %p173 = por %p171, %p172
      %p174 = scmp.ne.s32.totalorder %s166, %s168
      %p175 = scmp.eq.s32.totalorder %s32, 1
      %p176 = por %p174, %p175
      %p177 = scmp.ne.s32.totalorder %s168, %s169
      %p178 = scmp.eq.s32.totalorder %s32, 0
      %p179 = por %p177, %p178
      %p180 = scmp.ne.s32.totalorder %s168, %s169
      %p181 = scmp.eq.s32.totalorder %s33, 1
      %p182 = por %p180, %p181
      %p184 = scmp.ne.s32.totalorder %s169, %s183
      %p185 = scmp.eq.s32.totalorder %s33, 0
      %p186 = por %p184, %p185
      %s188 = sadd.s32 %s187, 1
      %p191 = scmp.eq.s32.totalorder %s27, 1
      %p192 = scmp.ne.s32.totalorder %s187, %s189
      %p193 = scmp.eq.s32.totalorder %s27, 0
      %p194 = por %p192, %p193
      %p195 = scmp.ne.s32.totalorder %s187, %s189
      %p196 = scmp.eq.s32.totalorder %s32, 1
      %p197 = por %p195, %p196
      %p198 = scmp.ne.s32.totalorder %s189, %s190
      %p199 = scmp.eq.s32.totalorder %s32, 0
      %p200 = por %p198, %p199
      %p201 = scmp.ne.s32.totalorder %s189, %s190
      %p202 = scmp.eq.s32.totalorder %s33, 1
      %p203 = por %p201, %p202
      %p205 = scmp.ne.s32.totalorder %s190, %s204
      %p206 = scmp.eq.s32.totalorder %s33, 0
      %p207 = por %p205, %p206
      %s209 = sadd.s32 %s208, 1
      %p212 = scmp.eq.s32.totalorder %s27, 1
      %p213 = scmp.ne.s32.totalorder %s208, %s210
      %p214 = scmp.eq.s32.totalorder %s27, 0
      %p215 = por %p213, %p214
      %p216 = scmp.ne.s32.totalorder %s208, %s210
      %p217 = scmp.eq.s32.totalorder %s32, 1
      %p218 = por %p216, %p217
      %p219 = scmp.ne.s32.totalorder %s210, %s211
      %p220 = scmp.eq.s32.totalorder %s32, 0
      %p221 = por %p219, %p220
      %p222 = scmp.ne.s32.totalorder %s210, %s211
      %p223 = scmp.eq.s32.totalorder %s33, 1
      %p224 = por %p222, %p223
      %p226 = scmp.ne.s32.totalorder %s211, %s225
      %p227 = scmp.eq.s32.totalorder %s33, 0
      %p228 = por %p226, %p227
      %s230 = sadd.s32 %s229, 1
      %p233 = scmp.eq.s32.totalorder %s27, 1
      %p234 = scmp.ne.s32.totalorder %s229, %s231
      %p235 = scmp.eq.s32.totalorder %s27, 0
      %p236 = por %p234, %p235
      %p237 = scmp.ne.s32.totalorder %s229, %s231
      %p238 = scmp.eq.s32.totalorder %s32, 1
      %p239 = por %p237, %p238
      %p240 = scmp.ne.s32.totalorder %s231, %s232
      %p241 = scmp.eq.s32.totalorder %s32, 0
      %p242 = por %p240, %p241
      %p243 = scmp.ne.s32.totalorder %s231, %s232
      %p244 = scmp.eq.s32.totalorder %s33, 1
      %p245 = por %p243, %p244
      %p247 = scmp.ne.s32.totalorder %s232, %s246
      %p248 = scmp.eq.s32.totalorder %s33, 0
      %p249 = por %p247, %p248
      %s251 = sadd.s32 %s250, 1
      %p254 = scmp.eq.s32.totalorder %s27, 1
      %p255 = scmp.ne.s32.totalorder %s250, %s252
      %p256 = scmp.eq.s32.totalorder %s27, 0
      %p257 = por %p255, %p256
      %p258 = scmp.ne.s32.totalorder %s250, %s252
      %p259 = scmp.eq.s32.totalorder %s32, 1
      %p260 = por %p258, %p259
      %p261 = scmp.ne.s32.totalorder %s252, %s253
      %p262 = scmp.eq.s32.totalorder %s32, 0
      %p263 = por %p261, %p262
      %p264 = scmp.ne.s32.totalorder %s252, %s253
      %p265 = scmp.eq.s32.totalorder %s33, 1
      %p266 = por %p264, %p265
      %p268 = scmp.ne.s32.totalorder %s253, %s267
      %p269 = scmp.eq.s32.totalorder %s33, 0
      %p270 = por %p268, %p269
      %s272 = sadd.s32 %s271, 1
      %p275 = scmp.eq.s32.totalorder %s27, 1
      %p276 = scmp.ne.s32.totalorder %s271, %s273
      %p277 = scmp.eq.s32.totalorder %s27, 0
      %p278 = por %p276, %p277
      %p279 = scmp.ne.s32.totalorder %s271, %s273
      %p280 = scmp.eq.s32.totalorder %s32, 1
      %p281 = por %p279, %p280
      %p282 = scmp.ne.s32.totalorder %s273, %s274
      %p283 = scmp.eq.s32.totalorder %s32, 0
      %p284 = por %p282, %p283
      %p285 = scmp.ne.s32.totalorder %s273, %s274
      %p286 = scmp.eq.s32.totalorder %s33, 1
      %p287 = por %p285, %p286
      %p289 = scmp.ne.s32.totalorder %s274, %s288
      %p290 = scmp.eq.s32.totalorder %s33, 0
      %p291 = por %p289, %p290
      %s293 = sadd.s32 %s292, 1
      %p296 = scmp.eq.s32.totalorder %s27, 1
      %p297 = scmp.ne.s32.totalorder %s292, %s294
      %p298 = scmp.eq.s32.totalorder %s27, 0
      %p299 = por %p297, %p298
      %p300 = scmp.ne.s32.totalorder %s292, %s294
      %p301 = scmp.eq.s32.totalorder %s32, 1
      %p302 = por %p300, %p301
      %p303 = scmp.ne.s32.totalorder %s294, %s295
      %p304 = scmp.eq.s32.totalorder %s32, 0
      %p305 = por %p303, %p304
      %p306 = scmp.ne.s32.totalorder %s294, %s295
      %p307 = scmp.eq.s32.totalorder %s33, 1
      %p308 = por %p306, %p307
      %p310 = scmp.ne.s32.totalorder %s295, %s309
      %p311 = scmp.eq.s32.totalorder %s33, 0
      %p312 = por %p310, %p311
      %s314 = sadd.s32 %s313, 1
      %p317 = scmp.eq.s32.totalorder %s27, 1
      %p318 = scmp.ne.s32.totalorder %s313, %s315
      %p319 = scmp.eq.s32.totalorder %s27, 0
      %p320 = por %p318, %p319
      %p321 = scmp.ne.s32.totalorder %s313, %s315
      %p322 = scmp.eq.s32.totalorder %s32, 1
      %p323 = por %p321, %p322
      %p324 = scmp.ne.s32.totalorder %s315, %s316
      %p325 = scmp.eq.s32.totalorder %s32, 0
      %p326 = por %p324, %p325
      %p327 = scmp.ne.s32.totalorder %s315, %s316
      %p328 = scmp.eq.s32.totalorder %s33, 1
      %p329 = por %p327, %p328
      %p331 = scmp.ne.s32.totalorder %s316, %s330
      %p332 = scmp.eq.s32.totalorder %s33, 0
      %p333 = por %p331, %p332
      %s335 = sadd.s32 %s334, 1
      %p338 = scmp.eq.s32.totalorder %s27, 1
      %p339 = scmp.ne.s32.totalorder %s334, %s336
      %p340 = scmp.eq.s32.totalorder %s27, 0
      %p341 = por %p339, %p340
      %p342 = scmp.ne.s32.totalorder %s334, %s336
      %p343 = scmp.eq.s32.totalorder %s32, 1
      %p344 = por %p342, %p343
      %p345 = scmp.ne.s32.totalorder %s336, %s337
      %p346 = scmp.eq.s32.totalorder %s32, 0
      %p347 = por %p345, %p346
      %p348 = scmp.ne.s32.totalorder %s336, %s337
      %p349 = scmp.eq.s32.totalorder %s33, 1
      %p350 = por %p348, %p349
      %p352 = scmp.ne.s32.totalorder %s337, %s351
      %p353 = scmp.eq.s32.totalorder %s33, 0
      %p354 = por %p352, %p353
      %s356 = sadd.s32 %s355, 1
      %p359 = scmp.eq.s32.totalorder %s27, 1
      %p360 = scmp.ne.s32.totalorder %s355, %s357
      %p361 = scmp.eq.s32.totalorder %s27, 0
      %p362 = por %p360, %p361
      %p363 = scmp.ne.s32.totalorder %s355, %s357
      %p364 = scmp.eq.s32.totalorder %s32, 1
      %p365 = por %p363, %p364
      %p366 = scmp.ne.s32.totalorder %s357, %s358
      %p367 = scmp.eq.s32.totalorder %s32, 0
      %p368 = por %p366, %p367
      %p369 = scmp.ne.s32.totalorder %s357, %s358
      %p370 = scmp.eq.s32.totalorder %s33, 1
      %p371 = por %p369, %p370
      %p373 = scmp.ne.s32.totalorder %s358, %s372
      %p374 = scmp.eq.s32.totalorder %s33, 0
      %p375 = por %p373, %p374
      %s377 = sadd.s32 %s376, 1
      %p380 = scmp.eq.s32.totalorder %s27, 1
      %p381 = scmp.ne.s32.totalorder %s376, %s378
      %p382 = scmp.eq.s32.totalorder %s27, 0
      %p383 = por %p381, %p382
      %p384 = scmp.ne.s32.totalorder %s376, %s378
      %p385 = scmp.eq.s32.totalorder %s32, 1
      %p386 = por %p384, %p385
      %p387 = scmp.ne.s32.totalorder %s378, %s379
      %p388 = scmp.eq.s32.totalorder %s32, 0
      %p389 = por %p387, %p388
      %p390 = scmp.ne.s32.totalorder %s378, %s379
      %p391 = scmp.eq.s32.totalorder %s33, 1
      %p392 = por %p390, %p391
      %p394 = scmp.ne.s32.totalorder %s379, %s393
      %p395 = scmp.eq.s32.totalorder %s33, 0
      %p396 = por %p394, %p395
      %s398 = sadd.s32 %s397, 1
      %p401 = scmp.eq.s32.totalorder %s27, 1
      %p402 = scmp.ne.s32.totalorder %s397, %s399
      %p403 = scmp.eq.s32.totalorder %s27, 0
      %p404 = por %p402, %p403
      %p405 = scmp.ne.s32.totalorder %s397, %s399
      %p406 = scmp.eq.s32.totalorder %s32, 1
      %p407 = por %p405, %p406
      %p408 = scmp.ne.s32.totalorder %s399, %s400
      %p409 = scmp.eq.s32.totalorder %s32, 0
      %p410 = por %p408, %p409
      %p411 = scmp.ne.s32.totalorder %s399, %s400
      %p412 = scmp.eq.s32.totalorder %s33, 1
      %p413 = por %p411, %p412
      %p415 = scmp.ne.s32.totalorder %s400, %s414
      %p416 = scmp.eq.s32.totalorder %s33, 0
      %p417 = por %p415, %p416
      %s418 = ssub.s32 %s27, %s34
      %p419 = scmp.eq.s32.totalorder %s418, 0
      %s421 = sadd.s32 %s420, 1
      %s422 = scalar_select %p419, %s420, %s421
      %p425 = pneg %p419
      %p426 = scmp.eq.s32.totalorder %s27, 1
      %p427 = por %p425, %p426
      %p428 = scmp.ne.s32.totalorder %s420, %s423
      %p429 = scmp.eq.s32.totalorder %s27, 0
      %p430 = por %p428, %p429
      %p431 = scmp.ne.s32.totalorder %s420, %s423
      %p432 = scmp.eq.s32.totalorder %s32, 1
      %p433 = por %p431, %p432
      %p434 = scmp.ne.s32.totalorder %s423, %s424
      %p435 = scmp.eq.s32.totalorder %s32, 0
      %p436 = por %p434, %p435
      %p437 = scmp.ne.s32.totalorder %s423, %s424
      %p438 = scmp.eq.s32.totalorder %s33, 1
      %p439 = por %p437, %p438
      %p441 = scmp.ne.s32.totalorder %s424, %s440
      %p442 = scmp.eq.s32.totalorder %s33, 0
      %p443 = por %p441, %p442
      %p444 = scmp.le.s32.totalorder 1, %s27
      %p445 = scmp.lt.s32.totalorder %s27, 3
      %p446 = pnand %p444, %p445
      %p447 = pneg %p446
      // Predicated region
      $region9: #{_lambda_.19} parent=5 // pred_check
        _
      $region10: #{_lambda_.19} parent=5 // pred_check_branch
        %449 = sbr.rel (%p446) target = $region12
      $region11: #{_lambda_.19} parent=5 // pred_region
        %s450 = ssub.s32 %s27, 1
        // Predicated region
        $region13: #{_lambda_.19} parent=11 // pred_check
          %p451 = pneg %p74
        $region14: #{_lambda_.19} parent=11 // pred_check_branch
          %453 = sbr.rel (%p451) target = $region16
        $region15: #{_lambda_.19} parent=11 // pred_region
          _
        $region16: #{_lambda_.19} parent=11 // pred_fallthru
          _
        // Predicated region
        $region17: #{_lambda_.19} parent=11 // pred_check
          %p454 = pneg %p95
        $region18: #{_lambda_.19} parent=11 // pred_check_branch
          %456 = sbr.rel (%p454) target = $region20
        $region19: #{_lambda_.19} parent=11 // pred_region
          _
        $region20: #{_lambda_.19} parent=11 // pred_fallthru
          _
        // Predicated region
        $region21: #{_lambda_.19} parent=11 // pred_check
          %p457 = pneg %p116
        $region22: #{_lambda_.19} parent=11 // pred_check_branch
          %459 = sbr.rel (%p457) target = $region24
        $region23: #{_lambda_.19} parent=11 // pred_region
          _
        $region24: #{_lambda_.19} parent=11 // pred_fallthru
          _
        // Predicated region
        $region25: #{_lambda_.19} parent=11 // pred_check
          %p460 = pneg %p137
        $region26: #{_lambda_.19} parent=11 // pred_check_branch
          %462 = sbr.rel (%p460) target = $region28
        $region27: #{_lambda_.19} parent=11 // pred_region
          _
        $region28: #{_lambda_.19} parent=11 // pred_fallthru
          _
        // Predicated region
        $region29: #{_lambda_.19} parent=11 // pred_check
          %p463 = pneg %p158
        $region30: #{_lambda_.19} parent=11 // pred_check_branch
          %465 = sbr.rel (%p463) target = $region32
        $region31: #{_lambda_.19} parent=11 // pred_region
          _
        $region32: #{_lambda_.19} parent=11 // pred_fallthru
          _
        // Predicated region
        $region33: #{_lambda_.19} parent=11 // pred_check
          %p466 = pneg %p179
        $region34: #{_lambda_.19} parent=11 // pred_check_branch
          %468 = sbr.rel (%p466) target = $region36
        $region35: #{_lambda_.19} parent=11 // pred_region
          _
        $region36: #{_lambda_.19} parent=11 // pred_fallthru
          _
        // Predicated region
        $region37: #{_lambda_.19} parent=11 // pred_check
          %p469 = pneg %p200
        $region38: #{_lambda_.19} parent=11 // pred_check_branch
          %471 = sbr.rel (%p469) target = $region40
        $region39: #{_lambda_.19} parent=11 // pred_region
          _
        $region40: #{_lambda_.19} parent=11 // pred_fallthru
          _
        // Predicated region
        $region41: #{_lambda_.19} parent=11 // pred_check
          %p472 = pneg %p221
        $region42: #{_lambda_.19} parent=11 // pred_check_branch
          %474 = sbr.rel (%p472) target = $region44
        $region43: #{_lambda_.19} parent=11 // pred_region
          _
        $region44: #{_lambda_.19} parent=11 // pred_fallthru
          _
        // Predicated region
        $region45: #{_lambda_.19} parent=11 // pred_check
          %p475 = pneg %p242
        $region46: #{_lambda_.19} parent=11 // pred_check_branch
          %477 = sbr.rel (%p475) target = $region48
        $region47: #{_lambda_.19} parent=11 // pred_region
          _
        $region48: #{_lambda_.19} parent=11 // pred_fallthru
          _
        // Predicated region
        $region49: #{_lambda_.19} parent=11 // pred_check
          %p478 = pneg %p263
        $region50: #{_lambda_.19} parent=11 // pred_check_branch
          %480 = sbr.rel (%p478) target = $region52
        $region51: #{_lambda_.19} parent=11 // pred_region
          _
        $region52: #{_lambda_.19} parent=11 // pred_fallthru
          _
        // Predicated region
        $region53: #{_lambda_.19} parent=11 // pred_check
          %p481 = pneg %p284
        $region54: #{_lambda_.19} parent=11 // pred_check_branch
          %483 = sbr.rel (%p481) target = $region56
        $region55: #{_lambda_.19} parent=11 // pred_region
          _
        $region56: #{_lambda_.19} parent=11 // pred_fallthru
          _
        // Predicated region
        $region57: #{_lambda_.19} parent=11 // pred_check
          %p484 = pneg %p305
        $region58: #{_lambda_.19} parent=11 // pred_check_branch
          %486 = sbr.rel (%p484) target = $region60
        $region59: #{_lambda_.19} parent=11 // pred_region
          _
        $region60: #{_lambda_.19} parent=11 // pred_fallthru
          _
        // Predicated region
        $region61: #{_lambda_.19} parent=11 // pred_check
          %p487 = pneg %p326
        $region62: #{_lambda_.19} parent=11 // pred_check_branch
          %489 = sbr.rel (%p487) target = $region64
        $region63: #{_lambda_.19} parent=11 // pred_region
          _
        $region64: #{_lambda_.19} parent=11 // pred_fallthru
          _
        // Predicated region
        $region65: #{_lambda_.19} parent=11 // pred_check
          %p490 = pneg %p347
        $region66: #{_lambda_.19} parent=11 // pred_check_branch
          %492 = sbr.rel (%p490) target = $region68
        $region67: #{_lambda_.19} parent=11 // pred_region
          _
        $region68: #{_lambda_.19} parent=11 // pred_fallthru
          _
        // Predicated region
        $region69: #{_lambda_.19} parent=11 // pred_check
          %p493 = pneg %p368
        $region70: #{_lambda_.19} parent=11 // pred_check_branch
          %495 = sbr.rel (%p493) target = $region72
        $region71: #{_lambda_.19} parent=11 // pred_region
          _
        $region72: #{_lambda_.19} parent=11 // pred_fallthru
          _
        // Predicated region
        $region73: #{_lambda_.19} parent=11 // pred_check
          %p496 = pneg %p389
        $region74: #{_lambda_.19} parent=11 // pred_check_branch
          %498 = sbr.rel (%p496) target = $region76
        $region75: #{_lambda_.19} parent=11 // pred_region
          _
        $region76: #{_lambda_.19} parent=11 // pred_fallthru
          _
        // Predicated region
        $region77: #{_lambda_.19} parent=11 // pred_check
          %p499 = pneg %p410
        $region78: #{_lambda_.19} parent=11 // pred_check_branch
          %501 = sbr.rel (%p499) target = $region80
        $region79: #{_lambda_.19} parent=11 // pred_region
          _
        $region80: #{_lambda_.19} parent=11 // pred_fallthru
          _
      $region12: #{_lambda_.19} parent=5 // pred_fallthru
        _
      %p502 = scmp.lt.s32.totalorder %s27, 2
      // Predicated region
      $region81: #{_lambda_.19} parent=5 // pred_check
        %p503 = pneg %p502
      $region82: #{_lambda_.19} parent=5 // pred_check_branch
        %505 = sbr.rel (%p503) target = $region84
      $region83: #{_lambda_.19} parent=5 // pred_region
        // Predicated region
        $region85: #{_lambda_.19} parent=83 // pred_check
          %p506 = pneg %p47
        $region86: #{_lambda_.19} parent=83 // pred_check_branch
          %508 = sbr.rel (%p506) target = $region88
        $region87: #{_lambda_.19} parent=83 // pred_region
          %p509 = scmp.lt.s32.totalorder %s27, 1
          %s510 = scalar_select %p509, %s27, 1
          %s511 = smul.addr %s510, 4
          %s512 = scalar_lea.vmem %s0, %s511
        $region88: #{_lambda_.19} parent=83 // pred_fallthru
          _
      $region84: #{_lambda_.19} parent=5 // pred_fallthru
        _
      %p513 = scmp.le.s32.totalorder 1, %s27
      %p514 = scmp.lt.s32.totalorder %s27, 3
      %p515 = pnand %p513, %p514
      %p516 = pneg %p515
      // Predicated region
      $region89: #{_lambda_.19} parent=5 // pred_check
        _
      $region90: #{_lambda_.19} parent=5 // pred_check_branch
        %518 = sbr.rel (%p515) target = $region92
      $region91: #{_lambda_.19} parent=5 // pred_region
        %s519 = ssub.s32 %s27, 1
        %p520 = scmp.lt.s32.totalorder %s32, 1
        %s521 = scalar_select %p520, %s32, 1
        %s522 = smul.addr %s521, 4
        %s523 = scalar_lea.vmem %s0, %s522
        %p524 = pneg %p53
        %p525 = pneg %p50
        %p526 = pneg %p74
        %p527 = pneg %p71
        %p528 = pneg %p95
        %p529 = pneg %p92
        %p530 = pneg %p116
        %p531 = pneg %p113
        %p532 = pneg %p137
        %p533 = pneg %p134
        %p534 = pneg %p158
        %p535 = pneg %p155
        %p536 = pneg %p179
        %p537 = pneg %p176
        %p538 = pneg %p200
        %p539 = pneg %p197
        %p540 = pneg %p221
        %p541 = pneg %p218
        %p542 = pneg %p242
        %p543 = pneg %p239
        %p544 = pneg %p263
        %p545 = pneg %p260
        %p546 = pneg %p284
        %p547 = pneg %p281
        %p548 = pneg %p305
        %p549 = pneg %p302
        %p550 = pneg %p326
        %p551 = pneg %p323
        %p552 = pneg %p347
        %p553 = pneg %p344
        %p554 = pneg %p368
        %p555 = pneg %p365
        %p556 = pneg %p389
        %p557 = pneg %p386
        %p558 = pneg %p410
        %p559 = pneg %p407
        %p560 = pneg %p436
        %p561 = pneg %p433
        %s562 = sand.u32 %s423, 1
        %s563 = scalar_lea.sflag [#allocation3], %s562
        %s564 = sand.u32 %s423, 1
        %s565 = scalar_lea.vmem [#allocation2], %s564
        %p566 = scmp.lt.s32.totalorder %s32, 1
        %s567 = scalar_select %p566, %s32, 1
        %s568 = smul.addr %s567, 4
        %s569 = scalar_lea.vmem %s0, %s568
        %v571 = vld [vmem:[%s569] sm:$0xf]
        %v572 = vld [vmem:[%s1] sm:$0x1]
        %v573 = vld [vmem:[%s2] sm:$0x1]
        %vm574 = vcmask 1043456
        %v575 = vsel %vm574, %v571, 0.0
        %576 = vadd.xlane.f32.xlu0 %v575
        %v577 = vpop.xlane.xlu0 %576
        %v578 = vrcp.pop 128.0
        %v579 = vmul.f32 %v577, %v578
        %v580 = vsub.f32 %v571, %v579
        %v581 = vmul.f32 %v580, %v580
        %v582 = vsel %vm574, %v581, 0.0
        %583 = vadd.xlane.f32.xlu0 %v582
        %v584 = vpop.xlane.xlu0 %583
        %v585 = vmul.f32 %v584, %v578
        %v586 = vadd.f32 %v585, 1e-05
        %v587 = vrsqrt.pop %v586
        %v588 = vmul.f32 %v580, %v587
        %v590 = vlaneseq
        %v591 = vshrl.u32 %v590, 7
        %v592 = vsub.s32 0, %v591
        %v593 = vrot.slane %v572, %v592
        %v595 = vmul.f32 %v588, %v593
        %v597 = vlaneseq
        %v598 = vshrl.u32 %v597, 7
        %v599 = vsub.s32 0, %v598
        %v600 = vrot.slane %v573, %v599
        %v602 = vadd.f32 %v595, %v600
        %v603 = vld [vmem:[%s3] sm:$0xff]
        %v604 = vld [vmem:[%s3 + $0x8] sm:$0xf]
        %v605 = vld [vmem:[%s3 + $0xc] sm:$0xff]
        %v606 = vld [vmem:[%s3 + $0x14] sm:$0xf]
        %v607 = vld [vmem:[%s3 + $0x18] sm:$0xff]
        %v608 = vld [vmem:[%s3 + $0x20] sm:$0xf]
        %v609 = vld [vmem:[%s3 + $0x24] sm:$0xff]
        %v610 = vld [vmem:[%s3 + $0x2c] sm:$0xf]
        %v611 = vld [vmem:[%s3 + $0x30] sm:$0xff]
        %v612 = vld [vmem:[%s3 + $0x38] sm:$0xf]
        %v613 = vld [vmem:[%s3 + $0x3c] sm:$0xff]
        %v614 = vld [vmem:[%s3 + $0x44] sm:$0xf]
        %v615 = vld [vmem:[%s3 + $0x48] sm:$0xff]
        %v616 = vld [vmem:[%s3 + $0x50] sm:$0xf]
        %v617 = vld [vmem:[%s3 + $0x54] sm:$0xff]
        %v618 = vld [vmem:[%s3 + $0x5c] sm:$0xf]
        %v619 = vld [vmem:[%s3 + $0x60] sm:$0xff]
        %v620 = vld [vmem:[%s3 + $0x68] sm:$0xf]
        %v621 = vld [vmem:[%s3 + $0x6c] sm:$0xff]
        %v622 = vld [vmem:[%s3 + $0x74] sm:$0xf]
        %v623 = vld [vmem:[%s3 + $0x78] sm:$0xff]
        %v624 = vld [vmem:[%s3 + $0x80] sm:$0xf]
        %v625 = vld [vmem:[%s3 + $0x84] sm:$0xff]
        %v626 = vld [vmem:[%s3 + $0x8c] sm:$0xf]
        %v627 = vld [vmem:[%s3 + $0x90] sm:$0xff]
        %v628 = vld [vmem:[%s3 + $0x98] sm:$0xf]
        %v629 = vld [vmem:[%s3 + $0x9c] sm:$0xff]
        %v630 = vld [vmem:[%s3 + $0xa4] sm:$0xf]
        %v631 = vld [vmem:[%s3 + $0xa8] sm:$0xff]
        %v632 = vld [vmem:[%s3 + $0xb0] sm:$0xf]
        %v633 = vld [vmem:[%s3 + $0xb4] sm:$0xff]
        %v634 = vld [vmem:[%s3 + $0xbc] sm:$0xf]
        %v635 = vpack.c.bf16 %v602, %v602
        %v636 = vld [vmem:[%s4] sm:$0x7]
        %v638 = vlaneseq
        %v639 = vshrl.u32 %v638, 7
        %v640 = vsub.s32 0, %v639
        %v641 = vrot.slane %v636, %v640
        %v642 = vlaneseq
        %v643 = vshrl.u32 %v642, 7
        %v644 = vsub.s32 1, %v643
        %v645 = vrot.slane %v636, %v644
        %v646 = vlaneseq
        %v647 = vshrl.u32 %v646, 7
        %v648 = vsub.s32 2, %v647
        %v649 = vrot.slane %v636, %v648
        %v685 = vunpack.c.l.b16 %v603
        %v686 = vunpack.c.h.b16 %v603
        %v687 = vunpack.c.l.b16 %v604
        %v688 = vunpack.c.l.b16 %v605
        %v689 = vunpack.c.h.b16 %v605
        %v690 = vunpack.c.l.b16 %v606
        %v691 = vunpack.c.l.b16 %v607
        %v692 = vunpack.c.h.b16 %v607
        %v693 = vunpack.c.l.b16 %v608
        %v694 = vunpack.c.l.b16 %v609
        %v695 = vunpack.c.h.b16 %v609
        %v696 = vunpack.c.l.b16 %v610
        %v697 = vunpack.c.l.b16 %v611
        %v698 = vunpack.c.h.b16 %v611
        %v699 = vunpack.c.l.b16 %v612
        %v700 = vunpack.c.l.b16 %v613
        %v701 = vunpack.c.h.b16 %v613
        %v702 = vunpack.c.l.b16 %v614
        %v703 = vunpack.c.l.b16 %v615
        %v704 = vunpack.c.h.b16 %v615
        %v705 = vunpack.c.l.b16 %v616
        %v706 = vunpack.c.l.b16 %v617
        %v707 = vunpack.c.h.b16 %v617
        %v708 = vunpack.c.l.b16 %v618
        %v709 = vunpack.c.l.b16 %v619
        %v710 = vunpack.c.h.b16 %v619
        %v711 = vunpack.c.l.b16 %v620
        %v712 = vunpack.c.l.b16 %v621
        %v713 = vunpack.c.h.b16 %v621
        %v714 = vunpack.c.l.b16 %v622
        %v715 = vunpack.c.l.b16 %v623
        %v716 = vunpack.c.h.b16 %v623
        %v717 = vunpack.c.l.b16 %v624
        %v718 = vunpack.c.l.b16 %v625
        %v719 = vunpack.c.h.b16 %v625
        %v720 = vunpack.c.l.b16 %v626
        %v721 = vunpack.c.l.b16 %v627
        %v722 = vunpack.c.h.b16 %v627
        %v723 = vunpack.c.l.b16 %v628
        %v724 = vunpack.c.l.b16 %v629
        %v725 = vunpack.c.h.b16 %v629
        %v726 = vunpack.c.l.b16 %v630
        %v727 = vunpack.c.l.b16 %v631
        %v728 = vunpack.c.h.b16 %v631
        %v729 = vunpack.c.l.b16 %v632
        %v730 = vunpack.c.l.b16 %v633
        %v731 = vunpack.c.h.b16 %v633
        %v732 = vunpack.c.l.b16 %v634
        %v733 = vpack.c.b16 %v688, %v685
        %v734 = vpack.c.b16 %v689, %v686
        %v735 = vpack.c.b16 %v690, %v687
        %v736 = vpack.c.b16 %v694, %v691
        %v737 = vpack.c.b16 %v695, %v692
        %v738 = vpack.c.b16 %v696, %v693
        %v739 = vpack.c.b16 %v700, %v697
        %v740 = vpack.c.b16 %v701, %v698
        %v741 = vpack.c.b16 %v702, %v699
        %v742 = vpack.c.b16 %v706, %v703
        %v743 = vpack.c.b16 %v707, %v704
        %v744 = vpack.c.b16 %v708, %v705
        %v745 = vpack.c.b16 %v712, %v709
        %v746 = vpack.c.b16 %v713, %v710
        %v747 = vpack.c.b16 %v714, %v711
        %v748 = vpack.c.b16 %v718, %v715
        %v749 = vpack.c.b16 %v719, %v716
        %v750 = vpack.c.b16 %v720, %v717
        %v751 = vpack.c.b16 %v724, %v721
        %v752 = vpack.c.b16 %v725, %v722
        %v753 = vpack.c.b16 %v726, %v723
        %v754 = vpack.c.b16 %v730, %v727
        %v755 = vpack.c.b16 %v731, %v728
        %v756 = vpack.c.b16 %v732, %v729
        %781 = vmatprep.subr.bf16.mxu0 %v755
        %782 = vmatpush1.bf16.msra.mxu0 %v754
        %783 = vmatprep.subr.bf16.mxu0 %v752
        %784 = vmatpush1.bf16.msra.mxu0 %v751
        %785 = vmatprep.subr.bf16.mxu0 %v749
        %786 = vmatpush1.bf16.msra.mxu0 %v748
        %787 = vmatprep.subr.bf16.mxu0 %v746
        %788 = vmatpush1.bf16.msra.mxu0 %v745
        %789 = vmatprep.subr.bf16.mxu0 %v743
        %790 = vmatpush1.bf16.msra.mxu0 %v742
        %791 = vmatprep.subr.bf16.mxu0 %v740
        %792 = vmatpush1.bf16.msra.mxu0 %v739
        %793 = vmatprep.subr.bf16.mxu0 %v737
        %794 = vmatpush1.bf16.msra.mxu0 %v736
        %795 = vmatprep.subr.bf16.mxu0 %v734
        %796 = vmatpush1.bf16.msra.mxu0 %v733
        %797 = vmatprep.subr.bf16.mxu0 0
        %798 = vmatpush2.bf16.msra.mxu0 0
        %799 = vmatprep.subr.bf16.mxu0 0
        %800 = vmatpush2.bf16.msra.mxu0 0
        %801 = vmatprep.subr.bf16.mxu0 0
        %802 = vmatpush2.bf16.msra.mxu0 0
        %803 = vmatprep.subr.bf16.mxu0 0
        %804 = vmatpush2.bf16.msra.mxu0 0
        %805 = vmatprep.subr.bf16.mxu0 0
        %806 = vmatpush2.bf16.msra.mxu0 0
        %807 = vmatprep.subr.bf16.mxu0 0
        %808 = vmatpush2.bf16.msra.mxu0 0
        %809 = vmatprep.subr.bf16.mxu0 0
        %810 = vmatpush2.bf16.msra.mxu0 0
        %811 = vmatprep.subr.bf16.mxu0 0
        %812 = vmatpush2.bf16.msra.mxu0 0
        %813 = vmatprep.mubr.bf16.mxu0 0
        %814 = vmatmul.mubr.bf16.gmra.mxu0 %v635
        %v815 = vpop.f32.mrf.mxu0
        %v816 = vadd.f32 %v641, %v815
        %v817 = vpop.f32.mrf.mxu0
        %v818 = vadd.f32 %v645, %v817
        %v819 = vpop.f32.mrf.mxu0
        %v820 = vpop.f32.mrf.mxu0
        %821 = vdwg.mxu0
        %822 = vmatprep.subr.bf16.mxu0 0
        %823 = vmatpush1.bf16.msra.mxu0 %v756
        %824 = vmatprep.subr.bf16.mxu0 0
        %825 = vmatpush1.bf16.msra.mxu0 %v753
        %826 = vmatprep.subr.bf16.mxu0 0
        %827 = vmatpush1.bf16.msra.mxu0 %v750
        %828 = vmatprep.subr.bf16.mxu0 0
        %829 = vmatpush1.bf16.msra.mxu0 %v747
        %830 = vmatprep.subr.bf16.mxu0 0
        %831 = vmatpush1.bf16.msra.mxu0 %v744
        %832 = vmatprep.subr.bf16.mxu0 0
        %833 = vmatpush1.bf16.msra.mxu0 %v741
        %834 = vmatprep.subr.bf16.mxu0 0
        %835 = vmatpush1.bf16.msra.mxu0 %v738
        %836 = vmatprep.subr.bf16.mxu0 0
        %837 = vmatpush1.bf16.msra.mxu0 %v735
        %838 = vmatprep.subr.bf16.mxu0 0
        %839 = vmatpush2.bf16.msra.mxu0 0
        %840 = vmatprep.subr.bf16.mxu0 0
        %841 = vmatpush2.bf16.msra.mxu0 0
        %842 = vmatprep.subr.bf16.mxu0 0
        %843 = vmatpush2.bf16.msra.mxu0 0
        %844 = vmatprep.subr.bf16.mxu0 0
        %845 = vmatpush2.bf16.msra.mxu0 0
        %846 = vmatprep.subr.bf16.mxu0 0
        %847 = vmatpush2.bf16.msra.mxu0 0
        %848 = vmatprep.subr.bf16.mxu0 0
        %849 = vmatpush2.bf16.msra.mxu0 0
        %850 = vmatprep.subr.bf16.mxu0 0
        %851 = vmatpush2.bf16.msra.mxu0 0
        %852 = vmatprep.subr.bf16.mxu0 0
        %853 = vmatpush2.bf16.msra.mxu0 0
        %854 = vmatprep.mubr.bf16.mxu0 0
        %855 = vmatmul.mubr.bf16.gmra.mxu0 %v635
        %v856 = vpop.f32.mrf.mxu0
        %v857 = vadd.f32 %v649, %v856
        %v858 = vpop.f32.mrf.mxu0
        %v859 = vpop.f32.mrf.mxu0
        %v860 = vpop.f32.mrf.mxu0
        %861 = vdwg.mxu0
        %v862 = vld [vmem:[%s6] sm:$0xf]
        %v863 = vld [vmem:[%s6 + $0x4] sm:$0xf]
        %v864 = vld [vmem:[%s6 + $0x8] sm:$0xf]
        %v865 = vld [vmem:[%s6 + $0xc] sm:$0xf]
        %v866 = vld [vmem:[%s6 + $0x10] sm:$0xf]
        %v867 = vld [vmem:[%s6 + $0x14] sm:$0xf]
        %v868 = vld [vmem:[%s6 + $0x18] sm:$0xf]
        %v869 = vld [vmem:[%s6 + $0x1c] sm:$0xf]
        %v870 = vld [vmem:[%s6 + $0x20] sm:$0xf]
        %v871 = vld [vmem:[%s6 + $0x24] sm:$0xf]
        %v872 = vld [vmem:[%s6 + $0x28] sm:$0xf]
        %v873 = vld [vmem:[%s6 + $0x2c] sm:$0xf]
        %v874 = vld [vmem:[%s6 + $0x30] sm:$0xf]
        %v875 = vld [vmem:[%s6 + $0x34] sm:$0xf]
        %v876 = vld [vmem:[%s6 + $0x38] sm:$0xf]
        %v877 = vld [vmem:[%s6 + $0x3c] sm:$0xf]
        %v878 = vld [vmem:[%s6 + $0x40] sm:$0xf]
        %v879 = vld [vmem:[%s6 + $0x44] sm:$0xf]
        %v880 = vld [vmem:[%s6 + $0x48] sm:$0xf]
        %v881 = vld [vmem:[%s6 + $0x4c] sm:$0xf]
        %v882 = vld [vmem:[%s6 + $0x50] sm:$0xf]
        %v883 = vld [vmem:[%s6 + $0x54] sm:$0xf]
        %v884 = vld [vmem:[%s6 + $0x58] sm:$0xf]
        %v885 = vld [vmem:[%s6 + $0x5c] sm:$0xf]
        %v886 = vld [vmem:[%s6 + $0x60] sm:$0xf]
        %v887 = vld [vmem:[%s6 + $0x64] sm:$0xf]
        %v888 = vld [vmem:[%s6 + $0x68] sm:$0xf]
        %v889 = vld [vmem:[%s6 + $0x6c] sm:$0xf]
        %v890 = vld [vmem:[%s6 + $0x70] sm:$0xf]
        %v891 = vld [vmem:[%s6 + $0x74] sm:$0xf]
        %v892 = vld [vmem:[%s6 + $0x78] sm:$0xf]
        %v893 = vld [vmem:[%s6 + $0x7c] sm:$0xf]
        %v894 = vld [vmem:[%s5] sm:$0xf]
        %896 = vrot.lane.b32.xlu0 %v816, 112
        %v897 = vpop.permute.xlu0 %896
        %vm898 = vcmask 130048
        %v899 = vsel %vm898, %v816, 0
        %v901 = vsel %vm898, %v897, 0
        %903 = vmatprep.subr.mxu0 0.0
        %904 = vmatpush1.xpose.msra.mxu0 0.0
        %905 = vmatprep.subr.mxu0 0.0
        %906 = vmatpush1.xpose.msra.mxu0 0.0
        %907 = vmatprep.subr.mxu0 0.0
        %908 = vmatpush1.xpose.msra.mxu0 0.0
        %909 = vmatprep.subr.mxu0 0.0
        %910 = vmatpush1.xpose.msra.mxu0 0.0
        %911 = vmatprep.subr.mxu0 0.0
        %912 = vmatpush1.xpose.msra.mxu0 0.0
        %913 = vmatprep.subr.mxu0 0.0
        %914 = vmatpush1.xpose.msra.mxu0 0.0
        %915 = vmatprep.subr.mxu0 0.0
        %916 = vmatpush1.xpose.msra.mxu0 0.0
        %917 = vmatprep.subr.mxu0 0.0
        %918 = vmatpush1.xpose.msra.mxu0 0.0
        %919 = vmatprep.subr.mxu0 0.0
        %920 = vmatpush1.xpose.msra.mxu0 0.0
        %921 = vmatprep.subr.mxu0 0.0
        %922 = vmatpush1.xpose.msra.mxu0 0.0
        %923 = vmatprep.subr.mxu0 0.0
        %924 = vmatpush1.xpose.msra.mxu0 0.0
        %925 = vmatprep.subr.mxu0 0.0
        %926 = vmatpush1.xpose.msra.mxu0 0.0
        %927 = vmatprep.subr.mxu0 0.0
        %928 = vmatpush1.xpose.msra.mxu0 0.0
        %929 = vmatprep.subr.mxu0 0.0
        %930 = vmatpush1.xpose.msra.mxu0 0.0
        %931 = vmatprep.subr.mxu0 0.0
        %932 = vmatpush1.xpose.msra.mxu0 0.0
        %933 = vmatprep.subr.mxu0 0.0
        %934 = vmatpush1.xpose.msra.mxu0 %v901
        %935 = vmatprep.subr.mxu0 0.0
        %936 = vmatpush2.xpose.msra.mxu0 0.0
        %937 = vmatprep.subr.mxu0 0.0
        %938 = vmatpush2.xpose.msra.mxu0 0.0
        %939 = vmatprep.subr.mxu0 0.0
        %940 = vmatpush2.xpose.msra.mxu0 0.0
        %941 = vmatprep.subr.mxu0 0.0
        %942 = vmatpush2.xpose.msra.mxu0 0.0
        %943 = vmatprep.subr.mxu0 0.0
        %944 = vmatpush2.xpose.msra.mxu0 0.0
        %945 = vmatprep.subr.mxu0 0.0
        %946 = vmatpush2.xpose.msra.mxu0 0.0
        %947 = vmatprep.subr.mxu0 0.0
        %948 = vmatpush2.xpose.msra.mxu0 0.0
        %949 = vmatprep.subr.mxu0 0.0
        %950 = vmatpush2.xpose.msra.mxu0 0.0
        %951 = vmatprep.subr.mxu0 0.0
        %952 = vmatpush2.xpose.msra.mxu0 0.0
        %953 = vmatprep.subr.mxu0 0.0
        %954 = vmatpush2.xpose.msra.mxu0 0.0
        %955 = vmatprep.subr.mxu0 0.0
        %956 = vmatpush2.xpose.msra.mxu0 0.0
        %957 = vmatprep.subr.mxu0 0.0
        %958 = vmatpush2.xpose.msra.mxu0 0.0
        %959 = vmatprep.subr.mxu0 0.0
        %960 = vmatpush2.xpose.msra.mxu0 0.0
        %961 = vmatprep.subr.mxu0 0.0
        %962 = vmatpush2.xpose.msra.mxu0 0.0
        %963 = vmatprep.subr.mxu0 0.0
        %964 = vmatpush2.xpose.msra.mxu0 0.0
        %965 = vmatprep.subr.mxu0 0.0
        %966 = vmatpush2.xpose.msra.mxu0 0.0
        %967 = vmatprep.mubr.f32.mxu0 0.0
        %968 = vmatmul.mubr.f32.gmra.mxu0 %v899
        %v969 = vpop.f32.mrf.mxu0
        %v970 = vadd.f32 %v894, %v969
        %v971 = vpop.f32.mrf.mxu0
        %972 = vdwg.mxu0
        %vm973 = vcmask 27648
        %v974 = vsel %vm973, %v970, -inf
        %975 = vmax.xlane.f32.xlu0 %v974
        %v976 = vpop.xlane.xlu0 %975
        %v977 = vsub.f32 %v970, %v976
        %v978 = vmul.f32 %v977, 1.442695
        %v979 = vpow.pop %v978
        %v980 = vsel %vm973, %v979, 0.0
        %981 = vadd.xlane.f32.xlu0 %v980
        %v982 = vpop.xlane.xlu0 %981
        %v983 = vrcp.pop %v982
        %v984 = vmul.f32 %v979, %v983
        %985 = vrot.lane.b32.xlu0 %v816, 96
        %v986 = vpop.permute.xlu0 %985
        %vm987 = vcmask 31744
        %v989 = vsel %vm987, %v984, 0
        %v991 = vsel %vm574, %v986, 0
        %993 = vmatprep.subr.mxu0 0.0
        %994 = vmatpush1.msra.mxu0 0.0
        %995 = vmatprep.subr.mxu0 0.0
        %996 = vmatpush1.msra.mxu0 0.0
        %997 = vmatprep.subr.mxu0 0.0
        %998 = vmatpush1.msra.mxu0 0.0
        %999 = vmatprep.subr.mxu0 0.0
        %1000 = vmatpush1.msra.mxu0 0.0
        %1001 = vmatprep.subr.mxu0 0.0
        %1002 = vmatpush1.msra.mxu0 0.0
        %1003 = vmatprep.subr.mxu0 0.0
        %1004 = vmatpush1.msra.mxu0 0.0
        %1005 = vmatprep.subr.mxu0 0.0
        %1006 = vmatpush1.msra.mxu0 0.0
        %1007 = vmatprep.subr.mxu0 0.0
        %1008 = vmatpush1.msra.mxu0 0.0
        %1009 = vmatprep.subr.mxu0 0.0
        %1010 = vmatpush1.msra.mxu0 0.0
        %1011 = vmatprep.subr.mxu0 0.0
        %1012 = vmatpush1.msra.mxu0 0.0
        %1013 = vmatprep.subr.mxu0 0.0
        %1014 = vmatpush1.msra.mxu0 0.0
        %1015 = vmatprep.subr.mxu0 0.0
        %1016 = vmatpush1.msra.mxu0 0.0
        %1017 = vmatprep.subr.mxu0 0.0
        %1018 = vmatpush1.msra.mxu0 0.0
        %1019 = vmatprep.subr.mxu0 0.0
        %1020 = vmatpush1.msra.mxu0 0.0
        %1021 = vmatprep.subr.mxu0 0.0
        %1022 = vmatpush1.msra.mxu0 0.0
        %1023 = vmatprep.subr.mxu0 0.0
        %1024 = vmatpush1.msra.mxu0 %v991
        %1025 = vmatprep.subr.mxu0 0.0
        %1026 = vmatpush2.msra.mxu0 0.0
        %1027 = vmatprep.subr.mxu0 0.0
        %1028 = vmatpush2.msra.mxu0 0.0
        %1029 = vmatprep.subr.mxu0 0.0
        %1030 = vmatpush2.msra.mxu0 0.0
        %1031 = vmatprep.subr.mxu0 0.0
        %1032 = vmatpush2.msra.mxu0 0.0
        %1033 = vmatprep.subr.mxu0 0.0
        %1034 = vmatpush2.msra.mxu0 0.0
        %1035 = vmatprep.subr.mxu0 0.0
        %1036 = vmatpush2.msra.mxu0 0.0
        %1037 = vmatprep.subr.mxu0 0.0
        %1038 = vmatpush2.msra.mxu0 0.0
        %1039 = vmatprep.subr.mxu0 0.0
        %1040 = vmatpush2.msra.mxu0 0.0
        %1041 = vmatprep.subr.mxu0 0.0
        %1042 = vmatpush2.msra.mxu0 0.0
        %1043 = vmatprep.subr.mxu0 0.0
        %1044 = vmatpush2.msra.mxu0 0.0
        %1045 = vmatprep.subr.mxu0 0.0
        %1046 = vmatpush2.msra.mxu0 0.0
        %1047 = vmatprep.subr.mxu0 0.0
        %1048 = vmatpush2.msra.mxu0 0.0
        %1049 = vmatprep.subr.mxu0 0.0
        %1050 = vmatpush2.msra.mxu0 0.0
        %1051 = vmatprep.subr.mxu0 0.0
        %1052 = vmatpush2.msra.mxu0 0.0
        %1053 = vmatprep.subr.mxu0 0.0
        %1054 = vmatpush2.msra.mxu0 0.0
        %1055 = vmatprep.subr.mxu0 0.0
        %1056 = vmatpush2.msra.mxu0 0.0
        %1057 = vmatprep.mubr.f32.mxu0 0.0
        %1058 = vmatmul.mubr.f32.gmra.mxu0 %v989
        %v1059 = vpop.f32.mrf.mxu0
        %v1060 = vadd.f32 0.0, %v1059
        %v1061 = vpop.f32.mrf.mxu0
        %1062 = vdwg.mxu0
        %v1063 = vpack.c.bf16 %v1060, %v1060
        %s1064 = scalar_lea.vmem %s5, 4
        %v1065 = vld [vmem:[%s1064] sm:$0xf]
        %1066 = vrot.lane.b32.xlu0 %v816, 32
        %v1067 = vpop.permute.xlu0 %1066
        %1068 = vrot.lane.b32.xlu0 %v816, 16
        %v1069 = vpop.permute.xlu0 %1068
        %v1070 = vsel %vm898, %v1067, 0
        %v1072 = vsel %vm898, %v1069, 0
        %1074 = vmatprep.subr.mxu0 0.0
        %1075 = vmatpush1.xpose.msra.mxu0 0.0
        %1076 = vmatprep.subr.mxu0 0.0
        %1077 = vmatpush1.xpose.msra.mxu0 0.0
        %1078 = vmatprep.subr.mxu0 0.0
        %1079 = vmatpush1.xpose.msra.mxu0 0.0
        %1080 = vmatprep.subr.mxu0 0.0
        %1081 = vmatpush1.xpose.msra.mxu0 0.0
        %1082 = vmatprep.subr.mxu0 0.0
        %1083 = vmatpush1.xpose.msra.mxu0 0.0
        %1084 = vmatprep.subr.mxu0 0.0
        %1085 = vmatpush1.xpose.msra.mxu0 0.0
        %1086 = vmatprep.subr.mxu0 0.0
        %1087 = vmatpush1.xpose.msra.mxu0 0.0
        %1088 = vmatprep.subr.mxu0 0.0
        %1089 = vmatpush1.xpose.msra.mxu0 0.0
        %1090 = vmatprep.subr.mxu0 0.0
        %1091 = vmatpush1.xpose.msra.mxu0 0.0
        %1092 = vmatprep.subr.mxu0 0.0
        %1093 = vmatpush1.xpose.msra.mxu0 0.0
        %1094 = vmatprep.subr.mxu0 0.0
        %1095 = vmatpush1.xpose.msra.mxu0 0.0
        %1096 = vmatprep.subr.mxu0 0.0
        %1097 = vmatpush1.xpose.msra.mxu0 0.0
        %1098 = vmatprep.subr.mxu0 0.0
        %1099 = vmatpush1.xpose.msra.mxu0 0.0
        %1100 = vmatprep.subr.mxu0 0.0
        %1101 = vmatpush1.xpose.msra.mxu0 0.0
        %1102 = vmatprep.subr.mxu0 0.0
        %1103 = vmatpush1.xpose.msra.mxu0 0.0
        %1104 = vmatprep.subr.mxu0 0.0
        %1105 = vmatpush1.xpose.msra.mxu0 %v1072
        %1106 = vmatprep.subr.mxu0 0.0
        %1107 = vmatpush2.xpose.msra.mxu0 0.0
        %1108 = vmatprep.subr.mxu0 0.0
        %1109 = vmatpush2.xpose.msra.mxu0 0.0
        %1110 = vmatprep.subr.mxu0 0.0
        %1111 = vmatpush2.xpose.msra.mxu0 0.0
        %1112 = vmatprep.subr.mxu0 0.0
        %1113 = vmatpush2.xpose.msra.mxu0 0.0
        %1114 = vmatprep.subr.mxu0 0.0
        %1115 = vmatpush2.xpose.msra.mxu0 0.0
        %1116 = vmatprep.subr.mxu0 0.0
        %1117 = vmatpush2.xpose.msra.mxu0 0.0
        %1118 = vmatprep.subr.mxu0 0.0
        %1119 = vmatpush2.xpose.msra.mxu0 0.0
        %1120 = vmatprep.subr.mxu0 0.0
        %1121 = vmatpush2.xpose.msra.mxu0 0.0
        %1122 = vmatprep.subr.mxu0 0.0
        %1123 = vmatpush2.xpose.msra.mxu0 0.0
        %1124 = vmatprep.subr.mxu0 0.0
        %1125 = vmatpush2.xpose.msra.mxu0 0.0
        %1126 = vmatprep.subr.mxu0 0.0
        %1127 = vmatpush2.xpose.msra.mxu0 0.0
        %1128 = vmatprep.subr.mxu0 0.0
        %1129 = vmatpush2.xpose.msra.mxu0 0.0
        %1130 = vmatprep.subr.mxu0 0.0
        %1131 = vmatpush2.xpose.msra.mxu0 0.0
        %1132 = vmatprep.subr.mxu0 0.0
        %1133 = vmatpush2.xpose.msra.mxu0 0.0
        %1134 = vmatprep.subr.mxu0 0.0
        %1135 = vmatpush2.xpose.msra.mxu0 0.0
        %1136 = vmatprep.subr.mxu0 0.0
        %1137 = vmatpush2.xpose.msra.mxu0 0.0
        %1138 = vmatprep.mubr.f32.mxu0 0.0
        %1139 = vmatmul.mubr.f32.gmra.mxu0 %v1070
        %v1140 = vpop.f32.mrf.mxu0
        %v1141 = vadd.f32 %v1065, %v1140
        %v1142 = vpop.f32.mrf.mxu0
        %1143 = vdwg.mxu0
        %v1144 = vsel %vm973, %v1141, -inf
        %1145 = vmax.xlane.f32.xlu0 %v1144
        %v1146 = vpop.xlane.xlu0 %1145
        %v1147 = vsub.f32 %v1141, %v1146
        %v1148 = vmul.f32 %v1147, 1.442695
        %v1149 = vpow.pop %v1148
        %v1150 = vsel %vm973, %v1149, 0.0
        %1151 = vadd.xlane.f32.xlu0 %v1150
        %v1152 = vpop.xlane.xlu0 %1151
        %v1153 = vrcp.pop %v1152
        %v1154 = vmul.f32 %v1149, %v1153
        %v1156 = vsel %vm987, %v1154, 0
        %v1159 = vsel %vm574, %v818, 0
        %1161 = vmatprep.subr.mxu0 0.0
        %1162 = vmatpush1.msra.mxu0 0.0
        %1163 = vmatprep.subr.mxu0 0.0
        %1164 = vmatpush1.msra.mxu0 0.0
        %1165 = vmatprep.subr.mxu0 0.0
        %1166 = vmatpush1.msra.mxu0 0.0
        %1167 = vmatprep.subr.mxu0 0.0
        %1168 = vmatpush1.msra.mxu0 0.0
        %1169 = vmatprep.subr.mxu0 0.0
        %1170 = vmatpush1.msra.mxu0 0.0
        %1171 = vmatprep.subr.mxu0 0.0
        %1172 = vmatpush1.msra.mxu0 0.0
        %1173 = vmatprep.subr.mxu0 0.0
        %1174 = vmatpush1.msra.mxu0 0.0
        %1175 = vmatprep.subr.mxu0 0.0
        %1176 = vmatpush1.msra.mxu0 0.0
        %1177 = vmatprep.subr.mxu0 0.0
        %1178 = vmatpush1.msra.mxu0 0.0
        %1179 = vmatprep.subr.mxu0 0.0
        %1180 = vmatpush1.msra.mxu0 0.0
        %1181 = vmatprep.subr.mxu0 0.0
        %1182 = vmatpush1.msra.mxu0 0.0
        %1183 = vmatprep.subr.mxu0 0.0
        %1184 = vmatpush1.msra.mxu0 0.0
        %1185 = vmatprep.subr.mxu0 0.0
        %1186 = vmatpush1.msra.mxu0 0.0
        %1187 = vmatprep.subr.mxu0 0.0
        %1188 = vmatpush1.msra.mxu0 0.0
        %1189 = vmatprep.subr.mxu0 0.0
        %1190 = vmatpush1.msra.mxu0 0.0
        %1191 = vmatprep.subr.mxu0 0.0
        %1192 = vmatpush1.msra.mxu0 %v1159
        %1193 = vmatprep.subr.mxu0 0.0
        %1194 = vmatpush2.msra.mxu0 0.0
        %1195 = vmatprep.subr.mxu0 0.0
        %1196 = vmatpush2.msra.mxu0 0.0
        %1197 = vmatprep.subr.mxu0 0.0
        %1198 = vmatpush2.msra.mxu0 0.0
        %1199 = vmatprep.subr.mxu0 0.0
        %1200 = vmatpush2.msra.mxu0 0.0
        %1201 = vmatprep.subr.mxu0 0.0
        %1202 = vmatpush2.msra.mxu0 0.0
        %1203 = vmatprep.subr.mxu0 0.0
        %1204 = vmatpush2.msra.mxu0 0.0
        %1205 = vmatprep.subr.mxu0 0.0
        %1206 = vmatpush2.msra.mxu0 0.0
        %1207 = vmatprep.subr.mxu0 0.0
        %1208 = vmatpush2.msra.mxu0 0.0
        %1209 = vmatprep.subr.mxu0 0.0
        %1210 = vmatpush2.msra.mxu0 0.0
        %1211 = vmatprep.subr.mxu0 0.0
        %1212 = vmatpush2.msra.mxu0 0.0
        %1213 = vmatprep.subr.mxu0 0.0
        %1214 = vmatpush2.msra.mxu0 0.0
        %1215 = vmatprep.subr.mxu0 0.0
        %1216 = vmatpush2.msra.mxu0 0.0
        %1217 = vmatprep.subr.mxu0 0.0
        %1218 = vmatpush2.msra.mxu0 0.0
        %1219 = vmatprep.subr.mxu0 0.0
        %1220 = vmatpush2.msra.mxu0 0.0
        %1221 = vmatprep.subr.mxu0 0.0
        %1222 = vmatpush2.msra.mxu0 0.0
        %1223 = vmatprep.subr.mxu0 0.0
        %1224 = vmatpush2.msra.mxu0 0.0
        %1225 = vmatprep.mubr.f32.mxu0 0.0
        %1226 = vmatmul.mubr.f32.gmra.mxu0 %v1156
        %v1227 = vpop.f32.mrf.mxu0
        %v1228 = vadd.f32 0.0, %v1227
        %v1229 = vpop.f32.mrf.mxu0
        %1230 = vdwg.mxu0
        %v1231 = vpack.c.bf16 %v1228, %v1228
        %v1240 = vunpack.c.l.b16 %v870
        %v1241 = vunpack.c.l.b16 %v871
        %v1242 = vunpack.c.l.b16 %v872
        %v1243 = vunpack.c.l.b16 %v873
        %v1244 = vunpack.c.l.b16 %v874
        %v1245 = vunpack.c.l.b16 %v875
        %v1246 = vunpack.c.l.b16 %v876
        %v1247 = vunpack.c.l.b16 %v877
        %v1248 = vpack.c.b16 %v1241, %v1240
        %v1249 = vpack.c.b16 %v1243, %v1242
        %v1250 = vpack.c.b16 %v1245, %v1244
        %v1251 = vpack.c.b16 %v1247, %v1246
        %vm1256 = vcmask 523264
        %v1258 = vsel %vm1256, %v1231, 0
        %1260 = vmatprep.subr.bf16.mxu0 0
        %1261 = vmatpush1.bf16.msra.mxu0 0
        %1262 = vmatprep.subr.bf16.mxu0 0
        %1263 = vmatpush1.bf16.msra.mxu0 0
        %1264 = vmatprep.subr.bf16.mxu0 0
        %1265 = vmatpush1.bf16.msra.mxu0 0
        %1266 = vmatprep.subr.bf16.mxu0 0
        %1267 = vmatpush1.bf16.msra.mxu0 0
        %1268 = vmatprep.subr.bf16.mxu0 0
        %1269 = vmatpush1.bf16.msra.mxu0 %v1251
        %1270 = vmatprep.subr.bf16.mxu0 0
        %1271 = vmatpush1.bf16.msra.mxu0 %v1250
        %1272 = vmatprep.subr.bf16.mxu0 0
        %1273 = vmatpush1.bf16.msra.mxu0 %v1249
        %1274 = vmatprep.subr.bf16.mxu0 0
        %1275 = vmatpush1.bf16.msra.mxu0 %v1248
        %1276 = vmatprep.subr.bf16.mxu0 0
        %1277 = vmatpush2.bf16.msra.mxu0 0
        %1278 = vmatprep.subr.bf16.mxu0 0
        %1279 = vmatpush2.bf16.msra.mxu0 0
        %1280 = vmatprep.subr.bf16.mxu0 0
        %1281 = vmatpush2.bf16.msra.mxu0 0
        %1282 = vmatprep.subr.bf16.mxu0 0
        %1283 = vmatpush2.bf16.msra.mxu0 0
        %1284 = vmatprep.subr.bf16.mxu0 0
        %1285 = vmatpush2.bf16.msra.mxu0 0
        %1286 = vmatprep.subr.bf16.mxu0 0
        %1287 = vmatpush2.bf16.msra.mxu0 0
        %1288 = vmatprep.subr.bf16.mxu0 0
        %1289 = vmatpush2.bf16.msra.mxu0 0
        %1290 = vmatprep.subr.bf16.mxu0 0
        %1291 = vmatpush2.bf16.msra.mxu0 0
        %1292 = vmatprep.mubr.bf16.mxu0 0
        %1293 = vmatmul.mubr.bf16.gmra.mxu0 %v1258
        %v1294 = vpop.f32.mrf.mxu0
        %v1295 = vadd.f32 0.0, %v1294
        %v1296 = vpop.f32.mrf.mxu0
        %v1297 = vpop.f32.mrf.mxu0
        %v1298 = vpop.f32.mrf.mxu0
        %1299 = vdwg.mxu0
        %v1308 = vunpack.c.l.b16 %v862
        %v1309 = vunpack.c.l.b16 %v863
        %v1310 = vunpack.c.l.b16 %v864
        %v1311 = vunpack.c.l.b16 %v865
        %v1312 = vunpack.c.l.b16 %v866
        %v1313 = vunpack.c.l.b16 %v867
        %v1314 = vunpack.c.l.b16 %v868
        %v1315 = vunpack.c.l.b16 %v869
        %v1316 = vpack.c.b16 %v1309, %v1308
        %v1317 = vpack.c.b16 %v1311, %v1310
        %v1318 = vpack.c.b16 %v1313, %v1312
        %v1319 = vpack.c.b16 %v1315, %v1314
        %v1325 = vsel %vm1256, %v1063, 0
        %1327 = vmatprep.subr.bf16.mxu0 0
        %1328 = vmatpush1.bf16.msra.mxu0 0
        %1329 = vmatprep.subr.bf16.mxu0 0
        %1330 = vmatpush1.bf16.msra.mxu0 0
        %1331 = vmatprep.subr.bf16.mxu0 0
        %1332 = vmatpush1.bf16.msra.mxu0 0
        %1333 = vmatprep.subr.bf16.mxu0 0
        %1334 = vmatpush1.bf16.msra.mxu0 0
        %1335 = vmatprep.subr.bf16.mxu0 0
        %1336 = vmatpush1.bf16.msra.mxu0 %v1319
        %1337 = vmatprep.subr.bf16.mxu0 0
        %1338 = vmatpush1.bf16.msra.mxu0 %v1318
        %1339 = vmatprep.subr.bf16.mxu0 0
        %1340 = vmatpush1.bf16.msra.mxu0 %v1317
        %1341 = vmatprep.subr.bf16.mxu0 0
        %1342 = vmatpush1.bf16.msra.mxu0 %v1316
        %1343 = vmatprep.subr.bf16.mxu0 0
        %1344 = vmatpush2.bf16.msra.mxu0 0
        %1345 = vmatprep.subr.bf16.mxu0 0
        %1346 = vmatpush2.bf16.msra.mxu0 0
        %1347 = vmatprep.subr.bf16.mxu0 0
        %1348 = vmatpush2.bf16.msra.mxu0 0
        %1349 = vmatprep.subr.bf16.mxu0 0
        %1350 = vmatpush2.bf16.msra.mxu0 0
        %1351 = vmatprep.subr.bf16.mxu0 0
        %1352 = vmatpush2.bf16.msra.mxu0 0
        %1353 = vmatprep.subr.bf16.mxu0 0
        %1354 = vmatpush2.bf16.msra.mxu0 0
        %1355 = vmatprep.subr.bf16.mxu0 0
        %1356 = vmatpush2.bf16.msra.mxu0 0
        %1357 = vmatprep.subr.bf16.mxu0 0
        %1358 = vmatpush2.bf16.msra.mxu0 0
        %1359 = vmatprep.mubr.bf16.mxu0 0
        %1360 = vmatmul.mubr.bf16.gmra.mxu0 %v1325
        %v1361 = vpop.f32.mrf.mxu0
        %v1362 = vadd.f32 %v1295, %v1361
        %v1363 = vpop.f32.mrf.mxu0
        %v1364 = vpop.f32.mrf.mxu0
        %v1365 = vpop.f32.mrf.mxu0
        %1366 = vdwg.mxu0
        %s1367 = scalar_lea.vmem %s5, 8
        %v1368 = vld [vmem:[%s1367] sm:$0xf]
        %1369 = vrot.lane.b32.xlu0 %v818, 64
        %v1370 = vpop.permute.xlu0 %1369
        %1371 = vrot.lane.b32.xlu0 %v818, 48
        %v1372 = vpop.permute.xlu0 %1371
        %v1373 = vsel %vm898, %v1370, 0
        %v1375 = vsel %vm898, %v1372, 0
        %1377 = vmatprep.subr.mxu0 0.0
        %1378 = vmatpush1.xpose.msra.mxu0 0.0
        %1379 = vmatprep.subr.mxu0 0.0
        %1380 = vmatpush1.xpose.msra.mxu0 0.0
        %1381 = vmatprep.subr.mxu0 0.0
        %1382 = vmatpush1.xpose.msra.mxu0 0.0
        %1383 = vmatprep.subr.mxu0 0.0
        %1384 = vmatpush1.xpose.msra.mxu0 0.0
        %1385 = vmatprep.subr.mxu0 0.0
        %1386 = vmatpush1.xpose.msra.mxu0 0.0
        %1387 = vmatprep.subr.mxu0 0.0
        %1388 = vmatpush1.xpose.msra.mxu0 0.0
        %1389 = vmatprep.subr.mxu0 0.0
        %1390 = vmatpush1.xpose.msra.mxu0 0.0
        %1391 = vmatprep.subr.mxu0 0.0
        %1392 = vmatpush1.xpose.msra.mxu0 0.0
        %1393 = vmatprep.subr.mxu0 0.0
        %1394 = vmatpush1.xpose.msra.mxu0 0.0
        %1395 = vmatprep.subr.mxu0 0.0
        %1396 = vmatpush1.xpose.msra.mxu0 0.0
        %1397 = vmatprep.subr.mxu0 0.0
        %1398 = vmatpush1.xpose.msra.mxu0 0.0
        %1399 = vmatprep.subr.mxu0 0.0
        %1400 = vmatpush1.xpose.msra.mxu0 0.0
        %1401 = vmatprep.subr.mxu0 0.0
        %1402 = vmatpush1.xpose.msra.mxu0 0.0
        %1403 = vmatprep.subr.mxu0 0.0
        %1404 = vmatpush1.xpose.msra.mxu0 0.0
        %1405 = vmatprep.subr.mxu0 0.0
        %1406 = vmatpush1.xpose.msra.mxu0 0.0
        %1407 = vmatprep.subr.mxu0 0.0
        %1408 = vmatpush1.xpose.msra.mxu0 %v1375
        %1409 = vmatprep.subr.mxu0 0.0
        %1410 = vmatpush2.xpose.msra.mxu0 0.0
        %1411 = vmatprep.subr.mxu0 0.0
        %1412 = vmatpush2.xpose.msra.mxu0 0.0
        %1413 = vmatprep.subr.mxu0 0.0
        %1414 = vmatpush2.xpose.msra.mxu0 0.0
        %1415 = vmatprep.subr.mxu0 0.0
        %1416 = vmatpush2.xpose.msra.mxu0 0.0
        %1417 = vmatprep.subr.mxu0 0.0
        %1418 = vmatpush2.xpose.msra.mxu0 0.0
        %1419 = vmatprep.subr.mxu0 0.0
        %1420 = vmatpush2.xpose.msra.mxu0 0.0
        %1421 = vmatprep.subr.mxu0 0.0
        %1422 = vmatpush2.xpose.msra.mxu0 0.0
        %1423 = vmatprep.subr.mxu0 0.0
        %1424 = vmatpush2.xpose.msra.mxu0 0.0
        %1425 = vmatprep.subr.mxu0 0.0
        %1426 = vmatpush2.xpose.msra.mxu0 0.0
        %1427 = vmatprep.subr.mxu0 0.0
        %1428 = vmatpush2.xpose.msra.mxu0 0.0
        %1429 = vmatprep.subr.mxu0 0.0
        %1430 = vmatpush2.xpose.msra.mxu0 0.0
        %1431 = vmatprep.subr.mxu0 0.0
        %1432 = vmatpush2.xpose.msra.mxu0 0.0
        %1433 = vmatprep.subr.mxu0 0.0
        %1434 = vmatpush2.xpose.msra.mxu0 0.0
        %1435 = vmatprep.subr.mxu0 0.0
        %1436 = vmatpush2.xpose.msra.mxu0 0.0
        %1437 = vmatprep.subr.mxu0 0.0
        %1438 = vmatpush2.xpose.msra.mxu0 0.0
        %1439 = vmatprep.subr.mxu0 0.0
        %1440 = vmatpush2.xpose.msra.mxu0 0.0
        %1441 = vmatprep.mubr.f32.mxu0 0.0
        %1442 = vmatmul.mubr.f32.gmra.mxu0 %v1373
        %v1443 = vpop.f32.mrf.mxu0
        %v1444 = vadd.f32 %v1368, %v1443
        %v1445 = vpop.f32.mrf.mxu0
        %1446 = vdwg.mxu0
        %v1447 = vsel %vm973, %v1444, -inf
        %1448 = vmax.xlane.f32.xlu0 %v1447
        %v1449 = vpop.xlane.xlu0 %1448
        %v1450 = vsub.f32 %v1444, %v1449
        %v1451 = vmul.f32 %v1450, 1.442695
        %v1452 = vpow.pop %v1451
        %v1453 = vsel %vm973, %v1452, 0.0
        %1454 = vadd.xlane.f32.xlu0 %v1453
        %v1455 = vpop.xlane.xlu0 %1454
        %v1456 = vrcp.pop %v1455
        %v1457 = vmul.f32 %v1452, %v1456
        %1459 = vrot.lane.b32.xlu0 %v818, 32
        %v1460 = vpop.permute.xlu0 %1459
        %1461 = vrot.lane.b32.xlu0 %v857, 32
        %v1462 = vpop.permute.xlu0 %1461
        %vm1463 = vcmask 261120
        %v1464 = vsel %vm1463, %v1460, %v1462
        %v1466 = vsel %vm987, %v1457, 0
        %v1468 = vsel %vm574, %v1464, 0
        %1470 = vmatprep.subr.mxu0 0.0
        %1471 = vmatpush1.msra.mxu0 0.0
        %1472 = vmatprep.subr.mxu0 0.0
        %1473 = vmatpush1.msra.mxu0 0.0
        %1474 = vmatprep.subr.mxu0 0.0
        %1475 = vmatpush1.msra.mxu0 0.0
        %1476 = vmatprep.subr.mxu0 0.0
        %1477 = vmatpush1.msra.mxu0 0.0
        %1478 = vmatprep.subr.mxu0 0.0
        %1479 = vmatpush1.msra.mxu0 0.0
        %1480 = vmatprep.subr.mxu0 0.0
        %1481 = vmatpush1.msra.mxu0 0.0
        %1482 = vmatprep.subr.mxu0 0.0
        %1483 = vmatpush1.msra.mxu0 0.0
        %1484 = vmatprep.subr.mxu0 0.0
        %1485 = vmatpush1.msra.mxu0 0.0
        %1486 = vmatprep.subr.mxu0 0.0
        %1487 = vmatpush1.msra.mxu0 0.0
        %1488 = vmatprep.subr.mxu0 0.0
        %1489 = vmatpush1.msra.mxu0 0.0
        %1490 = vmatprep.subr.mxu0 0.0
        %1491 = vmatpush1.msra.mxu0 0.0
        %1492 = vmatprep.subr.mxu0 0.0
        %1493 = vmatpush1.msra.mxu0 0.0
        %1494 = vmatprep.subr.mxu0 0.0
        %1495 = vmatpush1.msra.mxu0 0.0
        %1496 = vmatprep.subr.mxu0 0.0
        %1497 = vmatpush1.msra.mxu0 0.0
        %1498 = vmatprep.subr.mxu0 0.0
        %1499 = vmatpush1.msra.mxu0 0.0
        %1500 = vmatprep.subr.mxu0 0.0
        %1501 = vmatpush1.msra.mxu0 %v1468
        %1502 = vmatprep.subr.mxu0 0.0
        %1503 = vmatpush2.msra.mxu0 0.0
        %1504 = vmatprep.subr.mxu0 0.0
        %1505 = vmatpush2.msra.mxu0 0.0
        %1506 = vmatprep.subr.mxu0 0.0
        %1507 = vmatpush2.msra.mxu0 0.0
        %1508 = vmatprep.subr.mxu0 0.0
        %1509 = vmatpush2.msra.mxu0 0.0
        %1510 = vmatprep.subr.mxu0 0.0
        %1511 = vmatpush2.msra.mxu0 0.0
        %1512 = vmatprep.subr.mxu0 0.0
        %1513 = vmatpush2.msra.mxu0 0.0
        %1514 = vmatprep.subr.mxu0 0.0
        %1515 = vmatpush2.msra.mxu0 0.0
        %1516 = vmatprep.subr.mxu0 0.0
        %1517 = vmatpush2.msra.mxu0 0.0
        %1518 = vmatprep.subr.mxu0 0.0
        %1519 = vmatpush2.msra.mxu0 0.0
        %1520 = vmatprep.subr.mxu0 0.0
        %1521 = vmatpush2.msra.mxu0 0.0
        %1522 = vmatprep.subr.mxu0 0.0
        %1523 = vmatpush2.msra.mxu0 0.0
        %1524 = vmatprep.subr.mxu0 0.0
        %1525 = vmatpush2.msra.mxu0 0.0
        %1526 = vmatprep.subr.mxu0 0.0
        %1527 = vmatpush2.msra.mxu0 0.0
        %1528 = vmatprep.subr.mxu0 0.0
        %1529 = vmatpush2.msra.mxu0 0.0
        %1530 = vmatprep.subr.mxu0 0.0
        %1531 = vmatpush2.msra.mxu0 0.0
        %1532 = vmatprep.subr.mxu0 0.0
        %1533 = vmatpush2.msra.mxu0 0.0
        %1534 = vmatprep.mubr.f32.mxu0 0.0
        %1535 = vmatmul.mubr.f32.gmra.mxu0 %v1466
        %v1536 = vpop.f32.mrf.mxu0
        %v1537 = vadd.f32 0.0, %v1536
        %v1538 = vpop.f32.mrf.mxu0
        %1539 = vdwg.mxu0
        %v1540 = vpack.c.bf16 %v1537, %v1537
        %v1549 = vunpack.c.l.b16 %v878
        %v1550 = vunpack.c.l.b16 %v879
        %v1551 = vunpack.c.l.b16 %v880
        %v1552 = vunpack.c.l.b16 %v881
        %v1553 = vunpack.c.l.b16 %v882
        %v1554 = vunpack.c.l.b16 %v883
        %v1555 = vunpack.c.l.b16 %v884
        %v1556 = vunpack.c.l.b16 %v885
        %v1557 = vpack.c.b16 %v1550, %v1549
        %v1558 = vpack.c.b16 %v1552, %v1551
        %v1559 = vpack.c.b16 %v1554, %v1553
        %v1560 = vpack.c.b16 %v1556, %v1555
        %v1566 = vsel %vm1256, %v1540, 0
        %1568 = vmatprep.subr.bf16.mxu0 0
        %1569 = vmatpush1.bf16.msra.mxu0 0
        %1570 = vmatprep.subr.bf16.mxu0 0
        %1571 = vmatpush1.bf16.msra.mxu0 0
        %1572 = vmatprep.subr.bf16.mxu0 0
        %1573 = vmatpush1.bf16.msra.mxu0 0
        %1574 = vmatprep.subr.bf16.mxu0 0
        %1575 = vmatpush1.bf16.msra.mxu0 0
        %1576 = vmatprep.subr.bf16.mxu0 0
        %1577 = vmatpush1.bf16.msra.mxu0 %v1560
        %1578 = vmatprep.subr.bf16.mxu0 0
        %1579 = vmatpush1.bf16.msra.mxu0 %v1559
        %1580 = vmatprep.subr.bf16.mxu0 0
        %1581 = vmatpush1.bf16.msra.mxu0 %v1558
        %1582 = vmatprep.subr.bf16.mxu0 0
        %1583 = vmatpush1.bf16.msra.mxu0 %v1557
        %1584 = vmatprep.subr.bf16.mxu0 0
        %1585 = vmatpush2.bf16.msra.mxu0 0
        %1586 = vmatprep.subr.bf16.mxu0 0
        %1587 = vmatpush2.bf16.msra.mxu0 0
        %1588 = vmatprep.subr.bf16.mxu0 0
        %1589 = vmatpush2.bf16.msra.mxu0 0
        %1590 = vmatprep.subr.bf16.mxu0 0
        %1591 = vmatpush2.bf16.msra.mxu0 0
        %1592 = vmatprep.subr.bf16.mxu0 0
        %1593 = vmatpush2.bf16.msra.mxu0 0
        %1594 = vmatprep.subr.bf16.mxu0 0
        %1595 = vmatpush2.bf16.msra.mxu0 0
        %1596 = vmatprep.subr.bf16.mxu0 0
        %1597 = vmatpush2.bf16.msra.mxu0 0
        %1598 = vmatprep.subr.bf16.mxu0 0
        %1599 = vmatpush2.bf16.msra.mxu0 0
        %1600 = vmatprep.mubr.bf16.mxu0 0
        %1601 = vmatmul.mubr.bf16.gmra.mxu0 %v1566
        %v1602 = vpop.f32.mrf.mxu0
        %v1603 = vadd.f32 0.0, %v1602
        %v1604 = vpop.f32.mrf.mxu0
        %v1605 = vpop.f32.mrf.mxu0
        %v1606 = vpop.f32.mrf.mxu0
        %1607 = vdwg.mxu0
        %v1608 = vadd.f32 %v1362, %v1603
        %s1609 = scalar_lea.vmem %s5, 12
        %v1610 = vld [vmem:[%s1609] sm:$0xf]
        %1611 = vrot.lane.b32.xlu0 %v857, 96
        %v1612 = vpop.permute.xlu0 %1611
        %1613 = vrot.lane.b32.xlu0 %v857, 80
        %v1614 = vpop.permute.xlu0 %1613
        %v1615 = vsel %vm898, %v1612, 0
        %v1617 = vsel %vm898, %v1614, 0
        %1619 = vmatprep.subr.mxu0 0.0
        %1620 = vmatpush1.xpose.msra.mxu0 0.0
        %1621 = vmatprep.subr.mxu0 0.0
        %1622 = vmatpush1.xpose.msra.mxu0 0.0
        %1623 = vmatprep.subr.mxu0 0.0
        %1624 = vmatpush1.xpose.msra.mxu0 0.0
        %1625 = vmatprep.subr.mxu0 0.0
        %1626 = vmatpush1.xpose.msra.mxu0 0.0
        %1627 = vmatprep.subr.mxu0 0.0
        %1628 = vmatpush1.xpose.msra.mxu0 0.0
        %1629 = vmatprep.subr.mxu0 0.0
        %1630 = vmatpush1.xpose.msra.mxu0 0.0
        %1631 = vmatprep.subr.mxu0 0.0
        %1632 = vmatpush1.xpose.msra.mxu0 0.0
        %1633 = vmatprep.subr.mxu0 0.0
        %1634 = vmatpush1.xpose.msra.mxu0 0.0
        %1635 = vmatprep.subr.mxu0 0.0
        %1636 = vmatpush1.xpose.msra.mxu0 0.0
        %1637 = vmatprep.subr.mxu0 0.0
        %1638 = vmatpush1.xpose.msra.mxu0 0.0
        %1639 = vmatprep.subr.mxu0 0.0
        %1640 = vmatpush1.xpose.msra.mxu0 0.0
        %1641 = vmatprep.subr.mxu0 0.0
        %1642 = vmatpush1.xpose.msra.mxu0 0.0
        %1643 = vmatprep.subr.mxu0 0.0
        %1644 = vmatpush1.xpose.msra.mxu0 0.0
        %1645 = vmatprep.subr.mxu0 0.0
        %1646 = vmatpush1.xpose.msra.mxu0 0.0
        %1647 = vmatprep.subr.mxu0 0.0
        %1648 = vmatpush1.xpose.msra.mxu0 0.0
        %1649 = vmatprep.subr.mxu0 0.0
        %1650 = vmatpush1.xpose.msra.mxu0 %v1617
        %1651 = vmatprep.subr.mxu0 0.0
        %1652 = vmatpush2.xpose.msra.mxu0 0.0
        %1653 = vmatprep.subr.mxu0 0.0
        %1654 = vmatpush2.xpose.msra.mxu0 0.0
        %1655 = vmatprep.subr.mxu0 0.0
        %1656 = vmatpush2.xpose.msra.mxu0 0.0
        %1657 = vmatprep.subr.mxu0 0.0
        %1658 = vmatpush2.xpose.msra.mxu0 0.0
        %1659 = vmatprep.subr.mxu0 0.0
        %1660 = vmatpush2.xpose.msra.mxu0 0.0
        %1661 = vmatprep.subr.mxu0 0.0
        %1662 = vmatpush2.xpose.msra.mxu0 0.0
        %1663 = vmatprep.subr.mxu0 0.0
        %1664 = vmatpush2.xpose.msra.mxu0 0.0
        %1665 = vmatprep.subr.mxu0 0.0
        %1666 = vmatpush2.xpose.msra.mxu0 0.0
        %1667 = vmatprep.subr.mxu0 0.0
        %1668 = vmatpush2.xpose.msra.mxu0 0.0
        %1669 = vmatprep.subr.mxu0 0.0
        %1670 = vmatpush2.xpose.msra.mxu0 0.0
        %1671 = vmatprep.subr.mxu0 0.0
        %1672 = vmatpush2.xpose.msra.mxu0 0.0
        %1673 = vmatprep.subr.mxu0 0.0
        %1674 = vmatpush2.xpose.msra.mxu0 0.0
        %1675 = vmatprep.subr.mxu0 0.0
        %1676 = vmatpush2.xpose.msra.mxu0 0.0
        %1677 = vmatprep.subr.mxu0 0.0
        %1678 = vmatpush2.xpose.msra.mxu0 0.0
        %1679 = vmatprep.subr.mxu0 0.0
        %1680 = vmatpush2.xpose.msra.mxu0 0.0
        %1681 = vmatprep.subr.mxu0 0.0
        %1682 = vmatpush2.xpose.msra.mxu0 0.0
        %1683 = vmatprep.mubr.f32.mxu0 0.0
        %1684 = vmatmul.mubr.f32.gmra.mxu0 %v1615
        %v1685 = vpop.f32.mrf.mxu0
        %v1686 = vadd.f32 %v1610, %v1685
        %v1687 = vpop.f32.mrf.mxu0
        %1688 = vdwg.mxu0
        %v1689 = vsel %vm973, %v1686, -inf
        %1690 = vmax.xlane.f32.xlu0 %v1689
        %v1691 = vpop.xlane.xlu0 %1690
        %v1692 = vsub.f32 %v1686, %v1691
        %v1693 = vmul.f32 %v1692, 1.442695
        %v1694 = vpow.pop %v1693
        %v1695 = vsel %vm973, %v1694, 0.0
        %1696 = vadd.xlane.f32.xlu0 %v1695
        %v1697 = vpop.xlane.xlu0 %1696
        %v1698 = vrcp.pop %v1697
        %v1699 = vmul.f32 %v1694, %v1698
        %1700 = vrot.lane.b32.xlu0 %v857, 64
        %v1701 = vpop.permute.xlu0 %1700
        %v1703 = vsel %vm987, %v1699, 0
        %v1705 = vsel %vm574, %v1701, 0
        %1707 = vmatprep.subr.mxu0 0.0
        %1708 = vmatpush1.msra.mxu0 0.0
        %1709 = vmatprep.subr.mxu0 0.0
        %1710 = vmatpush1.msra.mxu0 0.0
        %1711 = vmatprep.subr.mxu0 0.0
        %1712 = vmatpush1.msra.mxu0 0.0
        %1713 = vmatprep.subr.mxu0 0.0
        %1714 = vmatpush1.msra.mxu0 0.0
        %1715 = vmatprep.subr.mxu0 0.0
        %1716 = vmatpush1.msra.mxu0 0.0
        %1717 = vmatprep.subr.mxu0 0.0
        %1718 = vmatpush1.msra.mxu0 0.0
        %1719 = vmatprep.subr.mxu0 0.0
        %1720 = vmatpush1.msra.mxu0 0.0
        %1721 = vmatprep.subr.mxu0 0.0
        %1722 = vmatpush1.msra.mxu0 0.0
        %1723 = vmatprep.subr.mxu0 0.0
        %1724 = vmatpush1.msra.mxu0 0.0
        %1725 = vmatprep.subr.mxu0 0.0
        %1726 = vmatpush1.msra.mxu0 0.0
        %1727 = vmatprep.subr.mxu0 0.0
        %1728 = vmatpush1.msra.mxu0 0.0
        %1729 = vmatprep.subr.mxu0 0.0
        %1730 = vmatpush1.msra.mxu0 0.0
        %1731 = vmatprep.subr.mxu0 0.0
        %1732 = vmatpush1.msra.mxu0 0.0
        %1733 = vmatprep.subr.mxu0 0.0
        %1734 = vmatpush1.msra.mxu0 0.0
        %1735 = vmatprep.subr.mxu0 0.0
        %1736 = vmatpush1.msra.mxu0 0.0
        %1737 = vmatprep.subr.mxu0 0.0
        %1738 = vmatpush1.msra.mxu0 %v1705
        %1739 = vmatprep.subr.mxu0 0.0
        %1740 = vmatpush2.msra.mxu0 0.0
        %1741 = vmatprep.subr.mxu0 0.0
        %1742 = vmatpush2.msra.mxu0 0.0
        %1743 = vmatprep.subr.mxu0 0.0
        %1744 = vmatpush2.msra.mxu0 0.0
        %1745 = vmatprep.subr.mxu0 0.0
        %1746 = vmatpush2.msra.mxu0 0.0
        %1747 = vmatprep.subr.mxu0 0.0
        %1748 = vmatpush2.msra.mxu0 0.0
        %1749 = vmatprep.subr.mxu0 0.0
        %1750 = vmatpush2.msra.mxu0 0.0
        %1751 = vmatprep.subr.mxu0 0.0
        %1752 = vmatpush2.msra.mxu0 0.0
        %1753 = vmatprep.subr.mxu0 0.0
        %1754 = vmatpush2.msra.mxu0 0.0
        %1755 = vmatprep.subr.mxu0 0.0
        %1756 = vmatpush2.msra.mxu0 0.0
        %1757 = vmatprep.subr.mxu0 0.0
        %1758 = vmatpush2.msra.mxu0 0.0
        %1759 = vmatprep.subr.mxu0 0.0
        %1760 = vmatpush2.msra.mxu0 0.0
        %1761 = vmatprep.subr.mxu0 0.0
        %1762 = vmatpush2.msra.mxu0 0.0
        %1763 = vmatprep.subr.mxu0 0.0
        %1764 = vmatpush2.msra.mxu0 0.0
        %1765 = vmatprep.subr.mxu0 0.0
        %1766 = vmatpush2.msra.mxu0 0.0
        %1767 = vmatprep.subr.mxu0 0.0
        %1768 = vmatpush2.msra.mxu0 0.0
        %1769 = vmatprep.subr.mxu0 0.0
        %1770 = vmatpush2.msra.mxu0 0.0
        %1771 = vmatprep.mubr.f32.mxu0 0.0
        %1772 = vmatmul.mubr.f32.gmra.mxu0 %v1703
        %v1773 = vpop.f32.mrf.mxu0
        %v1774 = vadd.f32 0.0, %v1773
        %v1775 = vpop.f32.mrf.mxu0
        %1776 = vdwg.mxu0
        %v1777 = vpack.c.bf16 %v1774, %v1774
        %v1786 = vunpack.c.l.b16 %v886
        %v1787 = vunpack.c.l.b16 %v887
        %v1788 = vunpack.c.l.b16 %v888
        %v1789 = vunpack.c.l.b16 %v889
        %v1790 = vunpack.c.l.b16 %v890
        %v1791 = vunpack.c.l.b16 %v891
        %v1792 = vunpack.c.l.b16 %v892
        %v1793 = vunpack.c.l.b16 %v893
        %v1794 = vpack.c.b16 %v1787, %v1786
        %v1795 = vpack.c.b16 %v1789, %v1788
        %v1796 = vpack.c.b16 %v1791, %v1790
        %v1797 = vpack.c.b16 %v1793, %v1792
        %v1803 = vsel %vm1256, %v1777, 0
        %1805 = vmatprep.subr.bf16.mxu0 0
        %1806 = vmatpush1.bf16.msra.mxu0 0
        %1807 = vmatprep.subr.bf16.mxu0 0
        %1808 = vmatpush1.bf16.msra.mxu0 0
        %1809 = vmatprep.subr.bf16.mxu0 0
        %1810 = vmatpush1.bf16.msra.mxu0 0
        %1811 = vmatprep.subr.bf16.mxu0 0
        %1812 = vmatpush1.bf16.msra.mxu0 0
        %1813 = vmatprep.subr.bf16.mxu0 0
        %1814 = vmatpush1.bf16.msra.mxu0 %v1797
        %1815 = vmatprep.subr.bf16.mxu0 0
        %1816 = vmatpush1.bf16.msra.mxu0 %v1796
        %1817 = vmatprep.subr.bf16.mxu0 0
        %1818 = vmatpush1.bf16.msra.mxu0 %v1795
        %1819 = vmatprep.subr.bf16.mxu0 0
        %1820 = vmatpush1.bf16.msra.mxu0 %v1794
        %1821 = vmatprep.subr.bf16.mxu0 0
        %1822 = vmatpush2.bf16.msra.mxu0 0
        %1823 = vmatprep.subr.bf16.mxu0 0
        %1824 = vmatpush2.bf16.msra.mxu0 0
        %1825 = vmatprep.subr.bf16.mxu0 0
        %1826 = vmatpush2.bf16.msra.mxu0 0
        %1827 = vmatprep.subr.bf16.mxu0 0
        %1828 = vmatpush2.bf16.msra.mxu0 0
        %1829 = vmatprep.subr.bf16.mxu0 0
        %1830 = vmatpush2.bf16.msra.mxu0 0
        %1831 = vmatprep.subr.bf16.mxu0 0
        %1832 = vmatpush2.bf16.msra.mxu0 0
        %1833 = vmatprep.subr.bf16.mxu0 0
        %1834 = vmatpush2.bf16.msra.mxu0 0
        %1835 = vmatprep.subr.bf16.mxu0 0
        %1836 = vmatpush2.bf16.msra.mxu0 0
        %1837 = vmatprep.mubr.bf16.mxu0 0
        %1838 = vmatmul.mubr.bf16.gmra.mxu0 %v1803
        %v1839 = vpop.f32.mrf.mxu0
        %v1840 = vadd.f32 0.0, %v1839
        %v1841 = vpop.f32.mrf.mxu0
        %v1842 = vpop.f32.mrf.mxu0
        %v1843 = vpop.f32.mrf.mxu0
        %1844 = vdwg.mxu0
        %v1845 = vadd.f32 %v1608, %v1840
        %v1846 = vadd.f32 %v571, %v1845
        %v1847 = vld [vmem:[%s7] sm:$0x1]
        %v1849 = vlaneseq
        %v1850 = vshrl.u32 %v1849, 7
        %v1851 = vsub.s32 0, %v1850
        %v1852 = vrot.slane %v1847, %v1851
        %v1854 = vadd.f32 %v1846, %v1852
        %v1855 = vld [vmem:[%s8] sm:$0x1]
        %v1856 = vld [vmem:[%s9] sm:$0x1]
        %v1857 = vsel %vm574, %v1854, 0.0
        %1858 = vadd.xlane.f32.xlu0 %v1857
        %v1859 = vpop.xlane.xlu0 %1858
        %v1860 = vmul.f32 %v1859, %v578
        %v1861 = vsub.f32 %v1854, %v1860
        %v1862 = vmul.f32 %v1861, %v1861
        %v1863 = vsel %vm574, %v1862, 0.0
        %1864 = vadd.xlane.f32.xlu0 %v1863
        %v1865 = vpop.xlane.xlu0 %1864
        %v1866 = vmul.f32 %v1865, %v578
        %v1867 = vadd.f32 %v1866, 1e-05
        %v1868 = vrsqrt.pop %v1867
        %v1869 = vmul.f32 %v1861, %v1868
        %v1871 = vlaneseq
        %v1872 = vshrl.u32 %v1871, 7
        %v1873 = vsub.s32 0, %v1872
        %v1874 = vrot.slane %v1855, %v1873
        %v1876 = vmul.f32 %v1869, %v1874
        %v1878 = vlaneseq
        %v1879 = vshrl.u32 %v1878, 7
        %v1880 = vsub.s32 0, %v1879
        %v1881 = vrot.slane %v1856, %v1880
        %v1883 = vadd.f32 %v1876, %v1881
        %v1884 = vld [vmem:[%s10] sm:$0xff]
        %v1885 = vld [vmem:[%s10 + $0x8] sm:$0xff]
        %v1886 = vld [vmem:[%s10 + $0x10] sm:$0xff]
        %v1887 = vld [vmem:[%s10 + $0x18] sm:$0xff]
        %v1888 = vld [vmem:[%s10 + $0x20] sm:$0xff]
        %v1889 = vld [vmem:[%s10 + $0x28] sm:$0xff]
        %v1890 = vld [vmem:[%s10 + $0x30] sm:$0xff]
        %v1891 = vld [vmem:[%s10 + $0x38] sm:$0xff]
        %v1892 = vld [vmem:[%s10 + $0x40] sm:$0xff]
        %v1893 = vld [vmem:[%s10 + $0x48] sm:$0xff]
        %v1894 = vld [vmem:[%s10 + $0x50] sm:$0xff]
        %v1895 = vld [vmem:[%s10 + $0x58] sm:$0xff]
        %v1896 = vld [vmem:[%s10 + $0x60] sm:$0xff]
        %v1897 = vld [vmem:[%s10 + $0x68] sm:$0xff]
        %v1898 = vld [vmem:[%s10 + $0x70] sm:$0xff]
        %v1899 = vld [vmem:[%s10 + $0x78] sm:$0xff]
        %v1900 = vld [vmem:[%s10 + $0x80] sm:$0xff]
        %v1901 = vld [vmem:[%s10 + $0x88] sm:$0xff]
        %v1902 = vld [vmem:[%s10 + $0x90] sm:$0xff]
        %v1903 = vld [vmem:[%s10 + $0x98] sm:$0xff]
        %v1904 = vld [vmem:[%s10 + $0xa0] sm:$0xff]
        %v1905 = vld [vmem:[%s10 + $0xa8] sm:$0xff]
        %v1906 = vld [vmem:[%s10 + $0xb0] sm:$0xff]
        %v1907 = vld [vmem:[%s10 + $0xb8] sm:$0xff]
        %v1908 = vld [vmem:[%s10 + $0xc0] sm:$0xff]
        %v1909 = vld [vmem:[%s10 + $0xc8] sm:$0xff]
        %v1910 = vld [vmem:[%s10 + $0xd0] sm:$0xff]
        %v1911 = vld [vmem:[%s10 + $0xd8] sm:$0xff]
        %v1912 = vld [vmem:[%s10 + $0xe0] sm:$0xff]
        %v1913 = vld [vmem:[%s10 + $0xe8] sm:$0xff]
        %v1914 = vld [vmem:[%s10 + $0xf0] sm:$0xff]
        %v1915 = vld [vmem:[%s10 + $0xf8] sm:$0xff]
        %v1916 = vpack.c.bf16 %v1883, %v1883
        %v1917 = vld [vmem:[%s11] sm:$0xf]
        %v1919 = vlaneseq
        %v1920 = vshrl.u32 %v1919, 7
        %v1921 = vsub.s32 0, %v1920
        %v1922 = vrot.slane %v1917, %v1921
        %v1923 = vlaneseq
        %v1924 = vshrl.u32 %v1923, 7
        %v1925 = vsub.s32 1, %v1924
        %v1926 = vrot.slane %v1917, %v1925
        %v1927 = vlaneseq
        %v1928 = vshrl.u32 %v1927, 7
        %v1929 = vsub.s32 2, %v1928
        %v1930 = vrot.slane %v1917, %v1929
        %v1931 = vlaneseq
        %v1932 = vshrl.u32 %v1931, 7
        %v1933 = vsub.s32 3, %v1932
        %v1934 = vrot.slane %v1917, %v1933
        %v1971 = vunpack.c.l.b16 %v1884
        %v1972 = vunpack.c.h.b16 %v1884
        %v1973 = vunpack.c.l.b16 %v1885
        %v1974 = vunpack.c.h.b16 %v1885
        %v1975 = vunpack.c.l.b16 %v1886
        %v1976 = vunpack.c.h.b16 %v1886
        %v1977 = vunpack.c.l.b16 %v1887
        %v1978 = vunpack.c.h.b16 %v1887
        %v1979 = vunpack.c.l.b16 %v1888
        %v1980 = vunpack.c.h.b16 %v1888
        %v1981 = vunpack.c.l.b16 %v1889
        %v1982 = vunpack.c.h.b16 %v1889
        %v1983 = vunpack.c.l.b16 %v1890
        %v1984 = vunpack.c.h.b16 %v1890
        %v1985 = vunpack.c.l.b16 %v1891
        %v1986 = vunpack.c.h.b16 %v1891
        %v1987 = vunpack.c.l.b16 %v1892
        %v1988 = vunpack.c.h.b16 %v1892
        %v1989 = vunpack.c.l.b16 %v1893
        %v1990 = vunpack.c.h.b16 %v1893
        %v1991 = vunpack.c.l.b16 %v1894
        %v1992 = vunpack.c.h.b16 %v1894
        %v1993 = vunpack.c.l.b16 %v1895
        %v1994 = vunpack.c.h.b16 %v1895
        %v1995 = vunpack.c.l.b16 %v1896
        %v1996 = vunpack.c.h.b16 %v1896
        %v1997 = vunpack.c.l.b16 %v1897
        %v1998 = vunpack.c.h.b16 %v1897
        %v1999 = vunpack.c.l.b16 %v1898
        %v2000 = vunpack.c.h.b16 %v1898
        %v2001 = vunpack.c.l.b16 %v1899
        %v2002 = vunpack.c.h.b16 %v1899
        %v2003 = vunpack.c.l.b16 %v1900
        %v2004 = vunpack.c.h.b16 %v1900
        %v2005 = vunpack.c.l.b16 %v1901
        %v2006 = vunpack.c.h.b16 %v1901
        %v2007 = vunpack.c.l.b16 %v1902
        %v2008 = vunpack.c.h.b16 %v1902
        %v2009 = vunpack.c.l.b16 %v1903
        %v2010 = vunpack.c.h.b16 %v1903
        %v2011 = vunpack.c.l.b16 %v1904
        %v2012 = vunpack.c.h.b16 %v1904
        %v2013 = vunpack.c.l.b16 %v1905
        %v2014 = vunpack.c.h.b16 %v1905
        %v2015 = vunpack.c.l.b16 %v1906
        %v2016 = vunpack.c.h.b16 %v1906
        %v2017 = vunpack.c.l.b16 %v1907
        %v2018 = vunpack.c.h.b16 %v1907
        %v2019 = vunpack.c.l.b16 %v1908
        %v2020 = vunpack.c.h.b16 %v1908
        %v2021 = vunpack.c.l.b16 %v1909
        %v2022 = vunpack.c.h.b16 %v1909
        %v2023 = vunpack.c.l.b16 %v1910
        %v2024 = vunpack.c.h.b16 %v1910
        %v2025 = vunpack.c.l.b16 %v1911
        %v2026 = vunpack.c.h.b16 %v1911
        %v2027 = vunpack.c.l.b16 %v1912
        %v2028 = vunpack.c.h.b16 %v1912
        %v2029 = vunpack.c.l.b16 %v1913
        %v2030 = vunpack.c.h.b16 %v1913
        %v2031 = vunpack.c.l.b16 %v1914
        %v2032 = vunpack.c.h.b16 %v1914
        %v2033 = vunpack.c.l.b16 %v1915
        %v2034 = vunpack.c.h.b16 %v1915
        %v2035 = vpack.c.b16 %v1975, %v1971
        %v2036 = vpack.c.b16 %v1976, %v1972
        %v2037 = vpack.c.b16 %v1977, %v1973
        %v2038 = vpack.c.b16 %v1978, %v1974
        %v2039 = vpack.c.b16 %v1983, %v1979
        %v2040 = vpack.c.b16 %v1984, %v1980
        %v2041 = vpack.c.b16 %v1985, %v1981
        %v2042 = vpack.c.b16 %v1986, %v1982
        %v2043 = vpack.c.b16 %v1991, %v1987
        %v2044 = vpack.c.b16 %v1992, %v1988
        %v2045 = vpack.c.b16 %v1993, %v1989
        %v2046 = vpack.c.b16 %v1994, %v1990
        %v2047 = vpack.c.b16 %v1999, %v1995
        %v2048 = vpack.c.b16 %v2000, %v1996
        %v2049 = vpack.c.b16 %v2001, %v1997
        %v2050 = vpack.c.b16 %v2002, %v1998
        %v2051 = vpack.c.b16 %v2007, %v2003
        %v2052 = vpack.c.b16 %v2008, %v2004
        %v2053 = vpack.c.b16 %v2009, %v2005
        %v2054 = vpack.c.b16 %v2010, %v2006
        %v2055 = vpack.c.b16 %v2015, %v2011
        %v2056 = vpack.c.b16 %v2016, %v2012
        %v2057 = vpack.c.b16 %v2017, %v2013
        %v2058 = vpack.c.b16 %v2018, %v2014
        %v2059 = vpack.c.b16 %v2023, %v2019
        %v2060 = vpack.c.b16 %v2024, %v2020
        %v2061 = vpack.c.b16 %v2025, %v2021
        %v2062 = vpack.c.b16 %v2026, %v2022
        %v2063 = vpack.c.b16 %v2031, %v2027
        %v2064 = vpack.c.b16 %v2032, %v2028
        %v2065 = vpack.c.b16 %v2033, %v2029
        %v2066 = vpack.c.b16 %v2034, %v2030
        %2099 = vmatprep.subr.bf16.mxu0 %v2064
        %2100 = vmatpush1.bf16.msra.mxu0 %v2063
        %2101 = vmatprep.subr.bf16.mxu0 %v2060
        %2102 = vmatpush1.bf16.msra.mxu0 %v2059
        %2103 = vmatprep.subr.bf16.mxu0 %v2056
        %2104 = vmatpush1.bf16.msra.mxu0 %v2055
        %2105 = vmatprep.subr.bf16.mxu0 %v2052
        %2106 = vmatpush1.bf16.msra.mxu0 %v2051
        %2107 = vmatprep.subr.bf16.mxu0 %v2048
        %2108 = vmatpush1.bf16.msra.mxu0 %v2047
        %2109 = vmatprep.subr.bf16.mxu0 %v2044
        %2110 = vmatpush1.bf16.msra.mxu0 %v2043
        %2111 = vmatprep.subr.bf16.mxu0 %v2040
        %2112 = vmatpush1.bf16.msra.mxu0 %v2039
        %2113 = vmatprep.subr.bf16.mxu0 %v2036
        %2114 = vmatpush1.bf16.msra.mxu0 %v2035
        %2115 = vmatprep.subr.bf16.mxu0 0
        %2116 = vmatpush2.bf16.msra.mxu0 0
        %2117 = vmatprep.subr.bf16.mxu0 0
        %2118 = vmatpush2.bf16.msra.mxu0 0
        %2119 = vmatprep.subr.bf16.mxu0 0
        %2120 = vmatpush2.bf16.msra.mxu0 0
        %2121 = vmatprep.subr.bf16.mxu0 0
        %2122 = vmatpush2.bf16.msra.mxu0 0
        %2123 = vmatprep.subr.bf16.mxu0 0
        %2124 = vmatpush2.bf16.msra.mxu0 0
        %2125 = vmatprep.subr.bf16.mxu0 0
        %2126 = vmatpush2.bf16.msra.mxu0 0
        %2127 = vmatprep.subr.bf16.mxu0 0
        %2128 = vmatpush2.bf16.msra.mxu0 0
        %2129 = vmatprep.subr.bf16.mxu0 0
        %2130 = vmatpush2.bf16.msra.mxu0 0
        %2131 = vmatprep.mubr.bf16.mxu0 0
        %2132 = vmatmul.mubr.bf16.gmra.mxu0 %v1916
        %v2133 = vpop.f32.mrf.mxu0
        %v2134 = vadd.f32 %v1922, %v2133
        %v2135 = vpop.f32.mrf.mxu0
        %v2136 = vadd.f32 %v1926, %v2135
        %v2137 = vpop.f32.mrf.mxu0
        %v2138 = vpop.f32.mrf.mxu0
        %2139 = vdwg.mxu0
        %2140 = vmatprep.subr.bf16.mxu0 %v2066
        %2141 = vmatpush1.bf16.msra.mxu0 %v2065
        %2142 = vmatprep.subr.bf16.mxu0 %v2062
        %2143 = vmatpush1.bf16.msra.mxu0 %v2061
        %2144 = vmatprep.subr.bf16.mxu0 %v2058
        %2145 = vmatpush1.bf16.msra.mxu0 %v2057
        %2146 = vmatprep.subr.bf16.mxu0 %v2054
        %2147 = vmatpush1.bf16.msra.mxu0 %v2053
        %2148 = vmatprep.subr.bf16.mxu0 %v2050
        %2149 = vmatpush1.bf16.msra.mxu0 %v2049
        %2150 = vmatprep.subr.bf16.mxu0 %v2046
        %2151 = vmatpush1.bf16.msra.mxu0 %v2045
        %2152 = vmatprep.subr.bf16.mxu0 %v2042
        %2153 = vmatpush1.bf16.msra.mxu0 %v2041
        %2154 = vmatprep.subr.bf16.mxu0 %v2038
        %2155 = vmatpush1.bf16.msra.mxu0 %v2037
        %2156 = vmatprep.subr.bf16.mxu0 0
        %2157 = vmatpush2.bf16.msra.mxu0 0
        %2158 = vmatprep.subr.bf16.mxu0 0
        %2159 = vmatpush2.bf16.msra.mxu0 0
        %2160 = vmatprep.subr.bf16.mxu0 0
        %2161 = vmatpush2.bf16.msra.mxu0 0
        %2162 = vmatprep.subr.bf16.mxu0 0
        %2163 = vmatpush2.bf16.msra.mxu0 0
        %2164 = vmatprep.subr.bf16.mxu0 0
        %2165 = vmatpush2.bf16.msra.mxu0 0
        %2166 = vmatprep.subr.bf16.mxu0 0
        %2167 = vmatpush2.bf16.msra.mxu0 0
        %2168 = vmatprep.subr.bf16.mxu0 0
        %2169 = vmatpush2.bf16.msra.mxu0 0
        %2170 = vmatprep.subr.bf16.mxu0 0
        %2171 = vmatpush2.bf16.msra.mxu0 0
        %2172 = vmatprep.mubr.bf16.mxu0 0
        %2173 = vmatmul.mubr.bf16.gmra.mxu0 %v1916
        %v2174 = vpop.f32.mrf.mxu0
        %v2175 = vadd.f32 %v1930, %v2174
        %v2176 = vpop.f32.mrf.mxu0
        %v2177 = vadd.f32 %v1934, %v2176
        %v2178 = vpop.f32.mrf.mxu0
        %v2179 = vpop.f32.mrf.mxu0
        %2180 = vdwg.mxu0
        %v2181 = vmul.f32 %v2134, 0.5
        %v2182 = vmul.f32 %v2136, 0.5
        %v2183 = vmul.f32 %v2175, 0.5
        %v2184 = vmul.f32 %v2177, 0.5
        %v2185 = vmul.f32 %v2134, 0.044715
        %v2186 = vmul.f32 %v2136, 0.044715
        %v2187 = vmul.f32 %v2175, 0.044715
        %v2188 = vmul.f32 %v2177, 0.044715
        %v2189 = vmul.f32 %v2185, %v2134
        %v2190 = vmul.f32 %v2186, %v2136
        %v2191 = vmul.f32 %v2187, %v2175
        %v2192 = vmul.f32 %v2188, %v2177
        %v2193 = vmul.f32 %v2189, %v2134
        %v2194 = vmul.f32 %v2190, %v2136
        %v2195 = vmul.f32 %v2191, %v2175
        %v2196 = vmul.f32 %v2192, %v2177
        %v2197 = vadd.f32 %v2134, %v2193
        %v2198 = vadd.f32 %v2136, %v2194
        %v2199 = vadd.f32 %v2175, %v2195
        %v2200 = vadd.f32 %v2177, %v2196
        %v2201 = vmul.f32 %v2197, 0.7978846
        %v2202 = vmul.f32 %v2198, 0.7978846
        %v2203 = vmul.f32 %v2199, 0.7978846
        %v2204 = vmul.f32 %v2200, 0.7978846
        %v2205 = vtanh.pop %v2201
        %v2206 = vtanh.pop %v2202
        %v2207 = vtanh.pop %v2203
        %v2208 = vtanh.pop %v2204
        %v2209 = vadd.f32 %v2205, 1.0
        %v2210 = vadd.f32 %v2206, 1.0
        %v2211 = vadd.f32 %v2207, 1.0
        %v2212 = vadd.f32 %v2208, 1.0
        %v2213 = vmul.f32 %v2181, %v2209
        %v2214 = vmul.f32 %v2182, %v2210
        %v2215 = vmul.f32 %v2183, %v2211
        %v2216 = vmul.f32 %v2184, %v2212
        %v2217 = vld [vmem:[%s12] sm:$0xf]
        %v2218 = vld [vmem:[%s12 + $0x4] sm:$0xf]
        %v2219 = vld [vmem:[%s12 + $0x8] sm:$0xf]
        %v2220 = vld [vmem:[%s12 + $0xc] sm:$0xf]
        %v2221 = vld [vmem:[%s12 + $0x10] sm:$0xf]
        %v2222 = vld [vmem:[%s12 + $0x14] sm:$0xf]
        %v2223 = vld [vmem:[%s12 + $0x18] sm:$0xf]
        %v2224 = vld [vmem:[%s12 + $0x1c] sm:$0xf]
        %v2225 = vld [vmem:[%s12 + $0x20] sm:$0xf]
        %v2226 = vld [vmem:[%s12 + $0x24] sm:$0xf]
        %v2227 = vld [vmem:[%s12 + $0x28] sm:$0xf]
        %v2228 = vld [vmem:[%s12 + $0x2c] sm:$0xf]
        %v2229 = vld [vmem:[%s12 + $0x30] sm:$0xf]
        %v2230 = vld [vmem:[%s12 + $0x34] sm:$0xf]
        %v2231 = vld [vmem:[%s12 + $0x38] sm:$0xf]
        %v2232 = vld [vmem:[%s12 + $0x3c] sm:$0xf]
        %v2233 = vld [vmem:[%s12 + $0x40] sm:$0xf]
        %v2234 = vld [vmem:[%s12 + $0x44] sm:$0xf]
        %v2235 = vld [vmem:[%s12 + $0x48] sm:$0xf]
        %v2236 = vld [vmem:[%s12 + $0x4c] sm:$0xf]
        %v2237 = vld [vmem:[%s12 + $0x50] sm:$0xf]
        %v2238 = vld [vmem:[%s12 + $0x54] sm:$0xf]
        %v2239 = vld [vmem:[%s12 + $0x58] sm:$0xf]
        %v2240 = vld [vmem:[%s12 + $0x5c] sm:$0xf]
        %v2241 = vld [vmem:[%s12 + $0x60] sm:$0xf]
        %v2242 = vld [vmem:[%s12 + $0x64] sm:$0xf]
        %v2243 = vld [vmem:[%s12 + $0x68] sm:$0xf]
        %v2244 = vld [vmem:[%s12 + $0x6c] sm:$0xf]
        %v2245 = vld [vmem:[%s12 + $0x70] sm:$0xf]
        %v2246 = vld [vmem:[%s12 + $0x74] sm:$0xf]
        %v2247 = vld [vmem:[%s12 + $0x78] sm:$0xf]
        %v2248 = vld [vmem:[%s12 + $0x7c] sm:$0xf]
        %v2249 = vld [vmem:[%s12 + $0x80] sm:$0xf]
        %v2250 = vld [vmem:[%s12 + $0x84] sm:$0xf]
        %v2251 = vld [vmem:[%s12 + $0x88] sm:$0xf]
        %v2252 = vld [vmem:[%s12 + $0x8c] sm:$0xf]
        %v2253 = vld [vmem:[%s12 + $0x90] sm:$0xf]
        %v2254 = vld [vmem:[%s12 + $0x94] sm:$0xf]
        %v2255 = vld [vmem:[%s12 + $0x98] sm:$0xf]
        %v2256 = vld [vmem:[%s12 + $0x9c] sm:$0xf]
        %v2257 = vld [vmem:[%s12 + $0xa0] sm:$0xf]
        %v2258 = vld [vmem:[%s12 + $0xa4] sm:$0xf]
        %v2259 = vld [vmem:[%s12 + $0xa8] sm:$0xf]
        %v2260 = vld [vmem:[%s12 + $0xac] sm:$0xf]
        %v2261 = vld [vmem:[%s12 + $0xb0] sm:$0xf]
        %v2262 = vld [vmem:[%s12 + $0xb4] sm:$0xf]
        %v2263 = vld [vmem:[%s12 + $0xb8] sm:$0xf]
        %v2264 = vld [vmem:[%s12 + $0xbc] sm:$0xf]
        %v2265 = vld [vmem:[%s12 + $0xc0] sm:$0xf]
        %v2266 = vld [vmem:[%s12 + $0xc4] sm:$0xf]
        %v2267 = vld [vmem:[%s12 + $0xc8] sm:$0xf]
        %v2268 = vld [vmem:[%s12 + $0xcc] sm:$0xf]
        %v2269 = vld [vmem:[%s12 + $0xd0] sm:$0xf]
        %v2270 = vld [vmem:[%s12 + $0xd4] sm:$0xf]
        %v2271 = vld [vmem:[%s12 + $0xd8] sm:$0xf]
        %v2272 = vld [vmem:[%s12 + $0xdc] sm:$0xf]
        %v2273 = vld [vmem:[%s12 + $0xe0] sm:$0xf]
        %v2274 = vld [vmem:[%s12 + $0xe4] sm:$0xf]
        %v2275 = vld [vmem:[%s12 + $0xe8] sm:$0xf]
        %v2276 = vld [vmem:[%s12 + $0xec] sm:$0xf]
        %v2277 = vld [vmem:[%s12 + $0xf0] sm:$0xf]
        %v2278 = vld [vmem:[%s12 + $0xf4] sm:$0xf]
        %v2279 = vld [vmem:[%s12 + $0xf8] sm:$0xf]
        %v2280 = vld [vmem:[%s12 + $0xfc] sm:$0xf]
        %v2281 = vpack.c.bf16 %v2213, %v2213
        %v2282 = vpack.c.bf16 %v2214, %v2214
        %v2283 = vpack.c.bf16 %v2215, %v2215
        %v2284 = vpack.c.bf16 %v2216, %v2216
        %v2349 = vunpack.c.l.b16 %v2217
        %v2350 = vunpack.c.l.b16 %v2218
        %v2351 = vunpack.c.l.b16 %v2219
        %v2352 = vunpack.c.l.b16 %v2220
        %v2353 = vunpack.c.l.b16 %v2221
        %v2354 = vunpack.c.l.b16 %v2222
        %v2355 = vunpack.c.l.b16 %v2223
        %v2356 = vunpack.c.l.b16 %v2224
        %v2357 = vunpack.c.l.b16 %v2225
        %v2358 = vunpack.c.l.b16 %v2226
        %v2359 = vunpack.c.l.b16 %v2227
        %v2360 = vunpack.c.l.b16 %v2228
        %v2361 = vunpack.c.l.b16 %v2229
        %v2362 = vunpack.c.l.b16 %v2230
        %v2363 = vunpack.c.l.b16 %v2231
        %v2364 = vunpack.c.l.b16 %v2232
        %v2365 = vunpack.c.l.b16 %v2233
        %v2366 = vunpack.c.l.b16 %v2234
        %v2367 = vunpack.c.l.b16 %v2235
        %v2368 = vunpack.c.l.b16 %v2236
        %v2369 = vunpack.c.l.b16 %v2237
        %v2370 = vunpack.c.l.b16 %v2238
        %v2371 = vunpack.c.l.b16 %v2239
        %v2372 = vunpack.c.l.b16 %v2240
        %v2373 = vunpack.c.l.b16 %v2241
        %v2374 = vunpack.c.l.b16 %v2242
        %v2375 = vunpack.c.l.b16 %v2243
        %v2376 = vunpack.c.l.b16 %v2244
        %v2377 = vunpack.c.l.b16 %v2245
        %v2378 = vunpack.c.l.b16 %v2246
        %v2379 = vunpack.c.l.b16 %v2247
        %v2380 = vunpack.c.l.b16 %v2248
        %v2381 = vunpack.c.l.b16 %v2249
        %v2382 = vunpack.c.l.b16 %v2250
        %v2383 = vunpack.c.l.b16 %v2251
        %v2384 = vunpack.c.l.b16 %v2252
        %v2385 = vunpack.c.l.b16 %v2253
        %v2386 = vunpack.c.l.b16 %v2254
        %v2387 = vunpack.c.l.b16 %v2255
        %v2388 = vunpack.c.l.b16 %v2256
        %v2389 = vunpack.c.l.b16 %v2257
        %v2390 = vunpack.c.l.b16 %v2258
        %v2391 = vunpack.c.l.b16 %v2259
        %v2392 = vunpack.c.l.b16 %v2260
        %v2393 = vunpack.c.l.b16 %v2261
        %v2394 = vunpack.c.l.b16 %v2262
        %v2395 = vunpack.c.l.b16 %v2263
        %v2396 = vunpack.c.l.b16 %v2264
        %v2397 = vunpack.c.l.b16 %v2265
        %v2398 = vunpack.c.l.b16 %v2266
        %v2399 = vunpack.c.l.b16 %v2267
        %v2400 = vunpack.c.l.b16 %v2268
        %v2401 = vunpack.c.l.b16 %v2269
        %v2402 = vunpack.c.l.b16 %v2270
        %v2403 = vunpack.c.l.b16 %v2271
        %v2404 = vunpack.c.l.b16 %v2272
        %v2405 = vunpack.c.l.b16 %v2273
        %v2406 = vunpack.c.l.b16 %v2274
        %v2407 = vunpack.c.l.b16 %v2275
        %v2408 = vunpack.c.l.b16 %v2276
        %v2409 = vunpack.c.l.b16 %v2277
        %v2410 = vunpack.c.l.b16 %v2278
        %v2411 = vunpack.c.l.b16 %v2279
        %v2412 = vunpack.c.l.b16 %v2280
        %v2413 = vpack.c.b16 %v2350, %v2349
        %v2414 = vpack.c.b16 %v2352, %v2351
        %v2415 = vpack.c.b16 %v2354, %v2353
        %v2416 = vpack.c.b16 %v2356, %v2355
        %v2417 = vpack.c.b16 %v2358, %v2357
        %v2418 = vpack.c.b16 %v2360, %v2359
        %v2419 = vpack.c.b16 %v2362, %v2361
        %v2420 = vpack.c.b16 %v2364, %v2363
        %v2421 = vpack.c.b16 %v2366, %v2365
        %v2422 = vpack.c.b16 %v2368, %v2367
        %v2423 = vpack.c.b16 %v2370, %v2369
        %v2424 = vpack.c.b16 %v2372, %v2371
        %v2425 = vpack.c.b16 %v2374, %v2373
        %v2426 = vpack.c.b16 %v2376, %v2375
        %v2427 = vpack.c.b16 %v2378, %v2377
        %v2428 = vpack.c.b16 %v2380, %v2379
        %v2429 = vpack.c.b16 %v2382, %v2381
        %v2430 = vpack.c.b16 %v2384, %v2383
        %v2431 = vpack.c.b16 %v2386, %v2385
        %v2432 = vpack.c.b16 %v2388, %v2387
        %v2433 = vpack.c.b16 %v2390, %v2389
        %v2434 = vpack.c.b16 %v2392, %v2391
        %v2435 = vpack.c.b16 %v2394, %v2393
        %v2436 = vpack.c.b16 %v2396, %v2395
        %v2437 = vpack.c.b16 %v2398, %v2397
        %v2438 = vpack.c.b16 %v2400, %v2399
        %v2439 = vpack.c.b16 %v2402, %v2401
        %v2440 = vpack.c.b16 %v2404, %v2403
        %v2441 = vpack.c.b16 %v2406, %v2405
        %v2442 = vpack.c.b16 %v2408, %v2407
        %v2443 = vpack.c.b16 %v2410, %v2409
        %v2444 = vpack.c.b16 %v2412, %v2411
        %2477 = vmatprep.subr.bf16.mxu0 0
        %2478 = vmatpush1.bf16.msra.mxu0 %v2420
        %2479 = vmatprep.subr.bf16.mxu0 0
        %2480 = vmatpush1.bf16.msra.mxu0 %v2419
        %2481 = vmatprep.subr.bf16.mxu0 0
        %2482 = vmatpush1.bf16.msra.mxu0 %v2418
        %2483 = vmatprep.subr.bf16.mxu0 0
        %2484 = vmatpush1.bf16.msra.mxu0 %v2417
        %2485 = vmatprep.subr.bf16.mxu0 0
        %2486 = vmatpush1.bf16.msra.mxu0 %v2416
        %2487 = vmatprep.subr.bf16.mxu0 0
        %2488 = vmatpush1.bf16.msra.mxu0 %v2415
        %2489 = vmatprep.subr.bf16.mxu0 0
        %2490 = vmatpush1.bf16.msra.mxu0 %v2414
        %2491 = vmatprep.subr.bf16.mxu0 0
        %2492 = vmatpush1.bf16.msra.mxu0 %v2413
        %2493 = vmatprep.subr.bf16.mxu0 0
        %2494 = vmatpush2.bf16.msra.mxu0 %v2428
        %2495 = vmatprep.subr.bf16.mxu0 0
        %2496 = vmatpush2.bf16.msra.mxu0 %v2427
        %2497 = vmatprep.subr.bf16.mxu0 0
        %2498 = vmatpush2.bf16.msra.mxu0 %v2426
        %2499 = vmatprep.subr.bf16.mxu0 0
        %2500 = vmatpush2.bf16.msra.mxu0 %v2425
        %2501 = vmatprep.subr.bf16.mxu0 0
        %2502 = vmatpush2.bf16.msra.mxu0 %v2424
        %2503 = vmatprep.subr.bf16.mxu0 0
        %2504 = vmatpush2.bf16.msra.mxu0 %v2423
        %2505 = vmatprep.subr.bf16.mxu0 0
        %2506 = vmatpush2.bf16.msra.mxu0 %v2422
        %2507 = vmatprep.subr.bf16.mxu0 0
        %2508 = vmatpush2.bf16.msra.mxu0 %v2421
        %2509 = vmatprep.mubr.bf16.mxu0 %v2282
        %2510 = vmatmul.mubr.bf16.gmra.mxu0 %v2281
        %v2511 = vpop.f32.mrf.mxu0
        %v2512 = vadd.f32 0.0, %v2511
        %v2513 = vpop.f32.mrf.mxu0
        %v2514 = vpop.f32.mrf.mxu0
        %v2515 = vpop.f32.mrf.mxu0
        %2516 = vdwg.mxu0
        %2517 = vmatprep.subr.bf16.mxu0 0
        %2518 = vmatpush1.bf16.msra.mxu0 %v2436
        %2519 = vmatprep.subr.bf16.mxu0 0
        %2520 = vmatpush1.bf16.msra.mxu0 %v2435
        %2521 = vmatprep.subr.bf16.mxu0 0
        %2522 = vmatpush1.bf16.msra.mxu0 %v2434
        %2523 = vmatprep.subr.bf16.mxu0 0
        %2524 = vmatpush1.bf16.msra.mxu0 %v2433
        %2525 = vmatprep.subr.bf16.mxu0 0
        %2526 = vmatpush1.bf16.msra.mxu0 %v2432
        %2527 = vmatprep.subr.bf16.mxu0 0
        %2528 = vmatpush1.bf16.msra.mxu0 %v2431
        %2529 = vmatprep.subr.bf16.mxu0 0
        %2530 = vmatpush1.bf16.msra.mxu0 %v2430
        %2531 = vmatprep.subr.bf16.mxu0 0
        %2532 = vmatpush1.bf16.msra.mxu0 %v2429
        %2533 = vmatprep.subr.bf16.mxu0 0
        %2534 = vmatpush2.bf16.msra.mxu0 %v2444
        %2535 = vmatprep.subr.bf16.mxu0 0
        %2536 = vmatpush2.bf16.msra.mxu0 %v2443
        %2537 = vmatprep.subr.bf16.mxu0 0
        %2538 = vmatpush2.bf16.msra.mxu0 %v2442
        %2539 = vmatprep.subr.bf16.mxu0 0
        %2540 = vmatpush2.bf16.msra.mxu0 %v2441
        %2541 = vmatprep.subr.bf16.mxu0 0
        %2542 = vmatpush2.bf16.msra.mxu0 %v2440
        %2543 = vmatprep.subr.bf16.mxu0 0
        %2544 = vmatpush2.bf16.msra.mxu0 %v2439
        %2545 = vmatprep.subr.bf16.mxu0 0
        %2546 = vmatpush2.bf16.msra.mxu0 %v2438
        %2547 = vmatprep.subr.bf16.mxu0 0
        %2548 = vmatpush2.bf16.msra.mxu0 %v2437
        %2549 = vmatprep.mubr.bf16.mxu0 %v2284
        %2550 = vmatmul.mubr.bf16.gmra.mxu0 %v2283
        %v2551 = vpop.f32.mrf.mxu0
        %v2552 = vadd.f32 %v2512, %v2551
        %v2553 = vpop.f32.mrf.mxu0
        %v2554 = vpop.f32.mrf.mxu0
        %v2555 = vpop.f32.mrf.mxu0
        %2556 = vdwg.mxu0
        %v2557 = vadd.f32 %v1854, %v2552
        %v2558 = vld [vmem:[%s13] sm:$0x1]
        %v2560 = vlaneseq
        %v2561 = vshrl.u32 %v2560, 7
        %v2562 = vsub.s32 0, %v2561
        %v2563 = vrot.slane %v2558, %v2562
        %v2565 = vadd.f32 %v2557, %v2563
        %v2566 = vld [vmem:[%s14] sm:$0x1]
        %v2567 = vld [vmem:[%s15] sm:$0x1]
        %v2568 = vsel %vm574, %v2565, 0.0
        %2569 = vadd.xlane.f32.xlu0 %v2568
        %v2570 = vpop.xlane.xlu0 %2569
        %v2571 = vmul.f32 %v2570, %v578
        %v2572 = vsub.f32 %v2565, %v2571
        %v2573 = vmul.f32 %v2572, %v2572
        %v2574 = vsel %vm574, %v2573, 0.0
        %2575 = vadd.xlane.f32.xlu0 %v2574
        %v2576 = vpop.xlane.xlu0 %2575
        %v2577 = vmul.f32 %v2576, %v578
        %v2578 = vadd.f32 %v2577, 1e-05
        %v2579 = vrsqrt.pop %v2578
        %v2580 = vmul.f32 %v2572, %v2579
        %v2582 = vlaneseq
        %v2583 = vshrl.u32 %v2582, 7
        %v2584 = vsub.s32 0, %v2583
        %v2585 = vrot.slane %v2566, %v2584
        %v2587 = vmul.f32 %v2580, %v2585
        %v2589 = vlaneseq
        %v2590 = vshrl.u32 %v2589, 7
        %v2591 = vsub.s32 0, %v2590
        %v2592 = vrot.slane %v2567, %v2591
        %v2594 = vadd.f32 %v2587, %v2592
        %v2595 = vsel %vm574, %v2594, 0.0
        %v2596 = vrot.slane %v2595, 4
        %v2597 = vadd.f32 %v2595, %v2596
        %v2598 = vrot.slane %v2597, 2
        %v2599 = vadd.f32 %v2597, %v2598
        %v2600 = vrot.slane %v2599, 1
        %v2601 = vadd.f32 %v2599, %v2600
        %v2602 = vrcp.pop 4.0
        %v2603 = vmul.f32 %v2601, %v2602
        %v2604 = vld [vmem:[%s16] sm:$0xf]
        %v2605 = vld [vmem:[%s16 + $0x4] sm:$0xf]
        %v2606 = vld [vmem:[%s16 + $0x8] sm:$0xf]
        %v2607 = vld [vmem:[%s16 + $0xc] sm:$0xf]
        %v2608 = vld [vmem:[%s16 + $0x10] sm:$0xf]
        %v2609 = vld [vmem:[%s16 + $0x14] sm:$0xf]
        %v2610 = vld [vmem:[%s16 + $0x18] sm:$0xf]
        %v2611 = vld [vmem:[%s16 + $0x1c] sm:$0xf]
        %v2612 = vld [vmem:[%s16 + $0x20] sm:$0xf]
        %v2613 = vld [vmem:[%s16 + $0x24] sm:$0xf]
        %v2614 = vld [vmem:[%s16 + $0x28] sm:$0xf]
        %v2615 = vld [vmem:[%s16 + $0x2c] sm:$0xf]
        %v2616 = vld [vmem:[%s16 + $0x30] sm:$0xf]
        %v2617 = vld [vmem:[%s16 + $0x34] sm:$0xf]
        %v2618 = vld [vmem:[%s16 + $0x38] sm:$0xf]
        %v2619 = vld [vmem:[%s16 + $0x3c] sm:$0xf]
        %v2620 = vpack.c.bf16 %v2603, %v2603
        %v2621 = vld [vmem:[%s17] sm:$0x1]
        %v2638 = vunpack.c.l.b16 %v2604
        %v2639 = vunpack.c.l.b16 %v2605
        %v2640 = vunpack.c.l.b16 %v2606
        %v2641 = vunpack.c.l.b16 %v2607
        %v2642 = vunpack.c.l.b16 %v2608
        %v2643 = vunpack.c.l.b16 %v2609
        %v2644 = vunpack.c.l.b16 %v2610
        %v2645 = vunpack.c.l.b16 %v2611
        %v2646 = vunpack.c.l.b16 %v2612
        %v2647 = vunpack.c.l.b16 %v2613
        %v2648 = vunpack.c.l.b16 %v2614
        %v2649 = vunpack.c.l.b16 %v2615
        %v2650 = vunpack.c.l.b16 %v2616
        %v2651 = vunpack.c.l.b16 %v2617
        %v2652 = vunpack.c.l.b16 %v2618
        %v2653 = vunpack.c.l.b16 %v2619
        %v2654 = vpack.c.b16 %v2639, %v2638
        %v2655 = vpack.c.b16 %v2641, %v2640
        %v2656 = vpack.c.b16 %v2643, %v2642
        %v2657 = vpack.c.b16 %v2645, %v2644
        %v2658 = vpack.c.b16 %v2647, %v2646
        %v2659 = vpack.c.b16 %v2649, %v2648
        %v2660 = vpack.c.b16 %v2651, %v2650
        %v2661 = vpack.c.b16 %v2653, %v2652
        %2670 = vmatprep.subr.bf16.mxu0 0
        %2671 = vmatpush1.bf16.msra.mxu0 %v2661
        %2672 = vmatprep.subr.bf16.mxu0 0
        %2673 = vmatpush1.bf16.msra.mxu0 %v2660
        %2674 = vmatprep.subr.bf16.mxu0 0
        %2675 = vmatpush1.bf16.msra.mxu0 %v2659
        %2676 = vmatprep.subr.bf16.mxu0 0
        %2677 = vmatpush1.bf16.msra.mxu0 %v2658
        %2678 = vmatprep.subr.bf16.mxu0 0
        %2679 = vmatpush1.bf16.msra.mxu0 %v2657
        %2680 = vmatprep.subr.bf16.mxu0 0
        %2681 = vmatpush1.bf16.msra.mxu0 %v2656
        %2682 = vmatprep.subr.bf16.mxu0 0
        %2683 = vmatpush1.bf16.msra.mxu0 %v2655
        %2684 = vmatprep.subr.bf16.mxu0 0
        %2685 = vmatpush1.bf16.msra.mxu0 %v2654
        %2686 = vmatprep.subr.bf16.mxu0 0
        %2687 = vmatpush2.bf16.msra.mxu0 0
        %2688 = vmatprep.subr.bf16.mxu0 0
        %2689 = vmatpush2.bf16.msra.mxu0 0
        %2690 = vmatprep.subr.bf16.mxu0 0
        %2691 = vmatpush2.bf16.msra.mxu0 0
        %2692 = vmatprep.subr.bf16.mxu0 0
        %2693 = vmatpush2.bf16.msra.mxu0 0
        %2694 = vmatprep.subr.bf16.mxu0 0
        %2695 = vmatpush2.bf16.msra.mxu0 0
        %2696 = vmatprep.subr.bf16.mxu0 0
        %2697 = vmatpush2.bf16.msra.mxu0 0
        %2698 = vmatprep.subr.bf16.mxu0 0
        %2699 = vmatpush2.bf16.msra.mxu0 0
        %2700 = vmatprep.subr.bf16.mxu0 0
        %2701 = vmatpush2.bf16.msra.mxu0 0
        %2702 = vmatprep.mubr.bf16.mxu0 0
        %2703 = vmatmul.mubr.bf16.gmra.mxu0 %v2620
        %v2704 = vpop.f32.mrf.mxu0
        %v2705 = vadd.f32 %v2621, %v2704
        %v2706 = vpop.f32.mrf.mxu0
        %v2707 = vpop.f32.mrf.mxu0
        %v2708 = vpop.f32.mrf.mxu0
        %2709 = vdwg.mxu0
        %vm2710 = vcmask 73728
        %2711 = vst.msk [vmem:[%s565] sm:$0x1] %vm2710, %v2705
        %s2712 = sand.u32 %s423, 1
        %s2713 = scalar_lea.sflag [#allocation3], %s2712
        %s2714 = sand.u32 %s423, 1
        %s2715 = scalar_lea.vmem [#allocation2], %s2714
        // Predicated region
        $region93: #{_lambda_.19} parent=91 // pred_check
          %p2716 = pneg %p433
        $region94: #{_lambda_.19} parent=91 // pred_check_branch
          %2718 = sbr.rel (%p2716) target = $region96
        $region95: #{_lambda_.19} parent=91 // pred_region
          %s2720 = ssub.s32 16, 16
          %2721 = vsyncadd %s2713, %s2720
          %s2722 = smul.addr %s32, 16
          %s2723 = scalar_lea.hbm %s18, %s2722
          %s2725 = sshll.u32 %s2715, 4
          %s2726 = int_to_ptr.vmem [resolvable:$true] %s2725
          %2728 = dma.vmem_to_hbm [thread:$0]  %s2726, 16, %s2723, %s2713
        $region96: #{_lambda_.19} parent=91 // pred_fallthru
          _
      $region92: #{_lambda_.19} parent=5 // pred_fallthru
        _
      %p2729 = scmp.le.s32.totalorder 2, %s27
      // Predicated region
      $region97: #{_lambda_.19} parent=5 // pred_check
        %p2730 = pneg %p2729
      $region98: #{_lambda_.19} parent=5 // pred_check_branch
        %2732 = sbr.rel (%p2730) target = $region100
      $region99: #{_lambda_.19} parent=5 // pred_region
        %s2733 = ssub.s32 %s27, 2
        // Predicated region
        $region101: #{_lambda_.19} parent=99 // pred_check
          %p2734 = pneg %p439
        $region102: #{_lambda_.19} parent=99 // pred_check_branch
          %2736 = sbr.rel (%p2734) target = $region104
        $region103: #{_lambda_.19} parent=99 // pred_region
          %s2737 = sand.u32 %s424, 1
          %s2738 = scalar_lea.sflag [#allocation3], %s2737
          %s2739 = sand.u32 %s424, 1
          %s2740 = scalar_lea.vmem [#allocation2], %s2739
          %2741 = dma.done %s2738, 16
        $region104: #{_lambda_.19} parent=99 // pred_fallthru
          _
      $region100: #{_lambda_.19} parent=5 // pred_fallthru
        _
    $region6: #{_lambda_.19} parent=1 // loop_footer
      %s31 = sadd.s32 1, %s27
    $region7: #{_lambda_.19} parent=1 // loop_footer_branch
      %26 = sbr.rel target = $region3
    $region8: #{_lambda_.19} parent=1 // loop_exit
      _
    %2742 = vsyncpa [#allocation3], 1
    %s2743 = scalar_lea.sflag [#allocation3], 1
    %2744 = vsyncpa %s2743, 1

</llo_original>
